<compile_context>
chip_gen: v7x
topology: tpu7x:2x2x1
jax: 0.10.0
libtpu: 0.0.40
codegen_flags: <defaults>
</compile_context>

<pallas_src>
import functools

import jax
import jax.numpy as jnp
from jax.experimental import pallas as pl
from jax.experimental.pallas import tpu as pltpu

_BN_EPS = 1e-5
_LANE = 128


def _round_up(x, m):
    return (x + m - 1) // m * m


def _tap_order(kernel_size):
    """K*K taps with the center tap first (its channels double as the residual)."""
    c = kernel_size // 2
    order = [(c, c)]
    order += [(dy, dx) for dy in range(kernel_size) for dx in range(kernel_size)
              if (dy, dx) != (c, c)]
    return order


def _vmem_budget():
    """(vmem_limit_bytes, planning budget) derived from the actual chip generation."""
    cap = 64 * 1024 * 1024                      # conservative fallback (v7x-safe)
    try:
        cap = int(pltpu.get_tpu_info().vmem_capacity_bytes)
    except Exception:
        pass
    limit = max(32 * 1024 * 1024, min(int(cap * 0.70), 96 * 1024 * 1024))
    return limit, int(limit * 0.70)


def _choose_row_strip(H, W, Wp, cin, ccp, cm, co, pad, budget_bytes):
    """Output rows per grid step, sized against the generation's VMEM budget."""
    weights = 2 * (ccp * cm + cm * co) + 4 * 2 * (cm + co)

    def estimate(th):
        h2 = th * pl.cdiv(H, th)
        return (weights
                + 2 * (h2 + 2 * pad) * Wp * cin * 2   # double-buffered bf16 image block
                + 2 * th * W * co * 2                 # double-buffered bf16 output tile
                + th * W * ccp * 2                    # im2col VMEM scratch
                + th * W * 6 * (cm + co))             # f32 acc/y + bf16 temporaries

    candidates = [H] + [t for t in (1024, 512, 256, 128, 64, 32, 16, 8) if t < H]
    th = candidates[-1]
    for t in candidates:
        if estimate(t) <= budget_bytes:
            th = t
            break
    n_strips = pl.cdiv(H, th)
    return th, n_strips, th * n_strips


def _fused_mbconv_kernel(xp_ref, w1_ref, s1_ref, b1_ref, w2_ref, s2_ref, b2_ref,
                         o_ref, pat_ref, *, K, W, cin, TH, has_residual):
    """One (batch, row-strip) step.

    xp_ref : (H2+2p, Wp, Cin) bf16  padded NHWC image of this batch element
    w1_ref : (Ccp, Cm)        bf16  KxK conv weights, taps stacked (center first)
    s1/b1  : (1, Cm)          f32   folded BN1 scale / shift
    w2_ref : (Cm, Co)         bf16  1x1 projection weights
    s2/b2  : (1, Co)          f32   folded conv2-bias + BN2 (+ re_zero) scale / shift
    o_ref  : (TH*W, Co)       bf16  output rows of this strip
    pat_ref: (TH*W, Ccp)      bf16  VMEM im2col scratch
    """
    rows = TH * W
    ncols = K * K * cin
    ccp = pat_ref.shape[-1]
    co = o_ref.shape[-1]

    # Pad lanes of the im2col scratch are never written by the tap stores below; zero
    # them so the (zero-weight) MXU rows / residual read never see stale VMEM junk.
    if ccp > ncols:
        pat_ref[:, ncols:] = jnp.zeros((rows, ccp - ncols), pat_ref.dtype)

    # In-kernel im2col: the padded image block was DMA'd HBM->VMEM once; build the
    # (rows, K*K*Cin) patch slab with cheap VMEM-local slices (center tap first).
    h0 = pl.program_id(1) * TH
    for t, (dy, dx) in enumerate(_tap_order(K)):
        a = xp_ref[pl.ds(h0 + dy, TH), dx:dx + W, :]            # (TH, W, Cin) bf16
        pat_ref[:, t * cin:(t + 1) * cin] = a.reshape(rows, cin)

    pat = pat_ref[...]                                          # (rows, Ccp) bf16
    # KxK conv == ONE deep MXU contraction over K*K*Cin (zero-padded to Ccp).
    acc = jnp.dot(pat, w1_ref[...], preferred_element_type=jnp.float32)
    h = jnp.maximum(acc * s1_ref[...] + b1_ref[...], 0.0)       # folded BN1 + ReLU (f32)
    y = jnp.dot(h.astype(w2_ref.dtype), w2_ref[...],
                preferred_element_type=jnp.float32)
    y = y * s2_ref[...] + b2_ref[...]                           # conv2 bias + BN2 (+ re_zero)
    if has_residual:
        # Center tap occupies lanes [0, Cin); lanes [Cout, Co) of this sum land in
        # output pad lanes that the wrapper crops, so no mask is required.
        y = y + pat[:, :co].astype(jnp.float32)
    o_ref[...] = y.astype(o_ref.dtype)


def fold_params(raw, kernel_size, stride=1):
    """Fold BN (inference), conv2 bias and re_zero; pad to lane-dense MXU layouts."""
    K = kernel_size
    cmid, cin = raw["conv1_w"].shape[0], raw["conv1_w"].shape[1]
    cout = raw["conv2_w"].shape[0]
    has_residual = (stride == 1 and cin == cout)

    ncols = K * K * cin
    ccp = _round_up(ncols, _LANE)
    # Fill the 2x256-deep MXUs on v6e/v7x when Cmid is large; 128 otherwise.
    cm = _round_up(cmid, 256 if cmid >= 256 else _LANE)
    co = _round_up(cout, _LANE)

    # conv1: (Cmid, Cin, K, K) -> taps (center first) stacked along the contraction.
    w1_hwio = jnp.transpose(raw["conv1_w"], (2, 3, 1, 0))          # (K, K, Cin, Cmid)
    w1 = jnp.concatenate([w1_hwio[dy, dx] for dy, dx in _tap_order(K)], axis=0)
    w1p = jnp.zeros((ccp, cm), jnp.float32).at[:ncols, :cmid].set(w1)

    s1 = raw["bn1_gamma"] / jnp.sqrt(raw["bn1_var"] + _BN_EPS)
    b1 = raw["bn1_beta"] - raw["bn1_mean"] * s1
    # Padded s1/b1 entries stay 0 so padded Cmid lanes remain exactly 0 after ReLU.
    s1p = jnp.zeros((1, cm), jnp.float32).at[0, :cmid].set(s1)
    b1p = jnp.zeros((1, cm), jnp.float32).at[0, :cmid].set(b1)

    # conv2 1x1 (+bias) + BN2 folded; re_zero folded in when the residual is active:
    #   x + rz*(h@w2*s2 + b2) == x + h@w2*(rz*s2) + rz*b2
    w2 = jnp.transpose(raw["conv2_w"][:, :, 0, 0], (1, 0))         # (Cmid, Cout)
    s2 = raw["bn2_gamma"] / jnp.sqrt(raw["bn2_var"] + _BN_EPS)
    b2 = (raw["conv2_b"] - raw["bn2_mean"]) * s2 + raw["bn2_beta"]
    if has_residual:
        s2 = s2 * raw["re_zero"]
        b2 = b2 * raw["re_zero"]
    w2p = jnp.zeros((cm, co), jnp.float32).at[:cmid, :cout].set(w2)
    s2p = jnp.zeros((1, co), jnp.float32).at[0, :cout].set(s2)
    b2p = jnp.zeros((1, co), jnp.float32).at[0, :cout].set(b2)

    return {
        "w1": w1p.astype(jnp.bfloat16), "s1": s1p, "b1": b1p,
        "w2": w2p.astype(jnp.bfloat16), "s2": s2p, "b2": b2p,
        "cin": cin, "cmid": cmid, "cout": cout,
        "ncols": ncols, "ccp": ccp, "cm": cm, "co": co,
        "kernel_size": K, "stride": stride, "has_residual": has_residual,
    }


def fused_mbconv_forward(x_nchw, params):
    """PyTorch-layout NCHW in / NCHW out."""
    K, stride = params["kernel_size"], params["stride"]
    assert stride == 1, "TODO(synk): stride>1 downsample path not implemented"
    p = K // 2

    x = jnp.transpose(x_nchw, (0, 2, 3, 1)).astype(jnp.bfloat16)   # NHWC bf16
    B, H, W, cin = x.shape
    assert cin == params["cin"]
    cout = params["cout"]
    ccp, cm, co = params["ccp"], params["cm"], params["co"]

    vmem_limit, budget = _vmem_budget()
    Wp = W + 2 * p
    TH, n_strips, H2 = _choose_row_strip(H, W, Wp, cin, ccp, cm, co, p, budget)

    # Pad spatially once (plus extra zero rows so TH * n_strips covers H exactly).
    xp = jnp.pad(x, ((0, 0), (p, p + (H2 - H)), (p, p), (0, 0)))   # (B, H2+2p, Wp, Cin)

    kernel = functools.partial(_fused_mbconv_kernel, K=K, W=W, cin=cin, TH=TH,
                               has_residual=params["has_residual"])

    flops = 2 * B * H2 * W * (ccp * cm + cm * co)
    bytes_accessed = (B * (H2 + 2 * p) * Wp * cin * 2 + B * H2 * W * co * 2
                      + (ccp * cm + cm * co) * 2 + 2 * (cm + co) * 4)

    def build(single_buffer_weights):
        def wspec(shape):
            if single_buffer_weights:
                return pl.BlockSpec(shape, lambda b, s: (0, 0),
                                    pipeline_mode=pl.Buffered(1))
            return pl.BlockSpec(shape, lambda b, s: (0, 0))

        grid_spec = pltpu.PrefetchScalarGridSpec(
            num_scalar_prefetch=0,
            grid=(B, n_strips),
            in_specs=[
                # Padded image: index depends only on b, so it is DMA'd once per
                # batch element and reused by every row strip.
                pl.BlockSpec((None, H2 + 2 * p, Wp, cin), lambda b, s: (b, 0, 0, 0)),
                wspec((ccp, cm)),   # conv1 weights (resident)
                wspec((1, cm)),     # BN1 scale
                wspec((1, cm)),     # BN1 shift
                wspec((cm, co)),    # conv2 weights (resident)
                wspec((1, co)),     # folded scale (incl. re_zero)
                wspec((1, co)),     # folded shift (incl. re_zero)
            ],
            out_specs=pl.BlockSpec((None, TH * W, co), lambda b, s: (b, s, 0)),
            scratch_shapes=[pltpu.VMEM((TH * W, ccp), jnp.bfloat16)],
        )
        return pl.pallas_call(
            kernel,
            out_shape=jax.ShapeDtypeStruct((B, H2 * W, co), jnp.bfloat16),
            grid_spec=grid_spec,
            compiler_params=pltpu.CompilerParams(
                dimension_semantics=("parallel", "parallel"),
                vmem_limit_bytes=vmem_limit,
            ),
            cost_estimate=pl.CostEstimate(flops=flops, transcendentals=0,
                                          bytes_accessed=bytes_accessed),
        )

    args = (xp, params["w1"], params["s1"], params["b1"],
            params["w2"], params["s2"], params["b2"])
    try:
        out = build(hasattr(pl, "Buffered"))(*args)
    except Exception:
        out = build(False)(*args)          # fall back to default double-buffering

    out = out[:, :H * W, :cout].reshape(B, H, W, cout).astype(jnp.float32)
    return jnp.transpose(out, (0, 3, 1, 2))                        # back to NCHW


def init_raw_params(key, in_channels, out_channels, kernel_size, expansion):
    """Deterministic synthetic parameters in PyTorch shapes."""
    Cmid = in_channels * expansion
    K = kernel_size
    ks = jax.random.split(key, 12)
    return {
        "conv1_w": 0.1 * jax.random.normal(ks[0], (Cmid, in_channels, K, K), jnp.float32),
        "bn1_gamma": jax.random.uniform(ks[1], (Cmid,), jnp.float32, 0.5, 1.5),
        "bn1_beta": 0.1 * jax.random.normal(ks[2], (Cmid,), jnp.float32),
        "bn1_mean": 0.1 * jax.random.normal(ks[3], (Cmid,), jnp.float32),
        "bn1_var": jax.random.uniform(ks[4], (Cmid,), jnp.float32, 0.5, 1.5),
        "conv2_w": 0.1 * jax.random.normal(ks[5], (out_channels, Cmid, 1, 1), jnp.float32),
        "conv2_b": 0.1 * jax.random.normal(ks[6], (out_channels,), jnp.float32),
        "bn2_gamma": jax.random.uniform(ks[7], (out_channels,), jnp.float32, 0.5, 1.5),
        "bn2_beta": 0.1 * jax.random.normal(ks[8], (out_channels,), jnp.float32),
        "bn2_mean": 0.1 * jax.random.normal(ks[9], (out_channels,), jnp.float32),
        "bn2_var": jax.random.uniform(ks[10], (out_channels,), jnp.float32, 0.5, 1.5),
        # PyTorch inits re_zero to 0; use a nonzero value so the body path is exercised.
        "re_zero": jnp.float32(0.25),
    }


def reference_forward(x_nchw, raw, *, kernel_size, stride=1):
    """Pure-JAX f32 reference (inference-mode BN, DropPath identity)."""
    x = jnp.transpose(x_nchw, (0, 2, 3, 1)).astype(jnp.float32)
    dn = ("NHWC", "HWIO", "NHWC")

    w1 = jnp.transpose(raw["conv1_w"], (2, 3, 1, 0))
    y = jax.lax.conv_general_dilated(x, w1, (stride, stride), "SAME",
                                     dimension_numbers=dn)
    y = (y - raw["bn1_mean"]) / jnp.sqrt(raw["bn1_var"] + _BN_EPS)
    y = y * raw["bn1_gamma"] + raw["bn1_beta"]
    y = jnp.maximum(y, 0.0)

    w2 = jnp.transpose(raw["conv2_w"], (2, 3, 1, 0))
    z = jax.lax.conv_general_dilated(y, w2, (1, 1), "VALID",
                                     dimension_numbers=dn) + raw["conv2_b"]
    z = (z - raw["bn2_mean"]) / jnp.sqrt(raw["bn2_var"] + _BN_EPS)
    z = z * raw["bn2_gamma"] + raw["bn2_beta"]

    Cin, Cout = x.shape[-1], z.shape[-1]
    if stride == 1 and Cin == Cout:
        z = x + raw["re_zero"] * z
    return jnp.transpose(z, (0, 3, 1, 2))


if __name__ == "__main__":
    # Small shapes consistent with the module: B=2, C=4, H=W=16, K=3, stride=1,
    # expansion=4 (residual branch active).
    B, C, H, W = 2, 4, 16, 16
    K, STRIDE, EXPANSION = 3, 1, 4

    key = jax.random.PRNGKey(0)
    k_x, k_p = jax.random.split(key)
    x = jax.random.normal(k_x, (B, C, H, W), jnp.float32)

    raw = init_raw_params(k_p, C, C, K, EXPANSION)
    params = fold_params(raw, K, stride=STRIDE)

    out = jax.block_until_ready(fused_mbconv_forward(x, params))
    ref = jax.block_until_ready(reference_forward(x, raw, kernel_size=K,
                                                  stride=STRIDE))

    assert out.shape == (B, C, H, W)
    # Tolerance sized for bf16 MXU operands, the bf16 skip path, and bf16 output
    # vs a pure-f32 reference (accumulation is f32 everywhere).
    assert jnp.allclose(out, ref, rtol=2e-2, atol=2e-2), (
        float(jnp.max(jnp.abs(out - ref))))
    print("KERNEL_OK")
</pallas_src>

<mosaic_0001>
module attributes {stable_mosaic.version = 11 : i64} {
  func.func @_fused_mbconv_kernel(%arg0: i32, %arg1: i32, %arg2: memref<1x18x18x4xbf16, #tpu.memory_space<vmem>>, %arg3: memref<128x128xbf16, #tpu.memory_space<vmem>>, %arg4: memref<1x128xf32, #tpu.memory_space<vmem>>, %arg5: memref<1x128xf32, #tpu.memory_space<vmem>>, %arg6: memref<128x128xbf16, #tpu.memory_space<vmem>>, %arg7: memref<1x128xf32, #tpu.memory_space<vmem>>, %arg8: memref<1x128xf32, #tpu.memory_space<vmem>>, %arg9: memref<1x256x128xbf16, #tpu.memory_space<vmem>>, %arg10: memref<256x128xbf16, #tpu.memory_space<vmem>>) attributes {dimension_semantics = [#tpu.dimension_semantics<parallel>, #tpu.dimension_semantics<parallel>], iteration_bounds = array<i64: 2, 1>, scalar_prefetch = 0 : i64, scratch_operands = 1 : i64, tpu.core_type = #tpu.core_type<tc>, window_params = [{transform_indices = @transform_0, window_bounds = array<i64: 1, 18, 18, 4>}, {pipeline_mode = #tpu.pipeline_mode<synchronous>, transform_indices = @transform_1, window_bounds = array<i64: 128, 128>}, {pipeline_mode = #tpu.pipeline_mode<synchronous>, transform_indices = @transform_2, window_bounds = array<i64: 1, 128>}, {pipeline_mode = #tpu.pipeline_mode<synchronous>, transform_indices = @transform_3, window_bounds = array<i64: 1, 128>}, {pipeline_mode = #tpu.pipeline_mode<synchronous>, transform_indices = @transform_4, window_bounds = array<i64: 128, 128>}, {pipeline_mode = #tpu.pipeline_mode<synchronous>, transform_indices = @transform_5, window_bounds = array<i64: 1, 128>}, {pipeline_mode = #tpu.pipeline_mode<synchronous>, transform_indices = @transform_6, window_bounds = array<i64: 1, 128>}, {transform_indices = @transform_7, window_bounds = array<i64: 1, 256, 128>}]} {
    %cst = arith.constant 0.000000e+00 : bf16
    %0 = vector.broadcast %cst : bf16 to vector<256x92xbf16>
    %c0 = arith.constant 0 : index
    %c36 = arith.constant 36 : index
    %1 = vector.load %arg10[%c0, %c36] : memref<256x128xbf16, #tpu.memory_space<vmem>>, vector<256x92xbf16>
    tpu.vector_store %arg10[%c0, %c36], %0 {strides = array<i32>} : memref<256x128xbf16, #tpu.memory_space<vmem>>, vector<256x92xbf16>,
    %c16_i32 = arith.constant 16 : i32
    %2 = arith.muli %arg1, %c16_i32 : i32
    %c1_i32 = arith.constant 1 : i32
    %3 = arith.addi %2, %c1_i32 : i32
    %c0_0 = arith.constant 0 : index
    %4 = arith.index_cast %3 : i32 to index
    %c1 = arith.constant 1 : index
    %c0_1 = arith.constant 0 : index
    %5 = vector.load %arg2[%c0_0, %4, %c1, %c0_1] : memref<1x18x18x4xbf16, #tpu.memory_space<vmem>>, vector<1x16x16x4xbf16>
    %6 = vector.shape_cast %5 : vector<1x16x16x4xbf16> to vector<16x16x4xbf16>
    %7 = vector.shape_cast %6 : vector<16x16x4xbf16> to vector<256x4xbf16>
    %c0_2 = arith.constant 0 : index
    %c0_3 = arith.constant 0 : index
    %8 = vector.load %arg10[%c0_2, %c0_3] : memref<256x128xbf16, #tpu.memory_space<vmem>>, vector<256x4xbf16>
    tpu.vector_store %arg10[%c0_2, %c0_3], %7 {strides = array<i32>} : memref<256x128xbf16, #tpu.memory_space<vmem>>, vector<256x4xbf16>,
    %c0_i32 = arith.constant 0 : i32
    %9 = arith.addi %2, %c0_i32 : i32
    %c0_4 = arith.constant 0 : index
    %10 = arith.index_cast %9 : i32 to index
    %c0_5 = arith.constant 0 : index
    %c0_6 = arith.constant 0 : index
    %11 = vector.load %arg2[%c0_4, %10, %c0_5, %c0_6] : memref<1x18x18x4xbf16, #tpu.memory_space<vmem>>, vector<1x16x16x4xbf16>
    %12 = vector.shape_cast %11 : vector<1x16x16x4xbf16> to vector<16x16x4xbf16>
    %13 = vector.shape_cast %12 : vector<16x16x4xbf16> to vector<256x4xbf16>
    %c0_7 = arith.constant 0 : index
    %c4 = arith.constant 4 : index
    %14 = vector.load %arg10[%c0_7, %c4] : memref<256x128xbf16, #tpu.memory_space<vmem>>, vector<256x4xbf16>
    tpu.vector_store %arg10[%c0_7, %c4], %13 {strides = array<i32>} : memref<256x128xbf16, #tpu.memory_space<vmem>>, vector<256x4xbf16>,
    %c0_i32_8 = arith.constant 0 : i32
    %15 = arith.addi %2, %c0_i32_8 : i32
    %c0_9 = arith.constant 0 : index
    %16 = arith.index_cast %15 : i32 to index
    %c1_10 = arith.constant 1 : index
    %c0_11 = arith.constant 0 : index
    %17 = vector.load %arg2[%c0_9, %16, %c1_10, %c0_11] : memref<1x18x18x4xbf16, #tpu.memory_space<vmem>>, vector<1x16x16x4xbf16>
    %18 = vector.shape_cast %17 : vector<1x16x16x4xbf16> to vector<16x16x4xbf16>
    %19 = vector.shape_cast %18 : vector<16x16x4xbf16> to vector<256x4xbf16>
    %c0_12 = arith.constant 0 : index
    %c8 = arith.constant 8 : index
    %20 = vector.load %arg10[%c0_12, %c8] : memref<256x128xbf16, #tpu.memory_space<vmem>>, vector<256x4xbf16>
    tpu.vector_store %arg10[%c0_12, %c8], %19 {strides = array<i32>} : memref<256x128xbf16, #tpu.memory_space<vmem>>, vector<256x4xbf16>,
    %c0_i32_13 = arith.constant 0 : i32
    %21 = arith.addi %2, %c0_i32_13 : i32
    %c0_14 = arith.constant 0 : index
    %22 = arith.index_cast %21 : i32 to index
    %c2 = arith.constant 2 : index
    %c0_15 = arith.constant 0 : index
    %23 = vector.load %arg2[%c0_14, %22, %c2, %c0_15] : memref<1x18x18x4xbf16, #tpu.memory_space<vmem>>, vector<1x16x16x4xbf16>
    %24 = vector.shape_cast %23 : vector<1x16x16x4xbf16> to vector<16x16x4xbf16>
    %25 = vector.shape_cast %24 : vector<16x16x4xbf16> to vector<256x4xbf16>
    %c0_16 = arith.constant 0 : index
    %c12 = arith.constant 12 : index
    %26 = vector.load %arg10[%c0_16, %c12] : memref<256x128xbf16, #tpu.memory_space<vmem>>, vector<256x4xbf16>
    tpu.vector_store %arg10[%c0_16, %c12], %25 {strides = array<i32>} : memref<256x128xbf16, #tpu.memory_space<vmem>>, vector<256x4xbf16>,
    %c1_i32_17 = arith.constant 1 : i32
    %27 = arith.addi %2, %c1_i32_17 : i32
    %c0_18 = arith.constant 0 : index
    %28 = arith.index_cast %27 : i32 to index
    %c0_19 = arith.constant 0 : index
    %c0_20 = arith.constant 0 : index
    %29 = vector.load %arg2[%c0_18, %28, %c0_19, %c0_20] : memref<1x18x18x4xbf16, #tpu.memory_space<vmem>>, vector<1x16x16x4xbf16>
    %30 = vector.shape_cast %29 : vector<1x16x16x4xbf16> to vector<16x16x4xbf16>
    %31 = vector.shape_cast %30 : vector<16x16x4xbf16> to vector<256x4xbf16>
    %c0_21 = arith.constant 0 : index
    %c16 = arith.constant 16 : index
    %32 = vector.load %arg10[%c0_21, %c16] : memref<256x128xbf16, #tpu.memory_space<vmem>>, vector<256x4xbf16>
    tpu.vector_store %arg10[%c0_21, %c16], %31 {strides = array<i32>} : memref<256x128xbf16, #tpu.memory_space<vmem>>, vector<256x4xbf16>,
    %c1_i32_22 = arith.constant 1 : i32
    %33 = arith.addi %2, %c1_i32_22 : i32
    %c0_23 = arith.constant 0 : index
    %34 = arith.index_cast %33 : i32 to index
    %c2_24 = arith.constant 2 : index
    %c0_25 = arith.constant 0 : index
    %35 = vector.load %arg2[%c0_23, %34, %c2_24, %c0_25] : memref<1x18x18x4xbf16, #tpu.memory_space<vmem>>, vector<1x16x16x4xbf16>
    %36 = vector.shape_cast %35 : vector<1x16x16x4xbf16> to vector<16x16x4xbf16>
    %37 = vector.shape_cast %36 : vector<16x16x4xbf16> to vector<256x4xbf16>
    %c0_26 = arith.constant 0 : index
    %c20 = arith.constant 20 : index
    %38 = vector.load %arg10[%c0_26, %c20] : memref<256x128xbf16, #tpu.memory_space<vmem>>, vector<256x4xbf16>
    tpu.vector_store %arg10[%c0_26, %c20], %37 {strides = array<i32>} : memref<256x128xbf16, #tpu.memory_space<vmem>>, vector<256x4xbf16>,
    %c2_i32 = arith.constant 2 : i32
    %39 = arith.addi %2, %c2_i32 : i32
    %c0_27 = arith.constant 0 : index
    %40 = arith.index_cast %39 : i32 to index
    %c0_28 = arith.constant 0 : index
    %c0_29 = arith.constant 0 : index
    %41 = vector.load %arg2[%c0_27, %40, %c0_28, %c0_29] : memref<1x18x18x4xbf16, #tpu.memory_space<vmem>>, vector<1x16x16x4xbf16>
    %42 = vector.shape_cast %41 : vector<1x16x16x4xbf16> to vector<16x16x4xbf16>
    %43 = vector.shape_cast %42 : vector<16x16x4xbf16> to vector<256x4xbf16>
    %c0_30 = arith.constant 0 : index
    %c24 = arith.constant 24 : index
    %44 = vector.load %arg10[%c0_30, %c24] : memref<256x128xbf16, #tpu.memory_space<vmem>>, vector<256x4xbf16>
    tpu.vector_store %arg10[%c0_30, %c24], %43 {strides = array<i32>} : memref<256x128xbf16, #tpu.memory_space<vmem>>, vector<256x4xbf16>,
    %c2_i32_31 = arith.constant 2 : i32
    %45 = arith.addi %2, %c2_i32_31 : i32
    %c0_32 = arith.constant 0 : index
    %46 = arith.index_cast %45 : i32 to index
    %c1_33 = arith.constant 1 : index
    %c0_34 = arith.constant 0 : index
    %47 = vector.load %arg2[%c0_32, %46, %c1_33, %c0_34] : memref<1x18x18x4xbf16, #tpu.memory_space<vmem>>, vector<1x16x16x4xbf16>
    %48 = vector.shape_cast %47 : vector<1x16x16x4xbf16> to vector<16x16x4xbf16>
    %49 = vector.shape_cast %48 : vector<16x16x4xbf16> to vector<256x4xbf16>
    %c0_35 = arith.constant 0 : index
    %c28 = arith.constant 28 : index
    %50 = vector.load %arg10[%c0_35, %c28] : memref<256x128xbf16, #tpu.memory_space<vmem>>, vector<256x4xbf16>
    tpu.vector_store %arg10[%c0_35, %c28], %49 {strides = array<i32>} : memref<256x128xbf16, #tpu.memory_space<vmem>>, vector<256x4xbf16>,
    %c2_i32_36 = arith.constant 2 : i32
    %51 = arith.addi %2, %c2_i32_36 : i32
    %c0_37 = arith.constant 0 : index
    %52 = arith.index_cast %51 : i32 to index
    %c2_38 = arith.constant 2 : index
    %c0_39 = arith.constant 0 : index
    %53 = vector.load %arg2[%c0_37, %52, %c2_38, %c0_39] : memref<1x18x18x4xbf16, #tpu.memory_space<vmem>>, vector<1x16x16x4xbf16>
    %54 = vector.shape_cast %53 : vector<1x16x16x4xbf16> to vector<16x16x4xbf16>
    %55 = vector.shape_cast %54 : vector<16x16x4xbf16> to vector<256x4xbf16>
    %c0_40 = arith.constant 0 : index
    %c32 = arith.constant 32 : index
    %56 = vector.load %arg10[%c0_40, %c32] : memref<256x128xbf16, #tpu.memory_space<vmem>>, vector<256x4xbf16>
    tpu.vector_store %arg10[%c0_40, %c32], %55 {strides = array<i32>} : memref<256x128xbf16, #tpu.memory_space<vmem>>, vector<256x4xbf16>,
    %c0_41 = arith.constant 0 : index
    %c0_42 = arith.constant 0 : index
    %57 = vector.load %arg10[%c0_41, %c0_42] : memref<256x128xbf16, #tpu.memory_space<vmem>>, vector<256x128xbf16>
    %c0_43 = arith.constant 0 : index
    %c0_44 = arith.constant 0 : index
    %58 = vector.load %arg3[%c0_43, %c0_44] : memref<128x128xbf16, #tpu.memory_space<vmem>>, vector<128x128xbf16>
    %cst_45 = arith.constant dense<0.000000e+00> : vector<256x128xf32>
    %59 = tpu.matmul %57, %58, %cst_45 {dimension_numbers = #tpu.dot_dimension_numbers<[1], [0], [0], [1], [0, 0, 1, 1], [], []>} : vector<256x128xbf16>, vector<128x128xbf16>, vector<256x128xf32> -> vector<256x128xf32>
    %c0_46 = arith.constant 0 : index
    %c0_47 = arith.constant 0 : index
    %60 = vector.load %arg4[%c0_46, %c0_47] : memref<1x128xf32, #tpu.memory_space<vmem>>, vector<1x128xf32>
    %61 = vector.broadcast %60 : vector<1x128xf32> to vector<256x128xf32>
    %62 = arith.mulf %59, %61 : vector<256x128xf32>
    %c0_48 = arith.constant 0 : index
    %c0_49 = arith.constant 0 : index
    %63 = vector.load %arg5[%c0_48, %c0_49] : memref<1x128xf32, #tpu.memory_space<vmem>>, vector<1x128xf32>
    %64 = vector.broadcast %63 : vector<1x128xf32> to vector<256x128xf32>
    %65 = arith.addf %62, %64 : vector<256x128xf32>
    %cst_50 = arith.constant 0.000000e+00 : f32
    %66 = vector.broadcast %cst_50 : f32 to vector<256x128xf32>
    %67 = arith.maximumf %65, %66 : vector<256x128xf32>
    %68 = arith.truncf %67 : vector<256x128xf32> to vector<256x128xbf16>
    %c0_51 = arith.constant 0 : index
    %c0_52 = arith.constant 0 : index
    %69 = vector.load %arg6[%c0_51, %c0_52] : memref<128x128xbf16, #tpu.memory_space<vmem>>, vector<128x128xbf16>
    %cst_53 = arith.constant dense<0.000000e+00> : vector<256x128xf32>
    %70 = tpu.matmul %68, %69, %cst_53 {dimension_numbers = #tpu.dot_dimension_numbers<[1], [0], [0], [1], [0, 0, 1, 1], [], []>} : vector<256x128xbf16>, vector<128x128xbf16>, vector<256x128xf32> -> vector<256x128xf32>
    %c0_54 = arith.constant 0 : index
    %c0_55 = arith.constant 0 : index
    %71 = vector.load %arg7[%c0_54, %c0_55] : memref<1x128xf32, #tpu.memory_space<vmem>>, vector<1x128xf32>
    %72 = vector.broadcast %71 : vector<1x128xf32> to vector<256x128xf32>
    %73 = arith.mulf %70, %72 : vector<256x128xf32>
    %c0_56 = arith.constant 0 : index
    %c0_57 = arith.constant 0 : index
    %74 = vector.load %arg8[%c0_56, %c0_57] : memref<1x128xf32, #tpu.memory_space<vmem>>, vector<1x128xf32>
    %75 = vector.broadcast %74 : vector<1x128xf32> to vector<256x128xf32>
    %76 = arith.addf %73, %75 : vector<256x128xf32>
    %77 = arith.extf %57 : vector<256x128xbf16> to vector<256x128xf32>
    %78 = arith.addf %76, %77 : vector<256x128xf32>
    %79 = arith.truncf %78 : vector<256x128xf32> to vector<256x128xbf16>
    %c0_58 = arith.constant 0 : index
    %c0_59 = arith.constant 0 : index
    %c0_60 = arith.constant 0 : index
    %80 = vector.load %arg9[%c0_58, %c0_59, %c0_60] : memref<1x256x128xbf16, #tpu.memory_space<vmem>>, vector<1x256x128xbf16>
    %81 = vector.shape_cast %80 : vector<1x256x128xbf16> to vector<256x128xbf16>
    %82 = vector.shape_cast %79 : vector<256x128xbf16> to vector<1x256x128xbf16>
    tpu.vector_store %arg9[%c0_58, %c0_59, %c0_60], %82 {strides = array<i32>} : memref<1x256x128xbf16, #tpu.memory_space<vmem>>, vector<1x256x128xbf16>,
    return
  }
  func.func @transform_0(%arg0: i32, %arg1: i32) -> (i32, i32, i32, i32) {
    %c0_i32 = arith.constant 0 : i32
    %c0_i32_0 = arith.constant 0 : i32
    %c0_i32_1 = arith.constant 0 : i32
    %c0_i32_2 = arith.constant 0 : i32
    return %arg0, %c0_i32, %c0_i32_0, %c0_i32_1 : i32, i32, i32, i32
  }
  func.func @transform_1(%arg0: i32, %arg1: i32) -> (i32, i32) {
    %c0_i32 = arith.constant 0 : i32
    %c0_i32_0 = arith.constant 0 : i32
    %c0_i32_1 = arith.constant 0 : i32
    return %c0_i32, %c0_i32_0 : i32, i32
  }
  func.func @transform_2(%arg0: i32, %arg1: i32) -> (i32, i32) {
    %c0_i32 = arith.constant 0 : i32
    %c0_i32_0 = arith.constant 0 : i32
    %c0_i32_1 = arith.constant 0 : i32
    return %c0_i32, %c0_i32_0 : i32, i32
  }
  func.func @transform_3(%arg0: i32, %arg1: i32) -> (i32, i32) {
    %c0_i32 = arith.constant 0 : i32
    %c0_i32_0 = arith.constant 0 : i32
    %c0_i32_1 = arith.constant 0 : i32
    return %c0_i32, %c0_i32_0 : i32, i32
  }
  func.func @transform_4(%arg0: i32, %arg1: i32) -> (i32, i32) {
    %c0_i32 = arith.constant 0 : i32
    %c0_i32_0 = arith.constant 0 : i32
    %c0_i32_1 = arith.constant 0 : i32
    return %c0_i32, %c0_i32_0 : i32, i32
  }
  func.func @transform_5(%arg0: i32, %arg1: i32) -> (i32, i32) {
    %c0_i32 = arith.constant 0 : i32
    %c0_i32_0 = arith.constant 0 : i32
    %c0_i32_1 = arith.constant 0 : i32
    return %c0_i32, %c0_i32_0 : i32, i32
  }
  func.func @transform_6(%arg0: i32, %arg1: i32) -> (i32, i32) {
    %c0_i32 = arith.constant 0 : i32
    %c0_i32_0 = arith.constant 0 : i32
    %c0_i32_1 = arith.constant 0 : i32
    return %c0_i32, %c0_i32_0 : i32, i32
  }
  func.func @transform_7(%arg0: i32, %arg1: i32) -> (i32, i32, i32) {
    %c0_i32 = arith.constant 0 : i32
    %c0_i32_0 = arith.constant 0 : i32
    return %arg0, %arg1, %c0_i32 : i32, i32, i32
  }
}

module attributes {stable_mosaic.version = 11 : i64} {
  func.func @_fused_mbconv_kernel(%arg0: i32, %arg1: i32, %arg2: memref<1x18x18x4xbf16, #tpu.memory_space<vmem>>, %arg3: memref<128x128xbf16, #tpu.memory_space<vmem>>, %arg4: memref<1x128xf32, #tpu.memory_space<vmem>>, %arg5: memref<1x128xf32, #tpu.memory_space<vmem>>, %arg6: memref<128x128xbf16, #tpu.memory_space<vmem>>, %arg7: memref<1x128xf32, #tpu.memory_space<vmem>>, %arg8: memref<1x128xf32, #tpu.memory_space<vmem>>, %arg9: memref<1x256x128xbf16, #tpu.memory_space<vmem>>, %arg10: memref<256x128xbf16, #tpu.memory_space<vmem>>) attributes {dimension_semantics = [#tpu.dimension_semantics<parallel>, #tpu.dimension_semantics<parallel>], iteration_bounds = array<i64: 2, 1>, scalar_prefetch = 0 : i64, scratch_operands = 1 : i64, tpu.core_type = #tpu.core_type<tc>, window_params = [{transform_indices = @transform_0, window_bounds = array<i64: 1, 18, 18, 4>}, {pipeline_mode = #tpu.pipeline_mode<synchronous>, transform_indices = @transform_1, window_bounds = array<i64: 128, 128>}, {pipeline_mode = #tpu.pipeline_mode<synchronous>, transform_indices = @transform_2, window_bounds = array<i64: 1, 128>}, {pipeline_mode = #tpu.pipeline_mode<synchronous>, transform_indices = @transform_3, window_bounds = array<i64: 1, 128>}, {pipeline_mode = #tpu.pipeline_mode<synchronous>, transform_indices = @transform_4, window_bounds = array<i64: 128, 128>}, {pipeline_mode = #tpu.pipeline_mode<synchronous>, transform_indices = @transform_5, window_bounds = array<i64: 1, 128>}, {pipeline_mode = #tpu.pipeline_mode<synchronous>, transform_indices = @transform_6, window_bounds = array<i64: 1, 128>}, {transform_indices = @transform_7, window_bounds = array<i64: 1, 256, 128>}]} {
    %cst = arith.constant 0.000000e+00 : bf16
    %0 = vector.broadcast %cst : bf16 to vector<256x92xbf16>
    %c0 = arith.constant 0 : index
    %c36 = arith.constant 36 : index
    %1 = vector.load %arg10[%c0, %c36] : memref<256x128xbf16, #tpu.memory_space<vmem>>, vector<256x92xbf16>
    tpu.vector_store %arg10[%c0, %c36], %0 {strides = array<i32>} : memref<256x128xbf16, #tpu.memory_space<vmem>>, vector<256x92xbf16>,
    %c16_i32 = arith.constant 16 : i32
    %2 = arith.muli %arg1, %c16_i32 : i32
    %c1_i32 = arith.constant 1 : i32
    %3 = arith.addi %2, %c1_i32 : i32
    %c0_0 = arith.constant 0 : index
    %4 = arith.index_cast %3 : i32 to index
    %c1 = arith.constant 1 : index
    %c0_1 = arith.constant 0 : index
    %5 = vector.load %arg2[%c0_0, %4, %c1, %c0_1] : memref<1x18x18x4xbf16, #tpu.memory_space<vmem>>, vector<1x16x16x4xbf16>
    %6 = vector.shape_cast %5 : vector<1x16x16x4xbf16> to vector<16x16x4xbf16>
    %7 = vector.shape_cast %6 : vector<16x16x4xbf16> to vector<256x4xbf16>
    %c0_2 = arith.constant 0 : index
    %c0_3 = arith.constant 0 : index
    %8 = vector.load %arg10[%c0_2, %c0_3] : memref<256x128xbf16, #tpu.memory_space<vmem>>, vector<256x4xbf16>
    tpu.vector_store %arg10[%c0_2, %c0_3], %7 {strides = array<i32>} : memref<256x128xbf16, #tpu.memory_space<vmem>>, vector<256x4xbf16>,
    %c0_i32 = arith.constant 0 : i32
    %9 = arith.addi %2, %c0_i32 : i32
    %c0_4 = arith.constant 0 : index
    %10 = arith.index_cast %9 : i32 to index
    %c0_5 = arith.constant 0 : index
    %c0_6 = arith.constant 0 : index
    %11 = vector.load %arg2[%c0_4, %10, %c0_5, %c0_6] : memref<1x18x18x4xbf16, #tpu.memory_space<vmem>>, vector<1x16x16x4xbf16>
    %12 = vector.shape_cast %11 : vector<1x16x16x4xbf16> to vector<16x16x4xbf16>
    %13 = vector.shape_cast %12 : vector<16x16x4xbf16> to vector<256x4xbf16>
    %c0_7 = arith.constant 0 : index
    %c4 = arith.constant 4 : index
    %14 = vector.load %arg10[%c0_7, %c4] : memref<256x128xbf16, #tpu.memory_space<vmem>>, vector<256x4xbf16>
    tpu.vector_store %arg10[%c0_7, %c4], %13 {strides = array<i32>} : memref<256x128xbf16, #tpu.memory_space<vmem>>, vector<256x4xbf16>,
    %c0_i32_8 = arith.constant 0 : i32
    %15 = arith.addi %2, %c0_i32_8 : i32
    %c0_9 = arith.constant 0 : index
    %16 = arith.index_cast %15 : i32 to index
    %c1_10 = arith.constant 1 : index
    %c0_11 = arith.constant 0 : index
    %17 = vector.load %arg2[%c0_9, %16, %c1_10, %c0_11] : memref<1x18x18x4xbf16, #tpu.memory_space<vmem>>, vector<1x16x16x4xbf16>
    %18 = vector.shape_cast %17 : vector<1x16x16x4xbf16> to vector<16x16x4xbf16>
    %19 = vector.shape_cast %18 : vector<16x16x4xbf16> to vector<256x4xbf16>
    %c0_12 = arith.constant 0 : index
    %c8 = arith.constant 8 : index
    %20 = vector.load %arg10[%c0_12, %c8] : memref<256x128xbf16, #tpu.memory_space<vmem>>, vector<256x4xbf16>
    tpu.vector_store %arg10[%c0_12, %c8], %19 {strides = array<i32>} : memref<256x128xbf16, #tpu.memory_space<vmem>>, vector<256x4xbf16>,
    %c0_i32_13 = arith.constant 0 : i32
    %21 = arith.addi %2, %c0_i32_13 : i32
    %c0_14 = arith.constant 0 : index
    %22 = arith.index_cast %21 : i32 to index
    %c2 = arith.constant 2 : index
    %c0_15 = arith.constant 0 : index
    %23 = vector.load %arg2[%c0_14, %22, %c2, %c0_15] : memref<1x18x18x4xbf16, #tpu.memory_space<vmem>>, vector<1x16x16x4xbf16>
    %24 = vector.shape_cast %23 : vector<1x16x16x4xbf16> to vector<16x16x4xbf16>
    %25 = vector.shape_cast %24 : vector<16x16x4xbf16> to vector<256x4xbf16>
    %c0_16 = arith.constant 0 : index
    %c12 = arith.constant 12 : index
    %26 = vector.load %arg10[%c0_16, %c12] : memref<256x128xbf16, #tpu.memory_space<vmem>>, vector<256x4xbf16>
    tpu.vector_store %arg10[%c0_16, %c12], %25 {strides = array<i32>} : memref<256x128xbf16, #tpu.memory_space<vmem>>, vector<256x4xbf16>,
    %c1_i32_17 = arith.constant 1 : i32
    %27 = arith.addi %2, %c1_i32_17 : i32
    %c0_18 = arith.constant 0 : index
    %28 = arith.index_cast %27 : i32 to index
    %c0_19 = arith.constant 0 : index
    %c0_20 = arith.constant 0 : index
    %29 = vector.load %arg2[%c0_18, %28, %c0_19, %c0_20] : memref<1x18x18x4xbf16, #tpu.memory_space<vmem>>, vector<1x16x16x4xbf16>
    %30 = vector.shape_cast %29 : vector<1x16x16x4xbf16> to vector<16x16x4xbf16>
    %31 = vector.shape_cast %30 : vector<16x16x4xbf16> to vector<256x4xbf16>
    %c0_21 = arith.constant 0 : index
    %c16 = arith.constant 16 : index
    %32 = vector.load %arg10[%c0_21, %c16] : memref<256x128xbf16, #tpu.memory_space<vmem>>, vector<256x4xbf16>
    tpu.vector_store %arg10[%c0_21, %c16], %31 {strides = array<i32>} : memref<256x128xbf16, #tpu.memory_space<vmem>>, vector<256x4xbf16>,
    %c1_i32_22 = arith.constant 1 : i32
    %33 = arith.addi %2, %c1_i32_22 : i32
    %c0_23 = arith.constant 0 : index
    %34 = arith.index_cast %33 : i32 to index
    %c2_24 = arith.constant 2 : index
    %c0_25 = arith.constant 0 : index
    %35 = vector.load %arg2[%c0_23, %34, %c2_24, %c0_25] : memref<1x18x18x4xbf16, #tpu.memory_space<vmem>>, vector<1x16x16x4xbf16>
    %36 = vector.shape_cast %35 : vector<1x16x16x4xbf16> to vector<16x16x4xbf16>
    %37 = vector.shape_cast %36 : vector<16x16x4xbf16> to vector<256x4xbf16>
    %c0_26 = arith.constant 0 : index
    %c20 = arith.constant 20 : index
    %38 = vector.load %arg10[%c0_26, %c20] : memref<256x128xbf16, #tpu.memory_space<vmem>>, vector<256x4xbf16>
    tpu.vector_store %arg10[%c0_26, %c20], %37 {strides = array<i32>} : memref<256x128xbf16, #tpu.memory_space<vmem>>, vector<256x4xbf16>,
    %c2_i32 = arith.constant 2 : i32
    %39 = arith.addi %2, %c2_i32 : i32
    %c0_27 = arith.constant 0 : index
    %40 = arith.index_cast %39 : i32 to index
    %c0_28 = arith.constant 0 : index
    %c0_29 = arith.constant 0 : index
    %41 = vector.load %arg2[%c0_27, %40, %c0_28, %c0_29] : memref<1x18x18x4xbf16, #tpu.memory_space<vmem>>, vector<1x16x16x4xbf16>
    %42 = vector.shape_cast %41 : vector<1x16x16x4xbf16> to vector<16x16x4xbf16>
    %43 = vector.shape_cast %42 : vector<16x16x4xbf16> to vector<256x4xbf16>
    %c0_30 = arith.constant 0 : index
    %c24 = arith.constant 24 : index
    %44 = vector.load %arg10[%c0_30, %c24] : memref<256x128xbf16, #tpu.memory_space<vmem>>, vector<256x4xbf16>
    tpu.vector_store %arg10[%c0_30, %c24], %43 {strides = array<i32>} : memref<256x128xbf16, #tpu.memory_space<vmem>>, vector<256x4xbf16>,
    %c2_i32_31 = arith.constant 2 : i32
    %45 = arith.addi %2, %c2_i32_31 : i32
    %c0_32 = arith.constant 0 : index
    %46 = arith.index_cast %45 : i32 to index
    %c1_33 = arith.constant 1 : index
    %c0_34 = arith.constant 0 : index
    %47 = vector.load %arg2[%c0_32, %46, %c1_33, %c0_34] : memref<1x18x18x4xbf16, #tpu.memory_space<vmem>>, vector<1x16x16x4xbf16>
    %48 = vector.shape_cast %47 : vector<1x16x16x4xbf16> to vector<16x16x4xbf16>
    %49 = vector.shape_cast %48 : vector<16x16x4xbf16> to vector<256x4xbf16>
    %c0_35 = arith.constant 0 : index
    %c28 = arith.constant 28 : index
    %50 = vector.load %arg10[%c0_35, %c28] : memref<256x128xbf16, #tpu.memory_space<vmem>>, vector<256x4xbf16>
    tpu.vector_store %arg10[%c0_35, %c28], %49 {strides = array<i32>} : memref<256x128xbf16, #tpu.memory_space<vmem>>, vector<256x4xbf16>,
    %c2_i32_36 = arith.constant 2 : i32
    %51 = arith.addi %2, %c2_i32_36 : i32
    %c0_37 = arith.constant 0 : index
    %52 = arith.index_cast %51 : i32 to index
    %c2_38 = arith.constant 2 : index
    %c0_39 = arith.constant 0 : index
    %53 = vector.load %arg2[%c0_37, %52, %c2_38, %c0_39] : memref<1x18x18x4xbf16, #tpu.memory_space<vmem>>, vector<1x16x16x4xbf16>
    %54 = vector.shape_cast %53 : vector<1x16x16x4xbf16> to vector<16x16x4xbf16>
    %55 = vector.shape_cast %54 : vector<16x16x4xbf16> to vector<256x4xbf16>
    %c0_40 = arith.constant 0 : index
    %c32 = arith.constant 32 : index
    %56 = vector.load %arg10[%c0_40, %c32] : memref<256x128xbf16, #tpu.memory_space<vmem>>, vector<256x4xbf16>
    tpu.vector_store %arg10[%c0_40, %c32], %55 {strides = array<i32>} : memref<256x128xbf16, #tpu.memory_space<vmem>>, vector<256x4xbf16>,
    %c0_41 = arith.constant 0 : index
    %c0_42 = arith.constant 0 : index
    %57 = vector.load %arg10[%c0_41, %c0_42] : memref<256x128xbf16, #tpu.memory_space<vmem>>, vector<256x128xbf16>
    %c0_43 = arith.constant 0 : index
    %c0_44 = arith.constant 0 : index
    %58 = vector.load %arg3[%c0_43, %c0_44] : memref<128x128xbf16, #tpu.memory_space<vmem>>, vector<128x128xbf16>
    %cst_45 = arith.constant dense<0.000000e+00> : vector<256x128xf32>
    %59 = tpu.matmul %57, %58, %cst_45 {dimension_numbers = #tpu.dot_dimension_numbers<[1], [0], [0], [1], [0, 0, 1, 1], [], []>} : vector<256x128xbf16>, vector<128x128xbf16>, vector<256x128xf32> -> vector<256x128xf32>
    %c0_46 = arith.constant 0 : index
    %c0_47 = arith.constant 0 : index
    %60 = vector.load %arg4[%c0_46, %c0_47] : memref<1x128xf32, #tpu.memory_space<vmem>>, vector<1x128xf32>
    %61 = vector.broadcast %60 : vector<1x128xf32> to vector<256x128xf32>
    %62 = arith.mulf %59, %61 : vector<256x128xf32>
    %c0_48 = arith.constant 0 : index
    %c0_49 = arith.constant 0 : index
    %63 = vector.load %arg5[%c0_48, %c0_49] : memref<1x128xf32, #tpu.memory_space<vmem>>, vector<1x128xf32>
    %64 = vector.broadcast %63 : vector<1x128xf32> to vector<256x128xf32>
    %65 = arith.addf %62, %64 : vector<256x128xf32>
    %cst_50 = arith.constant 0.000000e+00 : f32
    %66 = vector.broadcast %cst_50 : f32 to vector<256x128xf32>
    %67 = arith.maximumf %65, %66 : vector<256x128xf32>
    %68 = arith.truncf %67 : vector<256x128xf32> to vector<256x128xbf16>
    %c0_51 = arith.constant 0 : index
    %c0_52 = arith.constant 0 : index
    %69 = vector.load %arg6[%c0_51, %c0_52] : memref<128x128xbf16, #tpu.memory_space<vmem>>, vector<128x128xbf16>
    %cst_53 = arith.constant dense<0.000000e+00> : vector<256x128xf32>
    %70 = tpu.matmul %68, %69, %cst_53 {dimension_numbers = #tpu.dot_dimension_numbers<[1], [0], [0], [1], [0, 0, 1, 1], [], []>} : vector<256x128xbf16>, vector<128x128xbf16>, vector<256x128xf32> -> vector<256x128xf32>
    %c0_54 = arith.constant 0 : index
    %c0_55 = arith.constant 0 : index
    %71 = vector.load %arg7[%c0_54, %c0_55] : memref<1x128xf32, #tpu.memory_space<vmem>>, vector<1x128xf32>
    %72 = vector.broadcast %71 : vector<1x128xf32> to vector<256x128xf32>
    %73 = arith.mulf %70, %72 : vector<256x128xf32>
    %c0_56 = arith.constant 0 : index
    %c0_57 = arith.constant 0 : index
    %74 = vector.load %arg8[%c0_56, %c0_57] : memref<1x128xf32, #tpu.memory_space<vmem>>, vector<1x128xf32>
    %75 = vector.broadcast %74 : vector<1x128xf32> to vector<256x128xf32>
    %76 = arith.addf %73, %75 : vector<256x128xf32>
    %77 = arith.extf %57 : vector<256x128xbf16> to vector<256x128xf32>
    %78 = arith.addf %76, %77 : vector<256x128xf32>
    %79 = arith.truncf %78 : vector<256x128xf32> to vector<256x128xbf16>
    %c0_58 = arith.constant 0 : index
    %c0_59 = arith.constant 0 : index
    %c0_60 = arith.constant 0 : index
    %80 = vector.load %arg9[%c0_58, %c0_59, %c0_60] : memref<1x256x128xbf16, #tpu.memory_space<vmem>>, vector<1x256x128xbf16>
    %81 = vector.shape_cast %80 : vector<1x256x128xbf16> to vector<256x128xbf16>
    %82 = vector.shape_cast %79 : vector<256x128xbf16> to vector<1x256x128xbf16>
    tpu.vector_store %arg9[%c0_58, %c0_59, %c0_60], %82 {strides = array<i32>} : memref<1x256x128xbf16, #tpu.memory_space<vmem>>, vector<1x256x128xbf16>,
    return
  }
  func.func @transform_0(%arg0: i32, %arg1: i32) -> (i32, i32, i32, i32) {
    %c0_i32 = arith.constant 0 : i32
    %c0_i32_0 = arith.constant 0 : i32
    %c0_i32_1 = arith.constant 0 : i32
    %c0_i32_2 = arith.constant 0 : i32
    return %arg0, %c0_i32, %c0_i32_0, %c0_i32_1 : i32, i32, i32, i32
  }
  func.func @transform_1(%arg0: i32, %arg1: i32) -> (i32, i32) {
    %c0_i32 = arith.constant 0 : i32
    %c0_i32_0 = arith.constant 0 : i32
    %c0_i32_1 = arith.constant 0 : i32
    return %c0_i32, %c0_i32_0 : i32, i32
  }
  func.func @transform_2(%arg0: i32, %arg1: i32) -> (i32, i32) {
    %c0_i32 = arith.constant 0 : i32
    %c0_i32_0 = arith.constant 0 : i32
    %c0_i32_1 = arith.constant 0 : i32
    return %c0_i32, %c0_i32_0 : i32, i32
  }
  func.func @transform_3(%arg0: i32, %arg1: i32) -> (i32, i32) {
    %c0_i32 = arith.constant 0 : i32
    %c0_i32_0 = arith.constant 0 : i32
    %c0_i32_1 = arith.constant 0 : i32
    return %c0_i32, %c0_i32_0 : i32, i32
  }
  func.func @transform_4(%arg0: i32, %arg1: i32) -> (i32, i32) {
    %c0_i32 = arith.constant 0 : i32
    %c0_i32_0 = arith.constant 0 : i32
    %c0_i32_1 = arith.constant 0 : i32
    return %c0_i32, %c0_i32_0 : i32, i32
  }
  func.func @transform_5(%arg0: i32, %arg1: i32) -> (i32, i32) {
    %c0_i32 = arith.constant 0 : i32
    %c0_i32_0 = arith.constant 0 : i32
    %c0_i32_1 = arith.constant 0 : i32
    return %c0_i32, %c0_i32_0 : i32, i32
  }
  func.func @transform_6(%arg0: i32, %arg1: i32) -> (i32, i32) {
    %c0_i32 = arith.constant 0 : i32
    %c0_i32_0 = arith.constant 0 : i32
    %c0_i32_1 = arith.constant 0 : i32
    return %c0_i32, %c0_i32_0 : i32, i32
  }
  func.func @transform_7(%arg0: i32, %arg1: i32) -> (i32, i32, i32) {
    %c0_i32 = arith.constant 0 : i32
    %c0_i32_0 = arith.constant 0 : i32
    return %arg0, %arg1, %c0_i32 : i32, i32, i32
  }
}

</mosaic_0001>

<llo_original>
// kernel: tpu_custom_call.1
$region0: #{tpu_custom_call.1}
  #allocation0 [shape = 'u32[]', space=smem, size = 0x4, offset = 0x4, fixed_abs, tag = 'smem constant byte address 0x4 - core index']
  #allocation1 [shape = 'u32[144,128]{1,0:T(1,128)}', space=vmem, size = 0x12000, scoped, tag = 'internal scratch']
  #allocation2 [shape = 'bf16[256,128]{1,0:T(16,128)(2,1)}', space=vmem, size = 0x10000, scoped, tag = 'scratch operand']
  %s0 = inlined_call_operand.vmem [shape: bf16[2,18,18,4], index: 0, kind: input, shape index: {}]
  %s1 = inlined_call_operand.vmem [shape: bf16[128,128], index: 1, kind: input, shape index: {}]
  %s2 = inlined_call_operand.vmem [shape: f32[1,128], index: 2, kind: input, shape index: {}]
  %s3 = inlined_call_operand.vmem [shape: f32[1,128], index: 3, kind: input, shape index: {}]
  %s4 = inlined_call_operand.vmem [shape: bf16[128,128], index: 4, kind: input, shape index: {}]
  %s5 = inlined_call_operand.vmem [shape: f32[1,128], index: 5, kind: input, shape index: {}]
  %s6 = inlined_call_operand.vmem [shape: f32[1,128], index: 6, kind: input, shape index: {}]
  %s7 = inlined_call_operand.hbm [shape: bf16[2,256,128], index: 7, kind: output, shape index: {}]
  %s8 = sld [smem:[#allocation0]]
  $region61: #{tpu_custom_call.1} parent=0
    _
  %s10 = ssub.s32 1, %s8
  %s11 = scalar_select 0, %s10, %s8
  $region1: #{tpu_custom_call.1} parent=0
    #allocation3 [shape = 'u8[131072]{0}', space=vmem, size = 0x20000, scoped, tag = 'output window, operand 0']
    #allocation4 [shape = 's32[2]{0}', space=sflag, size = 0x8, scoped, tag = 'scoped memory for tpu_custom_call.1']
    %12 = vsyncpa [#allocation4], 0
    %s13 = scalar_lea.sflag [#allocation4], 1
    %14 = vsyncpa %s13, 0
    loop: start=0, step=1, limit=4
    $region2: #{tpu_custom_call.1} parent=1 // loop_pre_header
      _
    $region3: #{tpu_custom_call.1} parent=1 // loop_header
      %s16 = sphi 0, %s20
      %p17 = scmp.ge.s32.totalorder %s16, 4
      %s23 = sphi 0, %s35
      %s24 = sphi 0, %s31
      %s25 = sphi 0, %s23
      %s26 = sphi 0, %s24
      %s27 = sphi 0, %s25
      %s28 = sphi 0, %s26
      %s38 = sphi 0, %s40
      %s41 = sphi 0, %s38
      %s42 = sphi 0, %s41
      %s58 = sphi 0, %s42
      %s62 = sphi 0, %s62
      %s64 = sphi 0, %s62
      %s65 = sphi 0, %s64
      %s79 = sphi 0, %s65
      %s83 = sphi 0, %s83
      %s85 = sphi 0, %s83
      %s86 = sphi 0, %s85
      %s100 = sphi 0, %s86
      %s104 = sphi 0, %s104
      %s106 = sphi 0, %s104
      %s107 = sphi 0, %s106
      %s121 = sphi 0, %s107
      %s125 = sphi 0, %s125
      %s127 = sphi 0, %s125
      %s128 = sphi 0, %s127
      %s142 = sphi 0, %s128
      %s146 = sphi 0, %s146
      %s148 = sphi 0, %s146
      %s149 = sphi 0, %s148
      %s163 = sphi 0, %s149
      %s167 = sphi 0, %s167
      %s169 = sphi 0, %s167
      %s170 = sphi 0, %s169
      %s184 = sphi 0, %s170
      %s192 = sphi 0, %s194
      %s195 = sphi 0, %s192
      %s196 = sphi 0, %s195
      %s212 = sphi 0, %s196
    $region4: #{tpu_custom_call.1} parent=1 // loop_header_branch
      %19 = sbr.rel (%p17) target = $region8
    $region5: #{tpu_custom_call.1} parent=1 // loop_body
      %s21 = ssub.s32 %s16, 1
      %s22 = ssub.s32 %s16, 2
      %s29 = sadd.s32 1, %s24
      %p30 = scmp.ge.s32.totalorder %s29, 1
      %s31 = scalar_select %p30, 0, %s29
      %s32 = sadd.s32 1, %s23
      %s33 = scalar_select %p30, %s32, %s23
      %p34 = scmp.ge.s32.totalorder %s33, 2
      %s35 = scalar_select %p34, 0, %s33
      %s36 = ssub.s32 %s23, %s35
      %p37 = scmp.eq.s32.totalorder %s36, 0
      %s39 = sadd.s32 %s38, 1
      %s40 = scalar_select %p37, %s38, %s39
      %p43 = pneg %p37
      %p44 = scmp.eq.s32.totalorder %s16, 1
      %p45 = por %p43, %p44
      %p46 = scmp.ne.s32.totalorder %s38, %s41
      %p47 = scmp.eq.s32.totalorder %s16, 0
      %p48 = por %p46, %p47
      %p49 = scmp.ne.s32.totalorder %s38, %s41
      %p50 = scmp.eq.s32.totalorder %s21, 1
      %p51 = por %p49, %p50
      %p52 = scmp.ne.s32.totalorder %s41, %s42
      %p53 = scmp.eq.s32.totalorder %s21, 0
      %p54 = por %p52, %p53
      %p55 = scmp.ne.s32.totalorder %s41, %s42
      %p56 = scmp.eq.s32.totalorder %s22, 1
      %p57 = por %p55, %p56
      %p59 = scmp.ne.s32.totalorder %s42, %s58
      %p60 = scmp.eq.s32.totalorder %s22, 0
      %p61 = por %p59, %p60
      %s63 = sadd.s32 %s62, 1
      %p66 = scmp.eq.s32.totalorder %s16, 1
      %p67 = scmp.ne.s32.totalorder %s62, %s64
      %p68 = scmp.eq.s32.totalorder %s16, 0
      %p69 = por %p67, %p68
      %p70 = scmp.ne.s32.totalorder %s62, %s64
      %p71 = scmp.eq.s32.totalorder %s21, 1
      %p72 = por %p70, %p71
      %p73 = scmp.ne.s32.totalorder %s64, %s65
      %p74 = scmp.eq.s32.totalorder %s21, 0
      %p75 = por %p73, %p74
      %p76 = scmp.ne.s32.totalorder %s64, %s65
      %p77 = scmp.eq.s32.totalorder %s22, 1
      %p78 = por %p76, %p77
      %p80 = scmp.ne.s32.totalorder %s65, %s79
      %p81 = scmp.eq.s32.totalorder %s22, 0
      %p82 = por %p80, %p81
      %s84 = sadd.s32 %s83, 1
      %p87 = scmp.eq.s32.totalorder %s16, 1
      %p88 = scmp.ne.s32.totalorder %s83, %s85
      %p89 = scmp.eq.s32.totalorder %s16, 0
      %p90 = por %p88, %p89
      %p91 = scmp.ne.s32.totalorder %s83, %s85
      %p92 = scmp.eq.s32.totalorder %s21, 1
      %p93 = por %p91, %p92
      %p94 = scmp.ne.s32.totalorder %s85, %s86
      %p95 = scmp.eq.s32.totalorder %s21, 0
      %p96 = por %p94, %p95
      %p97 = scmp.ne.s32.totalorder %s85, %s86
      %p98 = scmp.eq.s32.totalorder %s22, 1
      %p99 = por %p97, %p98
      %p101 = scmp.ne.s32.totalorder %s86, %s100
      %p102 = scmp.eq.s32.totalorder %s22, 0
      %p103 = por %p101, %p102
      %s105 = sadd.s32 %s104, 1
      %p108 = scmp.eq.s32.totalorder %s16, 1
      %p109 = scmp.ne.s32.totalorder %s104, %s106
      %p110 = scmp.eq.s32.totalorder %s16, 0
      %p111 = por %p109, %p110
      %p112 = scmp.ne.s32.totalorder %s104, %s106
      %p113 = scmp.eq.s32.totalorder %s21, 1
      %p114 = por %p112, %p113
      %p115 = scmp.ne.s32.totalorder %s106, %s107
      %p116 = scmp.eq.s32.totalorder %s21, 0
      %p117 = por %p115, %p116
      %p118 = scmp.ne.s32.totalorder %s106, %s107
      %p119 = scmp.eq.s32.totalorder %s22, 1
      %p120 = por %p118, %p119
      %p122 = scmp.ne.s32.totalorder %s107, %s121
      %p123 = scmp.eq.s32.totalorder %s22, 0
      %p124 = por %p122, %p123
      %s126 = sadd.s32 %s125, 1
      %p129 = scmp.eq.s32.totalorder %s16, 1
      %p130 = scmp.ne.s32.totalorder %s125, %s127
      %p131 = scmp.eq.s32.totalorder %s16, 0
      %p132 = por %p130, %p131
      %p133 = scmp.ne.s32.totalorder %s125, %s127
      %p134 = scmp.eq.s32.totalorder %s21, 1
      %p135 = por %p133, %p134
      %p136 = scmp.ne.s32.totalorder %s127, %s128
      %p137 = scmp.eq.s32.totalorder %s21, 0
      %p138 = por %p136, %p137
      %p139 = scmp.ne.s32.totalorder %s127, %s128
      %p140 = scmp.eq.s32.totalorder %s22, 1
      %p141 = por %p139, %p140
      %p143 = scmp.ne.s32.totalorder %s128, %s142
      %p144 = scmp.eq.s32.totalorder %s22, 0
      %p145 = por %p143, %p144
      %s147 = sadd.s32 %s146, 1
      %p150 = scmp.eq.s32.totalorder %s16, 1
      %p151 = scmp.ne.s32.totalorder %s146, %s148
      %p152 = scmp.eq.s32.totalorder %s16, 0
      %p153 = por %p151, %p152
      %p154 = scmp.ne.s32.totalorder %s146, %s148
      %p155 = scmp.eq.s32.totalorder %s21, 1
      %p156 = por %p154, %p155
      %p157 = scmp.ne.s32.totalorder %s148, %s149
      %p158 = scmp.eq.s32.totalorder %s21, 0
      %p159 = por %p157, %p158
      %p160 = scmp.ne.s32.totalorder %s148, %s149
      %p161 = scmp.eq.s32.totalorder %s22, 1
      %p162 = por %p160, %p161
      %p164 = scmp.ne.s32.totalorder %s149, %s163
      %p165 = scmp.eq.s32.totalorder %s22, 0
      %p166 = por %p164, %p165
      %s168 = sadd.s32 %s167, 1
      %p171 = scmp.eq.s32.totalorder %s16, 1
      %p172 = scmp.ne.s32.totalorder %s167, %s169
      %p173 = scmp.eq.s32.totalorder %s16, 0
      %p174 = por %p172, %p173
      %p175 = scmp.ne.s32.totalorder %s167, %s169
      %p176 = scmp.eq.s32.totalorder %s21, 1
      %p177 = por %p175, %p176
      %p178 = scmp.ne.s32.totalorder %s169, %s170
      %p179 = scmp.eq.s32.totalorder %s21, 0
      %p180 = por %p178, %p179
      %p181 = scmp.ne.s32.totalorder %s169, %s170
      %p182 = scmp.eq.s32.totalorder %s22, 1
      %p183 = por %p181, %p182
      %p185 = scmp.ne.s32.totalorder %s170, %s184
      %p186 = scmp.eq.s32.totalorder %s22, 0
      %p187 = por %p185, %p186
      %s188 = ssub.s32 %s23, %s35
      %s189 = ssub.s32 %s24, %s31
      %s190 = sor.u32 %s188, %s189
      %p191 = scmp.eq.s32.totalorder %s190, 0
      %s193 = sadd.s32 %s192, 1
      %s194 = scalar_select %p191, %s192, %s193
      %p197 = pneg %p191
      %p198 = scmp.eq.s32.totalorder %s16, 1
      %p199 = por %p197, %p198
      %p200 = scmp.ne.s32.totalorder %s192, %s195
      %p201 = scmp.eq.s32.totalorder %s16, 0
      %p202 = por %p200, %p201
      %p203 = scmp.ne.s32.totalorder %s192, %s195
      %p204 = scmp.eq.s32.totalorder %s21, 1
      %p205 = por %p203, %p204
      %p206 = scmp.ne.s32.totalorder %s195, %s196
      %p207 = scmp.eq.s32.totalorder %s21, 0
      %p208 = por %p206, %p207
      %p209 = scmp.ne.s32.totalorder %s195, %s196
      %p210 = scmp.eq.s32.totalorder %s22, 1
      %p211 = por %p209, %p210
      %p213 = scmp.ne.s32.totalorder %s196, %s212
      %p214 = scmp.eq.s32.totalorder %s22, 0
      %p215 = por %p213, %p214
      %p216 = scmp.le.s32.totalorder 1, %s16
      %p217 = scmp.lt.s32.totalorder %s16, 3
      %p218 = pnand %p216, %p217
      %p219 = pneg %p218
      // Predicated region
      $region9: #{tpu_custom_call.1} parent=5 // pred_check
        _
      $region10: #{tpu_custom_call.1} parent=5 // pred_check_branch
        %221 = sbr.rel (%p218) target = $region12
      $region11: #{tpu_custom_call.1} parent=5 // pred_region
        %s222 = ssub.s32 %s16, 1
        // Predicated region
        $region13: #{tpu_custom_call.1} parent=11 // pred_check
          %p223 = pneg %p75
        $region14: #{tpu_custom_call.1} parent=11 // pred_check_branch
          %225 = sbr.rel (%p223) target = $region16
        $region15: #{tpu_custom_call.1} parent=11 // pred_region
          _
        $region16: #{tpu_custom_call.1} parent=11 // pred_fallthru
          _
        // Predicated region
        $region17: #{tpu_custom_call.1} parent=11 // pred_check
          %p226 = pneg %p96
        $region18: #{tpu_custom_call.1} parent=11 // pred_check_branch
          %228 = sbr.rel (%p226) target = $region20
        $region19: #{tpu_custom_call.1} parent=11 // pred_region
          _
        $region20: #{tpu_custom_call.1} parent=11 // pred_fallthru
          _
        // Predicated region
        $region21: #{tpu_custom_call.1} parent=11 // pred_check
          %p229 = pneg %p117
        $region22: #{tpu_custom_call.1} parent=11 // pred_check_branch
          %231 = sbr.rel (%p229) target = $region24
        $region23: #{tpu_custom_call.1} parent=11 // pred_region
          _
        $region24: #{tpu_custom_call.1} parent=11 // pred_fallthru
          _
        // Predicated region
        $region25: #{tpu_custom_call.1} parent=11 // pred_check
          %p232 = pneg %p138
        $region26: #{tpu_custom_call.1} parent=11 // pred_check_branch
          %234 = sbr.rel (%p232) target = $region28
        $region27: #{tpu_custom_call.1} parent=11 // pred_region
          _
        $region28: #{tpu_custom_call.1} parent=11 // pred_fallthru
          _
        // Predicated region
        $region29: #{tpu_custom_call.1} parent=11 // pred_check
          %p235 = pneg %p159
        $region30: #{tpu_custom_call.1} parent=11 // pred_check_branch
          %237 = sbr.rel (%p235) target = $region32
        $region31: #{tpu_custom_call.1} parent=11 // pred_region
          _
        $region32: #{tpu_custom_call.1} parent=11 // pred_fallthru
          _
        // Predicated region
        $region33: #{tpu_custom_call.1} parent=11 // pred_check
          %p238 = pneg %p180
        $region34: #{tpu_custom_call.1} parent=11 // pred_check_branch
          %240 = sbr.rel (%p238) target = $region36
        $region35: #{tpu_custom_call.1} parent=11 // pred_region
          _
        $region36: #{tpu_custom_call.1} parent=11 // pred_fallthru
          _
      $region12: #{tpu_custom_call.1} parent=5 // pred_fallthru
        _
      %p241 = scmp.lt.s32.totalorder %s16, 2
      // Predicated region
      $region37: #{tpu_custom_call.1} parent=5 // pred_check
        %p242 = pneg %p241
      $region38: #{tpu_custom_call.1} parent=5 // pred_check_branch
        %244 = sbr.rel (%p242) target = $region40
      $region39: #{tpu_custom_call.1} parent=5 // pred_region
        // Predicated region
        $region41: #{tpu_custom_call.1} parent=39 // pred_check
          %p245 = pneg %p48
        $region42: #{tpu_custom_call.1} parent=39 // pred_check_branch
          %247 = sbr.rel (%p245) target = $region44
        $region43: #{tpu_custom_call.1} parent=39 // pred_region
          %p248 = scmp.lt.s32.totalorder %s23, 1
          %s249 = scalar_select %p248, %s23, 1
          %s250 = smul.addr %s249, 54
          %s251 = smul.addr %s250, 4
          %s252 = scalar_lea.vmem %s0, %s251
        $region44: #{tpu_custom_call.1} parent=39 // pred_fallthru
          _
      $region40: #{tpu_custom_call.1} parent=5 // pred_fallthru
        _
      %p253 = scmp.le.s32.totalorder 1, %s16
      %p254 = scmp.lt.s32.totalorder %s16, 3
      %p255 = pnand %p253, %p254
      %p256 = pneg %p255
      // Predicated region
      $region45: #{tpu_custom_call.1} parent=5 // pred_check
        _
      $region46: #{tpu_custom_call.1} parent=5 // pred_check_branch
        %258 = sbr.rel (%p255) target = $region48
      $region47: #{tpu_custom_call.1} parent=5 // pred_region
        %s259 = ssub.s32 %s16, 1
        %p260 = scmp.lt.s32.totalorder %s25, 1
        %s261 = scalar_select %p260, %s25, 1
        %s262 = smul.addr %s261, 54
        %s263 = smul.addr %s262, 4
        %s264 = scalar_lea.vmem %s0, %s263
        %p265 = pneg %p54
        %p266 = pneg %p51
        %p267 = pneg %p75
        %p268 = pneg %p72
        %p269 = pneg %p96
        %p270 = pneg %p93
        %p271 = pneg %p117
        %p272 = pneg %p114
        %p273 = pneg %p138
        %p274 = pneg %p135
        %p275 = pneg %p159
        %p276 = pneg %p156
        %p277 = pneg %p180
        %p278 = pneg %p177
        %p279 = pneg %p208
        %p280 = pneg %p205
        %s281 = sand.u32 %s195, 1
        %s282 = scalar_lea.sflag [#allocation4], %s281
        %s283 = sand.u32 %s195, 1
        %s284 = smul.addr %s283, 128
        %s285 = scalar_lea.vmem [#allocation3], %s284
        %p286 = scmp.lt.s32.totalorder %s25, 1
        %s287 = scalar_select %p286, %s25, 1
        %s288 = smul.addr %s287, 54
        %s289 = smul.addr %s288, 4
        %s290 = scalar_lea.vmem %s0, %s289
        %s291 = smul.u32 32, %s26
        %vm293 = vcmask 1047840
        %294 = vst.msk [vmem:[#allocation2] sm:$0xff] %vm293, 0
        %295 = vst.msk [vmem:[#allocation2 + $0x8] sm:$0xff] %vm293, 0
        %296 = vst.msk [vmem:[#allocation2 + $0x10] sm:$0xff] %vm293, 0
        %297 = vst.msk [vmem:[#allocation2 + $0x18] sm:$0xff] %vm293, 0
        %298 = vst.msk [vmem:[#allocation2 + $0x20] sm:$0xff] %vm293, 0
        %299 = vst.msk [vmem:[#allocation2 + $0x28] sm:$0xff] %vm293, 0
        %300 = vst.msk [vmem:[#allocation2 + $0x30] sm:$0xff] %vm293, 0
        %301 = vst.msk [vmem:[#allocation2 + $0x38] sm:$0xff] %vm293, 0
        %302 = vst.msk [vmem:[#allocation2 + $0x40] sm:$0xff] %vm293, 0
        %303 = vst.msk [vmem:[#allocation2 + $0x48] sm:$0xff] %vm293, 0
        %304 = vst.msk [vmem:[#allocation2 + $0x50] sm:$0xff] %vm293, 0
        %305 = vst.msk [vmem:[#allocation2 + $0x58] sm:$0xff] %vm293, 0
        %306 = vst.msk [vmem:[#allocation2 + $0x60] sm:$0xff] %vm293, 0
        %307 = vst.msk [vmem:[#allocation2 + $0x68] sm:$0xff] %vm293, 0
        %308 = vst.msk [vmem:[#allocation2 + $0x70] sm:$0xff] %vm293, 0
        %309 = vst.msk [vmem:[#allocation2 + $0x78] sm:$0xff] %vm293, 0
        %s310 = smul.u32 %s26, 16
        %s311 = sadd.s32 %s310, 1
        %s312 = smul.u32 %s311, 3
        %s313 = smul.addr %s312, 4
        %s314 = scalar_lea.vmem %s290, %s313
        %v315 = vld [vmem:[%s314] sm:$0xf]
        %v316 = vld [vmem:[%s314 + $0x4] sm:$0xf]
        %v317 = vld [vmem:[%s314 + $0x8] sm:$0x1]
        %v318 = vld [vmem:[%s314 + $0xc] sm:$0xf]
        %v319 = vld [vmem:[%s314 + $0x10] sm:$0xf]
        %v320 = vld [vmem:[%s314 + $0x14] sm:$0x1]
        %v321 = vld [vmem:[%s314 + $0x18] sm:$0xf]
        %v322 = vld [vmem:[%s314 + $0x1c] sm:$0xf]
        %v323 = vld [vmem:[%s314 + $0x20] sm:$0x1]
        %v324 = vld [vmem:[%s314 + $0x24] sm:$0xf]
        %v325 = vld [vmem:[%s314 + $0x28] sm:$0xf]
        %v326 = vld [vmem:[%s314 + $0x2c] sm:$0x1]
        %v327 = vld [vmem:[%s314 + $0x30] sm:$0xf]
        %v328 = vld [vmem:[%s314 + $0x34] sm:$0xf]
        %v329 = vld [vmem:[%s314 + $0x38] sm:$0x1]
        %v330 = vld [vmem:[%s314 + $0x3c] sm:$0xf]
        %v331 = vld [vmem:[%s314 + $0x40] sm:$0xf]
        %v332 = vld [vmem:[%s314 + $0x44] sm:$0x1]
        %v333 = vld [vmem:[%s314 + $0x48] sm:$0xf]
        %v334 = vld [vmem:[%s314 + $0x4c] sm:$0xf]
        %v335 = vld [vmem:[%s314 + $0x50] sm:$0x1]
        %v336 = vld [vmem:[%s314 + $0x54] sm:$0xf]
        %v337 = vld [vmem:[%s314 + $0x58] sm:$0xf]
        %v338 = vld [vmem:[%s314 + $0x5c] sm:$0x1]
        %v339 = vld [vmem:[%s314 + $0x60] sm:$0xf]
        %v340 = vld [vmem:[%s314 + $0x64] sm:$0xf]
        %v341 = vld [vmem:[%s314 + $0x68] sm:$0x1]
        %v342 = vld [vmem:[%s314 + $0x6c] sm:$0xf]
        %v343 = vld [vmem:[%s314 + $0x70] sm:$0xf]
        %v344 = vld [vmem:[%s314 + $0x74] sm:$0x1]
        %v345 = vld [vmem:[%s314 + $0x78] sm:$0xf]
        %v346 = vld [vmem:[%s314 + $0x7c] sm:$0xf]
        %v347 = vld [vmem:[%s314 + $0x80] sm:$0x1]
        %v348 = vld [vmem:[%s314 + $0x84] sm:$0xf]
        %v349 = vld [vmem:[%s314 + $0x88] sm:$0xf]
        %v350 = vld [vmem:[%s314 + $0x8c] sm:$0x1]
        %v351 = vld [vmem:[%s314 + $0x90] sm:$0xf]
        %v352 = vld [vmem:[%s314 + $0x94] sm:$0xf]
        %v353 = vld [vmem:[%s314 + $0x98] sm:$0x1]
        %v354 = vld [vmem:[%s314 + $0x9c] sm:$0xf]
        %v355 = vld [vmem:[%s314 + $0xa0] sm:$0xf]
        %v356 = vld [vmem:[%s314 + $0xa4] sm:$0x1]
        %v357 = vld [vmem:[%s314 + $0xa8] sm:$0xf]
        %v358 = vld [vmem:[%s314 + $0xac] sm:$0xf]
        %v359 = vld [vmem:[%s314 + $0xb0] sm:$0x1]
        %v360 = vld [vmem:[%s314 + $0xb4] sm:$0xf]
        %v361 = vld [vmem:[%s314 + $0xb8] sm:$0xf]
        %v362 = vld [vmem:[%s314 + $0xbc] sm:$0x1]
        %vm363 = vsmask.f32 3328
        %vm364 = vsmask.f32 7440
        %vm365 = vmor %vm363, %vm364
        %v367 = vshrl.u32 %v315, 16
        %v369 = vrot.slane %v367, 4
        %v370 = vshll.u32 %v315, 16
        %v372 = vrot.slane %v370, 5
        %v373 = vor.u32 %v369, %v372
        %v374 = vrot.slane %v373, 4
        %v376 = vshll.u32 %v316, 16
        %v378 = vrot.slane %v376, 5
        %v379 = vsel %vm365, %v374, %v378
        %v380 = vshrl.u32 %v316, 16
        %v382 = vrot.slane %v380, 4
        %v383 = vor.u32 %v382, %v378
        %v384 = vrot.slane %v383, 4
        %v386 = vshll.u32 %v317, 16
        %v388 = vrot.slane %v386, 5
        %v389 = vsel %vm365, %v384, %v388
        %v391 = vshrl.u32 %v318, 16
        %v393 = vrot.slane %v391, 4
        %v394 = vshll.u32 %v318, 16
        %v396 = vrot.slane %v394, 5
        %v397 = vor.u32 %v393, %v396
        %v398 = vrot.slane %v397, 4
        %v400 = vshll.u32 %v319, 16
        %v402 = vrot.slane %v400, 5
        %v403 = vsel %vm365, %v398, %v402
        %v404 = vshrl.u32 %v319, 16
        %v406 = vrot.slane %v404, 4
        %v407 = vor.u32 %v406, %v402
        %v408 = vrot.slane %v407, 4
        %v410 = vshll.u32 %v320, 16
        %v412 = vrot.slane %v410, 5
        %v413 = vsel %vm365, %v408, %v412
        %v415 = vshrl.u32 %v321, 16
        %v417 = vrot.slane %v415, 4
        %v418 = vshll.u32 %v321, 16
        %v420 = vrot.slane %v418, 5
        %v421 = vor.u32 %v417, %v420
        %v422 = vrot.slane %v421, 4
        %v424 = vshll.u32 %v322, 16
        %v426 = vrot.slane %v424, 5
        %v427 = vsel %vm365, %v422, %v426
        %v428 = vshrl.u32 %v322, 16
        %v430 = vrot.slane %v428, 4
        %v431 = vor.u32 %v430, %v426
        %v432 = vrot.slane %v431, 4
        %v434 = vshll.u32 %v323, 16
        %v436 = vrot.slane %v434, 5
        %v437 = vsel %vm365, %v432, %v436
        %v439 = vshrl.u32 %v324, 16
        %v441 = vrot.slane %v439, 4
        %v442 = vshll.u32 %v324, 16
        %v444 = vrot.slane %v442, 5
        %v445 = vor.u32 %v441, %v444
        %v446 = vrot.slane %v445, 4
        %v448 = vshll.u32 %v325, 16
        %v450 = vrot.slane %v448, 5
        %v451 = vsel %vm365, %v446, %v450
        %v452 = vshrl.u32 %v325, 16
        %v454 = vrot.slane %v452, 4
        %v455 = vor.u32 %v454, %v450
        %v456 = vrot.slane %v455, 4
        %v458 = vshll.u32 %v326, 16
        %v460 = vrot.slane %v458, 5
        %v461 = vsel %vm365, %v456, %v460
        %v463 = vshrl.u32 %v327, 16
        %v465 = vrot.slane %v463, 4
        %v466 = vshll.u32 %v327, 16
        %v468 = vrot.slane %v466, 5
        %v469 = vor.u32 %v465, %v468
        %v470 = vrot.slane %v469, 4
        %v472 = vshll.u32 %v328, 16
        %v474 = vrot.slane %v472, 5
        %v475 = vsel %vm365, %v470, %v474
        %v476 = vshrl.u32 %v328, 16
        %v478 = vrot.slane %v476, 4
        %v479 = vor.u32 %v478, %v474
        %v480 = vrot.slane %v479, 4
        %v482 = vshll.u32 %v329, 16
        %v484 = vrot.slane %v482, 5
        %v485 = vsel %vm365, %v480, %v484
        %v487 = vshrl.u32 %v330, 16
        %v489 = vrot.slane %v487, 4
        %v490 = vshll.u32 %v330, 16
        %v492 = vrot.slane %v490, 5
        %v493 = vor.u32 %v489, %v492
        %v494 = vrot.slane %v493, 4
        %v496 = vshll.u32 %v331, 16
        %v498 = vrot.slane %v496, 5
        %v499 = vsel %vm365, %v494, %v498
        %v500 = vshrl.u32 %v331, 16
        %v502 = vrot.slane %v500, 4
        %v503 = vor.u32 %v502, %v498
        %v504 = vrot.slane %v503, 4
        %v506 = vshll.u32 %v332, 16
        %v508 = vrot.slane %v506, 5
        %v509 = vsel %vm365, %v504, %v508
        %v511 = vshrl.u32 %v333, 16
        %v513 = vrot.slane %v511, 4
        %v514 = vshll.u32 %v333, 16
        %v516 = vrot.slane %v514, 5
        %v517 = vor.u32 %v513, %v516
        %v518 = vrot.slane %v517, 4
        %v520 = vshll.u32 %v334, 16
        %v522 = vrot.slane %v520, 5
        %v523 = vsel %vm365, %v518, %v522
        %v524 = vshrl.u32 %v334, 16
        %v526 = vrot.slane %v524, 4
        %v527 = vor.u32 %v526, %v522
        %v528 = vrot.slane %v527, 4
        %v530 = vshll.u32 %v335, 16
        %v532 = vrot.slane %v530, 5
        %v533 = vsel %vm365, %v528, %v532
        %v535 = vshrl.u32 %v336, 16
        %v537 = vrot.slane %v535, 4
        %v538 = vshll.u32 %v336, 16
        %v540 = vrot.slane %v538, 5
        %v541 = vor.u32 %v537, %v540
        %v542 = vrot.slane %v541, 4
        %v544 = vshll.u32 %v337, 16
        %v546 = vrot.slane %v544, 5
        %v547 = vsel %vm365, %v542, %v546
        %v548 = vshrl.u32 %v337, 16
        %v550 = vrot.slane %v548, 4
        %v551 = vor.u32 %v550, %v546
        %v552 = vrot.slane %v551, 4
        %v554 = vshll.u32 %v338, 16
        %v556 = vrot.slane %v554, 5
        %v557 = vsel %vm365, %v552, %v556
        %v559 = vshrl.u32 %v339, 16
        %v561 = vrot.slane %v559, 4
        %v562 = vshll.u32 %v339, 16
        %v564 = vrot.slane %v562, 5
        %v565 = vor.u32 %v561, %v564
        %v566 = vrot.slane %v565, 4
        %v568 = vshll.u32 %v340, 16
        %v570 = vrot.slane %v568, 5
        %v571 = vsel %vm365, %v566, %v570
        %v572 = vshrl.u32 %v340, 16
        %v574 = vrot.slane %v572, 4
        %v575 = vor.u32 %v574, %v570
        %v576 = vrot.slane %v575, 4
        %v578 = vshll.u32 %v341, 16
        %v580 = vrot.slane %v578, 5
        %v581 = vsel %vm365, %v576, %v580
        %v583 = vshrl.u32 %v342, 16
        %v585 = vrot.slane %v583, 4
        %v586 = vshll.u32 %v342, 16
        %v588 = vrot.slane %v586, 5
        %v589 = vor.u32 %v585, %v588
        %v590 = vrot.slane %v589, 4
        %v592 = vshll.u32 %v343, 16
        %v594 = vrot.slane %v592, 5
        %v595 = vsel %vm365, %v590, %v594
        %v596 = vshrl.u32 %v343, 16
        %v598 = vrot.slane %v596, 4
        %v599 = vor.u32 %v598, %v594
        %v600 = vrot.slane %v599, 4
        %v602 = vshll.u32 %v344, 16
        %v604 = vrot.slane %v602, 5
        %v605 = vsel %vm365, %v600, %v604
        %v607 = vshrl.u32 %v345, 16
        %v609 = vrot.slane %v607, 4
        %v610 = vshll.u32 %v345, 16
        %v612 = vrot.slane %v610, 5
        %v613 = vor.u32 %v609, %v612
        %v614 = vrot.slane %v613, 4
        %v616 = vshll.u32 %v346, 16
        %v618 = vrot.slane %v616, 5
        %v619 = vsel %vm365, %v614, %v618
        %v620 = vshrl.u32 %v346, 16
        %v622 = vrot.slane %v620, 4
        %v623 = vor.u32 %v622, %v618
        %v624 = vrot.slane %v623, 4
        %v626 = vshll.u32 %v347, 16
        %v628 = vrot.slane %v626, 5
        %v629 = vsel %vm365, %v624, %v628
        %v631 = vshrl.u32 %v348, 16
        %v633 = vrot.slane %v631, 4
        %v634 = vshll.u32 %v348, 16
        %v636 = vrot.slane %v634, 5
        %v637 = vor.u32 %v633, %v636
        %v638 = vrot.slane %v637, 4
        %v640 = vshll.u32 %v349, 16
        %v642 = vrot.slane %v640, 5
        %v643 = vsel %vm365, %v638, %v642
        %v644 = vshrl.u32 %v349, 16
        %v646 = vrot.slane %v644, 4
        %v647 = vor.u32 %v646, %v642
        %v648 = vrot.slane %v647, 4
        %v650 = vshll.u32 %v350, 16
        %v652 = vrot.slane %v650, 5
        %v653 = vsel %vm365, %v648, %v652
        %v655 = vshrl.u32 %v351, 16
        %v657 = vrot.slane %v655, 4
        %v658 = vshll.u32 %v351, 16
        %v660 = vrot.slane %v658, 5
        %v661 = vor.u32 %v657, %v660
        %v662 = vrot.slane %v661, 4
        %v664 = vshll.u32 %v352, 16
        %v666 = vrot.slane %v664, 5
        %v667 = vsel %vm365, %v662, %v666
        %v668 = vshrl.u32 %v352, 16
        %v670 = vrot.slane %v668, 4
        %v671 = vor.u32 %v670, %v666
        %v672 = vrot.slane %v671, 4
        %v674 = vshll.u32 %v353, 16
        %v676 = vrot.slane %v674, 5
        %v677 = vsel %vm365, %v672, %v676
        %v679 = vshrl.u32 %v354, 16
        %v681 = vrot.slane %v679, 4
        %v682 = vshll.u32 %v354, 16
        %v684 = vrot.slane %v682, 5
        %v685 = vor.u32 %v681, %v684
        %v686 = vrot.slane %v685, 4
        %v688 = vshll.u32 %v355, 16
        %v690 = vrot.slane %v688, 5
        %v691 = vsel %vm365, %v686, %v690
        %v692 = vshrl.u32 %v355, 16
        %v694 = vrot.slane %v692, 4
        %v695 = vor.u32 %v694, %v690
        %v696 = vrot.slane %v695, 4
        %v698 = vshll.u32 %v356, 16
        %v700 = vrot.slane %v698, 5
        %v701 = vsel %vm365, %v696, %v700
        %v703 = vshrl.u32 %v357, 16
        %v705 = vrot.slane %v703, 4
        %v706 = vshll.u32 %v357, 16
        %v708 = vrot.slane %v706, 5
        %v709 = vor.u32 %v705, %v708
        %v710 = vrot.slane %v709, 4
        %v712 = vshll.u32 %v358, 16
        %v714 = vrot.slane %v712, 5
        %v715 = vsel %vm365, %v710, %v714
        %v716 = vshrl.u32 %v358, 16
        %v718 = vrot.slane %v716, 4
        %v719 = vor.u32 %v718, %v714
        %v720 = vrot.slane %v719, 4
        %v722 = vshll.u32 %v359, 16
        %v724 = vrot.slane %v722, 5
        %v725 = vsel %vm365, %v720, %v724
        %v727 = vshrl.u32 %v360, 16
        %v729 = vrot.slane %v727, 4
        %v730 = vshll.u32 %v360, 16
        %v732 = vrot.slane %v730, 5
        %v733 = vor.u32 %v729, %v732
        %v734 = vrot.slane %v733, 4
        %v736 = vshll.u32 %v361, 16
        %v738 = vrot.slane %v736, 5
        %v739 = vsel %vm365, %v734, %v738
        %v740 = vshrl.u32 %v361, 16
        %v742 = vrot.slane %v740, 4
        %v743 = vor.u32 %v742, %v738
        %v744 = vrot.slane %v743, 4
        %v746 = vshll.u32 %v362, 16
        %v748 = vrot.slane %v746, 5
        %v749 = vsel %vm365, %v744, %v748
        %v750 = vunpack.c.l.b16 %v379
        %v751 = vunpack.c.l.b16 %v389
        %v752 = vunpack.c.l.b16 %v403
        %v753 = vunpack.c.l.b16 %v413
        %v754 = vunpack.c.l.b16 %v427
        %v755 = vunpack.c.l.b16 %v437
        %v756 = vunpack.c.l.b16 %v451
        %v757 = vunpack.c.l.b16 %v461
        %v758 = vunpack.c.l.b16 %v475
        %v759 = vunpack.c.l.b16 %v485
        %v760 = vunpack.c.l.b16 %v499
        %v761 = vunpack.c.l.b16 %v509
        %v762 = vunpack.c.l.b16 %v523
        %v763 = vunpack.c.l.b16 %v533
        %v764 = vunpack.c.l.b16 %v547
        %v765 = vunpack.c.l.b16 %v557
        %v766 = vunpack.c.l.b16 %v571
        %v767 = vunpack.c.l.b16 %v581
        %v768 = vunpack.c.l.b16 %v595
        %v769 = vunpack.c.l.b16 %v605
        %v770 = vunpack.c.l.b16 %v619
        %v771 = vunpack.c.l.b16 %v629
        %v772 = vunpack.c.l.b16 %v643
        %v773 = vunpack.c.l.b16 %v653
        %v774 = vunpack.c.l.b16 %v667
        %v775 = vunpack.c.l.b16 %v677
        %v776 = vunpack.c.l.b16 %v691
        %v777 = vunpack.c.l.b16 %v701
        %v778 = vunpack.c.l.b16 %v715
        %v779 = vunpack.c.l.b16 %v725
        %v780 = vunpack.c.l.b16 %v739
        %v781 = vunpack.c.l.b16 %v749
        %v782 = vpack.c.b16 %v751, %v750
        %v783 = vpack.c.b16 %v753, %v752
        %v784 = vpack.c.b16 %v755, %v754
        %v785 = vpack.c.b16 %v757, %v756
        %v786 = vpack.c.b16 %v759, %v758
        %v787 = vpack.c.b16 %v761, %v760
        %v788 = vpack.c.b16 %v763, %v762
        %v789 = vpack.c.b16 %v765, %v764
        %v790 = vpack.c.b16 %v767, %v766
        %v791 = vpack.c.b16 %v769, %v768
        %v792 = vpack.c.b16 %v771, %v770
        %v793 = vpack.c.b16 %v773, %v772
        %v794 = vpack.c.b16 %v775, %v774
        %v795 = vpack.c.b16 %v777, %v776
        %v796 = vpack.c.b16 %v779, %v778
        %v797 = vpack.c.b16 %v781, %v780
        %vm814 = vcmask 31744
        %815 = vst.msk [vmem:[#allocation2] sm:$0xff] %vm814, %v782
        %816 = vst.msk [vmem:[#allocation2 + $0x8] sm:$0xff] %vm814, %v783
        %817 = vst.msk [vmem:[#allocation2 + $0x10] sm:$0xff] %vm814, %v784
        %818 = vst.msk [vmem:[#allocation2 + $0x18] sm:$0xff] %vm814, %v785
        %819 = vst.msk [vmem:[#allocation2 + $0x20] sm:$0xff] %vm814, %v786
        %820 = vst.msk [vmem:[#allocation2 + $0x28] sm:$0xff] %vm814, %v787
        %821 = vst.msk [vmem:[#allocation2 + $0x30] sm:$0xff] %vm814, %v788
        %822 = vst.msk [vmem:[#allocation2 + $0x38] sm:$0xff] %vm814, %v789
        %823 = vst.msk [vmem:[#allocation2 + $0x40] sm:$0xff] %vm814, %v790
        %824 = vst.msk [vmem:[#allocation2 + $0x48] sm:$0xff] %vm814, %v791
        %825 = vst.msk [vmem:[#allocation2 + $0x50] sm:$0xff] %vm814, %v792
        %826 = vst.msk [vmem:[#allocation2 + $0x58] sm:$0xff] %vm814, %v793
        %827 = vst.msk [vmem:[#allocation2 + $0x60] sm:$0xff] %vm814, %v794
        %828 = vst.msk [vmem:[#allocation2 + $0x68] sm:$0xff] %vm814, %v795
        %829 = vst.msk [vmem:[#allocation2 + $0x70] sm:$0xff] %vm814, %v796
        %830 = vst.msk [vmem:[#allocation2 + $0x78] sm:$0xff] %vm814, %v797
        %s831 = smul.u32 %s310, 3
        %s832 = smul.addr %s831, 4
        %s833 = scalar_lea.vmem %s290, %s832
        %v834 = vld [vmem:[%s833] sm:$0xf]
        %v835 = vld [vmem:[%s833 + $0x4] sm:$0xf]
        %v836 = vld [vmem:[%s833 + $0xc] sm:$0xf]
        %v837 = vld [vmem:[%s833 + $0x10] sm:$0xf]
        %v838 = vld [vmem:[%s833 + $0x18] sm:$0xf]
        %v839 = vld [vmem:[%s833 + $0x1c] sm:$0xf]
        %v840 = vld [vmem:[%s833 + $0x24] sm:$0xf]
        %v841 = vld [vmem:[%s833 + $0x28] sm:$0xf]
        %v842 = vld [vmem:[%s833 + $0x30] sm:$0xf]
        %v843 = vld [vmem:[%s833 + $0x34] sm:$0xf]
        %v844 = vld [vmem:[%s833 + $0x3c] sm:$0xf]
        %v845 = vld [vmem:[%s833 + $0x40] sm:$0xf]
        %v846 = vld [vmem:[%s833 + $0x48] sm:$0xf]
        %v847 = vld [vmem:[%s833 + $0x4c] sm:$0xf]
        %v848 = vld [vmem:[%s833 + $0x54] sm:$0xf]
        %v849 = vld [vmem:[%s833 + $0x58] sm:$0xf]
        %v850 = vld [vmem:[%s833 + $0x60] sm:$0xf]
        %v851 = vld [vmem:[%s833 + $0x64] sm:$0xf]
        %v852 = vld [vmem:[%s833 + $0x6c] sm:$0xf]
        %v853 = vld [vmem:[%s833 + $0x70] sm:$0xf]
        %v854 = vld [vmem:[%s833 + $0x78] sm:$0xf]
        %v855 = vld [vmem:[%s833 + $0x7c] sm:$0xf]
        %v856 = vld [vmem:[%s833 + $0x84] sm:$0xf]
        %v857 = vld [vmem:[%s833 + $0x88] sm:$0xf]
        %v858 = vld [vmem:[%s833 + $0x90] sm:$0xf]
        %v859 = vld [vmem:[%s833 + $0x94] sm:$0xf]
        %v860 = vld [vmem:[%s833 + $0x9c] sm:$0xf]
        %v861 = vld [vmem:[%s833 + $0xa0] sm:$0xf]
        %v862 = vld [vmem:[%s833 + $0xa8] sm:$0xf]
        %v863 = vld [vmem:[%s833 + $0xac] sm:$0xf]
        %v864 = vld [vmem:[%s833 + $0xb4] sm:$0xf]
        %v865 = vld [vmem:[%s833 + $0xb8] sm:$0xf]
        %v898 = vunpack.c.l.b16 %v834
        %v899 = vunpack.c.l.b16 %v835
        %v900 = vunpack.c.l.b16 %v836
        %v901 = vunpack.c.l.b16 %v837
        %v902 = vunpack.c.l.b16 %v838
        %v903 = vunpack.c.l.b16 %v839
        %v904 = vunpack.c.l.b16 %v840
        %v905 = vunpack.c.l.b16 %v841
        %v906 = vunpack.c.l.b16 %v842
        %v907 = vunpack.c.l.b16 %v843
        %v908 = vunpack.c.l.b16 %v844
        %v909 = vunpack.c.l.b16 %v845
        %v910 = vunpack.c.l.b16 %v846
        %v911 = vunpack.c.l.b16 %v847
        %v912 = vunpack.c.l.b16 %v848
        %v913 = vunpack.c.l.b16 %v849
        %v914 = vunpack.c.l.b16 %v850
        %v915 = vunpack.c.l.b16 %v851
        %v916 = vunpack.c.l.b16 %v852
        %v917 = vunpack.c.l.b16 %v853
        %v918 = vunpack.c.l.b16 %v854
        %v919 = vunpack.c.l.b16 %v855
        %v920 = vunpack.c.l.b16 %v856
        %v921 = vunpack.c.l.b16 %v857
        %v922 = vunpack.c.l.b16 %v858
        %v923 = vunpack.c.l.b16 %v859
        %v924 = vunpack.c.l.b16 %v860
        %v925 = vunpack.c.l.b16 %v861
        %v926 = vunpack.c.l.b16 %v862
        %v927 = vunpack.c.l.b16 %v863
        %v928 = vunpack.c.l.b16 %v864
        %v929 = vunpack.c.l.b16 %v865
        %v930 = vpack.c.b16 %v899, %v898
        %v931 = vpack.c.b16 %v901, %v900
        %v932 = vpack.c.b16 %v903, %v902
        %v933 = vpack.c.b16 %v905, %v904
        %v934 = vpack.c.b16 %v907, %v906
        %v935 = vpack.c.b16 %v909, %v908
        %v936 = vpack.c.b16 %v911, %v910
        %v937 = vpack.c.b16 %v913, %v912
        %v938 = vpack.c.b16 %v915, %v914
        %v939 = vpack.c.b16 %v917, %v916
        %v940 = vpack.c.b16 %v919, %v918
        %v941 = vpack.c.b16 %v921, %v920
        %v942 = vpack.c.b16 %v923, %v922
        %v943 = vpack.c.b16 %v925, %v924
        %v944 = vpack.c.b16 %v927, %v926
        %v945 = vpack.c.b16 %v929, %v928
        %946 = vrot.lane.b32.xlu0 %v930, 4
        %v947 = vpop.permute.xlu0 %946
        %948 = vrot.lane.b32.xlu0 %v931, 4
        %v949 = vpop.permute.xlu0 %948
        %950 = vrot.lane.b32.xlu0 %v932, 4
        %v951 = vpop.permute.xlu0 %950
        %952 = vrot.lane.b32.xlu0 %v933, 4
        %v953 = vpop.permute.xlu0 %952
        %954 = vrot.lane.b32.xlu0 %v934, 4
        %v955 = vpop.permute.xlu0 %954
        %956 = vrot.lane.b32.xlu0 %v935, 4
        %v957 = vpop.permute.xlu0 %956
        %958 = vrot.lane.b32.xlu0 %v936, 4
        %v959 = vpop.permute.xlu0 %958
        %960 = vrot.lane.b32.xlu0 %v937, 4
        %v961 = vpop.permute.xlu0 %960
        %962 = vrot.lane.b32.xlu0 %v938, 4
        %v963 = vpop.permute.xlu0 %962
        %964 = vrot.lane.b32.xlu0 %v939, 4
        %v965 = vpop.permute.xlu0 %964
        %966 = vrot.lane.b32.xlu0 %v940, 4
        %v967 = vpop.permute.xlu0 %966
        %968 = vrot.lane.b32.xlu0 %v941, 4
        %v969 = vpop.permute.xlu0 %968
        %970 = vrot.lane.b32.xlu0 %v942, 4
        %v971 = vpop.permute.xlu0 %970
        %972 = vrot.lane.b32.xlu0 %v943, 4
        %v973 = vpop.permute.xlu0 %972
        %974 = vrot.lane.b32.xlu0 %v944, 4
        %v975 = vpop.permute.xlu0 %974
        %976 = vrot.lane.b32.xlu0 %v945, 4
        %v977 = vpop.permute.xlu0 %976
        %vm994 = vcmask 64544
        %995 = vst.msk [vmem:[#allocation2] sm:$0xff] %vm994, %v947
        %996 = vst.msk [vmem:[#allocation2 + $0x8] sm:$0xff] %vm994, %v949
        %997 = vst.msk [vmem:[#allocation2 + $0x10] sm:$0xff] %vm994, %v951
        %998 = vst.msk [vmem:[#allocation2 + $0x18] sm:$0xff] %vm994, %v953
        %999 = vst.msk [vmem:[#allocation2 + $0x20] sm:$0xff] %vm994, %v955
        %1000 = vst.msk [vmem:[#allocation2 + $0x28] sm:$0xff] %vm994, %v957
        %1001 = vst.msk [vmem:[#allocation2 + $0x30] sm:$0xff] %vm994, %v959
        %1002 = vst.msk [vmem:[#allocation2 + $0x38] sm:$0xff] %vm994, %v961
        %1003 = vst.msk [vmem:[#allocation2 + $0x40] sm:$0xff] %vm994, %v963
        %1004 = vst.msk [vmem:[#allocation2 + $0x48] sm:$0xff] %vm994, %v965
        %1005 = vst.msk [vmem:[#allocation2 + $0x50] sm:$0xff] %vm994, %v967
        %1006 = vst.msk [vmem:[#allocation2 + $0x58] sm:$0xff] %vm994, %v969
        %1007 = vst.msk [vmem:[#allocation2 + $0x60] sm:$0xff] %vm994, %v971
        %1008 = vst.msk [vmem:[#allocation2 + $0x68] sm:$0xff] %vm994, %v973
        %1009 = vst.msk [vmem:[#allocation2 + $0x70] sm:$0xff] %vm994, %v975
        %1010 = vst.msk [vmem:[#allocation2 + $0x78] sm:$0xff] %vm994, %v977
        %v1011 = vld [vmem:[%s833] sm:$0xf]
        %v1012 = vld [vmem:[%s833 + $0x4] sm:$0xf]
        %v1013 = vld [vmem:[%s833 + $0x8] sm:$0x1]
        %v1014 = vld [vmem:[%s833 + $0xc] sm:$0xf]
        %v1015 = vld [vmem:[%s833 + $0x10] sm:$0xf]
        %v1016 = vld [vmem:[%s833 + $0x14] sm:$0x1]
        %v1017 = vld [vmem:[%s833 + $0x18] sm:$0xf]
        %v1018 = vld [vmem:[%s833 + $0x1c] sm:$0xf]
        %v1019 = vld [vmem:[%s833 + $0x20] sm:$0x1]
        %v1020 = vld [vmem:[%s833 + $0x24] sm:$0xf]
        %v1021 = vld [vmem:[%s833 + $0x28] sm:$0xf]
        %v1022 = vld [vmem:[%s833 + $0x2c] sm:$0x1]
        %v1023 = vld [vmem:[%s833 + $0x30] sm:$0xf]
        %v1024 = vld [vmem:[%s833 + $0x34] sm:$0xf]
        %v1025 = vld [vmem:[%s833 + $0x38] sm:$0x1]
        %v1026 = vld [vmem:[%s833 + $0x3c] sm:$0xf]
        %v1027 = vld [vmem:[%s833 + $0x40] sm:$0xf]
        %v1028 = vld [vmem:[%s833 + $0x44] sm:$0x1]
        %v1029 = vld [vmem:[%s833 + $0x48] sm:$0xf]
        %v1030 = vld [vmem:[%s833 + $0x4c] sm:$0xf]
        %v1031 = vld [vmem:[%s833 + $0x50] sm:$0x1]
        %v1032 = vld [vmem:[%s833 + $0x54] sm:$0xf]
        %v1033 = vld [vmem:[%s833 + $0x58] sm:$0xf]
        %v1034 = vld [vmem:[%s833 + $0x5c] sm:$0x1]
        %v1035 = vld [vmem:[%s833 + $0x60] sm:$0xf]
        %v1036 = vld [vmem:[%s833 + $0x64] sm:$0xf]
        %v1037 = vld [vmem:[%s833 + $0x68] sm:$0x1]
        %v1038 = vld [vmem:[%s833 + $0x6c] sm:$0xf]
        %v1039 = vld [vmem:[%s833 + $0x70] sm:$0xf]
        %v1040 = vld [vmem:[%s833 + $0x74] sm:$0x1]
        %v1041 = vld [vmem:[%s833 + $0x78] sm:$0xf]
        %v1042 = vld [vmem:[%s833 + $0x7c] sm:$0xf]
        %v1043 = vld [vmem:[%s833 + $0x80] sm:$0x1]
        %v1044 = vld [vmem:[%s833 + $0x84] sm:$0xf]
        %v1045 = vld [vmem:[%s833 + $0x88] sm:$0xf]
        %v1046 = vld [vmem:[%s833 + $0x8c] sm:$0x1]
        %v1047 = vld [vmem:[%s833 + $0x90] sm:$0xf]
        %v1048 = vld [vmem:[%s833 + $0x94] sm:$0xf]
        %v1049 = vld [vmem:[%s833 + $0x98] sm:$0x1]
        %v1050 = vld [vmem:[%s833 + $0x9c] sm:$0xf]
        %v1051 = vld [vmem:[%s833 + $0xa0] sm:$0xf]
        %v1052 = vld [vmem:[%s833 + $0xa4] sm:$0x1]
        %v1053 = vld [vmem:[%s833 + $0xa8] sm:$0xf]
        %v1054 = vld [vmem:[%s833 + $0xac] sm:$0xf]
        %v1055 = vld [vmem:[%s833 + $0xb0] sm:$0x1]
        %v1056 = vld [vmem:[%s833 + $0xb4] sm:$0xf]
        %v1057 = vld [vmem:[%s833 + $0xb8] sm:$0xf]
        %v1058 = vld [vmem:[%s833 + $0xbc] sm:$0x1]
        %v1060 = vshrl.u32 %v1011, 16
        %v1062 = vrot.slane %v1060, 4
        %v1063 = vshll.u32 %v1011, 16
        %v1065 = vrot.slane %v1063, 5
        %v1066 = vor.u32 %v1062, %v1065
        %v1067 = vrot.slane %v1066, 4
        %v1069 = vshll.u32 %v1012, 16
        %v1071 = vrot.slane %v1069, 5
        %v1072 = vsel %vm365, %v1067, %v1071
        %v1073 = vshrl.u32 %v1012, 16
        %v1075 = vrot.slane %v1073, 4
        %v1076 = vor.u32 %v1075, %v1071
        %v1077 = vrot.slane %v1076, 4
        %v1079 = vshll.u32 %v1013, 16
        %v1081 = vrot.slane %v1079, 5
        %v1082 = vsel %vm365, %v1077, %v1081
        %v1084 = vshrl.u32 %v1014, 16
        %v1086 = vrot.slane %v1084, 4
        %v1087 = vshll.u32 %v1014, 16
        %v1089 = vrot.slane %v1087, 5
        %v1090 = vor.u32 %v1086, %v1089
        %v1091 = vrot.slane %v1090, 4
        %v1093 = vshll.u32 %v1015, 16
        %v1095 = vrot.slane %v1093, 5
        %v1096 = vsel %vm365, %v1091, %v1095
        %v1097 = vshrl.u32 %v1015, 16
        %v1099 = vrot.slane %v1097, 4
        %v1100 = vor.u32 %v1099, %v1095
        %v1101 = vrot.slane %v1100, 4
        %v1103 = vshll.u32 %v1016, 16
        %v1105 = vrot.slane %v1103, 5
        %v1106 = vsel %vm365, %v1101, %v1105
        %v1108 = vshrl.u32 %v1017, 16
        %v1110 = vrot.slane %v1108, 4
        %v1111 = vshll.u32 %v1017, 16
        %v1113 = vrot.slane %v1111, 5
        %v1114 = vor.u32 %v1110, %v1113
        %v1115 = vrot.slane %v1114, 4
        %v1117 = vshll.u32 %v1018, 16
        %v1119 = vrot.slane %v1117, 5
        %v1120 = vsel %vm365, %v1115, %v1119
        %v1121 = vshrl.u32 %v1018, 16
        %v1123 = vrot.slane %v1121, 4
        %v1124 = vor.u32 %v1123, %v1119
        %v1125 = vrot.slane %v1124, 4
        %v1127 = vshll.u32 %v1019, 16
        %v1129 = vrot.slane %v1127, 5
        %v1130 = vsel %vm365, %v1125, %v1129
        %v1132 = vshrl.u32 %v1020, 16
        %v1134 = vrot.slane %v1132, 4
        %v1135 = vshll.u32 %v1020, 16
        %v1137 = vrot.slane %v1135, 5
        %v1138 = vor.u32 %v1134, %v1137
        %v1139 = vrot.slane %v1138, 4
        %v1141 = vshll.u32 %v1021, 16
        %v1143 = vrot.slane %v1141, 5
        %v1144 = vsel %vm365, %v1139, %v1143
        %v1145 = vshrl.u32 %v1021, 16
        %v1147 = vrot.slane %v1145, 4
        %v1148 = vor.u32 %v1147, %v1143
        %v1149 = vrot.slane %v1148, 4
        %v1151 = vshll.u32 %v1022, 16
        %v1153 = vrot.slane %v1151, 5
        %v1154 = vsel %vm365, %v1149, %v1153
        %v1156 = vshrl.u32 %v1023, 16
        %v1158 = vrot.slane %v1156, 4
        %v1159 = vshll.u32 %v1023, 16
        %v1161 = vrot.slane %v1159, 5
        %v1162 = vor.u32 %v1158, %v1161
        %v1163 = vrot.slane %v1162, 4
        %v1165 = vshll.u32 %v1024, 16
        %v1167 = vrot.slane %v1165, 5
        %v1168 = vsel %vm365, %v1163, %v1167
        %v1169 = vshrl.u32 %v1024, 16
        %v1171 = vrot.slane %v1169, 4
        %v1172 = vor.u32 %v1171, %v1167
        %v1173 = vrot.slane %v1172, 4
        %v1175 = vshll.u32 %v1025, 16
        %v1177 = vrot.slane %v1175, 5
        %v1178 = vsel %vm365, %v1173, %v1177
        %v1180 = vshrl.u32 %v1026, 16
        %v1182 = vrot.slane %v1180, 4
        %v1183 = vshll.u32 %v1026, 16
        %v1185 = vrot.slane %v1183, 5
        %v1186 = vor.u32 %v1182, %v1185
        %v1187 = vrot.slane %v1186, 4
        %v1189 = vshll.u32 %v1027, 16
        %v1191 = vrot.slane %v1189, 5
        %v1192 = vsel %vm365, %v1187, %v1191
        %v1193 = vshrl.u32 %v1027, 16
        %v1195 = vrot.slane %v1193, 4
        %v1196 = vor.u32 %v1195, %v1191
        %v1197 = vrot.slane %v1196, 4
        %v1199 = vshll.u32 %v1028, 16
        %v1201 = vrot.slane %v1199, 5
        %v1202 = vsel %vm365, %v1197, %v1201
        %v1204 = vshrl.u32 %v1029, 16
        %v1206 = vrot.slane %v1204, 4
        %v1207 = vshll.u32 %v1029, 16
        %v1209 = vrot.slane %v1207, 5
        %v1210 = vor.u32 %v1206, %v1209
        %v1211 = vrot.slane %v1210, 4
        %v1213 = vshll.u32 %v1030, 16
        %v1215 = vrot.slane %v1213, 5
        %v1216 = vsel %vm365, %v1211, %v1215
        %v1217 = vshrl.u32 %v1030, 16
        %v1219 = vrot.slane %v1217, 4
        %v1220 = vor.u32 %v1219, %v1215
        %v1221 = vrot.slane %v1220, 4
        %v1223 = vshll.u32 %v1031, 16
        %v1225 = vrot.slane %v1223, 5
        %v1226 = vsel %vm365, %v1221, %v1225
        %v1228 = vshrl.u32 %v1032, 16
        %v1230 = vrot.slane %v1228, 4
        %v1231 = vshll.u32 %v1032, 16
        %v1233 = vrot.slane %v1231, 5
        %v1234 = vor.u32 %v1230, %v1233
        %v1235 = vrot.slane %v1234, 4
        %v1237 = vshll.u32 %v1033, 16
        %v1239 = vrot.slane %v1237, 5
        %v1240 = vsel %vm365, %v1235, %v1239
        %v1241 = vshrl.u32 %v1033, 16
        %v1243 = vrot.slane %v1241, 4
        %v1244 = vor.u32 %v1243, %v1239
        %v1245 = vrot.slane %v1244, 4
        %v1247 = vshll.u32 %v1034, 16
        %v1249 = vrot.slane %v1247, 5
        %v1250 = vsel %vm365, %v1245, %v1249
        %v1252 = vshrl.u32 %v1035, 16
        %v1254 = vrot.slane %v1252, 4
        %v1255 = vshll.u32 %v1035, 16
        %v1257 = vrot.slane %v1255, 5
        %v1258 = vor.u32 %v1254, %v1257
        %v1259 = vrot.slane %v1258, 4
        %v1261 = vshll.u32 %v1036, 16
        %v1263 = vrot.slane %v1261, 5
        %v1264 = vsel %vm365, %v1259, %v1263
        %v1265 = vshrl.u32 %v1036, 16
        %v1267 = vrot.slane %v1265, 4
        %v1268 = vor.u32 %v1267, %v1263
        %v1269 = vrot.slane %v1268, 4
        %v1271 = vshll.u32 %v1037, 16
        %v1273 = vrot.slane %v1271, 5
        %v1274 = vsel %vm365, %v1269, %v1273
        %v1276 = vshrl.u32 %v1038, 16
        %v1278 = vrot.slane %v1276, 4
        %v1279 = vshll.u32 %v1038, 16
        %v1281 = vrot.slane %v1279, 5
        %v1282 = vor.u32 %v1278, %v1281
        %v1283 = vrot.slane %v1282, 4
        %v1285 = vshll.u32 %v1039, 16
        %v1287 = vrot.slane %v1285, 5
        %v1288 = vsel %vm365, %v1283, %v1287
        %v1289 = vshrl.u32 %v1039, 16
        %v1291 = vrot.slane %v1289, 4
        %v1292 = vor.u32 %v1291, %v1287
        %v1293 = vrot.slane %v1292, 4
        %v1295 = vshll.u32 %v1040, 16
        %v1297 = vrot.slane %v1295, 5
        %v1298 = vsel %vm365, %v1293, %v1297
        %v1300 = vshrl.u32 %v1041, 16
        %v1302 = vrot.slane %v1300, 4
        %v1303 = vshll.u32 %v1041, 16
        %v1305 = vrot.slane %v1303, 5
        %v1306 = vor.u32 %v1302, %v1305
        %v1307 = vrot.slane %v1306, 4
        %v1309 = vshll.u32 %v1042, 16
        %v1311 = vrot.slane %v1309, 5
        %v1312 = vsel %vm365, %v1307, %v1311
        %v1313 = vshrl.u32 %v1042, 16
        %v1315 = vrot.slane %v1313, 4
        %v1316 = vor.u32 %v1315, %v1311
        %v1317 = vrot.slane %v1316, 4
        %v1319 = vshll.u32 %v1043, 16
        %v1321 = vrot.slane %v1319, 5
        %v1322 = vsel %vm365, %v1317, %v1321
        %v1324 = vshrl.u32 %v1044, 16
        %v1326 = vrot.slane %v1324, 4
        %v1327 = vshll.u32 %v1044, 16
        %v1329 = vrot.slane %v1327, 5
        %v1330 = vor.u32 %v1326, %v1329
        %v1331 = vrot.slane %v1330, 4
        %v1333 = vshll.u32 %v1045, 16
        %v1335 = vrot.slane %v1333, 5
        %v1336 = vsel %vm365, %v1331, %v1335
        %v1337 = vshrl.u32 %v1045, 16
        %v1339 = vrot.slane %v1337, 4
        %v1340 = vor.u32 %v1339, %v1335
        %v1341 = vrot.slane %v1340, 4
        %v1343 = vshll.u32 %v1046, 16
        %v1345 = vrot.slane %v1343, 5
        %v1346 = vsel %vm365, %v1341, %v1345
        %v1348 = vshrl.u32 %v1047, 16
        %v1350 = vrot.slane %v1348, 4
        %v1351 = vshll.u32 %v1047, 16
        %v1353 = vrot.slane %v1351, 5
        %v1354 = vor.u32 %v1350, %v1353
        %v1355 = vrot.slane %v1354, 4
        %v1357 = vshll.u32 %v1048, 16
        %v1359 = vrot.slane %v1357, 5
        %v1360 = vsel %vm365, %v1355, %v1359
        %v1361 = vshrl.u32 %v1048, 16
        %v1363 = vrot.slane %v1361, 4
        %v1364 = vor.u32 %v1363, %v1359
        %v1365 = vrot.slane %v1364, 4
        %v1367 = vshll.u32 %v1049, 16
        %v1369 = vrot.slane %v1367, 5
        %v1370 = vsel %vm365, %v1365, %v1369
        %v1372 = vshrl.u32 %v1050, 16
        %v1374 = vrot.slane %v1372, 4
        %v1375 = vshll.u32 %v1050, 16
        %v1377 = vrot.slane %v1375, 5
        %v1378 = vor.u32 %v1374, %v1377
        %v1379 = vrot.slane %v1378, 4
        %v1381 = vshll.u32 %v1051, 16
        %v1383 = vrot.slane %v1381, 5
        %v1384 = vsel %vm365, %v1379, %v1383
        %v1385 = vshrl.u32 %v1051, 16
        %v1387 = vrot.slane %v1385, 4
        %v1388 = vor.u32 %v1387, %v1383
        %v1389 = vrot.slane %v1388, 4
        %v1391 = vshll.u32 %v1052, 16
        %v1393 = vrot.slane %v1391, 5
        %v1394 = vsel %vm365, %v1389, %v1393
        %v1396 = vshrl.u32 %v1053, 16
        %v1398 = vrot.slane %v1396, 4
        %v1399 = vshll.u32 %v1053, 16
        %v1401 = vrot.slane %v1399, 5
        %v1402 = vor.u32 %v1398, %v1401
        %v1403 = vrot.slane %v1402, 4
        %v1405 = vshll.u32 %v1054, 16
        %v1407 = vrot.slane %v1405, 5
        %v1408 = vsel %vm365, %v1403, %v1407
        %v1409 = vshrl.u32 %v1054, 16
        %v1411 = vrot.slane %v1409, 4
        %v1412 = vor.u32 %v1411, %v1407
        %v1413 = vrot.slane %v1412, 4
        %v1415 = vshll.u32 %v1055, 16
        %v1417 = vrot.slane %v1415, 5
        %v1418 = vsel %vm365, %v1413, %v1417
        %v1420 = vshrl.u32 %v1056, 16
        %v1422 = vrot.slane %v1420, 4
        %v1423 = vshll.u32 %v1056, 16
        %v1425 = vrot.slane %v1423, 5
        %v1426 = vor.u32 %v1422, %v1425
        %v1427 = vrot.slane %v1426, 4
        %v1429 = vshll.u32 %v1057, 16
        %v1431 = vrot.slane %v1429, 5
        %v1432 = vsel %vm365, %v1427, %v1431
        %v1433 = vshrl.u32 %v1057, 16
        %v1435 = vrot.slane %v1433, 4
        %v1436 = vor.u32 %v1435, %v1431
        %v1437 = vrot.slane %v1436, 4
        %v1439 = vshll.u32 %v1058, 16
        %v1441 = vrot.slane %v1439, 5
        %v1442 = vsel %vm365, %v1437, %v1441
        %v1443 = vunpack.c.l.b16 %v1072
        %v1444 = vunpack.c.l.b16 %v1082
        %v1445 = vunpack.c.l.b16 %v1096
        %v1446 = vunpack.c.l.b16 %v1106
        %v1447 = vunpack.c.l.b16 %v1120
        %v1448 = vunpack.c.l.b16 %v1130
        %v1449 = vunpack.c.l.b16 %v1144
        %v1450 = vunpack.c.l.b16 %v1154
        %v1451 = vunpack.c.l.b16 %v1168
        %v1452 = vunpack.c.l.b16 %v1178
        %v1453 = vunpack.c.l.b16 %v1192
        %v1454 = vunpack.c.l.b16 %v1202
        %v1455 = vunpack.c.l.b16 %v1216
        %v1456 = vunpack.c.l.b16 %v1226
        %v1457 = vunpack.c.l.b16 %v1240
        %v1458 = vunpack.c.l.b16 %v1250
        %v1459 = vunpack.c.l.b16 %v1264
        %v1460 = vunpack.c.l.b16 %v1274
        %v1461 = vunpack.c.l.b16 %v1288
        %v1462 = vunpack.c.l.b16 %v1298
        %v1463 = vunpack.c.l.b16 %v1312
        %v1464 = vunpack.c.l.b16 %v1322
        %v1465 = vunpack.c.l.b16 %v1336
        %v1466 = vunpack.c.l.b16 %v1346
        %v1467 = vunpack.c.l.b16 %v1360
        %v1468 = vunpack.c.l.b16 %v1370
        %v1469 = vunpack.c.l.b16 %v1384
        %v1470 = vunpack.c.l.b16 %v1394
        %v1471 = vunpack.c.l.b16 %v1408
        %v1472 = vunpack.c.l.b16 %v1418
        %v1473 = vunpack.c.l.b16 %v1432
        %v1474 = vunpack.c.l.b16 %v1442
        %v1475 = vpack.c.b16 %v1444, %v1443
        %v1476 = vpack.c.b16 %v1446, %v1445
        %v1477 = vpack.c.b16 %v1448, %v1447
        %v1478 = vpack.c.b16 %v1450, %v1449
        %v1479 = vpack.c.b16 %v1452, %v1451
        %v1480 = vpack.c.b16 %v1454, %v1453
        %v1481 = vpack.c.b16 %v1456, %v1455
        %v1482 = vpack.c.b16 %v1458, %v1457
        %v1483 = vpack.c.b16 %v1460, %v1459
        %v1484 = vpack.c.b16 %v1462, %v1461
        %v1485 = vpack.c.b16 %v1464, %v1463
        %v1486 = vpack.c.b16 %v1466, %v1465
        %v1487 = vpack.c.b16 %v1468, %v1467
        %v1488 = vpack.c.b16 %v1470, %v1469
        %v1489 = vpack.c.b16 %v1472, %v1471
        %v1490 = vpack.c.b16 %v1474, %v1473
        %1491 = vrot.lane.b32.xlu0 %v1475, 8
        %v1492 = vpop.permute.xlu0 %1491
        %1493 = vrot.lane.b32.xlu0 %v1476, 8
        %v1494 = vpop.permute.xlu0 %1493
        %1495 = vrot.lane.b32.xlu0 %v1477, 8
        %v1496 = vpop.permute.xlu0 %1495
        %1497 = vrot.lane.b32.xlu0 %v1478, 8
        %v1498 = vpop.permute.xlu0 %1497
        %1499 = vrot.lane.b32.xlu0 %v1479, 8
        %v1500 = vpop.permute.xlu0 %1499
        %1501 = vrot.lane.b32.xlu0 %v1480, 8
        %v1502 = vpop.permute.xlu0 %1501
        %1503 = vrot.lane.b32.xlu0 %v1481, 8
        %v1504 = vpop.permute.xlu0 %1503
        %1505 = vrot.lane.b32.xlu0 %v1482, 8
        %v1506 = vpop.permute.xlu0 %1505
        %1507 = vrot.lane.b32.xlu0 %v1483, 8
        %v1508 = vpop.permute.xlu0 %1507
        %1509 = vrot.lane.b32.xlu0 %v1484, 8
        %v1510 = vpop.permute.xlu0 %1509
        %1511 = vrot.lane.b32.xlu0 %v1485, 8
        %v1512 = vpop.permute.xlu0 %1511
        %1513 = vrot.lane.b32.xlu0 %v1486, 8
        %v1514 = vpop.permute.xlu0 %1513
        %1515 = vrot.lane.b32.xlu0 %v1487, 8
        %v1516 = vpop.permute.xlu0 %1515
        %1517 = vrot.lane.b32.xlu0 %v1488, 8
        %v1518 = vpop.permute.xlu0 %1517
        %1519 = vrot.lane.b32.xlu0 %v1489, 8
        %v1520 = vpop.permute.xlu0 %1519
        %1521 = vrot.lane.b32.xlu0 %v1490, 8
        %v1522 = vpop.permute.xlu0 %1521
        %vm1539 = vcmask 97344
        %1540 = vst.msk [vmem:[#allocation2] sm:$0xff] %vm1539, %v1492
        %1541 = vst.msk [vmem:[#allocation2 + $0x8] sm:$0xff] %vm1539, %v1494
        %1542 = vst.msk [vmem:[#allocation2 + $0x10] sm:$0xff] %vm1539, %v1496
        %1543 = vst.msk [vmem:[#allocation2 + $0x18] sm:$0xff] %vm1539, %v1498
        %1544 = vst.msk [vmem:[#allocation2 + $0x20] sm:$0xff] %vm1539, %v1500
        %1545 = vst.msk [vmem:[#allocation2 + $0x28] sm:$0xff] %vm1539, %v1502
        %1546 = vst.msk [vmem:[#allocation2 + $0x30] sm:$0xff] %vm1539, %v1504
        %1547 = vst.msk [vmem:[#allocation2 + $0x38] sm:$0xff] %vm1539, %v1506
        %1548 = vst.msk [vmem:[#allocation2 + $0x40] sm:$0xff] %vm1539, %v1508
        %1549 = vst.msk [vmem:[#allocation2 + $0x48] sm:$0xff] %vm1539, %v1510
        %1550 = vst.msk [vmem:[#allocation2 + $0x50] sm:$0xff] %vm1539, %v1512
        %1551 = vst.msk [vmem:[#allocation2 + $0x58] sm:$0xff] %vm1539, %v1514
        %1552 = vst.msk [vmem:[#allocation2 + $0x60] sm:$0xff] %vm1539, %v1516
        %1553 = vst.msk [vmem:[#allocation2 + $0x68] sm:$0xff] %vm1539, %v1518
        %1554 = vst.msk [vmem:[#allocation2 + $0x70] sm:$0xff] %vm1539, %v1520
        %1555 = vst.msk [vmem:[#allocation2 + $0x78] sm:$0xff] %vm1539, %v1522
        %v1556 = vld [vmem:[%s833] sm:$0xe]
        %v1557 = vld [vmem:[%s833 + $0x4] sm:$0xf]
        %v1558 = vld [vmem:[%s833 + $0x8] sm:$0x1]
        %v1559 = vld [vmem:[%s833 + $0xc] sm:$0xe]
        %v1560 = vld [vmem:[%s833 + $0x10] sm:$0xf]
        %v1561 = vld [vmem:[%s833 + $0x14] sm:$0x1]
        %v1562 = vld [vmem:[%s833 + $0x18] sm:$0xe]
        %v1563 = vld [vmem:[%s833 + $0x1c] sm:$0xf]
        %v1564 = vld [vmem:[%s833 + $0x20] sm:$0x1]
        %v1565 = vld [vmem:[%s833 + $0x24] sm:$0xe]
        %v1566 = vld [vmem:[%s833 + $0x28] sm:$0xf]
        %v1567 = vld [vmem:[%s833 + $0x2c] sm:$0x1]
        %v1568 = vld [vmem:[%s833 + $0x30] sm:$0xe]
        %v1569 = vld [vmem:[%s833 + $0x34] sm:$0xf]
        %v1570 = vld [vmem:[%s833 + $0x38] sm:$0x1]
        %v1571 = vld [vmem:[%s833 + $0x3c] sm:$0xe]
        %v1572 = vld [vmem:[%s833 + $0x40] sm:$0xf]
        %v1573 = vld [vmem:[%s833 + $0x44] sm:$0x1]
        %v1574 = vld [vmem:[%s833 + $0x48] sm:$0xe]
        %v1575 = vld [vmem:[%s833 + $0x4c] sm:$0xf]
        %v1576 = vld [vmem:[%s833 + $0x50] sm:$0x1]
        %v1577 = vld [vmem:[%s833 + $0x54] sm:$0xe]
        %v1578 = vld [vmem:[%s833 + $0x58] sm:$0xf]
        %v1579 = vld [vmem:[%s833 + $0x5c] sm:$0x1]
        %v1580 = vld [vmem:[%s833 + $0x60] sm:$0xe]
        %v1581 = vld [vmem:[%s833 + $0x64] sm:$0xf]
        %v1582 = vld [vmem:[%s833 + $0x68] sm:$0x1]
        %v1583 = vld [vmem:[%s833 + $0x6c] sm:$0xe]
        %v1584 = vld [vmem:[%s833 + $0x70] sm:$0xf]
        %v1585 = vld [vmem:[%s833 + $0x74] sm:$0x1]
        %v1586 = vld [vmem:[%s833 + $0x78] sm:$0xe]
        %v1587 = vld [vmem:[%s833 + $0x7c] sm:$0xf]
        %v1588 = vld [vmem:[%s833 + $0x80] sm:$0x1]
        %v1589 = vld [vmem:[%s833 + $0x84] sm:$0xe]
        %v1590 = vld [vmem:[%s833 + $0x88] sm:$0xf]
        %v1591 = vld [vmem:[%s833 + $0x8c] sm:$0x1]
        %v1592 = vld [vmem:[%s833 + $0x90] sm:$0xe]
        %v1593 = vld [vmem:[%s833 + $0x94] sm:$0xf]
        %v1594 = vld [vmem:[%s833 + $0x98] sm:$0x1]
        %v1595 = vld [vmem:[%s833 + $0x9c] sm:$0xe]
        %v1596 = vld [vmem:[%s833 + $0xa0] sm:$0xf]
        %v1597 = vld [vmem:[%s833 + $0xa4] sm:$0x1]
        %v1598 = vld [vmem:[%s833 + $0xa8] sm:$0xe]
        %v1599 = vld [vmem:[%s833 + $0xac] sm:$0xf]
        %v1600 = vld [vmem:[%s833 + $0xb0] sm:$0x1]
        %v1601 = vld [vmem:[%s833 + $0xb4] sm:$0xe]
        %v1602 = vld [vmem:[%s833 + $0xb8] sm:$0xf]
        %v1603 = vld [vmem:[%s833 + $0xbc] sm:$0x1]
        %vm1652 = vcmask 1042432
        %vm1653 = vcmask 1046532
        %vm1654 = vmor %vm1652, %vm1653
        %v1655 = vrot.slane %v1556, 5
        %v1656 = vrot.slane %v1655, 4
        %v1657 = vrot.slane %v1557, 5
        %v1658 = vsel %vm1654, %v1656, %v1657
        %v1659 = vrot.slane %v1657, 4
        %v1660 = vrot.slane %v1558, 5
        %v1661 = vsel %vm1654, %v1659, %v1660
        %v1662 = vrot.slane %v1559, 5
        %v1663 = vrot.slane %v1662, 4
        %v1664 = vrot.slane %v1560, 5
        %v1665 = vsel %vm1654, %v1663, %v1664
        %v1666 = vrot.slane %v1664, 4
        %v1667 = vrot.slane %v1561, 5
        %v1668 = vsel %vm1654, %v1666, %v1667
        %v1669 = vrot.slane %v1562, 5
        %v1670 = vrot.slane %v1669, 4
        %v1671 = vrot.slane %v1563, 5
        %v1672 = vsel %vm1654, %v1670, %v1671
        %v1673 = vrot.slane %v1671, 4
        %v1674 = vrot.slane %v1564, 5
        %v1675 = vsel %vm1654, %v1673, %v1674
        %v1676 = vrot.slane %v1565, 5
        %v1677 = vrot.slane %v1676, 4
        %v1678 = vrot.slane %v1566, 5
        %v1679 = vsel %vm1654, %v1677, %v1678
        %v1680 = vrot.slane %v1678, 4
        %v1681 = vrot.slane %v1567, 5
        %v1682 = vsel %vm1654, %v1680, %v1681
        %v1683 = vrot.slane %v1568, 5
        %v1684 = vrot.slane %v1683, 4
        %v1685 = vrot.slane %v1569, 5
        %v1686 = vsel %vm1654, %v1684, %v1685
        %v1687 = vrot.slane %v1685, 4
        %v1688 = vrot.slane %v1570, 5
        %v1689 = vsel %vm1654, %v1687, %v1688
        %v1690 = vrot.slane %v1571, 5
        %v1691 = vrot.slane %v1690, 4
        %v1692 = vrot.slane %v1572, 5
        %v1693 = vsel %vm1654, %v1691, %v1692
        %v1694 = vrot.slane %v1692, 4
        %v1695 = vrot.slane %v1573, 5
        %v1696 = vsel %vm1654, %v1694, %v1695
        %v1697 = vrot.slane %v1574, 5
        %v1698 = vrot.slane %v1697, 4
        %v1699 = vrot.slane %v1575, 5
        %v1700 = vsel %vm1654, %v1698, %v1699
        %v1701 = vrot.slane %v1699, 4
        %v1702 = vrot.slane %v1576, 5
        %v1703 = vsel %vm1654, %v1701, %v1702
        %v1704 = vrot.slane %v1577, 5
        %v1705 = vrot.slane %v1704, 4
        %v1706 = vrot.slane %v1578, 5
        %v1707 = vsel %vm1654, %v1705, %v1706
        %v1708 = vrot.slane %v1706, 4
        %v1709 = vrot.slane %v1579, 5
        %v1710 = vsel %vm1654, %v1708, %v1709
        %v1711 = vrot.slane %v1580, 5
        %v1712 = vrot.slane %v1711, 4
        %v1713 = vrot.slane %v1581, 5
        %v1714 = vsel %vm1654, %v1712, %v1713
        %v1715 = vrot.slane %v1713, 4
        %v1716 = vrot.slane %v1582, 5
        %v1717 = vsel %vm1654, %v1715, %v1716
        %v1718 = vrot.slane %v1583, 5
        %v1719 = vrot.slane %v1718, 4
        %v1720 = vrot.slane %v1584, 5
        %v1721 = vsel %vm1654, %v1719, %v1720
        %v1722 = vrot.slane %v1720, 4
        %v1723 = vrot.slane %v1585, 5
        %v1724 = vsel %vm1654, %v1722, %v1723
        %v1725 = vrot.slane %v1586, 5
        %v1726 = vrot.slane %v1725, 4
        %v1727 = vrot.slane %v1587, 5
        %v1728 = vsel %vm1654, %v1726, %v1727
        %v1729 = vrot.slane %v1727, 4
        %v1730 = vrot.slane %v1588, 5
        %v1731 = vsel %vm1654, %v1729, %v1730
        %v1732 = vrot.slane %v1589, 5
        %v1733 = vrot.slane %v1732, 4
        %v1734 = vrot.slane %v1590, 5
        %v1735 = vsel %vm1654, %v1733, %v1734
        %v1736 = vrot.slane %v1734, 4
        %v1737 = vrot.slane %v1591, 5
        %v1738 = vsel %vm1654, %v1736, %v1737
        %v1739 = vrot.slane %v1592, 5
        %v1740 = vrot.slane %v1739, 4
        %v1741 = vrot.slane %v1593, 5
        %v1742 = vsel %vm1654, %v1740, %v1741
        %v1743 = vrot.slane %v1741, 4
        %v1744 = vrot.slane %v1594, 5
        %v1745 = vsel %vm1654, %v1743, %v1744
        %v1746 = vrot.slane %v1595, 5
        %v1747 = vrot.slane %v1746, 4
        %v1748 = vrot.slane %v1596, 5
        %v1749 = vsel %vm1654, %v1747, %v1748
        %v1750 = vrot.slane %v1748, 4
        %v1751 = vrot.slane %v1597, 5
        %v1752 = vsel %vm1654, %v1750, %v1751
        %v1753 = vrot.slane %v1598, 5
        %v1754 = vrot.slane %v1753, 4
        %v1755 = vrot.slane %v1599, 5
        %v1756 = vsel %vm1654, %v1754, %v1755
        %v1757 = vrot.slane %v1755, 4
        %v1758 = vrot.slane %v1600, 5
        %v1759 = vsel %vm1654, %v1757, %v1758
        %v1760 = vrot.slane %v1601, 5
        %v1761 = vrot.slane %v1760, 4
        %v1762 = vrot.slane %v1602, 5
        %v1763 = vsel %vm1654, %v1761, %v1762
        %v1764 = vrot.slane %v1762, 4
        %v1765 = vrot.slane %v1603, 5
        %v1766 = vsel %vm1654, %v1764, %v1765
        %v1767 = vunpack.c.l.b16 %v1658
        %v1768 = vunpack.c.l.b16 %v1661
        %v1769 = vunpack.c.l.b16 %v1665
        %v1770 = vunpack.c.l.b16 %v1668
        %v1771 = vunpack.c.l.b16 %v1672
        %v1772 = vunpack.c.l.b16 %v1675
        %v1773 = vunpack.c.l.b16 %v1679
        %v1774 = vunpack.c.l.b16 %v1682
        %v1775 = vunpack.c.l.b16 %v1686
        %v1776 = vunpack.c.l.b16 %v1689
        %v1777 = vunpack.c.l.b16 %v1693
        %v1778 = vunpack.c.l.b16 %v1696
        %v1779 = vunpack.c.l.b16 %v1700
        %v1780 = vunpack.c.l.b16 %v1703
        %v1781 = vunpack.c.l.b16 %v1707
        %v1782 = vunpack.c.l.b16 %v1710
        %v1783 = vunpack.c.l.b16 %v1714
        %v1784 = vunpack.c.l.b16 %v1717
        %v1785 = vunpack.c.l.b16 %v1721
        %v1786 = vunpack.c.l.b16 %v1724
        %v1787 = vunpack.c.l.b16 %v1728
        %v1788 = vunpack.c.l.b16 %v1731
        %v1789 = vunpack.c.l.b16 %v1735
        %v1790 = vunpack.c.l.b16 %v1738
        %v1791 = vunpack.c.l.b16 %v1742
        %v1792 = vunpack.c.l.b16 %v1745
        %v1793 = vunpack.c.l.b16 %v1749
        %v1794 = vunpack.c.l.b16 %v1752
        %v1795 = vunpack.c.l.b16 %v1756
        %v1796 = vunpack.c.l.b16 %v1759
        %v1797 = vunpack.c.l.b16 %v1763
        %v1798 = vunpack.c.l.b16 %v1766
        %v1799 = vpack.c.b16 %v1768, %v1767
        %v1800 = vpack.c.b16 %v1770, %v1769
        %v1801 = vpack.c.b16 %v1772, %v1771
        %v1802 = vpack.c.b16 %v1774, %v1773
        %v1803 = vpack.c.b16 %v1776, %v1775
        %v1804 = vpack.c.b16 %v1778, %v1777
        %v1805 = vpack.c.b16 %v1780, %v1779
        %v1806 = vpack.c.b16 %v1782, %v1781
        %v1807 = vpack.c.b16 %v1784, %v1783
        %v1808 = vpack.c.b16 %v1786, %v1785
        %v1809 = vpack.c.b16 %v1788, %v1787
        %v1810 = vpack.c.b16 %v1790, %v1789
        %v1811 = vpack.c.b16 %v1792, %v1791
        %v1812 = vpack.c.b16 %v1794, %v1793
        %v1813 = vpack.c.b16 %v1796, %v1795
        %v1814 = vpack.c.b16 %v1798, %v1797
        %1815 = vrot.lane.b32.xlu0 %v1799, 12
        %v1816 = vpop.permute.xlu0 %1815
        %1817 = vrot.lane.b32.xlu0 %v1800, 12
        %v1818 = vpop.permute.xlu0 %1817
        %1819 = vrot.lane.b32.xlu0 %v1801, 12
        %v1820 = vpop.permute.xlu0 %1819
        %1821 = vrot.lane.b32.xlu0 %v1802, 12
        %v1822 = vpop.permute.xlu0 %1821
        %1823 = vrot.lane.b32.xlu0 %v1803, 12
        %v1824 = vpop.permute.xlu0 %1823
        %1825 = vrot.lane.b32.xlu0 %v1804, 12
        %v1826 = vpop.permute.xlu0 %1825
        %1827 = vrot.lane.b32.xlu0 %v1805, 12
        %v1828 = vpop.permute.xlu0 %1827
        %1829 = vrot.lane.b32.xlu0 %v1806, 12
        %v1830 = vpop.permute.xlu0 %1829
        %1831 = vrot.lane.b32.xlu0 %v1807, 12
        %v1832 = vpop.permute.xlu0 %1831
        %1833 = vrot.lane.b32.xlu0 %v1808, 12
        %v1834 = vpop.permute.xlu0 %1833
        %1835 = vrot.lane.b32.xlu0 %v1809, 12
        %v1836 = vpop.permute.xlu0 %1835
        %1837 = vrot.lane.b32.xlu0 %v1810, 12
        %v1838 = vpop.permute.xlu0 %1837
        %1839 = vrot.lane.b32.xlu0 %v1811, 12
        %v1840 = vpop.permute.xlu0 %1839
        %1841 = vrot.lane.b32.xlu0 %v1812, 12
        %v1842 = vpop.permute.xlu0 %1841
        %1843 = vrot.lane.b32.xlu0 %v1813, 12
        %v1844 = vpop.permute.xlu0 %1843
        %1845 = vrot.lane.b32.xlu0 %v1814, 12
        %v1846 = vpop.permute.xlu0 %1845
        %vm1863 = vcmask 130144
        %1864 = vst.msk [vmem:[#allocation2] sm:$0xff] %vm1863, %v1816
        %1865 = vst.msk [vmem:[#allocation2 + $0x8] sm:$0xff] %vm1863, %v1818
        %1866 = vst.msk [vmem:[#allocation2 + $0x10] sm:$0xff] %vm1863, %v1820
        %1867 = vst.msk [vmem:[#allocation2 + $0x18] sm:$0xff] %vm1863, %v1822
        %1868 = vst.msk [vmem:[#allocation2 + $0x20] sm:$0xff] %vm1863, %v1824
        %1869 = vst.msk [vmem:[#allocation2 + $0x28] sm:$0xff] %vm1863, %v1826
        %1870 = vst.msk [vmem:[#allocation2 + $0x30] sm:$0xff] %vm1863, %v1828
        %1871 = vst.msk [vmem:[#allocation2 + $0x38] sm:$0xff] %vm1863, %v1830
        %1872 = vst.msk [vmem:[#allocation2 + $0x40] sm:$0xff] %vm1863, %v1832
        %1873 = vst.msk [vmem:[#allocation2 + $0x48] sm:$0xff] %vm1863, %v1834
        %1874 = vst.msk [vmem:[#allocation2 + $0x50] sm:$0xff] %vm1863, %v1836
        %1875 = vst.msk [vmem:[#allocation2 + $0x58] sm:$0xff] %vm1863, %v1838
        %1876 = vst.msk [vmem:[#allocation2 + $0x60] sm:$0xff] %vm1863, %v1840
        %1877 = vst.msk [vmem:[#allocation2 + $0x68] sm:$0xff] %vm1863, %v1842
        %1878 = vst.msk [vmem:[#allocation2 + $0x70] sm:$0xff] %vm1863, %v1844
        %1879 = vst.msk [vmem:[#allocation2 + $0x78] sm:$0xff] %vm1863, %v1846
        %v1880 = vld [vmem:[%s314] sm:$0xf]
        %v1881 = vld [vmem:[%s314 + $0x4] sm:$0xf]
        %v1882 = vld [vmem:[%s314 + $0xc] sm:$0xf]
        %v1883 = vld [vmem:[%s314 + $0x10] sm:$0xf]
        %v1884 = vld [vmem:[%s314 + $0x18] sm:$0xf]
        %v1885 = vld [vmem:[%s314 + $0x1c] sm:$0xf]
        %v1886 = vld [vmem:[%s314 + $0x24] sm:$0xf]
        %v1887 = vld [vmem:[%s314 + $0x28] sm:$0xf]
        %v1888 = vld [vmem:[%s314 + $0x30] sm:$0xf]
        %v1889 = vld [vmem:[%s314 + $0x34] sm:$0xf]
        %v1890 = vld [vmem:[%s314 + $0x3c] sm:$0xf]
        %v1891 = vld [vmem:[%s314 + $0x40] sm:$0xf]
        %v1892 = vld [vmem:[%s314 + $0x48] sm:$0xf]
        %v1893 = vld [vmem:[%s314 + $0x4c] sm:$0xf]
        %v1894 = vld [vmem:[%s314 + $0x54] sm:$0xf]
        %v1895 = vld [vmem:[%s314 + $0x58] sm:$0xf]
        %v1896 = vld [vmem:[%s314 + $0x60] sm:$0xf]
        %v1897 = vld [vmem:[%s314 + $0x64] sm:$0xf]
        %v1898 = vld [vmem:[%s314 + $0x6c] sm:$0xf]
        %v1899 = vld [vmem:[%s314 + $0x70] sm:$0xf]
        %v1900 = vld [vmem:[%s314 + $0x78] sm:$0xf]
        %v1901 = vld [vmem:[%s314 + $0x7c] sm:$0xf]
        %v1902 = vld [vmem:[%s314 + $0x84] sm:$0xf]
        %v1903 = vld [vmem:[%s314 + $0x88] sm:$0xf]
        %v1904 = vld [vmem:[%s314 + $0x90] sm:$0xf]
        %v1905 = vld [vmem:[%s314 + $0x94] sm:$0xf]
        %v1906 = vld [vmem:[%s314 + $0x9c] sm:$0xf]
        %v1907 = vld [vmem:[%s314 + $0xa0] sm:$0xf]
        %v1908 = vld [vmem:[%s314 + $0xa8] sm:$0xf]
        %v1909 = vld [vmem:[%s314 + $0xac] sm:$0xf]
        %v1910 = vld [vmem:[%s314 + $0xb4] sm:$0xf]
        %v1911 = vld [vmem:[%s314 + $0xb8] sm:$0xf]
        %v1944 = vunpack.c.l.b16 %v1880
        %v1945 = vunpack.c.l.b16 %v1881
        %v1946 = vunpack.c.l.b16 %v1882
        %v1947 = vunpack.c.l.b16 %v1883
        %v1948 = vunpack.c.l.b16 %v1884
        %v1949 = vunpack.c.l.b16 %v1885
        %v1950 = vunpack.c.l.b16 %v1886
        %v1951 = vunpack.c.l.b16 %v1887
        %v1952 = vunpack.c.l.b16 %v1888
        %v1953 = vunpack.c.l.b16 %v1889
        %v1954 = vunpack.c.l.b16 %v1890
        %v1955 = vunpack.c.l.b16 %v1891
        %v1956 = vunpack.c.l.b16 %v1892
        %v1957 = vunpack.c.l.b16 %v1893
        %v1958 = vunpack.c.l.b16 %v1894
        %v1959 = vunpack.c.l.b16 %v1895
        %v1960 = vunpack.c.l.b16 %v1896
        %v1961 = vunpack.c.l.b16 %v1897
        %v1962 = vunpack.c.l.b16 %v1898
        %v1963 = vunpack.c.l.b16 %v1899
        %v1964 = vunpack.c.l.b16 %v1900
        %v1965 = vunpack.c.l.b16 %v1901
        %v1966 = vunpack.c.l.b16 %v1902
        %v1967 = vunpack.c.l.b16 %v1903
        %v1968 = vunpack.c.l.b16 %v1904
        %v1969 = vunpack.c.l.b16 %v1905
        %v1970 = vunpack.c.l.b16 %v1906
        %v1971 = vunpack.c.l.b16 %v1907
        %v1972 = vunpack.c.l.b16 %v1908
        %v1973 = vunpack.c.l.b16 %v1909
        %v1974 = vunpack.c.l.b16 %v1910
        %v1975 = vunpack.c.l.b16 %v1911
        %v1976 = vpack.c.b16 %v1945, %v1944
        %v1977 = vpack.c.b16 %v1947, %v1946
        %v1978 = vpack.c.b16 %v1949, %v1948
        %v1979 = vpack.c.b16 %v1951, %v1950
        %v1980 = vpack.c.b16 %v1953, %v1952
        %v1981 = vpack.c.b16 %v1955, %v1954
        %v1982 = vpack.c.b16 %v1957, %v1956
        %v1983 = vpack.c.b16 %v1959, %v1958
        %v1984 = vpack.c.b16 %v1961, %v1960
        %v1985 = vpack.c.b16 %v1963, %v1962
        %v1986 = vpack.c.b16 %v1965, %v1964
        %v1987 = vpack.c.b16 %v1967, %v1966
        %v1988 = vpack.c.b16 %v1969, %v1968
        %v1989 = vpack.c.b16 %v1971, %v1970
        %v1990 = vpack.c.b16 %v1973, %v1972
        %v1991 = vpack.c.b16 %v1975, %v1974
        %1992 = vrot.lane.b32.xlu0 %v1976, 16
        %v1993 = vpop.permute.xlu0 %1992
        %1994 = vrot.lane.b32.xlu0 %v1977, 16
        %v1995 = vpop.permute.xlu0 %1994
        %1996 = vrot.lane.b32.xlu0 %v1978, 16
        %v1997 = vpop.permute.xlu0 %1996
        %1998 = vrot.lane.b32.xlu0 %v1979, 16
        %v1999 = vpop.permute.xlu0 %1998
        %2000 = vrot.lane.b32.xlu0 %v1980, 16
        %v2001 = vpop.permute.xlu0 %2000
        %2002 = vrot.lane.b32.xlu0 %v1981, 16
        %v2003 = vpop.permute.xlu0 %2002
        %2004 = vrot.lane.b32.xlu0 %v1982, 16
        %v2005 = vpop.permute.xlu0 %2004
        %2006 = vrot.lane.b32.xlu0 %v1983, 16
        %v2007 = vpop.permute.xlu0 %2006
        %2008 = vrot.lane.b32.xlu0 %v1984, 16
        %v2009 = vpop.permute.xlu0 %2008
        %2010 = vrot.lane.b32.xlu0 %v1985, 16
        %v2011 = vpop.permute.xlu0 %2010
        %2012 = vrot.lane.b32.xlu0 %v1986, 16
        %v2013 = vpop.permute.xlu0 %2012
        %2014 = vrot.lane.b32.xlu0 %v1987, 16
        %v2015 = vpop.permute.xlu0 %2014
        %2016 = vrot.lane.b32.xlu0 %v1988, 16
        %v2017 = vpop.permute.xlu0 %2016
        %2018 = vrot.lane.b32.xlu0 %v1989, 16
        %v2019 = vpop.permute.xlu0 %2018
        %2020 = vrot.lane.b32.xlu0 %v1990, 16
        %v2021 = vpop.permute.xlu0 %2020
        %2022 = vrot.lane.b32.xlu0 %v1991, 16
        %v2023 = vpop.permute.xlu0 %2022
        %vm2040 = vcmask 162944
        %2041 = vst.msk [vmem:[#allocation2] sm:$0xff] %vm2040, %v1993
        %2042 = vst.msk [vmem:[#allocation2 + $0x8] sm:$0xff] %vm2040, %v1995
        %2043 = vst.msk [vmem:[#allocation2 + $0x10] sm:$0xff] %vm2040, %v1997
        %2044 = vst.msk [vmem:[#allocation2 + $0x18] sm:$0xff] %vm2040, %v1999
        %2045 = vst.msk [vmem:[#allocation2 + $0x20] sm:$0xff] %vm2040, %v2001
        %2046 = vst.msk [vmem:[#allocation2 + $0x28] sm:$0xff] %vm2040, %v2003
        %2047 = vst.msk [vmem:[#allocation2 + $0x30] sm:$0xff] %vm2040, %v2005
        %2048 = vst.msk [vmem:[#allocation2 + $0x38] sm:$0xff] %vm2040, %v2007
        %2049 = vst.msk [vmem:[#allocation2 + $0x40] sm:$0xff] %vm2040, %v2009
        %2050 = vst.msk [vmem:[#allocation2 + $0x48] sm:$0xff] %vm2040, %v2011
        %2051 = vst.msk [vmem:[#allocation2 + $0x50] sm:$0xff] %vm2040, %v2013
        %2052 = vst.msk [vmem:[#allocation2 + $0x58] sm:$0xff] %vm2040, %v2015
        %2053 = vst.msk [vmem:[#allocation2 + $0x60] sm:$0xff] %vm2040, %v2017
        %2054 = vst.msk [vmem:[#allocation2 + $0x68] sm:$0xff] %vm2040, %v2019
        %2055 = vst.msk [vmem:[#allocation2 + $0x70] sm:$0xff] %vm2040, %v2021
        %2056 = vst.msk [vmem:[#allocation2 + $0x78] sm:$0xff] %vm2040, %v2023
        %v2057 = vld [vmem:[%s314] sm:$0xe]
        %v2058 = vld [vmem:[%s314 + $0x4] sm:$0xf]
        %v2059 = vld [vmem:[%s314 + $0x8] sm:$0x1]
        %v2060 = vld [vmem:[%s314 + $0xc] sm:$0xe]
        %v2061 = vld [vmem:[%s314 + $0x10] sm:$0xf]
        %v2062 = vld [vmem:[%s314 + $0x14] sm:$0x1]
        %v2063 = vld [vmem:[%s314 + $0x18] sm:$0xe]
        %v2064 = vld [vmem:[%s314 + $0x1c] sm:$0xf]
        %v2065 = vld [vmem:[%s314 + $0x20] sm:$0x1]
        %v2066 = vld [vmem:[%s314 + $0x24] sm:$0xe]
        %v2067 = vld [vmem:[%s314 + $0x28] sm:$0xf]
        %v2068 = vld [vmem:[%s314 + $0x2c] sm:$0x1]
        %v2069 = vld [vmem:[%s314 + $0x30] sm:$0xe]
        %v2070 = vld [vmem:[%s314 + $0x34] sm:$0xf]
        %v2071 = vld [vmem:[%s314 + $0x38] sm:$0x1]
        %v2072 = vld [vmem:[%s314 + $0x3c] sm:$0xe]
        %v2073 = vld [vmem:[%s314 + $0x40] sm:$0xf]
        %v2074 = vld [vmem:[%s314 + $0x44] sm:$0x1]
        %v2075 = vld [vmem:[%s314 + $0x48] sm:$0xe]
        %v2076 = vld [vmem:[%s314 + $0x4c] sm:$0xf]
        %v2077 = vld [vmem:[%s314 + $0x50] sm:$0x1]
        %v2078 = vld [vmem:[%s314 + $0x54] sm:$0xe]
        %v2079 = vld [vmem:[%s314 + $0x58] sm:$0xf]
        %v2080 = vld [vmem:[%s314 + $0x5c] sm:$0x1]
        %v2081 = vld [vmem:[%s314 + $0x60] sm:$0xe]
        %v2082 = vld [vmem:[%s314 + $0x64] sm:$0xf]
        %v2083 = vld [vmem:[%s314 + $0x68] sm:$0x1]
        %v2084 = vld [vmem:[%s314 + $0x6c] sm:$0xe]
        %v2085 = vld [vmem:[%s314 + $0x70] sm:$0xf]
        %v2086 = vld [vmem:[%s314 + $0x74] sm:$0x1]
        %v2087 = vld [vmem:[%s314 + $0x78] sm:$0xe]
        %v2088 = vld [vmem:[%s314 + $0x7c] sm:$0xf]
        %v2089 = vld [vmem:[%s314 + $0x80] sm:$0x1]
        %v2090 = vld [vmem:[%s314 + $0x84] sm:$0xe]
        %v2091 = vld [vmem:[%s314 + $0x88] sm:$0xf]
        %v2092 = vld [vmem:[%s314 + $0x8c] sm:$0x1]
        %v2093 = vld [vmem:[%s314 + $0x90] sm:$0xe]
        %v2094 = vld [vmem:[%s314 + $0x94] sm:$0xf]
        %v2095 = vld [vmem:[%s314 + $0x98] sm:$0x1]
        %v2096 = vld [vmem:[%s314 + $0x9c] sm:$0xe]
        %v2097 = vld [vmem:[%s314 + $0xa0] sm:$0xf]
        %v2098 = vld [vmem:[%s314 + $0xa4] sm:$0x1]
        %v2099 = vld [vmem:[%s314 + $0xa8] sm:$0xe]
        %v2100 = vld [vmem:[%s314 + $0xac] sm:$0xf]
        %v2101 = vld [vmem:[%s314 + $0xb0] sm:$0x1]
        %v2102 = vld [vmem:[%s314 + $0xb4] sm:$0xe]
        %v2103 = vld [vmem:[%s314 + $0xb8] sm:$0xf]
        %v2104 = vld [vmem:[%s314 + $0xbc] sm:$0x1]
        %v2153 = vrot.slane %v2057, 5
        %v2154 = vrot.slane %v2153, 4
        %v2155 = vrot.slane %v2058, 5
        %v2156 = vsel %vm1654, %v2154, %v2155
        %v2157 = vrot.slane %v2155, 4
        %v2158 = vrot.slane %v2059, 5
        %v2159 = vsel %vm1654, %v2157, %v2158
        %v2160 = vrot.slane %v2060, 5
        %v2161 = vrot.slane %v2160, 4
        %v2162 = vrot.slane %v2061, 5
        %v2163 = vsel %vm1654, %v2161, %v2162
        %v2164 = vrot.slane %v2162, 4
        %v2165 = vrot.slane %v2062, 5
        %v2166 = vsel %vm1654, %v2164, %v2165
        %v2167 = vrot.slane %v2063, 5
        %v2168 = vrot.slane %v2167, 4
        %v2169 = vrot.slane %v2064, 5
        %v2170 = vsel %vm1654, %v2168, %v2169
        %v2171 = vrot.slane %v2169, 4
        %v2172 = vrot.slane %v2065, 5
        %v2173 = vsel %vm1654, %v2171, %v2172
        %v2174 = vrot.slane %v2066, 5
        %v2175 = vrot.slane %v2174, 4
        %v2176 = vrot.slane %v2067, 5
        %v2177 = vsel %vm1654, %v2175, %v2176
        %v2178 = vrot.slane %v2176, 4
        %v2179 = vrot.slane %v2068, 5
        %v2180 = vsel %vm1654, %v2178, %v2179
        %v2181 = vrot.slane %v2069, 5
        %v2182 = vrot.slane %v2181, 4
        %v2183 = vrot.slane %v2070, 5
        %v2184 = vsel %vm1654, %v2182, %v2183
        %v2185 = vrot.slane %v2183, 4
        %v2186 = vrot.slane %v2071, 5
        %v2187 = vsel %vm1654, %v2185, %v2186
        %v2188 = vrot.slane %v2072, 5
        %v2189 = vrot.slane %v2188, 4
        %v2190 = vrot.slane %v2073, 5
        %v2191 = vsel %vm1654, %v2189, %v2190
        %v2192 = vrot.slane %v2190, 4
        %v2193 = vrot.slane %v2074, 5
        %v2194 = vsel %vm1654, %v2192, %v2193
        %v2195 = vrot.slane %v2075, 5
        %v2196 = vrot.slane %v2195, 4
        %v2197 = vrot.slane %v2076, 5
        %v2198 = vsel %vm1654, %v2196, %v2197
        %v2199 = vrot.slane %v2197, 4
        %v2200 = vrot.slane %v2077, 5
        %v2201 = vsel %vm1654, %v2199, %v2200
        %v2202 = vrot.slane %v2078, 5
        %v2203 = vrot.slane %v2202, 4
        %v2204 = vrot.slane %v2079, 5
        %v2205 = vsel %vm1654, %v2203, %v2204
        %v2206 = vrot.slane %v2204, 4
        %v2207 = vrot.slane %v2080, 5
        %v2208 = vsel %vm1654, %v2206, %v2207
        %v2209 = vrot.slane %v2081, 5
        %v2210 = vrot.slane %v2209, 4
        %v2211 = vrot.slane %v2082, 5
        %v2212 = vsel %vm1654, %v2210, %v2211
        %v2213 = vrot.slane %v2211, 4
        %v2214 = vrot.slane %v2083, 5
        %v2215 = vsel %vm1654, %v2213, %v2214
        %v2216 = vrot.slane %v2084, 5
        %v2217 = vrot.slane %v2216, 4
        %v2218 = vrot.slane %v2085, 5
        %v2219 = vsel %vm1654, %v2217, %v2218
        %v2220 = vrot.slane %v2218, 4
        %v2221 = vrot.slane %v2086, 5
        %v2222 = vsel %vm1654, %v2220, %v2221
        %v2223 = vrot.slane %v2087, 5
        %v2224 = vrot.slane %v2223, 4
        %v2225 = vrot.slane %v2088, 5
        %v2226 = vsel %vm1654, %v2224, %v2225
        %v2227 = vrot.slane %v2225, 4
        %v2228 = vrot.slane %v2089, 5
        %v2229 = vsel %vm1654, %v2227, %v2228
        %v2230 = vrot.slane %v2090, 5
        %v2231 = vrot.slane %v2230, 4
        %v2232 = vrot.slane %v2091, 5
        %v2233 = vsel %vm1654, %v2231, %v2232
        %v2234 = vrot.slane %v2232, 4
        %v2235 = vrot.slane %v2092, 5
        %v2236 = vsel %vm1654, %v2234, %v2235
        %v2237 = vrot.slane %v2093, 5
        %v2238 = vrot.slane %v2237, 4
        %v2239 = vrot.slane %v2094, 5
        %v2240 = vsel %vm1654, %v2238, %v2239
        %v2241 = vrot.slane %v2239, 4
        %v2242 = vrot.slane %v2095, 5
        %v2243 = vsel %vm1654, %v2241, %v2242
        %v2244 = vrot.slane %v2096, 5
        %v2245 = vrot.slane %v2244, 4
        %v2246 = vrot.slane %v2097, 5
        %v2247 = vsel %vm1654, %v2245, %v2246
        %v2248 = vrot.slane %v2246, 4
        %v2249 = vrot.slane %v2098, 5
        %v2250 = vsel %vm1654, %v2248, %v2249
        %v2251 = vrot.slane %v2099, 5
        %v2252 = vrot.slane %v2251, 4
        %v2253 = vrot.slane %v2100, 5
        %v2254 = vsel %vm1654, %v2252, %v2253
        %v2255 = vrot.slane %v2253, 4
        %v2256 = vrot.slane %v2101, 5
        %v2257 = vsel %vm1654, %v2255, %v2256
        %v2258 = vrot.slane %v2102, 5
        %v2259 = vrot.slane %v2258, 4
        %v2260 = vrot.slane %v2103, 5
        %v2261 = vsel %vm1654, %v2259, %v2260
        %v2262 = vrot.slane %v2260, 4
        %v2263 = vrot.slane %v2104, 5
        %v2264 = vsel %vm1654, %v2262, %v2263
        %v2265 = vunpack.c.l.b16 %v2156
        %v2266 = vunpack.c.l.b16 %v2159
        %v2267 = vunpack.c.l.b16 %v2163
        %v2268 = vunpack.c.l.b16 %v2166
        %v2269 = vunpack.c.l.b16 %v2170
        %v2270 = vunpack.c.l.b16 %v2173
        %v2271 = vunpack.c.l.b16 %v2177
        %v2272 = vunpack.c.l.b16 %v2180
        %v2273 = vunpack.c.l.b16 %v2184
        %v2274 = vunpack.c.l.b16 %v2187
        %v2275 = vunpack.c.l.b16 %v2191
        %v2276 = vunpack.c.l.b16 %v2194
        %v2277 = vunpack.c.l.b16 %v2198
        %v2278 = vunpack.c.l.b16 %v2201
        %v2279 = vunpack.c.l.b16 %v2205
        %v2280 = vunpack.c.l.b16 %v2208
        %v2281 = vunpack.c.l.b16 %v2212
        %v2282 = vunpack.c.l.b16 %v2215
        %v2283 = vunpack.c.l.b16 %v2219
        %v2284 = vunpack.c.l.b16 %v2222
        %v2285 = vunpack.c.l.b16 %v2226
        %v2286 = vunpack.c.l.b16 %v2229
        %v2287 = vunpack.c.l.b16 %v2233
        %v2288 = vunpack.c.l.b16 %v2236
        %v2289 = vunpack.c.l.b16 %v2240
        %v2290 = vunpack.c.l.b16 %v2243
        %v2291 = vunpack.c.l.b16 %v2247
        %v2292 = vunpack.c.l.b16 %v2250
        %v2293 = vunpack.c.l.b16 %v2254
        %v2294 = vunpack.c.l.b16 %v2257
        %v2295 = vunpack.c.l.b16 %v2261
        %v2296 = vunpack.c.l.b16 %v2264
        %v2297 = vpack.c.b16 %v2266, %v2265
        %v2298 = vpack.c.b16 %v2268, %v2267
        %v2299 = vpack.c.b16 %v2270, %v2269
        %v2300 = vpack.c.b16 %v2272, %v2271
        %v2301 = vpack.c.b16 %v2274, %v2273
        %v2302 = vpack.c.b16 %v2276, %v2275
        %v2303 = vpack.c.b16 %v2278, %v2277
        %v2304 = vpack.c.b16 %v2280, %v2279
        %v2305 = vpack.c.b16 %v2282, %v2281
        %v2306 = vpack.c.b16 %v2284, %v2283
        %v2307 = vpack.c.b16 %v2286, %v2285
        %v2308 = vpack.c.b16 %v2288, %v2287
        %v2309 = vpack.c.b16 %v2290, %v2289
        %v2310 = vpack.c.b16 %v2292, %v2291
        %v2311 = vpack.c.b16 %v2294, %v2293
        %v2312 = vpack.c.b16 %v2296, %v2295
        %2313 = vrot.lane.b32.xlu0 %v2297, 20
        %v2314 = vpop.permute.xlu0 %2313
        %2315 = vrot.lane.b32.xlu0 %v2298, 20
        %v2316 = vpop.permute.xlu0 %2315
        %2317 = vrot.lane.b32.xlu0 %v2299, 20
        %v2318 = vpop.permute.xlu0 %2317
        %2319 = vrot.lane.b32.xlu0 %v2300, 20
        %v2320 = vpop.permute.xlu0 %2319
        %2321 = vrot.lane.b32.xlu0 %v2301, 20
        %v2322 = vpop.permute.xlu0 %2321
        %2323 = vrot.lane.b32.xlu0 %v2302, 20
        %v2324 = vpop.permute.xlu0 %2323
        %2325 = vrot.lane.b32.xlu0 %v2303, 20
        %v2326 = vpop.permute.xlu0 %2325
        %2327 = vrot.lane.b32.xlu0 %v2304, 20
        %v2328 = vpop.permute.xlu0 %2327
        %2329 = vrot.lane.b32.xlu0 %v2305, 20
        %v2330 = vpop.permute.xlu0 %2329
        %2331 = vrot.lane.b32.xlu0 %v2306, 20
        %v2332 = vpop.permute.xlu0 %2331
        %2333 = vrot.lane.b32.xlu0 %v2307, 20
        %v2334 = vpop.permute.xlu0 %2333
        %2335 = vrot.lane.b32.xlu0 %v2308, 20
        %v2336 = vpop.permute.xlu0 %2335
        %2337 = vrot.lane.b32.xlu0 %v2309, 20
        %v2338 = vpop.permute.xlu0 %2337
        %2339 = vrot.lane.b32.xlu0 %v2310, 20
        %v2340 = vpop.permute.xlu0 %2339
        %2341 = vrot.lane.b32.xlu0 %v2311, 20
        %v2342 = vpop.permute.xlu0 %2341
        %2343 = vrot.lane.b32.xlu0 %v2312, 20
        %v2344 = vpop.permute.xlu0 %2343
        %vm2361 = vcmask 195744
        %2362 = vst.msk [vmem:[#allocation2] sm:$0xff] %vm2361, %v2314
        %2363 = vst.msk [vmem:[#allocation2 + $0x8] sm:$0xff] %vm2361, %v2316
        %2364 = vst.msk [vmem:[#allocation2 + $0x10] sm:$0xff] %vm2361, %v2318
        %2365 = vst.msk [vmem:[#allocation2 + $0x18] sm:$0xff] %vm2361, %v2320
        %2366 = vst.msk [vmem:[#allocation2 + $0x20] sm:$0xff] %vm2361, %v2322
        %2367 = vst.msk [vmem:[#allocation2 + $0x28] sm:$0xff] %vm2361, %v2324
        %2368 = vst.msk [vmem:[#allocation2 + $0x30] sm:$0xff] %vm2361, %v2326
        %2369 = vst.msk [vmem:[#allocation2 + $0x38] sm:$0xff] %vm2361, %v2328
        %2370 = vst.msk [vmem:[#allocation2 + $0x40] sm:$0xff] %vm2361, %v2330
        %2371 = vst.msk [vmem:[#allocation2 + $0x48] sm:$0xff] %vm2361, %v2332
        %2372 = vst.msk [vmem:[#allocation2 + $0x50] sm:$0xff] %vm2361, %v2334
        %2373 = vst.msk [vmem:[#allocation2 + $0x58] sm:$0xff] %vm2361, %v2336
        %2374 = vst.msk [vmem:[#allocation2 + $0x60] sm:$0xff] %vm2361, %v2338
        %2375 = vst.msk [vmem:[#allocation2 + $0x68] sm:$0xff] %vm2361, %v2340
        %2376 = vst.msk [vmem:[#allocation2 + $0x70] sm:$0xff] %vm2361, %v2342
        %2377 = vst.msk [vmem:[#allocation2 + $0x78] sm:$0xff] %vm2361, %v2344
        %s2378 = sadd.s32 %s310, 2
        %s2379 = smul.u32 %s2378, 3
        %s2380 = smul.addr %s2379, 4
        %s2381 = scalar_lea.vmem %s290, %s2380
        %v2382 = vld [vmem:[%s2381] sm:$0xf]
        %v2383 = vld [vmem:[%s2381 + $0x4] sm:$0xf]
        %v2384 = vld [vmem:[%s2381 + $0xc] sm:$0xf]
        %v2385 = vld [vmem:[%s2381 + $0x10] sm:$0xf]
        %v2386 = vld [vmem:[%s2381 + $0x18] sm:$0xf]
        %v2387 = vld [vmem:[%s2381 + $0x1c] sm:$0xf]
        %v2388 = vld [vmem:[%s2381 + $0x24] sm:$0xf]
        %v2389 = vld [vmem:[%s2381 + $0x28] sm:$0xf]
        %v2390 = vld [vmem:[%s2381 + $0x30] sm:$0xf]
        %v2391 = vld [vmem:[%s2381 + $0x34] sm:$0xf]
        %v2392 = vld [vmem:[%s2381 + $0x3c] sm:$0xf]
        %v2393 = vld [vmem:[%s2381 + $0x40] sm:$0xf]
        %v2394 = vld [vmem:[%s2381 + $0x48] sm:$0xf]
        %v2395 = vld [vmem:[%s2381 + $0x4c] sm:$0xf]
        %v2396 = vld [vmem:[%s2381 + $0x54] sm:$0xf]
        %v2397 = vld [vmem:[%s2381 + $0x58] sm:$0xf]
        %v2398 = vld [vmem:[%s2381 + $0x60] sm:$0xf]
        %v2399 = vld [vmem:[%s2381 + $0x64] sm:$0xf]
        %v2400 = vld [vmem:[%s2381 + $0x6c] sm:$0xf]
        %v2401 = vld [vmem:[%s2381 + $0x70] sm:$0xf]
        %v2402 = vld [vmem:[%s2381 + $0x78] sm:$0xf]
        %v2403 = vld [vmem:[%s2381 + $0x7c] sm:$0xf]
        %v2404 = vld [vmem:[%s2381 + $0x84] sm:$0xf]
        %v2405 = vld [vmem:[%s2381 + $0x88] sm:$0xf]
        %v2406 = vld [vmem:[%s2381 + $0x90] sm:$0xf]
        %v2407 = vld [vmem:[%s2381 + $0x94] sm:$0xf]
        %v2408 = vld [vmem:[%s2381 + $0x9c] sm:$0xf]
        %v2409 = vld [vmem:[%s2381 + $0xa0] sm:$0xf]
        %v2410 = vld [vmem:[%s2381 + $0xa8] sm:$0xf]
        %v2411 = vld [vmem:[%s2381 + $0xac] sm:$0xf]
        %v2412 = vld [vmem:[%s2381 + $0xb4] sm:$0xf]
        %v2413 = vld [vmem:[%s2381 + $0xb8] sm:$0xf]
        %v2446 = vunpack.c.l.b16 %v2382
        %v2447 = vunpack.c.l.b16 %v2383
        %v2448 = vunpack.c.l.b16 %v2384
        %v2449 = vunpack.c.l.b16 %v2385
        %v2450 = vunpack.c.l.b16 %v2386
        %v2451 = vunpack.c.l.b16 %v2387
        %v2452 = vunpack.c.l.b16 %v2388
        %v2453 = vunpack.c.l.b16 %v2389
        %v2454 = vunpack.c.l.b16 %v2390
        %v2455 = vunpack.c.l.b16 %v2391
        %v2456 = vunpack.c.l.b16 %v2392
        %v2457 = vunpack.c.l.b16 %v2393
        %v2458 = vunpack.c.l.b16 %v2394
        %v2459 = vunpack.c.l.b16 %v2395
        %v2460 = vunpack.c.l.b16 %v2396
        %v2461 = vunpack.c.l.b16 %v2397
        %v2462 = vunpack.c.l.b16 %v2398
        %v2463 = vunpack.c.l.b16 %v2399
        %v2464 = vunpack.c.l.b16 %v2400
        %v2465 = vunpack.c.l.b16 %v2401
        %v2466 = vunpack.c.l.b16 %v2402
        %v2467 = vunpack.c.l.b16 %v2403
        %v2468 = vunpack.c.l.b16 %v2404
        %v2469 = vunpack.c.l.b16 %v2405
        %v2470 = vunpack.c.l.b16 %v2406
        %v2471 = vunpack.c.l.b16 %v2407
        %v2472 = vunpack.c.l.b16 %v2408
        %v2473 = vunpack.c.l.b16 %v2409
        %v2474 = vunpack.c.l.b16 %v2410
        %v2475 = vunpack.c.l.b16 %v2411
        %v2476 = vunpack.c.l.b16 %v2412
        %v2477 = vunpack.c.l.b16 %v2413
        %v2478 = vpack.c.b16 %v2447, %v2446
        %v2479 = vpack.c.b16 %v2449, %v2448
        %v2480 = vpack.c.b16 %v2451, %v2450
        %v2481 = vpack.c.b16 %v2453, %v2452
        %v2482 = vpack.c.b16 %v2455, %v2454
        %v2483 = vpack.c.b16 %v2457, %v2456
        %v2484 = vpack.c.b16 %v2459, %v2458
        %v2485 = vpack.c.b16 %v2461, %v2460
        %v2486 = vpack.c.b16 %v2463, %v2462
        %v2487 = vpack.c.b16 %v2465, %v2464
        %v2488 = vpack.c.b16 %v2467, %v2466
        %v2489 = vpack.c.b16 %v2469, %v2468
        %v2490 = vpack.c.b16 %v2471, %v2470
        %v2491 = vpack.c.b16 %v2473, %v2472
        %v2492 = vpack.c.b16 %v2475, %v2474
        %v2493 = vpack.c.b16 %v2477, %v2476
        %2494 = vrot.lane.b32.xlu0 %v2478, 24
        %v2495 = vpop.permute.xlu0 %2494
        %2496 = vrot.lane.b32.xlu0 %v2479, 24
        %v2497 = vpop.permute.xlu0 %2496
        %2498 = vrot.lane.b32.xlu0 %v2480, 24
        %v2499 = vpop.permute.xlu0 %2498
        %2500 = vrot.lane.b32.xlu0 %v2481, 24
        %v2501 = vpop.permute.xlu0 %2500
        %2502 = vrot.lane.b32.xlu0 %v2482, 24
        %v2503 = vpop.permute.xlu0 %2502
        %2504 = vrot.lane.b32.xlu0 %v2483, 24
        %v2505 = vpop.permute.xlu0 %2504
        %2506 = vrot.lane.b32.xlu0 %v2484, 24
        %v2507 = vpop.permute.xlu0 %2506
        %2508 = vrot.lane.b32.xlu0 %v2485, 24
        %v2509 = vpop.permute.xlu0 %2508
        %2510 = vrot.lane.b32.xlu0 %v2486, 24
        %v2511 = vpop.permute.xlu0 %2510
        %2512 = vrot.lane.b32.xlu0 %v2487, 24
        %v2513 = vpop.permute.xlu0 %2512
        %2514 = vrot.lane.b32.xlu0 %v2488, 24
        %v2515 = vpop.permute.xlu0 %2514
        %2516 = vrot.lane.b32.xlu0 %v2489, 24
        %v2517 = vpop.permute.xlu0 %2516
        %2518 = vrot.lane.b32.xlu0 %v2490, 24
        %v2519 = vpop.permute.xlu0 %2518
        %2520 = vrot.lane.b32.xlu0 %v2491, 24
        %v2521 = vpop.permute.xlu0 %2520
        %2522 = vrot.lane.b32.xlu0 %v2492, 24
        %v2523 = vpop.permute.xlu0 %2522
        %2524 = vrot.lane.b32.xlu0 %v2493, 24
        %v2525 = vpop.permute.xlu0 %2524
        %vm2542 = vcmask 228544
        %2543 = vst.msk [vmem:[#allocation2] sm:$0xff] %vm2542, %v2495
        %2544 = vst.msk [vmem:[#allocation2 + $0x8] sm:$0xff] %vm2542, %v2497
        %2545 = vst.msk [vmem:[#allocation2 + $0x10] sm:$0xff] %vm2542, %v2499
        %2546 = vst.msk [vmem:[#allocation2 + $0x18] sm:$0xff] %vm2542, %v2501
        %2547 = vst.msk [vmem:[#allocation2 + $0x20] sm:$0xff] %vm2542, %v2503
        %2548 = vst.msk [vmem:[#allocation2 + $0x28] sm:$0xff] %vm2542, %v2505
        %2549 = vst.msk [vmem:[#allocation2 + $0x30] sm:$0xff] %vm2542, %v2507
        %2550 = vst.msk [vmem:[#allocation2 + $0x38] sm:$0xff] %vm2542, %v2509
        %2551 = vst.msk [vmem:[#allocation2 + $0x40] sm:$0xff] %vm2542, %v2511
        %2552 = vst.msk [vmem:[#allocation2 + $0x48] sm:$0xff] %vm2542, %v2513
        %2553 = vst.msk [vmem:[#allocation2 + $0x50] sm:$0xff] %vm2542, %v2515
        %2554 = vst.msk [vmem:[#allocation2 + $0x58] sm:$0xff] %vm2542, %v2517
        %2555 = vst.msk [vmem:[#allocation2 + $0x60] sm:$0xff] %vm2542, %v2519
        %2556 = vst.msk [vmem:[#allocation2 + $0x68] sm:$0xff] %vm2542, %v2521
        %2557 = vst.msk [vmem:[#allocation2 + $0x70] sm:$0xff] %vm2542, %v2523
        %2558 = vst.msk [vmem:[#allocation2 + $0x78] sm:$0xff] %vm2542, %v2525
        %v2559 = vld [vmem:[%s2381] sm:$0xf]
        %v2560 = vld [vmem:[%s2381 + $0x4] sm:$0xf]
        %v2561 = vld [vmem:[%s2381 + $0x8] sm:$0x1]
        %v2562 = vld [vmem:[%s2381 + $0xc] sm:$0xf]
        %v2563 = vld [vmem:[%s2381 + $0x10] sm:$0xf]
        %v2564 = vld [vmem:[%s2381 + $0x14] sm:$0x1]
        %v2565 = vld [vmem:[%s2381 + $0x18] sm:$0xf]
        %v2566 = vld [vmem:[%s2381 + $0x1c] sm:$0xf]
        %v2567 = vld [vmem:[%s2381 + $0x20] sm:$0x1]
        %v2568 = vld [vmem:[%s2381 + $0x24] sm:$0xf]
        %v2569 = vld [vmem:[%s2381 + $0x28] sm:$0xf]
        %v2570 = vld [vmem:[%s2381 + $0x2c] sm:$0x1]
        %v2571 = vld [vmem:[%s2381 + $0x30] sm:$0xf]
        %v2572 = vld [vmem:[%s2381 + $0x34] sm:$0xf]
        %v2573 = vld [vmem:[%s2381 + $0x38] sm:$0x1]
        %v2574 = vld [vmem:[%s2381 + $0x3c] sm:$0xf]
        %v2575 = vld [vmem:[%s2381 + $0x40] sm:$0xf]
        %v2576 = vld [vmem:[%s2381 + $0x44] sm:$0x1]
        %v2577 = vld [vmem:[%s2381 + $0x48] sm:$0xf]
        %v2578 = vld [vmem:[%s2381 + $0x4c] sm:$0xf]
        %v2579 = vld [vmem:[%s2381 + $0x50] sm:$0x1]
        %v2580 = vld [vmem:[%s2381 + $0x54] sm:$0xf]
        %v2581 = vld [vmem:[%s2381 + $0x58] sm:$0xf]
        %v2582 = vld [vmem:[%s2381 + $0x5c] sm:$0x1]
        %v2583 = vld [vmem:[%s2381 + $0x60] sm:$0xf]
        %v2584 = vld [vmem:[%s2381 + $0x64] sm:$0xf]
        %v2585 = vld [vmem:[%s2381 + $0x68] sm:$0x1]
        %v2586 = vld [vmem:[%s2381 + $0x6c] sm:$0xf]
        %v2587 = vld [vmem:[%s2381 + $0x70] sm:$0xf]
        %v2588 = vld [vmem:[%s2381 + $0x74] sm:$0x1]
        %v2589 = vld [vmem:[%s2381 + $0x78] sm:$0xf]
        %v2590 = vld [vmem:[%s2381 + $0x7c] sm:$0xf]
        %v2591 = vld [vmem:[%s2381 + $0x80] sm:$0x1]
        %v2592 = vld [vmem:[%s2381 + $0x84] sm:$0xf]
        %v2593 = vld [vmem:[%s2381 + $0x88] sm:$0xf]
        %v2594 = vld [vmem:[%s2381 + $0x8c] sm:$0x1]
        %v2595 = vld [vmem:[%s2381 + $0x90] sm:$0xf]
        %v2596 = vld [vmem:[%s2381 + $0x94] sm:$0xf]
        %v2597 = vld [vmem:[%s2381 + $0x98] sm:$0x1]
        %v2598 = vld [vmem:[%s2381 + $0x9c] sm:$0xf]
        %v2599 = vld [vmem:[%s2381 + $0xa0] sm:$0xf]
        %v2600 = vld [vmem:[%s2381 + $0xa4] sm:$0x1]
        %v2601 = vld [vmem:[%s2381 + $0xa8] sm:$0xf]
        %v2602 = vld [vmem:[%s2381 + $0xac] sm:$0xf]
        %v2603 = vld [vmem:[%s2381 + $0xb0] sm:$0x1]
        %v2604 = vld [vmem:[%s2381 + $0xb4] sm:$0xf]
        %v2605 = vld [vmem:[%s2381 + $0xb8] sm:$0xf]
        %v2606 = vld [vmem:[%s2381 + $0xbc] sm:$0x1]
        %v2608 = vshrl.u32 %v2559, 16
        %v2610 = vrot.slane %v2608, 4
        %v2611 = vshll.u32 %v2559, 16
        %v2613 = vrot.slane %v2611, 5
        %v2614 = vor.u32 %v2610, %v2613
        %v2615 = vrot.slane %v2614, 4
        %v2617 = vshll.u32 %v2560, 16
        %v2619 = vrot.slane %v2617, 5
        %v2620 = vsel %vm365, %v2615, %v2619
        %v2621 = vshrl.u32 %v2560, 16
        %v2623 = vrot.slane %v2621, 4
        %v2624 = vor.u32 %v2623, %v2619
        %v2625 = vrot.slane %v2624, 4
        %v2627 = vshll.u32 %v2561, 16
        %v2629 = vrot.slane %v2627, 5
        %v2630 = vsel %vm365, %v2625, %v2629
        %v2632 = vshrl.u32 %v2562, 16
        %v2634 = vrot.slane %v2632, 4
        %v2635 = vshll.u32 %v2562, 16
        %v2637 = vrot.slane %v2635, 5
        %v2638 = vor.u32 %v2634, %v2637
        %v2639 = vrot.slane %v2638, 4
        %v2641 = vshll.u32 %v2563, 16
        %v2643 = vrot.slane %v2641, 5
        %v2644 = vsel %vm365, %v2639, %v2643
        %v2645 = vshrl.u32 %v2563, 16
        %v2647 = vrot.slane %v2645, 4
        %v2648 = vor.u32 %v2647, %v2643
        %v2649 = vrot.slane %v2648, 4
        %v2651 = vshll.u32 %v2564, 16
        %v2653 = vrot.slane %v2651, 5
        %v2654 = vsel %vm365, %v2649, %v2653
        %v2656 = vshrl.u32 %v2565, 16
        %v2658 = vrot.slane %v2656, 4
        %v2659 = vshll.u32 %v2565, 16
        %v2661 = vrot.slane %v2659, 5
        %v2662 = vor.u32 %v2658, %v2661
        %v2663 = vrot.slane %v2662, 4
        %v2665 = vshll.u32 %v2566, 16
        %v2667 = vrot.slane %v2665, 5
        %v2668 = vsel %vm365, %v2663, %v2667
        %v2669 = vshrl.u32 %v2566, 16
        %v2671 = vrot.slane %v2669, 4
        %v2672 = vor.u32 %v2671, %v2667
        %v2673 = vrot.slane %v2672, 4
        %v2675 = vshll.u32 %v2567, 16
        %v2677 = vrot.slane %v2675, 5
        %v2678 = vsel %vm365, %v2673, %v2677
        %v2680 = vshrl.u32 %v2568, 16
        %v2682 = vrot.slane %v2680, 4
        %v2683 = vshll.u32 %v2568, 16
        %v2685 = vrot.slane %v2683, 5
        %v2686 = vor.u32 %v2682, %v2685
        %v2687 = vrot.slane %v2686, 4
        %v2689 = vshll.u32 %v2569, 16
        %v2691 = vrot.slane %v2689, 5
        %v2692 = vsel %vm365, %v2687, %v2691
        %v2693 = vshrl.u32 %v2569, 16
        %v2695 = vrot.slane %v2693, 4
        %v2696 = vor.u32 %v2695, %v2691
        %v2697 = vrot.slane %v2696, 4
        %v2699 = vshll.u32 %v2570, 16
        %v2701 = vrot.slane %v2699, 5
        %v2702 = vsel %vm365, %v2697, %v2701
        %v2704 = vshrl.u32 %v2571, 16
        %v2706 = vrot.slane %v2704, 4
        %v2707 = vshll.u32 %v2571, 16
        %v2709 = vrot.slane %v2707, 5
        %v2710 = vor.u32 %v2706, %v2709
        %v2711 = vrot.slane %v2710, 4
        %v2713 = vshll.u32 %v2572, 16
        %v2715 = vrot.slane %v2713, 5
        %v2716 = vsel %vm365, %v2711, %v2715
        %v2717 = vshrl.u32 %v2572, 16
        %v2719 = vrot.slane %v2717, 4
        %v2720 = vor.u32 %v2719, %v2715
        %v2721 = vrot.slane %v2720, 4
        %v2723 = vshll.u32 %v2573, 16
        %v2725 = vrot.slane %v2723, 5
        %v2726 = vsel %vm365, %v2721, %v2725
        %v2728 = vshrl.u32 %v2574, 16
        %v2730 = vrot.slane %v2728, 4
        %v2731 = vshll.u32 %v2574, 16
        %v2733 = vrot.slane %v2731, 5
        %v2734 = vor.u32 %v2730, %v2733
        %v2735 = vrot.slane %v2734, 4
        %v2737 = vshll.u32 %v2575, 16
        %v2739 = vrot.slane %v2737, 5
        %v2740 = vsel %vm365, %v2735, %v2739
        %v2741 = vshrl.u32 %v2575, 16
        %v2743 = vrot.slane %v2741, 4
        %v2744 = vor.u32 %v2743, %v2739
        %v2745 = vrot.slane %v2744, 4
        %v2747 = vshll.u32 %v2576, 16
        %v2749 = vrot.slane %v2747, 5
        %v2750 = vsel %vm365, %v2745, %v2749
        %v2752 = vshrl.u32 %v2577, 16
        %v2754 = vrot.slane %v2752, 4
        %v2755 = vshll.u32 %v2577, 16
        %v2757 = vrot.slane %v2755, 5
        %v2758 = vor.u32 %v2754, %v2757
        %v2759 = vrot.slane %v2758, 4
        %v2761 = vshll.u32 %v2578, 16
        %v2763 = vrot.slane %v2761, 5
        %v2764 = vsel %vm365, %v2759, %v2763
        %v2765 = vshrl.u32 %v2578, 16
        %v2767 = vrot.slane %v2765, 4
        %v2768 = vor.u32 %v2767, %v2763
        %v2769 = vrot.slane %v2768, 4
        %v2771 = vshll.u32 %v2579, 16
        %v2773 = vrot.slane %v2771, 5
        %v2774 = vsel %vm365, %v2769, %v2773
        %v2776 = vshrl.u32 %v2580, 16
        %v2778 = vrot.slane %v2776, 4
        %v2779 = vshll.u32 %v2580, 16
        %v2781 = vrot.slane %v2779, 5
        %v2782 = vor.u32 %v2778, %v2781
        %v2783 = vrot.slane %v2782, 4
        %v2785 = vshll.u32 %v2581, 16
        %v2787 = vrot.slane %v2785, 5
        %v2788 = vsel %vm365, %v2783, %v2787
        %v2789 = vshrl.u32 %v2581, 16
        %v2791 = vrot.slane %v2789, 4
        %v2792 = vor.u32 %v2791, %v2787
        %v2793 = vrot.slane %v2792, 4
        %v2795 = vshll.u32 %v2582, 16
        %v2797 = vrot.slane %v2795, 5
        %v2798 = vsel %vm365, %v2793, %v2797
        %v2800 = vshrl.u32 %v2583, 16
        %v2802 = vrot.slane %v2800, 4
        %v2803 = vshll.u32 %v2583, 16
        %v2805 = vrot.slane %v2803, 5
        %v2806 = vor.u32 %v2802, %v2805
        %v2807 = vrot.slane %v2806, 4
        %v2809 = vshll.u32 %v2584, 16
        %v2811 = vrot.slane %v2809, 5
        %v2812 = vsel %vm365, %v2807, %v2811
        %v2813 = vshrl.u32 %v2584, 16
        %v2815 = vrot.slane %v2813, 4
        %v2816 = vor.u32 %v2815, %v2811
        %v2817 = vrot.slane %v2816, 4
        %v2819 = vshll.u32 %v2585, 16
        %v2821 = vrot.slane %v2819, 5
        %v2822 = vsel %vm365, %v2817, %v2821
        %v2824 = vshrl.u32 %v2586, 16
        %v2826 = vrot.slane %v2824, 4
        %v2827 = vshll.u32 %v2586, 16
        %v2829 = vrot.slane %v2827, 5
        %v2830 = vor.u32 %v2826, %v2829
        %v2831 = vrot.slane %v2830, 4
        %v2833 = vshll.u32 %v2587, 16
        %v2835 = vrot.slane %v2833, 5
        %v2836 = vsel %vm365, %v2831, %v2835
        %v2837 = vshrl.u32 %v2587, 16
        %v2839 = vrot.slane %v2837, 4
        %v2840 = vor.u32 %v2839, %v2835
        %v2841 = vrot.slane %v2840, 4
        %v2843 = vshll.u32 %v2588, 16
        %v2845 = vrot.slane %v2843, 5
        %v2846 = vsel %vm365, %v2841, %v2845
        %v2848 = vshrl.u32 %v2589, 16
        %v2850 = vrot.slane %v2848, 4
        %v2851 = vshll.u32 %v2589, 16
        %v2853 = vrot.slane %v2851, 5
        %v2854 = vor.u32 %v2850, %v2853
        %v2855 = vrot.slane %v2854, 4
        %v2857 = vshll.u32 %v2590, 16
        %v2859 = vrot.slane %v2857, 5
        %v2860 = vsel %vm365, %v2855, %v2859
        %v2861 = vshrl.u32 %v2590, 16
        %v2863 = vrot.slane %v2861, 4
        %v2864 = vor.u32 %v2863, %v2859
        %v2865 = vrot.slane %v2864, 4
        %v2867 = vshll.u32 %v2591, 16
        %v2869 = vrot.slane %v2867, 5
        %v2870 = vsel %vm365, %v2865, %v2869
        %v2872 = vshrl.u32 %v2592, 16
        %v2874 = vrot.slane %v2872, 4
        %v2875 = vshll.u32 %v2592, 16
        %v2877 = vrot.slane %v2875, 5
        %v2878 = vor.u32 %v2874, %v2877
        %v2879 = vrot.slane %v2878, 4
        %v2881 = vshll.u32 %v2593, 16
        %v2883 = vrot.slane %v2881, 5
        %v2884 = vsel %vm365, %v2879, %v2883
        %v2885 = vshrl.u32 %v2593, 16
        %v2887 = vrot.slane %v2885, 4
        %v2888 = vor.u32 %v2887, %v2883
        %v2889 = vrot.slane %v2888, 4
        %v2891 = vshll.u32 %v2594, 16
        %v2893 = vrot.slane %v2891, 5
        %v2894 = vsel %vm365, %v2889, %v2893
        %v2896 = vshrl.u32 %v2595, 16
        %v2898 = vrot.slane %v2896, 4
        %v2899 = vshll.u32 %v2595, 16
        %v2901 = vrot.slane %v2899, 5
        %v2902 = vor.u32 %v2898, %v2901
        %v2903 = vrot.slane %v2902, 4
        %v2905 = vshll.u32 %v2596, 16
        %v2907 = vrot.slane %v2905, 5
        %v2908 = vsel %vm365, %v2903, %v2907
        %v2909 = vshrl.u32 %v2596, 16
        %v2911 = vrot.slane %v2909, 4
        %v2912 = vor.u32 %v2911, %v2907
        %v2913 = vrot.slane %v2912, 4
        %v2915 = vshll.u32 %v2597, 16
        %v2917 = vrot.slane %v2915, 5
        %v2918 = vsel %vm365, %v2913, %v2917
        %v2920 = vshrl.u32 %v2598, 16
        %v2922 = vrot.slane %v2920, 4
        %v2923 = vshll.u32 %v2598, 16
        %v2925 = vrot.slane %v2923, 5
        %v2926 = vor.u32 %v2922, %v2925
        %v2927 = vrot.slane %v2926, 4
        %v2929 = vshll.u32 %v2599, 16
        %v2931 = vrot.slane %v2929, 5
        %v2932 = vsel %vm365, %v2927, %v2931
        %v2933 = vshrl.u32 %v2599, 16
        %v2935 = vrot.slane %v2933, 4
        %v2936 = vor.u32 %v2935, %v2931
        %v2937 = vrot.slane %v2936, 4
        %v2939 = vshll.u32 %v2600, 16
        %v2941 = vrot.slane %v2939, 5
        %v2942 = vsel %vm365, %v2937, %v2941
        %v2944 = vshrl.u32 %v2601, 16
        %v2946 = vrot.slane %v2944, 4
        %v2947 = vshll.u32 %v2601, 16
        %v2949 = vrot.slane %v2947, 5
        %v2950 = vor.u32 %v2946, %v2949
        %v2951 = vrot.slane %v2950, 4
        %v2953 = vshll.u32 %v2602, 16
        %v2955 = vrot.slane %v2953, 5
        %v2956 = vsel %vm365, %v2951, %v2955
        %v2957 = vshrl.u32 %v2602, 16
        %v2959 = vrot.slane %v2957, 4
        %v2960 = vor.u32 %v2959, %v2955
        %v2961 = vrot.slane %v2960, 4
        %v2963 = vshll.u32 %v2603, 16
        %v2965 = vrot.slane %v2963, 5
        %v2966 = vsel %vm365, %v2961, %v2965
        %v2968 = vshrl.u32 %v2604, 16
        %v2970 = vrot.slane %v2968, 4
        %v2971 = vshll.u32 %v2604, 16
        %v2973 = vrot.slane %v2971, 5
        %v2974 = vor.u32 %v2970, %v2973
        %v2975 = vrot.slane %v2974, 4
        %v2977 = vshll.u32 %v2605, 16
        %v2979 = vrot.slane %v2977, 5
        %v2980 = vsel %vm365, %v2975, %v2979
        %v2981 = vshrl.u32 %v2605, 16
        %v2983 = vrot.slane %v2981, 4
        %v2984 = vor.u32 %v2983, %v2979
        %v2985 = vrot.slane %v2984, 4
        %v2987 = vshll.u32 %v2606, 16
        %v2989 = vrot.slane %v2987, 5
        %v2990 = vsel %vm365, %v2985, %v2989
        %v2991 = vunpack.c.l.b16 %v2620
        %v2992 = vunpack.c.l.b16 %v2630
        %v2993 = vunpack.c.l.b16 %v2644
        %v2994 = vunpack.c.l.b16 %v2654
        %v2995 = vunpack.c.l.b16 %v2668
        %v2996 = vunpack.c.l.b16 %v2678
        %v2997 = vunpack.c.l.b16 %v2692
        %v2998 = vunpack.c.l.b16 %v2702
        %v2999 = vunpack.c.l.b16 %v2716
        %v3000 = vunpack.c.l.b16 %v2726
        %v3001 = vunpack.c.l.b16 %v2740
        %v3002 = vunpack.c.l.b16 %v2750
        %v3003 = vunpack.c.l.b16 %v2764
        %v3004 = vunpack.c.l.b16 %v2774
        %v3005 = vunpack.c.l.b16 %v2788
        %v3006 = vunpack.c.l.b16 %v2798
        %v3007 = vunpack.c.l.b16 %v2812
        %v3008 = vunpack.c.l.b16 %v2822
        %v3009 = vunpack.c.l.b16 %v2836
        %v3010 = vunpack.c.l.b16 %v2846
        %v3011 = vunpack.c.l.b16 %v2860
        %v3012 = vunpack.c.l.b16 %v2870
        %v3013 = vunpack.c.l.b16 %v2884
        %v3014 = vunpack.c.l.b16 %v2894
        %v3015 = vunpack.c.l.b16 %v2908
        %v3016 = vunpack.c.l.b16 %v2918
        %v3017 = vunpack.c.l.b16 %v2932
        %v3018 = vunpack.c.l.b16 %v2942
        %v3019 = vunpack.c.l.b16 %v2956
        %v3020 = vunpack.c.l.b16 %v2966
        %v3021 = vunpack.c.l.b16 %v2980
        %v3022 = vunpack.c.l.b16 %v2990
        %v3023 = vpack.c.b16 %v2992, %v2991
        %v3024 = vpack.c.b16 %v2994, %v2993
        %v3025 = vpack.c.b16 %v2996, %v2995
        %v3026 = vpack.c.b16 %v2998, %v2997
        %v3027 = vpack.c.b16 %v3000, %v2999
        %v3028 = vpack.c.b16 %v3002, %v3001
        %v3029 = vpack.c.b16 %v3004, %v3003
        %v3030 = vpack.c.b16 %v3006, %v3005
        %v3031 = vpack.c.b16 %v3008, %v3007
        %v3032 = vpack.c.b16 %v3010, %v3009
        %v3033 = vpack.c.b16 %v3012, %v3011
        %v3034 = vpack.c.b16 %v3014, %v3013
        %v3035 = vpack.c.b16 %v3016, %v3015
        %v3036 = vpack.c.b16 %v3018, %v3017
        %v3037 = vpack.c.b16 %v3020, %v3019
        %v3038 = vpack.c.b16 %v3022, %v3021
        %3039 = vrot.lane.b32.xlu0 %v3023, 28
        %v3040 = vpop.permute.xlu0 %3039
        %3041 = vrot.lane.b32.xlu0 %v3024, 28
        %v3042 = vpop.permute.xlu0 %3041
        %3043 = vrot.lane.b32.xlu0 %v3025, 28
        %v3044 = vpop.permute.xlu0 %3043
        %3045 = vrot.lane.b32.xlu0 %v3026, 28
        %v3046 = vpop.permute.xlu0 %3045
        %3047 = vrot.lane.b32.xlu0 %v3027, 28
        %v3048 = vpop.permute.xlu0 %3047
        %3049 = vrot.lane.b32.xlu0 %v3028, 28
        %v3050 = vpop.permute.xlu0 %3049
        %3051 = vrot.lane.b32.xlu0 %v3029, 28
        %v3052 = vpop.permute.xlu0 %3051
        %3053 = vrot.lane.b32.xlu0 %v3030, 28
        %v3054 = vpop.permute.xlu0 %3053
        %3055 = vrot.lane.b32.xlu0 %v3031, 28
        %v3056 = vpop.permute.xlu0 %3055
        %3057 = vrot.lane.b32.xlu0 %v3032, 28
        %v3058 = vpop.permute.xlu0 %3057
        %3059 = vrot.lane.b32.xlu0 %v3033, 28
        %v3060 = vpop.permute.xlu0 %3059
        %3061 = vrot.lane.b32.xlu0 %v3034, 28
        %v3062 = vpop.permute.xlu0 %3061
        %3063 = vrot.lane.b32.xlu0 %v3035, 28
        %v3064 = vpop.permute.xlu0 %3063
        %3065 = vrot.lane.b32.xlu0 %v3036, 28
        %v3066 = vpop.permute.xlu0 %3065
        %3067 = vrot.lane.b32.xlu0 %v3037, 28
        %v3068 = vpop.permute.xlu0 %3067
        %3069 = vrot.lane.b32.xlu0 %v3038, 28
        %v3070 = vpop.permute.xlu0 %3069
        %vm3087 = vcmask 261344
        %3088 = vst.msk [vmem:[#allocation2] sm:$0xff] %vm3087, %v3040
        %3089 = vst.msk [vmem:[#allocation2 + $0x8] sm:$0xff] %vm3087, %v3042
        %3090 = vst.msk [vmem:[#allocation2 + $0x10] sm:$0xff] %vm3087, %v3044
        %3091 = vst.msk [vmem:[#allocation2 + $0x18] sm:$0xff] %vm3087, %v3046
        %3092 = vst.msk [vmem:[#allocation2 + $0x20] sm:$0xff] %vm3087, %v3048
        %3093 = vst.msk [vmem:[#allocation2 + $0x28] sm:$0xff] %vm3087, %v3050
        %3094 = vst.msk [vmem:[#allocation2 + $0x30] sm:$0xff] %vm3087, %v3052
        %3095 = vst.msk [vmem:[#allocation2 + $0x38] sm:$0xff] %vm3087, %v3054
        %3096 = vst.msk [vmem:[#allocation2 + $0x40] sm:$0xff] %vm3087, %v3056
        %3097 = vst.msk [vmem:[#allocation2 + $0x48] sm:$0xff] %vm3087, %v3058
        %3098 = vst.msk [vmem:[#allocation2 + $0x50] sm:$0xff] %vm3087, %v3060
        %3099 = vst.msk [vmem:[#allocation2 + $0x58] sm:$0xff] %vm3087, %v3062
        %3100 = vst.msk [vmem:[#allocation2 + $0x60] sm:$0xff] %vm3087, %v3064
        %3101 = vst.msk [vmem:[#allocation2 + $0x68] sm:$0xff] %vm3087, %v3066
        %3102 = vst.msk [vmem:[#allocation2 + $0x70] sm:$0xff] %vm3087, %v3068
        %3103 = vst.msk [vmem:[#allocation2 + $0x78] sm:$0xff] %vm3087, %v3070
        %v3104 = vld [vmem:[%s2381] sm:$0xe]
        %v3105 = vld [vmem:[%s2381 + $0x4] sm:$0xf]
        %v3106 = vld [vmem:[%s2381 + $0x8] sm:$0x1]
        %v3107 = vld [vmem:[%s2381 + $0xc] sm:$0xe]
        %v3108 = vld [vmem:[%s2381 + $0x10] sm:$0xf]
        %v3109 = vld [vmem:[%s2381 + $0x14] sm:$0x1]
        %v3110 = vld [vmem:[%s2381 + $0x18] sm:$0xe]
        %v3111 = vld [vmem:[%s2381 + $0x1c] sm:$0xf]
        %v3112 = vld [vmem:[%s2381 + $0x20] sm:$0x1]
        %v3113 = vld [vmem:[%s2381 + $0x24] sm:$0xe]
        %v3114 = vld [vmem:[%s2381 + $0x28] sm:$0xf]
        %v3115 = vld [vmem:[%s2381 + $0x2c] sm:$0x1]
        %v3116 = vld [vmem:[%s2381 + $0x30] sm:$0xe]
        %v3117 = vld [vmem:[%s2381 + $0x34] sm:$0xf]
        %v3118 = vld [vmem:[%s2381 + $0x38] sm:$0x1]
        %v3119 = vld [vmem:[%s2381 + $0x3c] sm:$0xe]
        %v3120 = vld [vmem:[%s2381 + $0x40] sm:$0xf]
        %v3121 = vld [vmem:[%s2381 + $0x44] sm:$0x1]
        %v3122 = vld [vmem:[%s2381 + $0x48] sm:$0xe]
        %v3123 = vld [vmem:[%s2381 + $0x4c] sm:$0xf]
        %v3124 = vld [vmem:[%s2381 + $0x50] sm:$0x1]
        %v3125 = vld [vmem:[%s2381 + $0x54] sm:$0xe]
        %v3126 = vld [vmem:[%s2381 + $0x58] sm:$0xf]
        %v3127 = vld [vmem:[%s2381 + $0x5c] sm:$0x1]
        %v3128 = vld [vmem:[%s2381 + $0x60] sm:$0xe]
        %v3129 = vld [vmem:[%s2381 + $0x64] sm:$0xf]
        %v3130 = vld [vmem:[%s2381 + $0x68] sm:$0x1]
        %v3131 = vld [vmem:[%s2381 + $0x6c] sm:$0xe]
        %v3132 = vld [vmem:[%s2381 + $0x70] sm:$0xf]
        %v3133 = vld [vmem:[%s2381 + $0x74] sm:$0x1]
        %v3134 = vld [vmem:[%s2381 + $0x78] sm:$0xe]
        %v3135 = vld [vmem:[%s2381 + $0x7c] sm:$0xf]
        %v3136 = vld [vmem:[%s2381 + $0x80] sm:$0x1]
        %v3137 = vld [vmem:[%s2381 + $0x84] sm:$0xe]
        %v3138 = vld [vmem:[%s2381 + $0x88] sm:$0xf]
        %v3139 = vld [vmem:[%s2381 + $0x8c] sm:$0x1]
        %v3140 = vld [vmem:[%s2381 + $0x90] sm:$0xe]
        %v3141 = vld [vmem:[%s2381 + $0x94] sm:$0xf]
        %v3142 = vld [vmem:[%s2381 + $0x98] sm:$0x1]
        %v3143 = vld [vmem:[%s2381 + $0x9c] sm:$0xe]
        %v3144 = vld [vmem:[%s2381 + $0xa0] sm:$0xf]
        %v3145 = vld [vmem:[%s2381 + $0xa4] sm:$0x1]
        %v3146 = vld [vmem:[%s2381 + $0xa8] sm:$0xe]
        %v3147 = vld [vmem:[%s2381 + $0xac] sm:$0xf]
        %v3148 = vld [vmem:[%s2381 + $0xb0] sm:$0x1]
        %v3149 = vld [vmem:[%s2381 + $0xb4] sm:$0xe]
        %v3150 = vld [vmem:[%s2381 + $0xb8] sm:$0xf]
        %v3151 = vld [vmem:[%s2381 + $0xbc] sm:$0x1]
        %v3200 = vrot.slane %v3104, 5
        %v3201 = vrot.slane %v3200, 4
        %v3202 = vrot.slane %v3105, 5
        %v3203 = vsel %vm1654, %v3201, %v3202
        %v3204 = vrot.slane %v3202, 4
        %v3205 = vrot.slane %v3106, 5
        %v3206 = vsel %vm1654, %v3204, %v3205
        %v3207 = vrot.slane %v3107, 5
        %v3208 = vrot.slane %v3207, 4
        %v3209 = vrot.slane %v3108, 5
        %v3210 = vsel %vm1654, %v3208, %v3209
        %v3211 = vrot.slane %v3209, 4
        %v3212 = vrot.slane %v3109, 5
        %v3213 = vsel %vm1654, %v3211, %v3212
        %v3214 = vrot.slane %v3110, 5
        %v3215 = vrot.slane %v3214, 4
        %v3216 = vrot.slane %v3111, 5
        %v3217 = vsel %vm1654, %v3215, %v3216
        %v3218 = vrot.slane %v3216, 4
        %v3219 = vrot.slane %v3112, 5
        %v3220 = vsel %vm1654, %v3218, %v3219
        %v3221 = vrot.slane %v3113, 5
        %v3222 = vrot.slane %v3221, 4
        %v3223 = vrot.slane %v3114, 5
        %v3224 = vsel %vm1654, %v3222, %v3223
        %v3225 = vrot.slane %v3223, 4
        %v3226 = vrot.slane %v3115, 5
        %v3227 = vsel %vm1654, %v3225, %v3226
        %v3228 = vrot.slane %v3116, 5
        %v3229 = vrot.slane %v3228, 4
        %v3230 = vrot.slane %v3117, 5
        %v3231 = vsel %vm1654, %v3229, %v3230
        %v3232 = vrot.slane %v3230, 4
        %v3233 = vrot.slane %v3118, 5
        %v3234 = vsel %vm1654, %v3232, %v3233
        %v3235 = vrot.slane %v3119, 5
        %v3236 = vrot.slane %v3235, 4
        %v3237 = vrot.slane %v3120, 5
        %v3238 = vsel %vm1654, %v3236, %v3237
        %v3239 = vrot.slane %v3237, 4
        %v3240 = vrot.slane %v3121, 5
        %v3241 = vsel %vm1654, %v3239, %v3240
        %v3242 = vrot.slane %v3122, 5
        %v3243 = vrot.slane %v3242, 4
        %v3244 = vrot.slane %v3123, 5
        %v3245 = vsel %vm1654, %v3243, %v3244
        %v3246 = vrot.slane %v3244, 4
        %v3247 = vrot.slane %v3124, 5
        %v3248 = vsel %vm1654, %v3246, %v3247
        %v3249 = vrot.slane %v3125, 5
        %v3250 = vrot.slane %v3249, 4
        %v3251 = vrot.slane %v3126, 5
        %v3252 = vsel %vm1654, %v3250, %v3251
        %v3253 = vrot.slane %v3251, 4
        %v3254 = vrot.slane %v3127, 5
        %v3255 = vsel %vm1654, %v3253, %v3254
        %v3256 = vrot.slane %v3128, 5
        %v3257 = vrot.slane %v3256, 4
        %v3258 = vrot.slane %v3129, 5
        %v3259 = vsel %vm1654, %v3257, %v3258
        %v3260 = vrot.slane %v3258, 4
        %v3261 = vrot.slane %v3130, 5
        %v3262 = vsel %vm1654, %v3260, %v3261
        %v3263 = vrot.slane %v3131, 5
        %v3264 = vrot.slane %v3263, 4
        %v3265 = vrot.slane %v3132, 5
        %v3266 = vsel %vm1654, %v3264, %v3265
        %v3267 = vrot.slane %v3265, 4
        %v3268 = vrot.slane %v3133, 5
        %v3269 = vsel %vm1654, %v3267, %v3268
        %v3270 = vrot.slane %v3134, 5
        %v3271 = vrot.slane %v3270, 4
        %v3272 = vrot.slane %v3135, 5
        %v3273 = vsel %vm1654, %v3271, %v3272
        %v3274 = vrot.slane %v3272, 4
        %v3275 = vrot.slane %v3136, 5
        %v3276 = vsel %vm1654, %v3274, %v3275
        %v3277 = vrot.slane %v3137, 5
        %v3278 = vrot.slane %v3277, 4
        %v3279 = vrot.slane %v3138, 5
        %v3280 = vsel %vm1654, %v3278, %v3279
        %v3281 = vrot.slane %v3279, 4
        %v3282 = vrot.slane %v3139, 5
        %v3283 = vsel %vm1654, %v3281, %v3282
        %v3284 = vrot.slane %v3140, 5
        %v3285 = vrot.slane %v3284, 4
        %v3286 = vrot.slane %v3141, 5
        %v3287 = vsel %vm1654, %v3285, %v3286
        %v3288 = vrot.slane %v3286, 4
        %v3289 = vrot.slane %v3142, 5
        %v3290 = vsel %vm1654, %v3288, %v3289
        %v3291 = vrot.slane %v3143, 5
        %v3292 = vrot.slane %v3291, 4
        %v3293 = vrot.slane %v3144, 5
        %v3294 = vsel %vm1654, %v3292, %v3293
        %v3295 = vrot.slane %v3293, 4
        %v3296 = vrot.slane %v3145, 5
        %v3297 = vsel %vm1654, %v3295, %v3296
        %v3298 = vrot.slane %v3146, 5
        %v3299 = vrot.slane %v3298, 4
        %v3300 = vrot.slane %v3147, 5
        %v3301 = vsel %vm1654, %v3299, %v3300
        %v3302 = vrot.slane %v3300, 4
        %v3303 = vrot.slane %v3148, 5
        %v3304 = vsel %vm1654, %v3302, %v3303
        %v3305 = vrot.slane %v3149, 5
        %v3306 = vrot.slane %v3305, 4
        %v3307 = vrot.slane %v3150, 5
        %v3308 = vsel %vm1654, %v3306, %v3307
        %v3309 = vrot.slane %v3307, 4
        %v3310 = vrot.slane %v3151, 5
        %v3311 = vsel %vm1654, %v3309, %v3310
        %v3312 = vunpack.c.l.b16 %v3203
        %v3313 = vunpack.c.l.b16 %v3206
        %v3314 = vunpack.c.l.b16 %v3210
        %v3315 = vunpack.c.l.b16 %v3213
        %v3316 = vunpack.c.l.b16 %v3217
        %v3317 = vunpack.c.l.b16 %v3220
        %v3318 = vunpack.c.l.b16 %v3224
        %v3319 = vunpack.c.l.b16 %v3227
        %v3320 = vunpack.c.l.b16 %v3231
        %v3321 = vunpack.c.l.b16 %v3234
        %v3322 = vunpack.c.l.b16 %v3238
        %v3323 = vunpack.c.l.b16 %v3241
        %v3324 = vunpack.c.l.b16 %v3245
        %v3325 = vunpack.c.l.b16 %v3248
        %v3326 = vunpack.c.l.b16 %v3252
        %v3327 = vunpack.c.l.b16 %v3255
        %v3328 = vunpack.c.l.b16 %v3259
        %v3329 = vunpack.c.l.b16 %v3262
        %v3330 = vunpack.c.l.b16 %v3266
        %v3331 = vunpack.c.l.b16 %v3269
        %v3332 = vunpack.c.l.b16 %v3273
        %v3333 = vunpack.c.l.b16 %v3276
        %v3334 = vunpack.c.l.b16 %v3280
        %v3335 = vunpack.c.l.b16 %v3283
        %v3336 = vunpack.c.l.b16 %v3287
        %v3337 = vunpack.c.l.b16 %v3290
        %v3338 = vunpack.c.l.b16 %v3294
        %v3339 = vunpack.c.l.b16 %v3297
        %v3340 = vunpack.c.l.b16 %v3301
        %v3341 = vunpack.c.l.b16 %v3304
        %v3342 = vunpack.c.l.b16 %v3308
        %v3343 = vunpack.c.l.b16 %v3311
        %v3344 = vpack.c.b16 %v3313, %v3312
        %v3345 = vpack.c.b16 %v3315, %v3314
        %v3346 = vpack.c.b16 %v3317, %v3316
        %v3347 = vpack.c.b16 %v3319, %v3318
        %v3348 = vpack.c.b16 %v3321, %v3320
        %v3349 = vpack.c.b16 %v3323, %v3322
        %v3350 = vpack.c.b16 %v3325, %v3324
        %v3351 = vpack.c.b16 %v3327, %v3326
        %v3352 = vpack.c.b16 %v3329, %v3328
        %v3353 = vpack.c.b16 %v3331, %v3330
        %v3354 = vpack.c.b16 %v3333, %v3332
        %v3355 = vpack.c.b16 %v3335, %v3334
        %v3356 = vpack.c.b16 %v3337, %v3336
        %v3357 = vpack.c.b16 %v3339, %v3338
        %v3358 = vpack.c.b16 %v3341, %v3340
        %v3359 = vpack.c.b16 %v3343, %v3342
        %3360 = vrot.lane.b32.xlu0 %v3344, 32
        %v3361 = vpop.permute.xlu0 %3360
        %3362 = vrot.lane.b32.xlu0 %v3345, 32
        %v3363 = vpop.permute.xlu0 %3362
        %3364 = vrot.lane.b32.xlu0 %v3346, 32
        %v3365 = vpop.permute.xlu0 %3364
        %3366 = vrot.lane.b32.xlu0 %v3347, 32
        %v3367 = vpop.permute.xlu0 %3366
        %3368 = vrot.lane.b32.xlu0 %v3348, 32
        %v3369 = vpop.permute.xlu0 %3368
        %3370 = vrot.lane.b32.xlu0 %v3349, 32
        %v3371 = vpop.permute.xlu0 %3370
        %3372 = vrot.lane.b32.xlu0 %v3350, 32
        %v3373 = vpop.permute.xlu0 %3372
        %3374 = vrot.lane.b32.xlu0 %v3351, 32
        %v3375 = vpop.permute.xlu0 %3374
        %3376 = vrot.lane.b32.xlu0 %v3352, 32
        %v3377 = vpop.permute.xlu0 %3376
        %3378 = vrot.lane.b32.xlu0 %v3353, 32
        %v3379 = vpop.permute.xlu0 %3378
        %3380 = vrot.lane.b32.xlu0 %v3354, 32
        %v3381 = vpop.permute.xlu0 %3380
        %3382 = vrot.lane.b32.xlu0 %v3355, 32
        %v3383 = vpop.permute.xlu0 %3382
        %3384 = vrot.lane.b32.xlu0 %v3356, 32
        %v3385 = vpop.permute.xlu0 %3384
        %3386 = vrot.lane.b32.xlu0 %v3357, 32
        %v3387 = vpop.permute.xlu0 %3386
        %3388 = vrot.lane.b32.xlu0 %v3358, 32
        %v3389 = vpop.permute.xlu0 %3388
        %3390 = vrot.lane.b32.xlu0 %v3359, 32
        %v3391 = vpop.permute.xlu0 %3390
        %vm3408 = vcmask 294144
        %3409 = vst.msk [vmem:[#allocation2] sm:$0xff] %vm3408, %v3361
        %3410 = vst.msk [vmem:[#allocation2 + $0x8] sm:$0xff] %vm3408, %v3363
        %3411 = vst.msk [vmem:[#allocation2 + $0x10] sm:$0xff] %vm3408, %v3365
        %3412 = vst.msk [vmem:[#allocation2 + $0x18] sm:$0xff] %vm3408, %v3367
        %3413 = vst.msk [vmem:[#allocation2 + $0x20] sm:$0xff] %vm3408, %v3369
        %3414 = vst.msk [vmem:[#allocation2 + $0x28] sm:$0xff] %vm3408, %v3371
        %3415 = vst.msk [vmem:[#allocation2 + $0x30] sm:$0xff] %vm3408, %v3373
        %3416 = vst.msk [vmem:[#allocation2 + $0x38] sm:$0xff] %vm3408, %v3375
        %3417 = vst.msk [vmem:[#allocation2 + $0x40] sm:$0xff] %vm3408, %v3377
        %3418 = vst.msk [vmem:[#allocation2 + $0x48] sm:$0xff] %vm3408, %v3379
        %3419 = vst.msk [vmem:[#allocation2 + $0x50] sm:$0xff] %vm3408, %v3381
        %3420 = vst.msk [vmem:[#allocation2 + $0x58] sm:$0xff] %vm3408, %v3383
        %3421 = vst.msk [vmem:[#allocation2 + $0x60] sm:$0xff] %vm3408, %v3385
        %3422 = vst.msk [vmem:[#allocation2 + $0x68] sm:$0xff] %vm3408, %v3387
        %3423 = vst.msk [vmem:[#allocation2 + $0x70] sm:$0xff] %vm3408, %v3389
        %3424 = vst.msk [vmem:[#allocation2 + $0x78] sm:$0xff] %vm3408, %v3391
        %v3425 = vld [vmem:[#allocation2] sm:$0xff]
        %v3426 = vld [vmem:[#allocation2 + $0x8] sm:$0xff]
        %v3427 = vld [vmem:[#allocation2 + $0x10] sm:$0xff]
        %v3428 = vld [vmem:[#allocation2 + $0x18] sm:$0xff]
        %v3429 = vld [vmem:[#allocation2 + $0x20] sm:$0xff]
        %v3430 = vld [vmem:[#allocation2 + $0x28] sm:$0xff]
        %v3431 = vld [vmem:[#allocation2 + $0x30] sm:$0xff]
        %v3432 = vld [vmem:[#allocation2 + $0x38] sm:$0xff]
        %v3433 = vld [vmem:[#allocation2 + $0x40] sm:$0xff]
        %v3434 = vld [vmem:[#allocation2 + $0x48] sm:$0xff]
        %v3435 = vld [vmem:[#allocation2 + $0x50] sm:$0xff]
        %v3436 = vld [vmem:[#allocation2 + $0x58] sm:$0xff]
        %v3437 = vld [vmem:[#allocation2 + $0x60] sm:$0xff]
        %v3438 = vld [vmem:[#allocation2 + $0x68] sm:$0xff]
        %v3439 = vld [vmem:[#allocation2 + $0x70] sm:$0xff]
        %v3440 = vld [vmem:[#allocation2 + $0x78] sm:$0xff]
        %v3441 = vld [vmem:[%s1] sm:$0xf]
        %v3442 = vld [vmem:[%s1 + $0x4] sm:$0xf]
        %v3443 = vld [vmem:[%s1 + $0x8] sm:$0xf]
        %v3444 = vld [vmem:[%s1 + $0xc] sm:$0xf]
        %v3445 = vld [vmem:[%s1 + $0x10] sm:$0xf]
        %v3446 = vld [vmem:[%s1 + $0x14] sm:$0xf]
        %v3447 = vld [vmem:[%s1 + $0x18] sm:$0xf]
        %v3448 = vld [vmem:[%s1 + $0x1c] sm:$0xf]
        %v3449 = vld [vmem:[%s1 + $0x20] sm:$0xf]
        %v3450 = vld [vmem:[%s1 + $0x24] sm:$0xf]
        %v3451 = vld [vmem:[%s1 + $0x28] sm:$0xf]
        %v3452 = vld [vmem:[%s1 + $0x2c] sm:$0xf]
        %v3453 = vld [vmem:[%s1 + $0x30] sm:$0xf]
        %v3454 = vld [vmem:[%s1 + $0x34] sm:$0xf]
        %v3455 = vld [vmem:[%s1 + $0x38] sm:$0xf]
        %v3456 = vld [vmem:[%s1 + $0x3c] sm:$0xf]
        %v3473 = vunpack.c.l.b16 %v3441
        %v3474 = vunpack.c.l.b16 %v3442
        %v3475 = vunpack.c.l.b16 %v3443
        %v3476 = vunpack.c.l.b16 %v3444
        %v3477 = vunpack.c.l.b16 %v3445
        %v3478 = vunpack.c.l.b16 %v3446
        %v3479 = vunpack.c.l.b16 %v3447
        %v3480 = vunpack.c.l.b16 %v3448
        %v3481 = vunpack.c.l.b16 %v3449
        %v3482 = vunpack.c.l.b16 %v3450
        %v3483 = vunpack.c.l.b16 %v3451
        %v3484 = vunpack.c.l.b16 %v3452
        %v3485 = vunpack.c.l.b16 %v3453
        %v3486 = vunpack.c.l.b16 %v3454
        %v3487 = vunpack.c.l.b16 %v3455
        %v3488 = vunpack.c.l.b16 %v3456
        %v3489 = vpack.c.b16 %v3474, %v3473
        %v3490 = vpack.c.b16 %v3476, %v3475
        %v3491 = vpack.c.b16 %v3478, %v3477
        %v3492 = vpack.c.b16 %v3480, %v3479
        %v3493 = vpack.c.b16 %v3482, %v3481
        %v3494 = vpack.c.b16 %v3484, %v3483
        %v3495 = vpack.c.b16 %v3486, %v3485
        %v3496 = vpack.c.b16 %v3488, %v3487
        %3505 = vmatprep.subr.bf16.mxu0 0
        %3506 = vmatpush1.bf16.msra.mxu0 %v3489
        %3507 = vmatprep.subr.bf16.mxu0 0
        %3508 = vmatpush1.bf16.msra.mxu0 %v3490
        %3509 = vmatprep.subr.bf16.mxu0 0
        %3510 = vmatpush1.bf16.msra.mxu0 %v3491
        %3511 = vmatprep.subr.bf16.mxu0 0
        %3512 = vmatpush1.bf16.msra.mxu0 %v3492
        %3513 = vmatprep.subr.bf16.mxu0 0
        %3514 = vmatpush1.bf16.msra.mxu0 %v3493
        %3515 = vmatprep.subr.bf16.mxu0 0
        %3516 = vmatpush1.bf16.msra.mxu0 %v3494
        %3517 = vmatprep.subr.bf16.mxu0 0
        %3518 = vmatpush1.bf16.msra.mxu0 %v3495
        %3519 = vmatprep.subr.bf16.mxu0 0
        %3520 = vmatpush1.bf16.msra.mxu0 %v3496
        %3521 = vmatprep.subr.bf16.mxu0 0
        %3522 = vmatpush1.bf16.msra.mxu0 0
        %3523 = vmatprep.subr.bf16.mxu0 0
        %3524 = vmatpush1.bf16.msra.mxu0 0
        %3525 = vmatprep.subr.bf16.mxu0 0
        %3526 = vmatpush1.bf16.msra.mxu0 0
        %3527 = vmatprep.subr.bf16.mxu0 0
        %3528 = vmatpush1.bf16.msra.mxu0 0
        %3529 = vmatprep.subr.bf16.mxu0 0
        %3530 = vmatpush1.bf16.msra.mxu0 0
        %3531 = vmatprep.subr.bf16.mxu0 0
        %3532 = vmatpush1.bf16.msra.mxu0 0
        %3533 = vmatprep.subr.bf16.mxu0 0
        %3534 = vmatpush1.bf16.msra.mxu0 0
        %3535 = vmatprep.subr.bf16.mxu0 0
        %3536 = vmatpush1.bf16.msra.mxu0 0
        %3537 = vmatprep.mubr.bf16.mxu0 0
        %3538 = vmatmul.mubr.bf16.gmra.mrb[0].mxu0 %v3425
        %v3539 = vpop.f32.mrb[0].mxu0
        %v3540 = vadd.f32 0.0, %v3539
        %v3541 = vpop.f32.mrb[0].mxu0
        %v3542 = vpop.f32.mrb[0].mxu0
        %v3543 = vadd.f32 0.0, %v3542
        %v3544 = vpop.f32.mrb[0].mxu0
        %3545 = vmatprep.mubr.bf16.mxu0 0
        %3546 = vmatmul.mubr.bf16.gmra.mrb[0].mxu0 %v3426
        %v3547 = vpop.f32.mrb[0].mxu0
        %v3548 = vadd.f32 0.0, %v3547
        %v3549 = vpop.f32.mrb[0].mxu0
        %v3550 = vpop.f32.mrb[0].mxu0
        %v3551 = vadd.f32 0.0, %v3550
        %v3552 = vpop.f32.mrb[0].mxu0
        %3553 = vmatprep.mubr.bf16.mxu0 0
        %3554 = vmatmul.mubr.bf16.gmra.mrb[0].mxu0 %v3427
        %v3555 = vpop.f32.mrb[0].mxu0
        %v3556 = vadd.f32 0.0, %v3555
        %v3557 = vpop.f32.mrb[0].mxu0
        %v3558 = vpop.f32.mrb[0].mxu0
        %v3559 = vadd.f32 0.0, %v3558
        %v3560 = vpop.f32.mrb[0].mxu0
        %3561 = vmatprep.mubr.bf16.mxu0 0
        %3562 = vmatmul.mubr.bf16.gmra.mrb[0].mxu0 %v3428
        %v3563 = vpop.f32.mrb[0].mxu0
        %v3564 = vadd.f32 0.0, %v3563
        %v3565 = vpop.f32.mrb[0].mxu0
        %v3566 = vpop.f32.mrb[0].mxu0
        %v3567 = vadd.f32 0.0, %v3566
        %v3568 = vpop.f32.mrb[0].mxu0
        %3569 = vmatprep.mubr.bf16.mxu0 0
        %3570 = vmatmul.mubr.bf16.gmra.mrb[0].mxu0 %v3429
        %v3571 = vpop.f32.mrb[0].mxu0
        %v3572 = vadd.f32 0.0, %v3571
        %v3573 = vpop.f32.mrb[0].mxu0
        %v3574 = vpop.f32.mrb[0].mxu0
        %v3575 = vadd.f32 0.0, %v3574
        %v3576 = vpop.f32.mrb[0].mxu0
        %3577 = vmatprep.mubr.bf16.mxu0 0
        %3578 = vmatmul.mubr.bf16.gmra.mrb[0].mxu0 %v3430
        %v3579 = vpop.f32.mrb[0].mxu0
        %v3580 = vadd.f32 0.0, %v3579
        %v3581 = vpop.f32.mrb[0].mxu0
        %v3582 = vpop.f32.mrb[0].mxu0
        %v3583 = vadd.f32 0.0, %v3582
        %v3584 = vpop.f32.mrb[0].mxu0
        %3585 = vmatprep.mubr.bf16.mxu0 0
        %3586 = vmatmul.mubr.bf16.gmra.mrb[0].mxu0 %v3431
        %v3587 = vpop.f32.mrb[0].mxu0
        %v3588 = vadd.f32 0.0, %v3587
        %v3589 = vpop.f32.mrb[0].mxu0
        %v3590 = vpop.f32.mrb[0].mxu0
        %v3591 = vadd.f32 0.0, %v3590
        %v3592 = vpop.f32.mrb[0].mxu0
        %3593 = vmatprep.mubr.bf16.mxu0 0
        %3594 = vmatmul.mubr.bf16.gmra.mrb[0].mxu0 %v3432
        %v3595 = vpop.f32.mrb[0].mxu0
        %v3596 = vadd.f32 0.0, %v3595
        %v3597 = vpop.f32.mrb[0].mxu0
        %v3598 = vpop.f32.mrb[0].mxu0
        %v3599 = vadd.f32 0.0, %v3598
        %v3600 = vpop.f32.mrb[0].mxu0
        %3601 = vmatprep.mubr.bf16.mxu0 0
        %3602 = vmatmul.mubr.bf16.gmra.mrb[0].mxu0 %v3433
        %v3603 = vpop.f32.mrb[0].mxu0
        %v3604 = vadd.f32 0.0, %v3603
        %v3605 = vpop.f32.mrb[0].mxu0
        %v3606 = vpop.f32.mrb[0].mxu0
        %v3607 = vadd.f32 0.0, %v3606
        %v3608 = vpop.f32.mrb[0].mxu0
        %3609 = vmatprep.mubr.bf16.mxu0 0
        %3610 = vmatmul.mubr.bf16.gmra.mrb[0].mxu0 %v3434
        %v3611 = vpop.f32.mrb[0].mxu0
        %v3612 = vadd.f32 0.0, %v3611
        %v3613 = vpop.f32.mrb[0].mxu0
        %v3614 = vpop.f32.mrb[0].mxu0
        %v3615 = vadd.f32 0.0, %v3614
        %v3616 = vpop.f32.mrb[0].mxu0
        %3617 = vmatprep.mubr.bf16.mxu0 0
        %3618 = vmatmul.mubr.bf16.gmra.mrb[0].mxu0 %v3435
        %v3619 = vpop.f32.mrb[0].mxu0
        %v3620 = vadd.f32 0.0, %v3619
        %v3621 = vpop.f32.mrb[0].mxu0
        %v3622 = vpop.f32.mrb[0].mxu0
        %v3623 = vadd.f32 0.0, %v3622
        %v3624 = vpop.f32.mrb[0].mxu0
        %3625 = vmatprep.mubr.bf16.mxu0 0
        %3626 = vmatmul.mubr.bf16.gmra.mrb[0].mxu0 %v3436
        %v3627 = vpop.f32.mrb[0].mxu0
        %v3628 = vadd.f32 0.0, %v3627
        %v3629 = vpop.f32.mrb[0].mxu0
        %v3630 = vpop.f32.mrb[0].mxu0
        %v3631 = vadd.f32 0.0, %v3630
        %v3632 = vpop.f32.mrb[0].mxu0
        %3633 = vmatprep.mubr.bf16.mxu0 0
        %3634 = vmatmul.mubr.bf16.gmra.mrb[0].mxu0 %v3437
        %v3635 = vpop.f32.mrb[0].mxu0
        %v3636 = vadd.f32 0.0, %v3635
        %v3637 = vpop.f32.mrb[0].mxu0
        %v3638 = vpop.f32.mrb[0].mxu0
        %v3639 = vadd.f32 0.0, %v3638
        %v3640 = vpop.f32.mrb[0].mxu0
        %3641 = vmatprep.mubr.bf16.mxu0 0
        %3642 = vmatmul.mubr.bf16.gmra.mrb[0].mxu0 %v3438
        %v3643 = vpop.f32.mrb[0].mxu0
        %v3644 = vadd.f32 0.0, %v3643
        %v3645 = vpop.f32.mrb[0].mxu0
        %v3646 = vpop.f32.mrb[0].mxu0
        %v3647 = vadd.f32 0.0, %v3646
        %v3648 = vpop.f32.mrb[0].mxu0
        %3649 = vmatprep.mubr.bf16.mxu0 0
        %3650 = vmatmul.mubr.bf16.gmra.mrb[0].mxu0 %v3439
        %v3651 = vpop.f32.mrb[0].mxu0
        %v3652 = vadd.f32 0.0, %v3651
        %v3653 = vpop.f32.mrb[0].mxu0
        %v3654 = vpop.f32.mrb[0].mxu0
        %v3655 = vadd.f32 0.0, %v3654
        %v3656 = vpop.f32.mrb[0].mxu0
        %3657 = vmatprep.mubr.bf16.mxu0 0
        %3658 = vmatmul.mubr.bf16.gmra.mrb[0].mxu0 %v3440
        %v3659 = vpop.f32.mrb[0].mxu0
        %v3660 = vadd.f32 0.0, %v3659
        %v3661 = vpop.f32.mrb[0].mxu0
        %v3662 = vpop.f32.mrb[0].mxu0
        %v3663 = vadd.f32 0.0, %v3662
        %v3664 = vpop.f32.mrb[0].mxu0
        %3665 = vdwg.mxu0
        %v3666 = vld [vmem:[%s2] sm:$0x1]
        %v3668 = vlaneseq
        %v3669 = vshrl.u32 %v3668, 7
        %v3670 = vsub.s32 0, %v3669
        %v3671 = vrot.slane %v3666, %v3670
        %v3673 = vmul.f32 %v3540, %v3671
        %v3674 = vmul.f32 %v3543, %v3671
        %v3675 = vmul.f32 %v3548, %v3671
        %v3676 = vmul.f32 %v3551, %v3671
        %v3677 = vmul.f32 %v3556, %v3671
        %v3678 = vmul.f32 %v3559, %v3671
        %v3679 = vmul.f32 %v3564, %v3671
        %v3680 = vmul.f32 %v3567, %v3671
        %v3681 = vmul.f32 %v3572, %v3671
        %v3682 = vmul.f32 %v3575, %v3671
        %v3683 = vmul.f32 %v3580, %v3671
        %v3684 = vmul.f32 %v3583, %v3671
        %v3685 = vmul.f32 %v3588, %v3671
        %v3686 = vmul.f32 %v3591, %v3671
        %v3687 = vmul.f32 %v3596, %v3671
        %v3688 = vmul.f32 %v3599, %v3671
        %v3689 = vmul.f32 %v3604, %v3671
        %v3690 = vmul.f32 %v3607, %v3671
        %v3691 = vmul.f32 %v3612, %v3671
        %v3692 = vmul.f32 %v3615, %v3671
        %v3693 = vmul.f32 %v3620, %v3671
        %v3694 = vmul.f32 %v3623, %v3671
        %v3695 = vmul.f32 %v3628, %v3671
        %v3696 = vmul.f32 %v3631, %v3671
        %v3697 = vmul.f32 %v3636, %v3671
        %v3698 = vmul.f32 %v3639, %v3671
        %v3699 = vmul.f32 %v3644, %v3671
        %v3700 = vmul.f32 %v3647, %v3671
        %v3701 = vmul.f32 %v3652, %v3671
        %v3702 = vmul.f32 %v3655, %v3671
        %v3703 = vmul.f32 %v3660, %v3671
        %v3704 = vmul.f32 %v3663, %v3671
        %v3705 = vld [vmem:[%s3] sm:$0x1]
        %v3707 = vlaneseq
        %v3708 = vshrl.u32 %v3707, 7
        %v3709 = vsub.s32 0, %v3708
        %v3710 = vrot.slane %v3705, %v3709
        %v3712 = vadd.f32 %v3673, %v3710
        %v3713 = vadd.f32 %v3674, %v3710
        %v3714 = vadd.f32 %v3675, %v3710
        %v3715 = vadd.f32 %v3676, %v3710
        %v3716 = vadd.f32 %v3677, %v3710
        %v3717 = vadd.f32 %v3678, %v3710
        %v3718 = vadd.f32 %v3679, %v3710
        %v3719 = vadd.f32 %v3680, %v3710
        %v3720 = vadd.f32 %v3681, %v3710
        %v3721 = vadd.f32 %v3682, %v3710
        %v3722 = vadd.f32 %v3683, %v3710
        %v3723 = vadd.f32 %v3684, %v3710
        %v3724 = vadd.f32 %v3685, %v3710
        %v3725 = vadd.f32 %v3686, %v3710
        %v3726 = vadd.f32 %v3687, %v3710
        %v3727 = vadd.f32 %v3688, %v3710
        %v3728 = vadd.f32 %v3689, %v3710
        %v3729 = vadd.f32 %v3690, %v3710
        %v3730 = vadd.f32 %v3691, %v3710
        %v3731 = vadd.f32 %v3692, %v3710
        %v3732 = vadd.f32 %v3693, %v3710
        %v3733 = vadd.f32 %v3694, %v3710
        %v3734 = vadd.f32 %v3695, %v3710
        %v3735 = vadd.f32 %v3696, %v3710
        %v3736 = vadd.f32 %v3697, %v3710
        %v3737 = vadd.f32 %v3698, %v3710
        %v3738 = vadd.f32 %v3699, %v3710
        %v3739 = vadd.f32 %v3700, %v3710
        %v3740 = vadd.f32 %v3701, %v3710
        %v3741 = vadd.f32 %v3702, %v3710
        %v3742 = vadd.f32 %v3703, %v3710
        %v3743 = vadd.f32 %v3704, %v3710
        %v3744 = vmax.f32 %v3712, 0.0
        %v3745 = vmax.f32 %v3713, 0.0
        %v3746 = vmax.f32 %v3714, 0.0
        %v3747 = vmax.f32 %v3715, 0.0
        %v3748 = vmax.f32 %v3716, 0.0
        %v3749 = vmax.f32 %v3717, 0.0
        %v3750 = vmax.f32 %v3718, 0.0
        %v3751 = vmax.f32 %v3719, 0.0
        %v3752 = vmax.f32 %v3720, 0.0
        %v3753 = vmax.f32 %v3721, 0.0
        %v3754 = vmax.f32 %v3722, 0.0
        %v3755 = vmax.f32 %v3723, 0.0
        %v3756 = vmax.f32 %v3724, 0.0
        %v3757 = vmax.f32 %v3725, 0.0
        %v3758 = vmax.f32 %v3726, 0.0
        %v3759 = vmax.f32 %v3727, 0.0
        %v3760 = vmax.f32 %v3728, 0.0
        %v3761 = vmax.f32 %v3729, 0.0
        %v3762 = vmax.f32 %v3730, 0.0
        %v3763 = vmax.f32 %v3731, 0.0
        %v3764 = vmax.f32 %v3732, 0.0
        %v3765 = vmax.f32 %v3733, 0.0
        %v3766 = vmax.f32 %v3734, 0.0
        %v3767 = vmax.f32 %v3735, 0.0
        %v3768 = vmax.f32 %v3736, 0.0
        %v3769 = vmax.f32 %v3737, 0.0
        %v3770 = vmax.f32 %v3738, 0.0
        %v3771 = vmax.f32 %v3739, 0.0
        %v3772 = vmax.f32 %v3740, 0.0
        %v3773 = vmax.f32 %v3741, 0.0
        %v3774 = vmax.f32 %v3742, 0.0
        %v3775 = vmax.f32 %v3743, 0.0
        %v3776 = vpack.c.bf16 %v3745, %v3744
        %v3777 = vpack.c.bf16 %v3747, %v3746
        %v3778 = vpack.c.bf16 %v3749, %v3748
        %v3779 = vpack.c.bf16 %v3751, %v3750
        %v3780 = vpack.c.bf16 %v3753, %v3752
        %v3781 = vpack.c.bf16 %v3755, %v3754
        %v3782 = vpack.c.bf16 %v3757, %v3756
        %v3783 = vpack.c.bf16 %v3759, %v3758
        %v3784 = vpack.c.bf16 %v3761, %v3760
        %v3785 = vpack.c.bf16 %v3763, %v3762
        %v3786 = vpack.c.bf16 %v3765, %v3764
        %v3787 = vpack.c.bf16 %v3767, %v3766
        %v3788 = vpack.c.bf16 %v3769, %v3768
        %v3789 = vpack.c.bf16 %v3771, %v3770
        %v3790 = vpack.c.bf16 %v3773, %v3772
        %v3791 = vpack.c.bf16 %v3775, %v3774
        %v3792 = vld [vmem:[%s4] sm:$0xf]
        %v3793 = vld [vmem:[%s4 + $0x4] sm:$0xf]
        %v3794 = vld [vmem:[%s4 + $0x8] sm:$0xf]
        %v3795 = vld [vmem:[%s4 + $0xc] sm:$0xf]
        %v3796 = vld [vmem:[%s4 + $0x10] sm:$0xf]
        %v3797 = vld [vmem:[%s4 + $0x14] sm:$0xf]
        %v3798 = vld [vmem:[%s4 + $0x18] sm:$0xf]
        %v3799 = vld [vmem:[%s4 + $0x1c] sm:$0xf]
        %v3800 = vld [vmem:[%s4 + $0x20] sm:$0xf]
        %v3801 = vld [vmem:[%s4 + $0x24] sm:$0xf]
        %v3802 = vld [vmem:[%s4 + $0x28] sm:$0xf]
        %v3803 = vld [vmem:[%s4 + $0x2c] sm:$0xf]
        %v3804 = vld [vmem:[%s4 + $0x30] sm:$0xf]
        %v3805 = vld [vmem:[%s4 + $0x34] sm:$0xf]
        %v3806 = vld [vmem:[%s4 + $0x38] sm:$0xf]
        %v3807 = vld [vmem:[%s4 + $0x3c] sm:$0xf]
        %v3824 = vunpack.c.l.b16 %v3792
        %v3825 = vunpack.c.l.b16 %v3793
        %v3826 = vunpack.c.l.b16 %v3794
        %v3827 = vunpack.c.l.b16 %v3795
        %v3828 = vunpack.c.l.b16 %v3796
        %v3829 = vunpack.c.l.b16 %v3797
        %v3830 = vunpack.c.l.b16 %v3798
        %v3831 = vunpack.c.l.b16 %v3799
        %v3832 = vunpack.c.l.b16 %v3800
        %v3833 = vunpack.c.l.b16 %v3801
        %v3834 = vunpack.c.l.b16 %v3802
        %v3835 = vunpack.c.l.b16 %v3803
        %v3836 = vunpack.c.l.b16 %v3804
        %v3837 = vunpack.c.l.b16 %v3805
        %v3838 = vunpack.c.l.b16 %v3806
        %v3839 = vunpack.c.l.b16 %v3807
        %v3840 = vpack.c.b16 %v3825, %v3824
        %v3841 = vpack.c.b16 %v3827, %v3826
        %v3842 = vpack.c.b16 %v3829, %v3828
        %v3843 = vpack.c.b16 %v3831, %v3830
        %v3844 = vpack.c.b16 %v3833, %v3832
        %v3845 = vpack.c.b16 %v3835, %v3834
        %v3846 = vpack.c.b16 %v3837, %v3836
        %v3847 = vpack.c.b16 %v3839, %v3838
        %3856 = vmatprep.subr.bf16.mxu0 0
        %3857 = vmatpush1.bf16.msra.mxu0 %v3840
        %3858 = vmatprep.subr.bf16.mxu0 0
        %3859 = vmatpush1.bf16.msra.mxu0 %v3841
        %3860 = vmatprep.subr.bf16.mxu0 0
        %3861 = vmatpush1.bf16.msra.mxu0 %v3842
        %3862 = vmatprep.subr.bf16.mxu0 0
        %3863 = vmatpush1.bf16.msra.mxu0 %v3843
        %3864 = vmatprep.subr.bf16.mxu0 0
        %3865 = vmatpush1.bf16.msra.mxu0 %v3844
        %3866 = vmatprep.subr.bf16.mxu0 0
        %3867 = vmatpush1.bf16.msra.mxu0 %v3845
        %3868 = vmatprep.subr.bf16.mxu0 0
        %3869 = vmatpush1.bf16.msra.mxu0 %v3846
        %3870 = vmatprep.subr.bf16.mxu0 0
        %3871 = vmatpush1.bf16.msra.mxu0 %v3847
        %3872 = vmatprep.subr.bf16.mxu0 0
        %3873 = vmatpush1.bf16.msra.mxu0 0
        %3874 = vmatprep.subr.bf16.mxu0 0
        %3875 = vmatpush1.bf16.msra.mxu0 0
        %3876 = vmatprep.subr.bf16.mxu0 0
        %3877 = vmatpush1.bf16.msra.mxu0 0
        %3878 = vmatprep.subr.bf16.mxu0 0
        %3879 = vmatpush1.bf16.msra.mxu0 0
        %3880 = vmatprep.subr.bf16.mxu0 0
        %3881 = vmatpush1.bf16.msra.mxu0 0
        %3882 = vmatprep.subr.bf16.mxu0 0
        %3883 = vmatpush1.bf16.msra.mxu0 0
        %3884 = vmatprep.subr.bf16.mxu0 0
        %3885 = vmatpush1.bf16.msra.mxu0 0
        %3886 = vmatprep.subr.bf16.mxu0 0
        %3887 = vmatpush1.bf16.msra.mxu0 0
        %3888 = vmatprep.mubr.bf16.mxu0 0
        %3889 = vmatmul.mubr.bf16.gmra.mrb[0].mxu0 %v3776
        %v3890 = vpop.f32.mrb[0].mxu0
        %v3891 = vadd.f32 0.0, %v3890
        %v3892 = vpop.f32.mrb[0].mxu0
        %v3893 = vpop.f32.mrb[0].mxu0
        %v3894 = vadd.f32 0.0, %v3893
        %v3895 = vpop.f32.mrb[0].mxu0
        %3896 = vmatprep.mubr.bf16.mxu0 0
        %3897 = vmatmul.mubr.bf16.gmra.mrb[0].mxu0 %v3777
        %v3898 = vpop.f32.mrb[0].mxu0
        %v3899 = vadd.f32 0.0, %v3898
        %v3900 = vpop.f32.mrb[0].mxu0
        %v3901 = vpop.f32.mrb[0].mxu0
        %v3902 = vadd.f32 0.0, %v3901
        %v3903 = vpop.f32.mrb[0].mxu0
        %3904 = vmatprep.mubr.bf16.mxu0 0
        %3905 = vmatmul.mubr.bf16.gmra.mrb[0].mxu0 %v3778
        %v3906 = vpop.f32.mrb[0].mxu0
        %v3907 = vadd.f32 0.0, %v3906
        %v3908 = vpop.f32.mrb[0].mxu0
        %v3909 = vpop.f32.mrb[0].mxu0
        %v3910 = vadd.f32 0.0, %v3909
        %v3911 = vpop.f32.mrb[0].mxu0
        %3912 = vmatprep.mubr.bf16.mxu0 0
        %3913 = vmatmul.mubr.bf16.gmra.mrb[0].mxu0 %v3779
        %v3914 = vpop.f32.mrb[0].mxu0
        %v3915 = vadd.f32 0.0, %v3914
        %v3916 = vpop.f32.mrb[0].mxu0
        %v3917 = vpop.f32.mrb[0].mxu0
        %v3918 = vadd.f32 0.0, %v3917
        %v3919 = vpop.f32.mrb[0].mxu0
        %3920 = vmatprep.mubr.bf16.mxu0 0
        %3921 = vmatmul.mubr.bf16.gmra.mrb[0].mxu0 %v3780
        %v3922 = vpop.f32.mrb[0].mxu0
        %v3923 = vadd.f32 0.0, %v3922
        %v3924 = vpop.f32.mrb[0].mxu0
        %v3925 = vpop.f32.mrb[0].mxu0
        %v3926 = vadd.f32 0.0, %v3925
        %v3927 = vpop.f32.mrb[0].mxu0
        %3928 = vmatprep.mubr.bf16.mxu0 0
        %3929 = vmatmul.mubr.bf16.gmra.mrb[0].mxu0 %v3781
        %v3930 = vpop.f32.mrb[0].mxu0
        %v3931 = vadd.f32 0.0, %v3930
        %v3932 = vpop.f32.mrb[0].mxu0
        %v3933 = vpop.f32.mrb[0].mxu0
        %v3934 = vadd.f32 0.0, %v3933
        %v3935 = vpop.f32.mrb[0].mxu0
        %3936 = vmatprep.mubr.bf16.mxu0 0
        %3937 = vmatmul.mubr.bf16.gmra.mrb[0].mxu0 %v3782
        %v3938 = vpop.f32.mrb[0].mxu0
        %v3939 = vadd.f32 0.0, %v3938
        %v3940 = vpop.f32.mrb[0].mxu0
        %v3941 = vpop.f32.mrb[0].mxu0
        %v3942 = vadd.f32 0.0, %v3941
        %v3943 = vpop.f32.mrb[0].mxu0
        %3944 = vmatprep.mubr.bf16.mxu0 0
        %3945 = vmatmul.mubr.bf16.gmra.mrb[0].mxu0 %v3783
        %v3946 = vpop.f32.mrb[0].mxu0
        %v3947 = vadd.f32 0.0, %v3946
        %v3948 = vpop.f32.mrb[0].mxu0
        %v3949 = vpop.f32.mrb[0].mxu0
        %v3950 = vadd.f32 0.0, %v3949
        %v3951 = vpop.f32.mrb[0].mxu0
        %3952 = vmatprep.mubr.bf16.mxu0 0
        %3953 = vmatmul.mubr.bf16.gmra.mrb[0].mxu0 %v3784
        %v3954 = vpop.f32.mrb[0].mxu0
        %v3955 = vadd.f32 0.0, %v3954
        %v3956 = vpop.f32.mrb[0].mxu0
        %v3957 = vpop.f32.mrb[0].mxu0
        %v3958 = vadd.f32 0.0, %v3957
        %v3959 = vpop.f32.mrb[0].mxu0
        %3960 = vmatprep.mubr.bf16.mxu0 0
        %3961 = vmatmul.mubr.bf16.gmra.mrb[0].mxu0 %v3785
        %v3962 = vpop.f32.mrb[0].mxu0
        %v3963 = vadd.f32 0.0, %v3962
        %v3964 = vpop.f32.mrb[0].mxu0
        %v3965 = vpop.f32.mrb[0].mxu0
        %v3966 = vadd.f32 0.0, %v3965
        %v3967 = vpop.f32.mrb[0].mxu0
        %3968 = vmatprep.mubr.bf16.mxu0 0
        %3969 = vmatmul.mubr.bf16.gmra.mrb[0].mxu0 %v3786
        %v3970 = vpop.f32.mrb[0].mxu0
        %v3971 = vadd.f32 0.0, %v3970
        %v3972 = vpop.f32.mrb[0].mxu0
        %v3973 = vpop.f32.mrb[0].mxu0
        %v3974 = vadd.f32 0.0, %v3973
        %v3975 = vpop.f32.mrb[0].mxu0
        %3976 = vmatprep.mubr.bf16.mxu0 0
        %3977 = vmatmul.mubr.bf16.gmra.mrb[0].mxu0 %v3787
        %v3978 = vpop.f32.mrb[0].mxu0
        %v3979 = vadd.f32 0.0, %v3978
        %v3980 = vpop.f32.mrb[0].mxu0
        %v3981 = vpop.f32.mrb[0].mxu0
        %v3982 = vadd.f32 0.0, %v3981
        %v3983 = vpop.f32.mrb[0].mxu0
        %3984 = vmatprep.mubr.bf16.mxu0 0
        %3985 = vmatmul.mubr.bf16.gmra.mrb[0].mxu0 %v3788
        %v3986 = vpop.f32.mrb[0].mxu0
        %v3987 = vadd.f32 0.0, %v3986
        %v3988 = vpop.f32.mrb[0].mxu0
        %v3989 = vpop.f32.mrb[0].mxu0
        %v3990 = vadd.f32 0.0, %v3989
        %v3991 = vpop.f32.mrb[0].mxu0
        %3992 = vmatprep.mubr.bf16.mxu0 0
        %3993 = vmatmul.mubr.bf16.gmra.mrb[0].mxu0 %v3789
        %v3994 = vpop.f32.mrb[0].mxu0
        %v3995 = vadd.f32 0.0, %v3994
        %v3996 = vpop.f32.mrb[0].mxu0
        %v3997 = vpop.f32.mrb[0].mxu0
        %v3998 = vadd.f32 0.0, %v3997
        %v3999 = vpop.f32.mrb[0].mxu0
        %4000 = vmatprep.mubr.bf16.mxu0 0
        %4001 = vmatmul.mubr.bf16.gmra.mrb[0].mxu0 %v3790
        %v4002 = vpop.f32.mrb[0].mxu0
        %v4003 = vadd.f32 0.0, %v4002
        %v4004 = vpop.f32.mrb[0].mxu0
        %v4005 = vpop.f32.mrb[0].mxu0
        %v4006 = vadd.f32 0.0, %v4005
        %v4007 = vpop.f32.mrb[0].mxu0
        %4008 = vmatprep.mubr.bf16.mxu0 0
        %4009 = vmatmul.mubr.bf16.gmra.mrb[0].mxu0 %v3791
        %v4010 = vpop.f32.mrb[0].mxu0
        %v4011 = vadd.f32 0.0, %v4010
        %v4012 = vpop.f32.mrb[0].mxu0
        %v4013 = vpop.f32.mrb[0].mxu0
        %v4014 = vadd.f32 0.0, %v4013
        %v4015 = vpop.f32.mrb[0].mxu0
        %4016 = vdwg.mxu0
        %v4017 = vld [vmem:[%s5] sm:$0x1]
        %v4019 = vlaneseq
        %v4020 = vshrl.u32 %v4019, 7
        %v4021 = vsub.s32 0, %v4020
        %v4022 = vrot.slane %v4017, %v4021
        %v4024 = vmul.f32 %v3891, %v4022
        %v4025 = vmul.f32 %v3894, %v4022
        %v4026 = vmul.f32 %v3899, %v4022
        %v4027 = vmul.f32 %v3902, %v4022
        %v4028 = vmul.f32 %v3907, %v4022
        %v4029 = vmul.f32 %v3910, %v4022
        %v4030 = vmul.f32 %v3915, %v4022
        %v4031 = vmul.f32 %v3918, %v4022
        %v4032 = vmul.f32 %v3923, %v4022
        %v4033 = vmul.f32 %v3926, %v4022
        %v4034 = vmul.f32 %v3931, %v4022
        %v4035 = vmul.f32 %v3934, %v4022
        %v4036 = vmul.f32 %v3939, %v4022
        %v4037 = vmul.f32 %v3942, %v4022
        %v4038 = vmul.f32 %v3947, %v4022
        %v4039 = vmul.f32 %v3950, %v4022
        %v4040 = vmul.f32 %v3955, %v4022
        %v4041 = vmul.f32 %v3958, %v4022
        %v4042 = vmul.f32 %v3963, %v4022
        %v4043 = vmul.f32 %v3966, %v4022
        %v4044 = vmul.f32 %v3971, %v4022
        %v4045 = vmul.f32 %v3974, %v4022
        %v4046 = vmul.f32 %v3979, %v4022
        %v4047 = vmul.f32 %v3982, %v4022
        %v4048 = vmul.f32 %v3987, %v4022
        %v4049 = vmul.f32 %v3990, %v4022
        %v4050 = vmul.f32 %v3995, %v4022
        %v4051 = vmul.f32 %v3998, %v4022
        %v4052 = vmul.f32 %v4003, %v4022
        %v4053 = vmul.f32 %v4006, %v4022
        %v4054 = vmul.f32 %v4011, %v4022
        %v4055 = vmul.f32 %v4014, %v4022
        %v4056 = vld [vmem:[%s6] sm:$0x1]
        %v4058 = vlaneseq
        %v4059 = vshrl.u32 %v4058, 7
        %v4060 = vsub.s32 0, %v4059
        %v4061 = vrot.slane %v4056, %v4060
        %v4063 = vadd.f32 %v4024, %v4061
        %v4064 = vadd.f32 %v4025, %v4061
        %v4065 = vadd.f32 %v4026, %v4061
        %v4066 = vadd.f32 %v4027, %v4061
        %v4067 = vadd.f32 %v4028, %v4061
        %v4068 = vadd.f32 %v4029, %v4061
        %v4069 = vadd.f32 %v4030, %v4061
        %v4070 = vadd.f32 %v4031, %v4061
        %v4071 = vadd.f32 %v4032, %v4061
        %v4072 = vadd.f32 %v4033, %v4061
        %v4073 = vadd.f32 %v4034, %v4061
        %v4074 = vadd.f32 %v4035, %v4061
        %v4075 = vadd.f32 %v4036, %v4061
        %v4076 = vadd.f32 %v4037, %v4061
        %v4077 = vadd.f32 %v4038, %v4061
        %v4078 = vadd.f32 %v4039, %v4061
        %v4079 = vadd.f32 %v4040, %v4061
        %v4080 = vadd.f32 %v4041, %v4061
        %v4081 = vadd.f32 %v4042, %v4061
        %v4082 = vadd.f32 %v4043, %v4061
        %v4083 = vadd.f32 %v4044, %v4061
        %v4084 = vadd.f32 %v4045, %v4061
        %v4085 = vadd.f32 %v4046, %v4061
        %v4086 = vadd.f32 %v4047, %v4061
        %v4087 = vadd.f32 %v4048, %v4061
        %v4088 = vadd.f32 %v4049, %v4061
        %v4089 = vadd.f32 %v4050, %v4061
        %v4090 = vadd.f32 %v4051, %v4061
        %v4091 = vadd.f32 %v4052, %v4061
        %v4092 = vadd.f32 %v4053, %v4061
        %v4093 = vadd.f32 %v4054, %v4061
        %v4094 = vadd.f32 %v4055, %v4061
        %v4095 = vunpack.c.l.bf16 %v3425
        %v4096 = vunpack.c.h.bf16 %v3425
        %v4097 = vunpack.c.l.bf16 %v3426
        %v4098 = vunpack.c.h.bf16 %v3426
        %v4099 = vunpack.c.l.bf16 %v3427
        %v4100 = vunpack.c.h.bf16 %v3427
        %v4101 = vunpack.c.l.bf16 %v3428
        %v4102 = vunpack.c.h.bf16 %v3428
        %v4103 = vunpack.c.l.bf16 %v3429
        %v4104 = vunpack.c.h.bf16 %v3429
        %v4105 = vunpack.c.l.bf16 %v3430
        %v4106 = vunpack.c.h.bf16 %v3430
        %v4107 = vunpack.c.l.bf16 %v3431
        %v4108 = vunpack.c.h.bf16 %v3431
        %v4109 = vunpack.c.l.bf16 %v3432
        %v4110 = vunpack.c.h.bf16 %v3432
        %v4111 = vunpack.c.l.bf16 %v3433
        %v4112 = vunpack.c.h.bf16 %v3433
        %v4113 = vunpack.c.l.bf16 %v3434
        %v4114 = vunpack.c.h.bf16 %v3434
        %v4115 = vunpack.c.l.bf16 %v3435
        %v4116 = vunpack.c.h.bf16 %v3435
        %v4117 = vunpack.c.l.bf16 %v3436
        %v4118 = vunpack.c.h.bf16 %v3436
        %v4119 = vunpack.c.l.bf16 %v3437
        %v4120 = vunpack.c.h.bf16 %v3437
        %v4121 = vunpack.c.l.bf16 %v3438
        %v4122 = vunpack.c.h.bf16 %v3438
        %v4123 = vunpack.c.l.bf16 %v3439
        %v4124 = vunpack.c.h.bf16 %v3439
        %v4125 = vunpack.c.l.bf16 %v3440
        %v4126 = vunpack.c.h.bf16 %v3440
        %v4127 = vadd.f32 %v4063, %v4095
        %v4128 = vadd.f32 %v4064, %v4096
        %v4129 = vadd.f32 %v4065, %v4097
        %v4130 = vadd.f32 %v4066, %v4098
        %v4131 = vadd.f32 %v4067, %v4099
        %v4132 = vadd.f32 %v4068, %v4100
        %v4133 = vadd.f32 %v4069, %v4101
        %v4134 = vadd.f32 %v4070, %v4102
        %v4135 = vadd.f32 %v4071, %v4103
        %v4136 = vadd.f32 %v4072, %v4104
        %v4137 = vadd.f32 %v4073, %v4105
        %v4138 = vadd.f32 %v4074, %v4106
        %v4139 = vadd.f32 %v4075, %v4107
        %v4140 = vadd.f32 %v4076, %v4108
        %v4141 = vadd.f32 %v4077, %v4109
        %v4142 = vadd.f32 %v4078, %v4110
        %v4143 = vadd.f32 %v4079, %v4111
        %v4144 = vadd.f32 %v4080, %v4112
        %v4145 = vadd.f32 %v4081, %v4113
        %v4146 = vadd.f32 %v4082, %v4114
        %v4147 = vadd.f32 %v4083, %v4115
        %v4148 = vadd.f32 %v4084, %v4116
        %v4149 = vadd.f32 %v4085, %v4117
        %v4150 = vadd.f32 %v4086, %v4118
        %v4151 = vadd.f32 %v4087, %v4119
        %v4152 = vadd.f32 %v4088, %v4120
        %v4153 = vadd.f32 %v4089, %v4121
        %v4154 = vadd.f32 %v4090, %v4122
        %v4155 = vadd.f32 %v4091, %v4123
        %v4156 = vadd.f32 %v4092, %v4124
        %v4157 = vadd.f32 %v4093, %v4125
        %v4158 = vadd.f32 %v4094, %v4126
        %v4159 = vpack.c.bf16 %v4128, %v4127
        %v4160 = vpack.c.bf16 %v4130, %v4129
        %v4161 = vpack.c.bf16 %v4132, %v4131
        %v4162 = vpack.c.bf16 %v4134, %v4133
        %v4163 = vpack.c.bf16 %v4136, %v4135
        %v4164 = vpack.c.bf16 %v4138, %v4137
        %v4165 = vpack.c.bf16 %v4140, %v4139
        %v4166 = vpack.c.bf16 %v4142, %v4141
        %v4167 = vpack.c.bf16 %v4144, %v4143
        %v4168 = vpack.c.bf16 %v4146, %v4145
        %v4169 = vpack.c.bf16 %v4148, %v4147
        %v4170 = vpack.c.bf16 %v4150, %v4149
        %v4171 = vpack.c.bf16 %v4152, %v4151
        %v4172 = vpack.c.bf16 %v4154, %v4153
        %v4173 = vpack.c.bf16 %v4156, %v4155
        %v4174 = vpack.c.bf16 %v4158, %v4157
        %v4191 = vunpack.c.l.b16 %v4159
        %v4192 = vunpack.c.h.b16 %v4159
        %v4193 = vunpack.c.l.b16 %v4160
        %v4194 = vunpack.c.h.b16 %v4160
        %v4195 = vunpack.c.l.b16 %v4161
        %v4196 = vunpack.c.h.b16 %v4161
        %v4197 = vunpack.c.l.b16 %v4162
        %v4198 = vunpack.c.h.b16 %v4162
        %v4199 = vunpack.c.l.b16 %v4163
        %v4200 = vunpack.c.h.b16 %v4163
        %v4201 = vunpack.c.l.b16 %v4164
        %v4202 = vunpack.c.h.b16 %v4164
        %v4203 = vunpack.c.l.b16 %v4165
        %v4204 = vunpack.c.h.b16 %v4165
        %v4205 = vunpack.c.l.b16 %v4166
        %v4206 = vunpack.c.h.b16 %v4166
        %v4207 = vunpack.c.l.b16 %v4167
        %v4208 = vunpack.c.h.b16 %v4167
        %v4209 = vunpack.c.l.b16 %v4168
        %v4210 = vunpack.c.h.b16 %v4168
        %v4211 = vunpack.c.l.b16 %v4169
        %v4212 = vunpack.c.h.b16 %v4169
        %v4213 = vunpack.c.l.b16 %v4170
        %v4214 = vunpack.c.h.b16 %v4170
        %v4215 = vunpack.c.l.b16 %v4171
        %v4216 = vunpack.c.h.b16 %v4171
        %v4217 = vunpack.c.l.b16 %v4172
        %v4218 = vunpack.c.h.b16 %v4172
        %v4219 = vunpack.c.l.b16 %v4173
        %v4220 = vunpack.c.h.b16 %v4173
        %v4221 = vunpack.c.l.b16 %v4174
        %v4222 = vunpack.c.h.b16 %v4174
        %v4223 = vpack.c.b16 %v4191, %v4191
        %v4224 = vpack.c.b16 %v4192, %v4192
        %v4225 = vpack.c.b16 %v4193, %v4193
        %v4226 = vpack.c.b16 %v4194, %v4194
        %v4227 = vpack.c.b16 %v4195, %v4195
        %v4228 = vpack.c.b16 %v4196, %v4196
        %v4229 = vpack.c.b16 %v4197, %v4197
        %v4230 = vpack.c.b16 %v4198, %v4198
        %v4231 = vpack.c.b16 %v4199, %v4199
        %v4232 = vpack.c.b16 %v4200, %v4200
        %v4233 = vpack.c.b16 %v4201, %v4201
        %v4234 = vpack.c.b16 %v4202, %v4202
        %v4235 = vpack.c.b16 %v4203, %v4203
        %v4236 = vpack.c.b16 %v4204, %v4204
        %v4237 = vpack.c.b16 %v4205, %v4205
        %v4238 = vpack.c.b16 %v4206, %v4206
        %v4239 = vpack.c.b16 %v4207, %v4207
        %v4240 = vpack.c.b16 %v4208, %v4208
        %v4241 = vpack.c.b16 %v4209, %v4209
        %v4242 = vpack.c.b16 %v4210, %v4210
        %v4243 = vpack.c.b16 %v4211, %v4211
        %v4244 = vpack.c.b16 %v4212, %v4212
        %v4245 = vpack.c.b16 %v4213, %v4213
        %v4246 = vpack.c.b16 %v4214, %v4214
        %v4247 = vpack.c.b16 %v4215, %v4215
        %v4248 = vpack.c.b16 %v4216, %v4216
        %v4249 = vpack.c.b16 %v4217, %v4217
        %v4250 = vpack.c.b16 %v4218, %v4218
        %v4251 = vpack.c.b16 %v4219, %v4219
        %v4252 = vpack.c.b16 %v4220, %v4220
        %v4253 = vpack.c.b16 %v4221, %v4221
        %v4254 = vpack.c.b16 %v4222, %v4222
        %4287 = vst [vmem:[%s285] sm:$0xf] %v4223
        %4288 = vst [vmem:[%s285 + $0x4] sm:$0xf] %v4224
        %4289 = vst [vmem:[%s285 + $0x8] sm:$0xf] %v4225
        %4290 = vst [vmem:[%s285 + $0xc] sm:$0xf] %v4226
        %4291 = vst [vmem:[%s285 + $0x10] sm:$0xf] %v4227
        %4292 = vst [vmem:[%s285 + $0x14] sm:$0xf] %v4228
        %4293 = vst [vmem:[%s285 + $0x18] sm:$0xf] %v4229
        %4294 = vst [vmem:[%s285 + $0x1c] sm:$0xf] %v4230
        %4295 = vst [vmem:[%s285 + $0x20] sm:$0xf] %v4231
        %4296 = vst [vmem:[%s285 + $0x24] sm:$0xf] %v4232
        %4297 = vst [vmem:[%s285 + $0x28] sm:$0xf] %v4233
        %4298 = vst [vmem:[%s285 + $0x2c] sm:$0xf] %v4234
        %4299 = vst [vmem:[%s285 + $0x30] sm:$0xf] %v4235
        %4300 = vst [vmem:[%s285 + $0x34] sm:$0xf] %v4236
        %4301 = vst [vmem:[%s285 + $0x38] sm:$0xf] %v4237
        %4302 = vst [vmem:[%s285 + $0x3c] sm:$0xf] %v4238
        %4303 = vst [vmem:[%s285 + $0x40] sm:$0xf] %v4239
        %4304 = vst [vmem:[%s285 + $0x44] sm:$0xf] %v4240
        %4305 = vst [vmem:[%s285 + $0x48] sm:$0xf] %v4241
        %4306 = vst [vmem:[%s285 + $0x4c] sm:$0xf] %v4242
        %4307 = vst [vmem:[%s285 + $0x50] sm:$0xf] %v4243
        %4308 = vst [vmem:[%s285 + $0x54] sm:$0xf] %v4244
        %4309 = vst [vmem:[%s285 + $0x58] sm:$0xf] %v4245
        %4310 = vst [vmem:[%s285 + $0x5c] sm:$0xf] %v4246
        %4311 = vst [vmem:[%s285 + $0x60] sm:$0xf] %v4247
        %4312 = vst [vmem:[%s285 + $0x64] sm:$0xf] %v4248
        %4313 = vst [vmem:[%s285 + $0x68] sm:$0xf] %v4249
        %4314 = vst [vmem:[%s285 + $0x6c] sm:$0xf] %v4250
        %4315 = vst [vmem:[%s285 + $0x70] sm:$0xf] %v4251
        %4316 = vst [vmem:[%s285 + $0x74] sm:$0xf] %v4252
        %4317 = vst [vmem:[%s285 + $0x78] sm:$0xf] %v4253
        %4318 = vst [vmem:[%s285 + $0x7c] sm:$0xf] %v4254
        %s4319 = sand.u32 %s195, 1
        %s4320 = scalar_lea.sflag [#allocation4], %s4319
        %s4321 = sand.u32 %s195, 1
        %s4322 = smul.addr %s4321, 128
        %s4323 = scalar_lea.vmem [#allocation3], %s4322
        // Predicated region
        $region49: #{tpu_custom_call.1} parent=47 // pred_check
          %p4324 = pneg %p205
        $region50: #{tpu_custom_call.1} parent=47 // pred_check_branch
          %4326 = sbr.rel (%p4324) target = $region52
        $region51: #{tpu_custom_call.1} parent=47 // pred_region
          %s4327 = smul.u32 32, %s26
          %s4329 = ssub.s32 2048, 2048
          %4330 = vsyncadd %s4320, %s4329
          %s4331 = smul.addr %s25, 32
          %s4332 = sadd.s32 %s4327, %s4331
          %s4333 = smul.addr %s4332, 64
          %s4334 = scalar_lea.hbm %s7, %s4333
          %s4335 = sshll.u32 %s4323, 4
          %s4336 = int_to_ptr.vmem [resolvable:$true] %s4335
          %4341 = dma.vmem_to_hbm [thread:$0]  %s4336, 2048, %s4334, %s4320, 64, 64, 4
        $region52: #{tpu_custom_call.1} parent=47 // pred_fallthru
          _
      $region48: #{tpu_custom_call.1} parent=5 // pred_fallthru
        _
      %p4342 = scmp.le.s32.totalorder 2, %s16
      // Predicated region
      $region53: #{tpu_custom_call.1} parent=5 // pred_check
        %p4343 = pneg %p4342
      $region54: #{tpu_custom_call.1} parent=5 // pred_check_branch
        %4345 = sbr.rel (%p4343) target = $region56
      $region55: #{tpu_custom_call.1} parent=5 // pred_region
        %s4346 = ssub.s32 %s16, 2
        // Predicated region
        $region57: #{tpu_custom_call.1} parent=55 // pred_check
          %p4347 = pneg %p211
        $region58: #{tpu_custom_call.1} parent=55 // pred_check_branch
          %4349 = sbr.rel (%p4347) target = $region60
        $region59: #{tpu_custom_call.1} parent=55 // pred_region
          %s4350 = sand.u32 %s196, 1
          %s4351 = scalar_lea.sflag [#allocation4], %s4350
          %s4352 = sand.u32 %s196, 1
          %s4353 = smul.addr %s4352, 128
          %s4354 = scalar_lea.vmem [#allocation3], %s4353
          %4355 = dma.done %s4351, 2048
        $region60: #{tpu_custom_call.1} parent=55 // pred_fallthru
          _
      $region56: #{tpu_custom_call.1} parent=5 // pred_fallthru
        _
    $region6: #{tpu_custom_call.1} parent=1 // loop_footer
      %s20 = sadd.s32 1, %s16
    $region7: #{tpu_custom_call.1} parent=1 // loop_footer_branch
      %15 = sbr.rel target = $region3
    $region8: #{tpu_custom_call.1} parent=1 // loop_exit
      _
    %4356 = vsyncpa [#allocation4], 1
    %s4357 = scalar_lea.sflag [#allocation4], 1
    %4358 = vsyncpa %s4357, 1

// kernel: tpu_custom_call.1
$region0: #{tpu_custom_call.1}
  #allocation0 [shape = 'u32[]', space=smem, size = 0x4, offset = 0x4, fixed_abs, tag = 'smem constant byte address 0x4 - core index']
  #allocation1 [shape = 'u32[144,128]{1,0:T(1,128)}', space=vmem, size = 0x12000, scoped, tag = 'internal scratch']
  #allocation2 [shape = 'bf16[256,128]{1,0:T(16,128)(2,1)}', space=vmem, size = 0x10000, scoped, tag = 'scratch operand']
  %s0 = inlined_call_operand.vmem [shape: bf16[2,18,18,4], index: 0, kind: input, shape index: {}]
  %s1 = inlined_call_operand.vmem [shape: bf16[128,128], index: 1, kind: input, shape index: {}]
  %s2 = inlined_call_operand.vmem [shape: f32[1,128], index: 2, kind: input, shape index: {}]
  %s3 = inlined_call_operand.vmem [shape: f32[1,128], index: 3, kind: input, shape index: {}]
  %s4 = inlined_call_operand.vmem [shape: bf16[128,128], index: 4, kind: input, shape index: {}]
  %s5 = inlined_call_operand.vmem [shape: f32[1,128], index: 5, kind: input, shape index: {}]
  %s6 = inlined_call_operand.vmem [shape: f32[1,128], index: 6, kind: input, shape index: {}]
  %s7 = inlined_call_operand.hbm [shape: bf16[2,256,128], index: 7, kind: output, shape index: {}]
  %s8 = sld [smem:[#allocation0]]
  $region61: #{tpu_custom_call.1} parent=0
    _
  %s10 = ssub.s32 1, %s8
  %s11 = scalar_select 0, %s10, %s8
  $region1: #{tpu_custom_call.1} parent=0
    #allocation3 [shape = 'u8[131072]{0}', space=vmem, size = 0x20000, scoped, tag = 'output window, operand 0']
    #allocation4 [shape = 's32[2]{0}', space=sflag, size = 0x8, scoped, tag = 'scoped memory for tpu_custom_call.1']
    %12 = vsyncpa [#allocation4], 0
    %s13 = scalar_lea.sflag [#allocation4], 1
    %14 = vsyncpa %s13, 0
    loop: start=0, step=1, limit=4
    $region2: #{tpu_custom_call.1} parent=1 // loop_pre_header
      _
    $region3: #{tpu_custom_call.1} parent=1 // loop_header
      %s16 = sphi 0, %s20
      %p17 = scmp.ge.s32.totalorder %s16, 4
      %s23 = sphi 0, %s35
      %s24 = sphi 0, %s31
      %s25 = sphi 0, %s23
      %s26 = sphi 0, %s24
      %s27 = sphi 0, %s25
      %s28 = sphi 0, %s26
      %s38 = sphi 0, %s40
      %s41 = sphi 0, %s38
      %s42 = sphi 0, %s41
      %s58 = sphi 0, %s42
      %s62 = sphi 0, %s62
      %s64 = sphi 0, %s62
      %s65 = sphi 0, %s64
      %s79 = sphi 0, %s65
      %s83 = sphi 0, %s83
      %s85 = sphi 0, %s83
      %s86 = sphi 0, %s85
      %s100 = sphi 0, %s86
      %s104 = sphi 0, %s104
      %s106 = sphi 0, %s104
      %s107 = sphi 0, %s106
      %s121 = sphi 0, %s107
      %s125 = sphi 0, %s125
      %s127 = sphi 0, %s125
      %s128 = sphi 0, %s127
      %s142 = sphi 0, %s128
      %s146 = sphi 0, %s146
      %s148 = sphi 0, %s146
      %s149 = sphi 0, %s148
      %s163 = sphi 0, %s149
      %s167 = sphi 0, %s167
      %s169 = sphi 0, %s167
      %s170 = sphi 0, %s169
      %s184 = sphi 0, %s170
      %s192 = sphi 0, %s194
      %s195 = sphi 0, %s192
      %s196 = sphi 0, %s195
      %s212 = sphi 0, %s196
    $region4: #{tpu_custom_call.1} parent=1 // loop_header_branch
      %19 = sbr.rel (%p17) target = $region8
    $region5: #{tpu_custom_call.1} parent=1 // loop_body
      %s21 = ssub.s32 %s16, 1
      %s22 = ssub.s32 %s16, 2
      %s29 = sadd.s32 1, %s24
      %p30 = scmp.ge.s32.totalorder %s29, 1
      %s31 = scalar_select %p30, 0, %s29
      %s32 = sadd.s32 1, %s23
      %s33 = scalar_select %p30, %s32, %s23
      %p34 = scmp.ge.s32.totalorder %s33, 2
      %s35 = scalar_select %p34, 0, %s33
      %s36 = ssub.s32 %s23, %s35
      %p37 = scmp.eq.s32.totalorder %s36, 0
      %s39 = sadd.s32 %s38, 1
      %s40 = scalar_select %p37, %s38, %s39
      %p43 = pneg %p37
      %p44 = scmp.eq.s32.totalorder %s16, 1
      %p45 = por %p43, %p44
      %p46 = scmp.ne.s32.totalorder %s38, %s41
      %p47 = scmp.eq.s32.totalorder %s16, 0
      %p48 = por %p46, %p47
      %p49 = scmp.ne.s32.totalorder %s38, %s41
      %p50 = scmp.eq.s32.totalorder %s21, 1
      %p51 = por %p49, %p50
      %p52 = scmp.ne.s32.totalorder %s41, %s42
      %p53 = scmp.eq.s32.totalorder %s21, 0
      %p54 = por %p52, %p53
      %p55 = scmp.ne.s32.totalorder %s41, %s42
      %p56 = scmp.eq.s32.totalorder %s22, 1
      %p57 = por %p55, %p56
      %p59 = scmp.ne.s32.totalorder %s42, %s58
      %p60 = scmp.eq.s32.totalorder %s22, 0
      %p61 = por %p59, %p60
      %s63 = sadd.s32 %s62, 1
      %p66 = scmp.eq.s32.totalorder %s16, 1
      %p67 = scmp.ne.s32.totalorder %s62, %s64
      %p68 = scmp.eq.s32.totalorder %s16, 0
      %p69 = por %p67, %p68
      %p70 = scmp.ne.s32.totalorder %s62, %s64
      %p71 = scmp.eq.s32.totalorder %s21, 1
      %p72 = por %p70, %p71
      %p73 = scmp.ne.s32.totalorder %s64, %s65
      %p74 = scmp.eq.s32.totalorder %s21, 0
      %p75 = por %p73, %p74
      %p76 = scmp.ne.s32.totalorder %s64, %s65
      %p77 = scmp.eq.s32.totalorder %s22, 1
      %p78 = por %p76, %p77
      %p80 = scmp.ne.s32.totalorder %s65, %s79
      %p81 = scmp.eq.s32.totalorder %s22, 0
      %p82 = por %p80, %p81
      %s84 = sadd.s32 %s83, 1
      %p87 = scmp.eq.s32.totalorder %s16, 1
      %p88 = scmp.ne.s32.totalorder %s83, %s85
      %p89 = scmp.eq.s32.totalorder %s16, 0
      %p90 = por %p88, %p89
      %p91 = scmp.ne.s32.totalorder %s83, %s85
      %p92 = scmp.eq.s32.totalorder %s21, 1
      %p93 = por %p91, %p92
      %p94 = scmp.ne.s32.totalorder %s85, %s86
      %p95 = scmp.eq.s32.totalorder %s21, 0
      %p96 = por %p94, %p95
      %p97 = scmp.ne.s32.totalorder %s85, %s86
      %p98 = scmp.eq.s32.totalorder %s22, 1
      %p99 = por %p97, %p98
      %p101 = scmp.ne.s32.totalorder %s86, %s100
      %p102 = scmp.eq.s32.totalorder %s22, 0
      %p103 = por %p101, %p102
      %s105 = sadd.s32 %s104, 1
      %p108 = scmp.eq.s32.totalorder %s16, 1
      %p109 = scmp.ne.s32.totalorder %s104, %s106
      %p110 = scmp.eq.s32.totalorder %s16, 0
      %p111 = por %p109, %p110
      %p112 = scmp.ne.s32.totalorder %s104, %s106
      %p113 = scmp.eq.s32.totalorder %s21, 1
      %p114 = por %p112, %p113
      %p115 = scmp.ne.s32.totalorder %s106, %s107
      %p116 = scmp.eq.s32.totalorder %s21, 0
      %p117 = por %p115, %p116
      %p118 = scmp.ne.s32.totalorder %s106, %s107
      %p119 = scmp.eq.s32.totalorder %s22, 1
      %p120 = por %p118, %p119
      %p122 = scmp.ne.s32.totalorder %s107, %s121
      %p123 = scmp.eq.s32.totalorder %s22, 0
      %p124 = por %p122, %p123
      %s126 = sadd.s32 %s125, 1
      %p129 = scmp.eq.s32.totalorder %s16, 1
      %p130 = scmp.ne.s32.totalorder %s125, %s127
      %p131 = scmp.eq.s32.totalorder %s16, 0
      %p132 = por %p130, %p131
      %p133 = scmp.ne.s32.totalorder %s125, %s127
      %p134 = scmp.eq.s32.totalorder %s21, 1
      %p135 = por %p133, %p134
      %p136 = scmp.ne.s32.totalorder %s127, %s128
      %p137 = scmp.eq.s32.totalorder %s21, 0
      %p138 = por %p136, %p137
      %p139 = scmp.ne.s32.totalorder %s127, %s128
      %p140 = scmp.eq.s32.totalorder %s22, 1
      %p141 = por %p139, %p140
      %p143 = scmp.ne.s32.totalorder %s128, %s142
      %p144 = scmp.eq.s32.totalorder %s22, 0
      %p145 = por %p143, %p144
      %s147 = sadd.s32 %s146, 1
      %p150 = scmp.eq.s32.totalorder %s16, 1
      %p151 = scmp.ne.s32.totalorder %s146, %s148
      %p152 = scmp.eq.s32.totalorder %s16, 0
      %p153 = por %p151, %p152
      %p154 = scmp.ne.s32.totalorder %s146, %s148
      %p155 = scmp.eq.s32.totalorder %s21, 1
      %p156 = por %p154, %p155
      %p157 = scmp.ne.s32.totalorder %s148, %s149
      %p158 = scmp.eq.s32.totalorder %s21, 0
      %p159 = por %p157, %p158
      %p160 = scmp.ne.s32.totalorder %s148, %s149
      %p161 = scmp.eq.s32.totalorder %s22, 1
      %p162 = por %p160, %p161
      %p164 = scmp.ne.s32.totalorder %s149, %s163
      %p165 = scmp.eq.s32.totalorder %s22, 0
      %p166 = por %p164, %p165
      %s168 = sadd.s32 %s167, 1
      %p171 = scmp.eq.s32.totalorder %s16, 1
      %p172 = scmp.ne.s32.totalorder %s167, %s169
      %p173 = scmp.eq.s32.totalorder %s16, 0
      %p174 = por %p172, %p173
      %p175 = scmp.ne.s32.totalorder %s167, %s169
      %p176 = scmp.eq.s32.totalorder %s21, 1
      %p177 = por %p175, %p176
      %p178 = scmp.ne.s32.totalorder %s169, %s170
      %p179 = scmp.eq.s32.totalorder %s21, 0
      %p180 = por %p178, %p179
      %p181 = scmp.ne.s32.totalorder %s169, %s170
      %p182 = scmp.eq.s32.totalorder %s22, 1
      %p183 = por %p181, %p182
      %p185 = scmp.ne.s32.totalorder %s170, %s184
      %p186 = scmp.eq.s32.totalorder %s22, 0
      %p187 = por %p185, %p186
      %s188 = ssub.s32 %s23, %s35
      %s189 = ssub.s32 %s24, %s31
      %s190 = sor.u32 %s188, %s189
      %p191 = scmp.eq.s32.totalorder %s190, 0
      %s193 = sadd.s32 %s192, 1
      %s194 = scalar_select %p191, %s192, %s193
      %p197 = pneg %p191
      %p198 = scmp.eq.s32.totalorder %s16, 1
      %p199 = por %p197, %p198
      %p200 = scmp.ne.s32.totalorder %s192, %s195
      %p201 = scmp.eq.s32.totalorder %s16, 0
      %p202 = por %p200, %p201
      %p203 = scmp.ne.s32.totalorder %s192, %s195
      %p204 = scmp.eq.s32.totalorder %s21, 1
      %p205 = por %p203, %p204
      %p206 = scmp.ne.s32.totalorder %s195, %s196
      %p207 = scmp.eq.s32.totalorder %s21, 0
      %p208 = por %p206, %p207
      %p209 = scmp.ne.s32.totalorder %s195, %s196
      %p210 = scmp.eq.s32.totalorder %s22, 1
      %p211 = por %p209, %p210
      %p213 = scmp.ne.s32.totalorder %s196, %s212
      %p214 = scmp.eq.s32.totalorder %s22, 0
      %p215 = por %p213, %p214
      %p216 = scmp.le.s32.totalorder 1, %s16
      %p217 = scmp.lt.s32.totalorder %s16, 3
      %p218 = pnand %p216, %p217
      %p219 = pneg %p218
      // Predicated region
      $region9: #{tpu_custom_call.1} parent=5 // pred_check
        _
      $region10: #{tpu_custom_call.1} parent=5 // pred_check_branch
        %221 = sbr.rel (%p218) target = $region12
      $region11: #{tpu_custom_call.1} parent=5 // pred_region
        %s222 = ssub.s32 %s16, 1
        // Predicated region
        $region13: #{tpu_custom_call.1} parent=11 // pred_check
          %p223 = pneg %p75
        $region14: #{tpu_custom_call.1} parent=11 // pred_check_branch
          %225 = sbr.rel (%p223) target = $region16
        $region15: #{tpu_custom_call.1} parent=11 // pred_region
          _
        $region16: #{tpu_custom_call.1} parent=11 // pred_fallthru
          _
        // Predicated region
        $region17: #{tpu_custom_call.1} parent=11 // pred_check
          %p226 = pneg %p96
        $region18: #{tpu_custom_call.1} parent=11 // pred_check_branch
          %228 = sbr.rel (%p226) target = $region20
        $region19: #{tpu_custom_call.1} parent=11 // pred_region
          _
        $region20: #{tpu_custom_call.1} parent=11 // pred_fallthru
          _
        // Predicated region
        $region21: #{tpu_custom_call.1} parent=11 // pred_check
          %p229 = pneg %p117
        $region22: #{tpu_custom_call.1} parent=11 // pred_check_branch
          %231 = sbr.rel (%p229) target = $region24
        $region23: #{tpu_custom_call.1} parent=11 // pred_region
          _
        $region24: #{tpu_custom_call.1} parent=11 // pred_fallthru
          _
        // Predicated region
        $region25: #{tpu_custom_call.1} parent=11 // pred_check
          %p232 = pneg %p138
        $region26: #{tpu_custom_call.1} parent=11 // pred_check_branch
          %234 = sbr.rel (%p232) target = $region28
        $region27: #{tpu_custom_call.1} parent=11 // pred_region
          _
        $region28: #{tpu_custom_call.1} parent=11 // pred_fallthru
          _
        // Predicated region
        $region29: #{tpu_custom_call.1} parent=11 // pred_check
          %p235 = pneg %p159
        $region30: #{tpu_custom_call.1} parent=11 // pred_check_branch
          %237 = sbr.rel (%p235) target = $region32
        $region31: #{tpu_custom_call.1} parent=11 // pred_region
          _
        $region32: #{tpu_custom_call.1} parent=11 // pred_fallthru
          _
        // Predicated region
        $region33: #{tpu_custom_call.1} parent=11 // pred_check
          %p238 = pneg %p180
        $region34: #{tpu_custom_call.1} parent=11 // pred_check_branch
          %240 = sbr.rel (%p238) target = $region36
        $region35: #{tpu_custom_call.1} parent=11 // pred_region
          _
        $region36: #{tpu_custom_call.1} parent=11 // pred_fallthru
          _
      $region12: #{tpu_custom_call.1} parent=5 // pred_fallthru
        _
      %p241 = scmp.lt.s32.totalorder %s16, 2
      // Predicated region
      $region37: #{tpu_custom_call.1} parent=5 // pred_check
        %p242 = pneg %p241
      $region38: #{tpu_custom_call.1} parent=5 // pred_check_branch
        %244 = sbr.rel (%p242) target = $region40
      $region39: #{tpu_custom_call.1} parent=5 // pred_region
        // Predicated region
        $region41: #{tpu_custom_call.1} parent=39 // pred_check
          %p245 = pneg %p48
        $region42: #{tpu_custom_call.1} parent=39 // pred_check_branch
          %247 = sbr.rel (%p245) target = $region44
        $region43: #{tpu_custom_call.1} parent=39 // pred_region
          %p248 = scmp.lt.s32.totalorder %s23, 1
          %s249 = scalar_select %p248, %s23, 1
          %s250 = smul.addr %s249, 54
          %s251 = smul.addr %s250, 4
          %s252 = scalar_lea.vmem %s0, %s251
        $region44: #{tpu_custom_call.1} parent=39 // pred_fallthru
          _
      $region40: #{tpu_custom_call.1} parent=5 // pred_fallthru
        _
      %p253 = scmp.le.s32.totalorder 1, %s16
      %p254 = scmp.lt.s32.totalorder %s16, 3
      %p255 = pnand %p253, %p254
      %p256 = pneg %p255
      // Predicated region
      $region45: #{tpu_custom_call.1} parent=5 // pred_check
        _
      $region46: #{tpu_custom_call.1} parent=5 // pred_check_branch
        %258 = sbr.rel (%p255) target = $region48
      $region47: #{tpu_custom_call.1} parent=5 // pred_region
        %s259 = ssub.s32 %s16, 1
        %p260 = scmp.lt.s32.totalorder %s25, 1
        %s261 = scalar_select %p260, %s25, 1
        %s262 = smul.addr %s261, 54
        %s263 = smul.addr %s262, 4
        %s264 = scalar_lea.vmem %s0, %s263
        %p265 = pneg %p54
        %p266 = pneg %p51
        %p267 = pneg %p75
        %p268 = pneg %p72
        %p269 = pneg %p96
        %p270 = pneg %p93
        %p271 = pneg %p117
        %p272 = pneg %p114
        %p273 = pneg %p138
        %p274 = pneg %p135
        %p275 = pneg %p159
        %p276 = pneg %p156
        %p277 = pneg %p180
        %p278 = pneg %p177
        %p279 = pneg %p208
        %p280 = pneg %p205
        %s281 = sand.u32 %s195, 1
        %s282 = scalar_lea.sflag [#allocation4], %s281
        %s283 = sand.u32 %s195, 1
        %s284 = smul.addr %s283, 128
        %s285 = scalar_lea.vmem [#allocation3], %s284
        %p286 = scmp.lt.s32.totalorder %s25, 1
        %s287 = scalar_select %p286, %s25, 1
        %s288 = smul.addr %s287, 54
        %s289 = smul.addr %s288, 4
        %s290 = scalar_lea.vmem %s0, %s289
        %s291 = smul.u32 32, %s26
        %vm293 = vcmask 1047840
        %294 = vst.msk [vmem:[#allocation2] sm:$0xff] %vm293, 0
        %295 = vst.msk [vmem:[#allocation2 + $0x8] sm:$0xff] %vm293, 0
        %296 = vst.msk [vmem:[#allocation2 + $0x10] sm:$0xff] %vm293, 0
        %297 = vst.msk [vmem:[#allocation2 + $0x18] sm:$0xff] %vm293, 0
        %298 = vst.msk [vmem:[#allocation2 + $0x20] sm:$0xff] %vm293, 0
        %299 = vst.msk [vmem:[#allocation2 + $0x28] sm:$0xff] %vm293, 0
        %300 = vst.msk [vmem:[#allocation2 + $0x30] sm:$0xff] %vm293, 0
        %301 = vst.msk [vmem:[#allocation2 + $0x38] sm:$0xff] %vm293, 0
        %302 = vst.msk [vmem:[#allocation2 + $0x40] sm:$0xff] %vm293, 0
        %303 = vst.msk [vmem:[#allocation2 + $0x48] sm:$0xff] %vm293, 0
        %304 = vst.msk [vmem:[#allocation2 + $0x50] sm:$0xff] %vm293, 0
        %305 = vst.msk [vmem:[#allocation2 + $0x58] sm:$0xff] %vm293, 0
        %306 = vst.msk [vmem:[#allocation2 + $0x60] sm:$0xff] %vm293, 0
        %307 = vst.msk [vmem:[#allocation2 + $0x68] sm:$0xff] %vm293, 0
        %308 = vst.msk [vmem:[#allocation2 + $0x70] sm:$0xff] %vm293, 0
        %309 = vst.msk [vmem:[#allocation2 + $0x78] sm:$0xff] %vm293, 0
        %s310 = smul.u32 %s26, 16
        %s311 = sadd.s32 %s310, 1
        %s312 = smul.u32 %s311, 3
        %s313 = smul.addr %s312, 4
        %s314 = scalar_lea.vmem %s290, %s313
        %v315 = vld [vmem:[%s314] sm:$0xf]
        %v316 = vld [vmem:[%s314 + $0x4] sm:$0xf]
        %v317 = vld [vmem:[%s314 + $0x8] sm:$0x1]
        %v318 = vld [vmem:[%s314 + $0xc] sm:$0xf]
        %v319 = vld [vmem:[%s314 + $0x10] sm:$0xf]
        %v320 = vld [vmem:[%s314 + $0x14] sm:$0x1]
        %v321 = vld [vmem:[%s314 + $0x18] sm:$0xf]
        %v322 = vld [vmem:[%s314 + $0x1c] sm:$0xf]
        %v323 = vld [vmem:[%s314 + $0x20] sm:$0x1]
        %v324 = vld [vmem:[%s314 + $0x24] sm:$0xf]
        %v325 = vld [vmem:[%s314 + $0x28] sm:$0xf]
        %v326 = vld [vmem:[%s314 + $0x2c] sm:$0x1]
        %v327 = vld [vmem:[%s314 + $0x30] sm:$0xf]
        %v328 = vld [vmem:[%s314 + $0x34] sm:$0xf]
        %v329 = vld [vmem:[%s314 + $0x38] sm:$0x1]
        %v330 = vld [vmem:[%s314 + $0x3c] sm:$0xf]
        %v331 = vld [vmem:[%s314 + $0x40] sm:$0xf]
        %v332 = vld [vmem:[%s314 + $0x44] sm:$0x1]
        %v333 = vld [vmem:[%s314 + $0x48] sm:$0xf]
        %v334 = vld [vmem:[%s314 + $0x4c] sm:$0xf]
        %v335 = vld [vmem:[%s314 + $0x50] sm:$0x1]
        %v336 = vld [vmem:[%s314 + $0x54] sm:$0xf]
        %v337 = vld [vmem:[%s314 + $0x58] sm:$0xf]
        %v338 = vld [vmem:[%s314 + $0x5c] sm:$0x1]
        %v339 = vld [vmem:[%s314 + $0x60] sm:$0xf]
        %v340 = vld [vmem:[%s314 + $0x64] sm:$0xf]
        %v341 = vld [vmem:[%s314 + $0x68] sm:$0x1]
        %v342 = vld [vmem:[%s314 + $0x6c] sm:$0xf]
        %v343 = vld [vmem:[%s314 + $0x70] sm:$0xf]
        %v344 = vld [vmem:[%s314 + $0x74] sm:$0x1]
        %v345 = vld [vmem:[%s314 + $0x78] sm:$0xf]
        %v346 = vld [vmem:[%s314 + $0x7c] sm:$0xf]
        %v347 = vld [vmem:[%s314 + $0x80] sm:$0x1]
        %v348 = vld [vmem:[%s314 + $0x84] sm:$0xf]
        %v349 = vld [vmem:[%s314 + $0x88] sm:$0xf]
        %v350 = vld [vmem:[%s314 + $0x8c] sm:$0x1]
        %v351 = vld [vmem:[%s314 + $0x90] sm:$0xf]
        %v352 = vld [vmem:[%s314 + $0x94] sm:$0xf]
        %v353 = vld [vmem:[%s314 + $0x98] sm:$0x1]
        %v354 = vld [vmem:[%s314 + $0x9c] sm:$0xf]
        %v355 = vld [vmem:[%s314 + $0xa0] sm:$0xf]
        %v356 = vld [vmem:[%s314 + $0xa4] sm:$0x1]
        %v357 = vld [vmem:[%s314 + $0xa8] sm:$0xf]
        %v358 = vld [vmem:[%s314 + $0xac] sm:$0xf]
        %v359 = vld [vmem:[%s314 + $0xb0] sm:$0x1]
        %v360 = vld [vmem:[%s314 + $0xb4] sm:$0xf]
        %v361 = vld [vmem:[%s314 + $0xb8] sm:$0xf]
        %v362 = vld [vmem:[%s314 + $0xbc] sm:$0x1]
        %vm363 = vsmask.f32 3328
        %vm364 = vsmask.f32 7440
        %vm365 = vmor %vm363, %vm364
        %v367 = vshrl.u32 %v315, 16
        %v369 = vrot.slane %v367, 4
        %v370 = vshll.u32 %v315, 16
        %v372 = vrot.slane %v370, 5
        %v373 = vor.u32 %v369, %v372
        %v374 = vrot.slane %v373, 4
        %v376 = vshll.u32 %v316, 16
        %v378 = vrot.slane %v376, 5
        %v379 = vsel %vm365, %v374, %v378
        %v380 = vshrl.u32 %v316, 16
        %v382 = vrot.slane %v380, 4
        %v383 = vor.u32 %v382, %v378
        %v384 = vrot.slane %v383, 4
        %v386 = vshll.u32 %v317, 16
        %v388 = vrot.slane %v386, 5
        %v389 = vsel %vm365, %v384, %v388
        %v391 = vshrl.u32 %v318, 16
        %v393 = vrot.slane %v391, 4
        %v394 = vshll.u32 %v318, 16
        %v396 = vrot.slane %v394, 5
        %v397 = vor.u32 %v393, %v396
        %v398 = vrot.slane %v397, 4
        %v400 = vshll.u32 %v319, 16
        %v402 = vrot.slane %v400, 5
        %v403 = vsel %vm365, %v398, %v402
        %v404 = vshrl.u32 %v319, 16
        %v406 = vrot.slane %v404, 4
        %v407 = vor.u32 %v406, %v402
        %v408 = vrot.slane %v407, 4
        %v410 = vshll.u32 %v320, 16
        %v412 = vrot.slane %v410, 5
        %v413 = vsel %vm365, %v408, %v412
        %v415 = vshrl.u32 %v321, 16
        %v417 = vrot.slane %v415, 4
        %v418 = vshll.u32 %v321, 16
        %v420 = vrot.slane %v418, 5
        %v421 = vor.u32 %v417, %v420
        %v422 = vrot.slane %v421, 4
        %v424 = vshll.u32 %v322, 16
        %v426 = vrot.slane %v424, 5
        %v427 = vsel %vm365, %v422, %v426
        %v428 = vshrl.u32 %v322, 16
        %v430 = vrot.slane %v428, 4
        %v431 = vor.u32 %v430, %v426
        %v432 = vrot.slane %v431, 4
        %v434 = vshll.u32 %v323, 16
        %v436 = vrot.slane %v434, 5
        %v437 = vsel %vm365, %v432, %v436
        %v439 = vshrl.u32 %v324, 16
        %v441 = vrot.slane %v439, 4
        %v442 = vshll.u32 %v324, 16
        %v444 = vrot.slane %v442, 5
        %v445 = vor.u32 %v441, %v444
        %v446 = vrot.slane %v445, 4
        %v448 = vshll.u32 %v325, 16
        %v450 = vrot.slane %v448, 5
        %v451 = vsel %vm365, %v446, %v450
        %v452 = vshrl.u32 %v325, 16
        %v454 = vrot.slane %v452, 4
        %v455 = vor.u32 %v454, %v450
        %v456 = vrot.slane %v455, 4
        %v458 = vshll.u32 %v326, 16
        %v460 = vrot.slane %v458, 5
        %v461 = vsel %vm365, %v456, %v460
        %v463 = vshrl.u32 %v327, 16
        %v465 = vrot.slane %v463, 4
        %v466 = vshll.u32 %v327, 16
        %v468 = vrot.slane %v466, 5
        %v469 = vor.u32 %v465, %v468
        %v470 = vrot.slane %v469, 4
        %v472 = vshll.u32 %v328, 16
        %v474 = vrot.slane %v472, 5
        %v475 = vsel %vm365, %v470, %v474
        %v476 = vshrl.u32 %v328, 16
        %v478 = vrot.slane %v476, 4
        %v479 = vor.u32 %v478, %v474
        %v480 = vrot.slane %v479, 4
        %v482 = vshll.u32 %v329, 16
        %v484 = vrot.slane %v482, 5
        %v485 = vsel %vm365, %v480, %v484
        %v487 = vshrl.u32 %v330, 16
        %v489 = vrot.slane %v487, 4
        %v490 = vshll.u32 %v330, 16
        %v492 = vrot.slane %v490, 5
        %v493 = vor.u32 %v489, %v492
        %v494 = vrot.slane %v493, 4
        %v496 = vshll.u32 %v331, 16
        %v498 = vrot.slane %v496, 5
        %v499 = vsel %vm365, %v494, %v498
        %v500 = vshrl.u32 %v331, 16
        %v502 = vrot.slane %v500, 4
        %v503 = vor.u32 %v502, %v498
        %v504 = vrot.slane %v503, 4
        %v506 = vshll.u32 %v332, 16
        %v508 = vrot.slane %v506, 5
        %v509 = vsel %vm365, %v504, %v508
        %v511 = vshrl.u32 %v333, 16
        %v513 = vrot.slane %v511, 4
        %v514 = vshll.u32 %v333, 16
        %v516 = vrot.slane %v514, 5
        %v517 = vor.u32 %v513, %v516
        %v518 = vrot.slane %v517, 4
        %v520 = vshll.u32 %v334, 16
        %v522 = vrot.slane %v520, 5
        %v523 = vsel %vm365, %v518, %v522
        %v524 = vshrl.u32 %v334, 16
        %v526 = vrot.slane %v524, 4
        %v527 = vor.u32 %v526, %v522
        %v528 = vrot.slane %v527, 4
        %v530 = vshll.u32 %v335, 16
        %v532 = vrot.slane %v530, 5
        %v533 = vsel %vm365, %v528, %v532
        %v535 = vshrl.u32 %v336, 16
        %v537 = vrot.slane %v535, 4
        %v538 = vshll.u32 %v336, 16
        %v540 = vrot.slane %v538, 5
        %v541 = vor.u32 %v537, %v540
        %v542 = vrot.slane %v541, 4
        %v544 = vshll.u32 %v337, 16
        %v546 = vrot.slane %v544, 5
        %v547 = vsel %vm365, %v542, %v546
        %v548 = vshrl.u32 %v337, 16
        %v550 = vrot.slane %v548, 4
        %v551 = vor.u32 %v550, %v546
        %v552 = vrot.slane %v551, 4
        %v554 = vshll.u32 %v338, 16
        %v556 = vrot.slane %v554, 5
        %v557 = vsel %vm365, %v552, %v556
        %v559 = vshrl.u32 %v339, 16
        %v561 = vrot.slane %v559, 4
        %v562 = vshll.u32 %v339, 16
        %v564 = vrot.slane %v562, 5
        %v565 = vor.u32 %v561, %v564
        %v566 = vrot.slane %v565, 4
        %v568 = vshll.u32 %v340, 16
        %v570 = vrot.slane %v568, 5
        %v571 = vsel %vm365, %v566, %v570
        %v572 = vshrl.u32 %v340, 16
        %v574 = vrot.slane %v572, 4
        %v575 = vor.u32 %v574, %v570
        %v576 = vrot.slane %v575, 4
        %v578 = vshll.u32 %v341, 16
        %v580 = vrot.slane %v578, 5
        %v581 = vsel %vm365, %v576, %v580
        %v583 = vshrl.u32 %v342, 16
        %v585 = vrot.slane %v583, 4
        %v586 = vshll.u32 %v342, 16
        %v588 = vrot.slane %v586, 5
        %v589 = vor.u32 %v585, %v588
        %v590 = vrot.slane %v589, 4
        %v592 = vshll.u32 %v343, 16
        %v594 = vrot.slane %v592, 5
        %v595 = vsel %vm365, %v590, %v594
        %v596 = vshrl.u32 %v343, 16
        %v598 = vrot.slane %v596, 4
        %v599 = vor.u32 %v598, %v594
        %v600 = vrot.slane %v599, 4
        %v602 = vshll.u32 %v344, 16
        %v604 = vrot.slane %v602, 5
        %v605 = vsel %vm365, %v600, %v604
        %v607 = vshrl.u32 %v345, 16
        %v609 = vrot.slane %v607, 4
        %v610 = vshll.u32 %v345, 16
        %v612 = vrot.slane %v610, 5
        %v613 = vor.u32 %v609, %v612
        %v614 = vrot.slane %v613, 4
        %v616 = vshll.u32 %v346, 16
        %v618 = vrot.slane %v616, 5
        %v619 = vsel %vm365, %v614, %v618
        %v620 = vshrl.u32 %v346, 16
        %v622 = vrot.slane %v620, 4
        %v623 = vor.u32 %v622, %v618
        %v624 = vrot.slane %v623, 4
        %v626 = vshll.u32 %v347, 16
        %v628 = vrot.slane %v626, 5
        %v629 = vsel %vm365, %v624, %v628
        %v631 = vshrl.u32 %v348, 16
        %v633 = vrot.slane %v631, 4
        %v634 = vshll.u32 %v348, 16
        %v636 = vrot.slane %v634, 5
        %v637 = vor.u32 %v633, %v636
        %v638 = vrot.slane %v637, 4
        %v640 = vshll.u32 %v349, 16
        %v642 = vrot.slane %v640, 5
        %v643 = vsel %vm365, %v638, %v642
        %v644 = vshrl.u32 %v349, 16
        %v646 = vrot.slane %v644, 4
        %v647 = vor.u32 %v646, %v642
        %v648 = vrot.slane %v647, 4
        %v650 = vshll.u32 %v350, 16
        %v652 = vrot.slane %v650, 5
        %v653 = vsel %vm365, %v648, %v652
        %v655 = vshrl.u32 %v351, 16
        %v657 = vrot.slane %v655, 4
        %v658 = vshll.u32 %v351, 16
        %v660 = vrot.slane %v658, 5
        %v661 = vor.u32 %v657, %v660
        %v662 = vrot.slane %v661, 4
        %v664 = vshll.u32 %v352, 16
        %v666 = vrot.slane %v664, 5
        %v667 = vsel %vm365, %v662, %v666
        %v668 = vshrl.u32 %v352, 16
        %v670 = vrot.slane %v668, 4
        %v671 = vor.u32 %v670, %v666
        %v672 = vrot.slane %v671, 4
        %v674 = vshll.u32 %v353, 16
        %v676 = vrot.slane %v674, 5
        %v677 = vsel %vm365, %v672, %v676
        %v679 = vshrl.u32 %v354, 16
        %v681 = vrot.slane %v679, 4
        %v682 = vshll.u32 %v354, 16
        %v684 = vrot.slane %v682, 5
        %v685 = vor.u32 %v681, %v684
        %v686 = vrot.slane %v685, 4
        %v688 = vshll.u32 %v355, 16
        %v690 = vrot.slane %v688, 5
        %v691 = vsel %vm365, %v686, %v690
        %v692 = vshrl.u32 %v355, 16
        %v694 = vrot.slane %v692, 4
        %v695 = vor.u32 %v694, %v690
        %v696 = vrot.slane %v695, 4
        %v698 = vshll.u32 %v356, 16
        %v700 = vrot.slane %v698, 5
        %v701 = vsel %vm365, %v696, %v700
        %v703 = vshrl.u32 %v357, 16
        %v705 = vrot.slane %v703, 4
        %v706 = vshll.u32 %v357, 16
        %v708 = vrot.slane %v706, 5
        %v709 = vor.u32 %v705, %v708
        %v710 = vrot.slane %v709, 4
        %v712 = vshll.u32 %v358, 16
        %v714 = vrot.slane %v712, 5
        %v715 = vsel %vm365, %v710, %v714
        %v716 = vshrl.u32 %v358, 16
        %v718 = vrot.slane %v716, 4
        %v719 = vor.u32 %v718, %v714
        %v720 = vrot.slane %v719, 4
        %v722 = vshll.u32 %v359, 16
        %v724 = vrot.slane %v722, 5
        %v725 = vsel %vm365, %v720, %v724
        %v727 = vshrl.u32 %v360, 16
        %v729 = vrot.slane %v727, 4
        %v730 = vshll.u32 %v360, 16
        %v732 = vrot.slane %v730, 5
        %v733 = vor.u32 %v729, %v732
        %v734 = vrot.slane %v733, 4
        %v736 = vshll.u32 %v361, 16
        %v738 = vrot.slane %v736, 5
        %v739 = vsel %vm365, %v734, %v738
        %v740 = vshrl.u32 %v361, 16
        %v742 = vrot.slane %v740, 4
        %v743 = vor.u32 %v742, %v738
        %v744 = vrot.slane %v743, 4
        %v746 = vshll.u32 %v362, 16
        %v748 = vrot.slane %v746, 5
        %v749 = vsel %vm365, %v744, %v748
        %v750 = vunpack.c.l.b16 %v379
        %v751 = vunpack.c.l.b16 %v389
        %v752 = vunpack.c.l.b16 %v403
        %v753 = vunpack.c.l.b16 %v413
        %v754 = vunpack.c.l.b16 %v427
        %v755 = vunpack.c.l.b16 %v437
        %v756 = vunpack.c.l.b16 %v451
        %v757 = vunpack.c.l.b16 %v461
        %v758 = vunpack.c.l.b16 %v475
        %v759 = vunpack.c.l.b16 %v485
        %v760 = vunpack.c.l.b16 %v499
        %v761 = vunpack.c.l.b16 %v509
        %v762 = vunpack.c.l.b16 %v523
        %v763 = vunpack.c.l.b16 %v533
        %v764 = vunpack.c.l.b16 %v547
        %v765 = vunpack.c.l.b16 %v557
        %v766 = vunpack.c.l.b16 %v571
        %v767 = vunpack.c.l.b16 %v581
        %v768 = vunpack.c.l.b16 %v595
        %v769 = vunpack.c.l.b16 %v605
        %v770 = vunpack.c.l.b16 %v619
        %v771 = vunpack.c.l.b16 %v629
        %v772 = vunpack.c.l.b16 %v643
        %v773 = vunpack.c.l.b16 %v653
        %v774 = vunpack.c.l.b16 %v667
        %v775 = vunpack.c.l.b16 %v677
        %v776 = vunpack.c.l.b16 %v691
        %v777 = vunpack.c.l.b16 %v701
        %v778 = vunpack.c.l.b16 %v715
        %v779 = vunpack.c.l.b16 %v725
        %v780 = vunpack.c.l.b16 %v739
        %v781 = vunpack.c.l.b16 %v749
        %v782 = vpack.c.b16 %v751, %v750
        %v783 = vpack.c.b16 %v753, %v752
        %v784 = vpack.c.b16 %v755, %v754
        %v785 = vpack.c.b16 %v757, %v756
        %v786 = vpack.c.b16 %v759, %v758
        %v787 = vpack.c.b16 %v761, %v760
        %v788 = vpack.c.b16 %v763, %v762
        %v789 = vpack.c.b16 %v765, %v764
        %v790 = vpack.c.b16 %v767, %v766
        %v791 = vpack.c.b16 %v769, %v768
        %v792 = vpack.c.b16 %v771, %v770
        %v793 = vpack.c.b16 %v773, %v772
        %v794 = vpack.c.b16 %v775, %v774
        %v795 = vpack.c.b16 %v777, %v776
        %v796 = vpack.c.b16 %v779, %v778
        %v797 = vpack.c.b16 %v781, %v780
        %vm814 = vcmask 31744
        %815 = vst.msk [vmem:[#allocation2] sm:$0xff] %vm814, %v782
        %816 = vst.msk [vmem:[#allocation2 + $0x8] sm:$0xff] %vm814, %v783
        %817 = vst.msk [vmem:[#allocation2 + $0x10] sm:$0xff] %vm814, %v784
        %818 = vst.msk [vmem:[#allocation2 + $0x18] sm:$0xff] %vm814, %v785
        %819 = vst.msk [vmem:[#allocation2 + $0x20] sm:$0xff] %vm814, %v786
        %820 = vst.msk [vmem:[#allocation2 + $0x28] sm:$0xff] %vm814, %v787
        %821 = vst.msk [vmem:[#allocation2 + $0x30] sm:$0xff] %vm814, %v788
        %822 = vst.msk [vmem:[#allocation2 + $0x38] sm:$0xff] %vm814, %v789
        %823 = vst.msk [vmem:[#allocation2 + $0x40] sm:$0xff] %vm814, %v790
        %824 = vst.msk [vmem:[#allocation2 + $0x48] sm:$0xff] %vm814, %v791
        %825 = vst.msk [vmem:[#allocation2 + $0x50] sm:$0xff] %vm814, %v792
        %826 = vst.msk [vmem:[#allocation2 + $0x58] sm:$0xff] %vm814, %v793
        %827 = vst.msk [vmem:[#allocation2 + $0x60] sm:$0xff] %vm814, %v794
        %828 = vst.msk [vmem:[#allocation2 + $0x68] sm:$0xff] %vm814, %v795
        %829 = vst.msk [vmem:[#allocation2 + $0x70] sm:$0xff] %vm814, %v796
        %830 = vst.msk [vmem:[#allocation2 + $0x78] sm:$0xff] %vm814, %v797
        %s831 = smul.u32 %s310, 3
        %s832 = smul.addr %s831, 4
        %s833 = scalar_lea.vmem %s290, %s832
        %v834 = vld [vmem:[%s833] sm:$0xf]
        %v835 = vld [vmem:[%s833 + $0x4] sm:$0xf]
        %v836 = vld [vmem:[%s833 + $0xc] sm:$0xf]
        %v837 = vld [vmem:[%s833 + $0x10] sm:$0xf]
        %v838 = vld [vmem:[%s833 + $0x18] sm:$0xf]
        %v839 = vld [vmem:[%s833 + $0x1c] sm:$0xf]
        %v840 = vld [vmem:[%s833 + $0x24] sm:$0xf]
        %v841 = vld [vmem:[%s833 + $0x28] sm:$0xf]
        %v842 = vld [vmem:[%s833 + $0x30] sm:$0xf]
        %v843 = vld [vmem:[%s833 + $0x34] sm:$0xf]
        %v844 = vld [vmem:[%s833 + $0x3c] sm:$0xf]
        %v845 = vld [vmem:[%s833 + $0x40] sm:$0xf]
        %v846 = vld [vmem:[%s833 + $0x48] sm:$0xf]
        %v847 = vld [vmem:[%s833 + $0x4c] sm:$0xf]
        %v848 = vld [vmem:[%s833 + $0x54] sm:$0xf]
        %v849 = vld [vmem:[%s833 + $0x58] sm:$0xf]
        %v850 = vld [vmem:[%s833 + $0x60] sm:$0xf]
        %v851 = vld [vmem:[%s833 + $0x64] sm:$0xf]
        %v852 = vld [vmem:[%s833 + $0x6c] sm:$0xf]
        %v853 = vld [vmem:[%s833 + $0x70] sm:$0xf]
        %v854 = vld [vmem:[%s833 + $0x78] sm:$0xf]
        %v855 = vld [vmem:[%s833 + $0x7c] sm:$0xf]
        %v856 = vld [vmem:[%s833 + $0x84] sm:$0xf]
        %v857 = vld [vmem:[%s833 + $0x88] sm:$0xf]
        %v858 = vld [vmem:[%s833 + $0x90] sm:$0xf]
        %v859 = vld [vmem:[%s833 + $0x94] sm:$0xf]
        %v860 = vld [vmem:[%s833 + $0x9c] sm:$0xf]
        %v861 = vld [vmem:[%s833 + $0xa0] sm:$0xf]
        %v862 = vld [vmem:[%s833 + $0xa8] sm:$0xf]
        %v863 = vld [vmem:[%s833 + $0xac] sm:$0xf]
        %v864 = vld [vmem:[%s833 + $0xb4] sm:$0xf]
        %v865 = vld [vmem:[%s833 + $0xb8] sm:$0xf]
        %v898 = vunpack.c.l.b16 %v834
        %v899 = vunpack.c.l.b16 %v835
        %v900 = vunpack.c.l.b16 %v836
        %v901 = vunpack.c.l.b16 %v837
        %v902 = vunpack.c.l.b16 %v838
        %v903 = vunpack.c.l.b16 %v839
        %v904 = vunpack.c.l.b16 %v840
        %v905 = vunpack.c.l.b16 %v841
        %v906 = vunpack.c.l.b16 %v842
        %v907 = vunpack.c.l.b16 %v843
        %v908 = vunpack.c.l.b16 %v844
        %v909 = vunpack.c.l.b16 %v845
        %v910 = vunpack.c.l.b16 %v846
        %v911 = vunpack.c.l.b16 %v847
        %v912 = vunpack.c.l.b16 %v848
        %v913 = vunpack.c.l.b16 %v849
        %v914 = vunpack.c.l.b16 %v850
        %v915 = vunpack.c.l.b16 %v851
        %v916 = vunpack.c.l.b16 %v852
        %v917 = vunpack.c.l.b16 %v853
        %v918 = vunpack.c.l.b16 %v854
        %v919 = vunpack.c.l.b16 %v855
        %v920 = vunpack.c.l.b16 %v856
        %v921 = vunpack.c.l.b16 %v857
        %v922 = vunpack.c.l.b16 %v858
        %v923 = vunpack.c.l.b16 %v859
        %v924 = vunpack.c.l.b16 %v860
        %v925 = vunpack.c.l.b16 %v861
        %v926 = vunpack.c.l.b16 %v862
        %v927 = vunpack.c.l.b16 %v863
        %v928 = vunpack.c.l.b16 %v864
        %v929 = vunpack.c.l.b16 %v865
        %v930 = vpack.c.b16 %v899, %v898
        %v931 = vpack.c.b16 %v901, %v900
        %v932 = vpack.c.b16 %v903, %v902
        %v933 = vpack.c.b16 %v905, %v904
        %v934 = vpack.c.b16 %v907, %v906
        %v935 = vpack.c.b16 %v909, %v908
        %v936 = vpack.c.b16 %v911, %v910
        %v937 = vpack.c.b16 %v913, %v912
        %v938 = vpack.c.b16 %v915, %v914
        %v939 = vpack.c.b16 %v917, %v916
        %v940 = vpack.c.b16 %v919, %v918
        %v941 = vpack.c.b16 %v921, %v920
        %v942 = vpack.c.b16 %v923, %v922
        %v943 = vpack.c.b16 %v925, %v924
        %v944 = vpack.c.b16 %v927, %v926
        %v945 = vpack.c.b16 %v929, %v928
        %946 = vrot.lane.b32.xlu0 %v930, 4
        %v947 = vpop.permute.xlu0 %946
        %948 = vrot.lane.b32.xlu0 %v931, 4
        %v949 = vpop.permute.xlu0 %948
        %950 = vrot.lane.b32.xlu0 %v932, 4
        %v951 = vpop.permute.xlu0 %950
        %952 = vrot.lane.b32.xlu0 %v933, 4
        %v953 = vpop.permute.xlu0 %952
        %954 = vrot.lane.b32.xlu0 %v934, 4
        %v955 = vpop.permute.xlu0 %954
        %956 = vrot.lane.b32.xlu0 %v935, 4
        %v957 = vpop.permute.xlu0 %956
        %958 = vrot.lane.b32.xlu0 %v936, 4
        %v959 = vpop.permute.xlu0 %958
        %960 = vrot.lane.b32.xlu0 %v937, 4
        %v961 = vpop.permute.xlu0 %960
        %962 = vrot.lane.b32.xlu0 %v938, 4
        %v963 = vpop.permute.xlu0 %962
        %964 = vrot.lane.b32.xlu0 %v939, 4
        %v965 = vpop.permute.xlu0 %964
        %966 = vrot.lane.b32.xlu0 %v940, 4
        %v967 = vpop.permute.xlu0 %966
        %968 = vrot.lane.b32.xlu0 %v941, 4
        %v969 = vpop.permute.xlu0 %968
        %970 = vrot.lane.b32.xlu0 %v942, 4
        %v971 = vpop.permute.xlu0 %970
        %972 = vrot.lane.b32.xlu0 %v943, 4
        %v973 = vpop.permute.xlu0 %972
        %974 = vrot.lane.b32.xlu0 %v944, 4
        %v975 = vpop.permute.xlu0 %974
        %976 = vrot.lane.b32.xlu0 %v945, 4
        %v977 = vpop.permute.xlu0 %976
        %vm994 = vcmask 64544
        %995 = vst.msk [vmem:[#allocation2] sm:$0xff] %vm994, %v947
        %996 = vst.msk [vmem:[#allocation2 + $0x8] sm:$0xff] %vm994, %v949
        %997 = vst.msk [vmem:[#allocation2 + $0x10] sm:$0xff] %vm994, %v951
        %998 = vst.msk [vmem:[#allocation2 + $0x18] sm:$0xff] %vm994, %v953
        %999 = vst.msk [vmem:[#allocation2 + $0x20] sm:$0xff] %vm994, %v955
        %1000 = vst.msk [vmem:[#allocation2 + $0x28] sm:$0xff] %vm994, %v957
        %1001 = vst.msk [vmem:[#allocation2 + $0x30] sm:$0xff] %vm994, %v959
        %1002 = vst.msk [vmem:[#allocation2 + $0x38] sm:$0xff] %vm994, %v961
        %1003 = vst.msk [vmem:[#allocation2 + $0x40] sm:$0xff] %vm994, %v963
        %1004 = vst.msk [vmem:[#allocation2 + $0x48] sm:$0xff] %vm994, %v965
        %1005 = vst.msk [vmem:[#allocation2 + $0x50] sm:$0xff] %vm994, %v967
        %1006 = vst.msk [vmem:[#allocation2 + $0x58] sm:$0xff] %vm994, %v969
        %1007 = vst.msk [vmem:[#allocation2 + $0x60] sm:$0xff] %vm994, %v971
        %1008 = vst.msk [vmem:[#allocation2 + $0x68] sm:$0xff] %vm994, %v973
        %1009 = vst.msk [vmem:[#allocation2 + $0x70] sm:$0xff] %vm994, %v975
        %1010 = vst.msk [vmem:[#allocation2 + $0x78] sm:$0xff] %vm994, %v977
        %v1011 = vld [vmem:[%s833] sm:$0xf]
        %v1012 = vld [vmem:[%s833 + $0x4] sm:$0xf]
        %v1013 = vld [vmem:[%s833 + $0x8] sm:$0x1]
        %v1014 = vld [vmem:[%s833 + $0xc] sm:$0xf]
        %v1015 = vld [vmem:[%s833 + $0x10] sm:$0xf]
        %v1016 = vld [vmem:[%s833 + $0x14] sm:$0x1]
        %v1017 = vld [vmem:[%s833 + $0x18] sm:$0xf]
        %v1018 = vld [vmem:[%s833 + $0x1c] sm:$0xf]
        %v1019 = vld [vmem:[%s833 + $0x20] sm:$0x1]
        %v1020 = vld [vmem:[%s833 + $0x24] sm:$0xf]
        %v1021 = vld [vmem:[%s833 + $0x28] sm:$0xf]
        %v1022 = vld [vmem:[%s833 + $0x2c] sm:$0x1]
        %v1023 = vld [vmem:[%s833 + $0x30] sm:$0xf]
        %v1024 = vld [vmem:[%s833 + $0x34] sm:$0xf]
        %v1025 = vld [vmem:[%s833 + $0x38] sm:$0x1]
        %v1026 = vld [vmem:[%s833 + $0x3c] sm:$0xf]
        %v1027 = vld [vmem:[%s833 + $0x40] sm:$0xf]
        %v1028 = vld [vmem:[%s833 + $0x44] sm:$0x1]
        %v1029 = vld [vmem:[%s833 + $0x48] sm:$0xf]
        %v1030 = vld [vmem:[%s833 + $0x4c] sm:$0xf]
        %v1031 = vld [vmem:[%s833 + $0x50] sm:$0x1]
        %v1032 = vld [vmem:[%s833 + $0x54] sm:$0xf]
        %v1033 = vld [vmem:[%s833 + $0x58] sm:$0xf]
        %v1034 = vld [vmem:[%s833 + $0x5c] sm:$0x1]
        %v1035 = vld [vmem:[%s833 + $0x60] sm:$0xf]
        %v1036 = vld [vmem:[%s833 + $0x64] sm:$0xf]
        %v1037 = vld [vmem:[%s833 + $0x68] sm:$0x1]
        %v1038 = vld [vmem:[%s833 + $0x6c] sm:$0xf]
        %v1039 = vld [vmem:[%s833 + $0x70] sm:$0xf]
        %v1040 = vld [vmem:[%s833 + $0x74] sm:$0x1]
        %v1041 = vld [vmem:[%s833 + $0x78] sm:$0xf]
        %v1042 = vld [vmem:[%s833 + $0x7c] sm:$0xf]
        %v1043 = vld [vmem:[%s833 + $0x80] sm:$0x1]
        %v1044 = vld [vmem:[%s833 + $0x84] sm:$0xf]
        %v1045 = vld [vmem:[%s833 + $0x88] sm:$0xf]
        %v1046 = vld [vmem:[%s833 + $0x8c] sm:$0x1]
        %v1047 = vld [vmem:[%s833 + $0x90] sm:$0xf]
        %v1048 = vld [vmem:[%s833 + $0x94] sm:$0xf]
        %v1049 = vld [vmem:[%s833 + $0x98] sm:$0x1]
        %v1050 = vld [vmem:[%s833 + $0x9c] sm:$0xf]
        %v1051 = vld [vmem:[%s833 + $0xa0] sm:$0xf]
        %v1052 = vld [vmem:[%s833 + $0xa4] sm:$0x1]
        %v1053 = vld [vmem:[%s833 + $0xa8] sm:$0xf]
        %v1054 = vld [vmem:[%s833 + $0xac] sm:$0xf]
        %v1055 = vld [vmem:[%s833 + $0xb0] sm:$0x1]
        %v1056 = vld [vmem:[%s833 + $0xb4] sm:$0xf]
        %v1057 = vld [vmem:[%s833 + $0xb8] sm:$0xf]
        %v1058 = vld [vmem:[%s833 + $0xbc] sm:$0x1]
        %v1060 = vshrl.u32 %v1011, 16
        %v1062 = vrot.slane %v1060, 4
        %v1063 = vshll.u32 %v1011, 16
        %v1065 = vrot.slane %v1063, 5
        %v1066 = vor.u32 %v1062, %v1065
        %v1067 = vrot.slane %v1066, 4
        %v1069 = vshll.u32 %v1012, 16
        %v1071 = vrot.slane %v1069, 5
        %v1072 = vsel %vm365, %v1067, %v1071
        %v1073 = vshrl.u32 %v1012, 16
        %v1075 = vrot.slane %v1073, 4
        %v1076 = vor.u32 %v1075, %v1071
        %v1077 = vrot.slane %v1076, 4
        %v1079 = vshll.u32 %v1013, 16
        %v1081 = vrot.slane %v1079, 5
        %v1082 = vsel %vm365, %v1077, %v1081
        %v1084 = vshrl.u32 %v1014, 16
        %v1086 = vrot.slane %v1084, 4
        %v1087 = vshll.u32 %v1014, 16
        %v1089 = vrot.slane %v1087, 5
        %v1090 = vor.u32 %v1086, %v1089
        %v1091 = vrot.slane %v1090, 4
        %v1093 = vshll.u32 %v1015, 16
        %v1095 = vrot.slane %v1093, 5
        %v1096 = vsel %vm365, %v1091, %v1095
        %v1097 = vshrl.u32 %v1015, 16
        %v1099 = vrot.slane %v1097, 4
        %v1100 = vor.u32 %v1099, %v1095
        %v1101 = vrot.slane %v1100, 4
        %v1103 = vshll.u32 %v1016, 16
        %v1105 = vrot.slane %v1103, 5
        %v1106 = vsel %vm365, %v1101, %v1105
        %v1108 = vshrl.u32 %v1017, 16
        %v1110 = vrot.slane %v1108, 4
        %v1111 = vshll.u32 %v1017, 16
        %v1113 = vrot.slane %v1111, 5
        %v1114 = vor.u32 %v1110, %v1113
        %v1115 = vrot.slane %v1114, 4
        %v1117 = vshll.u32 %v1018, 16
        %v1119 = vrot.slane %v1117, 5
        %v1120 = vsel %vm365, %v1115, %v1119
        %v1121 = vshrl.u32 %v1018, 16
        %v1123 = vrot.slane %v1121, 4
        %v1124 = vor.u32 %v1123, %v1119
        %v1125 = vrot.slane %v1124, 4
        %v1127 = vshll.u32 %v1019, 16
        %v1129 = vrot.slane %v1127, 5
        %v1130 = vsel %vm365, %v1125, %v1129
        %v1132 = vshrl.u32 %v1020, 16
        %v1134 = vrot.slane %v1132, 4
        %v1135 = vshll.u32 %v1020, 16
        %v1137 = vrot.slane %v1135, 5
        %v1138 = vor.u32 %v1134, %v1137
        %v1139 = vrot.slane %v1138, 4
        %v1141 = vshll.u32 %v1021, 16
        %v1143 = vrot.slane %v1141, 5
        %v1144 = vsel %vm365, %v1139, %v1143
        %v1145 = vshrl.u32 %v1021, 16
        %v1147 = vrot.slane %v1145, 4
        %v1148 = vor.u32 %v1147, %v1143
        %v1149 = vrot.slane %v1148, 4
        %v1151 = vshll.u32 %v1022, 16
        %v1153 = vrot.slane %v1151, 5
        %v1154 = vsel %vm365, %v1149, %v1153
        %v1156 = vshrl.u32 %v1023, 16
        %v1158 = vrot.slane %v1156, 4
        %v1159 = vshll.u32 %v1023, 16
        %v1161 = vrot.slane %v1159, 5
        %v1162 = vor.u32 %v1158, %v1161
        %v1163 = vrot.slane %v1162, 4
        %v1165 = vshll.u32 %v1024, 16
        %v1167 = vrot.slane %v1165, 5
        %v1168 = vsel %vm365, %v1163, %v1167
        %v1169 = vshrl.u32 %v1024, 16
        %v1171 = vrot.slane %v1169, 4
        %v1172 = vor.u32 %v1171, %v1167
        %v1173 = vrot.slane %v1172, 4
        %v1175 = vshll.u32 %v1025, 16
        %v1177 = vrot.slane %v1175, 5
        %v1178 = vsel %vm365, %v1173, %v1177
        %v1180 = vshrl.u32 %v1026, 16
        %v1182 = vrot.slane %v1180, 4
        %v1183 = vshll.u32 %v1026, 16
        %v1185 = vrot.slane %v1183, 5
        %v1186 = vor.u32 %v1182, %v1185
        %v1187 = vrot.slane %v1186, 4
        %v1189 = vshll.u32 %v1027, 16
        %v1191 = vrot.slane %v1189, 5
        %v1192 = vsel %vm365, %v1187, %v1191
        %v1193 = vshrl.u32 %v1027, 16
        %v1195 = vrot.slane %v1193, 4
        %v1196 = vor.u32 %v1195, %v1191
        %v1197 = vrot.slane %v1196, 4
        %v1199 = vshll.u32 %v1028, 16
        %v1201 = vrot.slane %v1199, 5
        %v1202 = vsel %vm365, %v1197, %v1201
        %v1204 = vshrl.u32 %v1029, 16
        %v1206 = vrot.slane %v1204, 4
        %v1207 = vshll.u32 %v1029, 16
        %v1209 = vrot.slane %v1207, 5
        %v1210 = vor.u32 %v1206, %v1209
        %v1211 = vrot.slane %v1210, 4
        %v1213 = vshll.u32 %v1030, 16
        %v1215 = vrot.slane %v1213, 5
        %v1216 = vsel %vm365, %v1211, %v1215
        %v1217 = vshrl.u32 %v1030, 16
        %v1219 = vrot.slane %v1217, 4
        %v1220 = vor.u32 %v1219, %v1215
        %v1221 = vrot.slane %v1220, 4
        %v1223 = vshll.u32 %v1031, 16
        %v1225 = vrot.slane %v1223, 5
        %v1226 = vsel %vm365, %v1221, %v1225
        %v1228 = vshrl.u32 %v1032, 16
        %v1230 = vrot.slane %v1228, 4
        %v1231 = vshll.u32 %v1032, 16
        %v1233 = vrot.slane %v1231, 5
        %v1234 = vor.u32 %v1230, %v1233
        %v1235 = vrot.slane %v1234, 4
        %v1237 = vshll.u32 %v1033, 16
        %v1239 = vrot.slane %v1237, 5
        %v1240 = vsel %vm365, %v1235, %v1239
        %v1241 = vshrl.u32 %v1033, 16
        %v1243 = vrot.slane %v1241, 4
        %v1244 = vor.u32 %v1243, %v1239
        %v1245 = vrot.slane %v1244, 4
        %v1247 = vshll.u32 %v1034, 16
        %v1249 = vrot.slane %v1247, 5
        %v1250 = vsel %vm365, %v1245, %v1249
        %v1252 = vshrl.u32 %v1035, 16
        %v1254 = vrot.slane %v1252, 4
        %v1255 = vshll.u32 %v1035, 16
        %v1257 = vrot.slane %v1255, 5
        %v1258 = vor.u32 %v1254, %v1257
        %v1259 = vrot.slane %v1258, 4
        %v1261 = vshll.u32 %v1036, 16
        %v1263 = vrot.slane %v1261, 5
        %v1264 = vsel %vm365, %v1259, %v1263
        %v1265 = vshrl.u32 %v1036, 16
        %v1267 = vrot.slane %v1265, 4
        %v1268 = vor.u32 %v1267, %v1263
        %v1269 = vrot.slane %v1268, 4
        %v1271 = vshll.u32 %v1037, 16
        %v1273 = vrot.slane %v1271, 5
        %v1274 = vsel %vm365, %v1269, %v1273
        %v1276 = vshrl.u32 %v1038, 16
        %v1278 = vrot.slane %v1276, 4
        %v1279 = vshll.u32 %v1038, 16
        %v1281 = vrot.slane %v1279, 5
        %v1282 = vor.u32 %v1278, %v1281
        %v1283 = vrot.slane %v1282, 4
        %v1285 = vshll.u32 %v1039, 16
        %v1287 = vrot.slane %v1285, 5
        %v1288 = vsel %vm365, %v1283, %v1287
        %v1289 = vshrl.u32 %v1039, 16
        %v1291 = vrot.slane %v1289, 4
        %v1292 = vor.u32 %v1291, %v1287
        %v1293 = vrot.slane %v1292, 4
        %v1295 = vshll.u32 %v1040, 16
        %v1297 = vrot.slane %v1295, 5
        %v1298 = vsel %vm365, %v1293, %v1297
        %v1300 = vshrl.u32 %v1041, 16
        %v1302 = vrot.slane %v1300, 4
        %v1303 = vshll.u32 %v1041, 16
        %v1305 = vrot.slane %v1303, 5
        %v1306 = vor.u32 %v1302, %v1305
        %v1307 = vrot.slane %v1306, 4
        %v1309 = vshll.u32 %v1042, 16
        %v1311 = vrot.slane %v1309, 5
        %v1312 = vsel %vm365, %v1307, %v1311
        %v1313 = vshrl.u32 %v1042, 16
        %v1315 = vrot.slane %v1313, 4
        %v1316 = vor.u32 %v1315, %v1311
        %v1317 = vrot.slane %v1316, 4
        %v1319 = vshll.u32 %v1043, 16
        %v1321 = vrot.slane %v1319, 5
        %v1322 = vsel %vm365, %v1317, %v1321
        %v1324 = vshrl.u32 %v1044, 16
        %v1326 = vrot.slane %v1324, 4
        %v1327 = vshll.u32 %v1044, 16
        %v1329 = vrot.slane %v1327, 5
        %v1330 = vor.u32 %v1326, %v1329
        %v1331 = vrot.slane %v1330, 4
        %v1333 = vshll.u32 %v1045, 16
        %v1335 = vrot.slane %v1333, 5
        %v1336 = vsel %vm365, %v1331, %v1335
        %v1337 = vshrl.u32 %v1045, 16
        %v1339 = vrot.slane %v1337, 4
        %v1340 = vor.u32 %v1339, %v1335
        %v1341 = vrot.slane %v1340, 4
        %v1343 = vshll.u32 %v1046, 16
        %v1345 = vrot.slane %v1343, 5
        %v1346 = vsel %vm365, %v1341, %v1345
        %v1348 = vshrl.u32 %v1047, 16
        %v1350 = vrot.slane %v1348, 4
        %v1351 = vshll.u32 %v1047, 16
        %v1353 = vrot.slane %v1351, 5
        %v1354 = vor.u32 %v1350, %v1353
        %v1355 = vrot.slane %v1354, 4
        %v1357 = vshll.u32 %v1048, 16
        %v1359 = vrot.slane %v1357, 5
        %v1360 = vsel %vm365, %v1355, %v1359
        %v1361 = vshrl.u32 %v1048, 16
        %v1363 = vrot.slane %v1361, 4
        %v1364 = vor.u32 %v1363, %v1359
        %v1365 = vrot.slane %v1364, 4
        %v1367 = vshll.u32 %v1049, 16
        %v1369 = vrot.slane %v1367, 5
        %v1370 = vsel %vm365, %v1365, %v1369
        %v1372 = vshrl.u32 %v1050, 16
        %v1374 = vrot.slane %v1372, 4
        %v1375 = vshll.u32 %v1050, 16
        %v1377 = vrot.slane %v1375, 5
        %v1378 = vor.u32 %v1374, %v1377
        %v1379 = vrot.slane %v1378, 4
        %v1381 = vshll.u32 %v1051, 16
        %v1383 = vrot.slane %v1381, 5
        %v1384 = vsel %vm365, %v1379, %v1383
        %v1385 = vshrl.u32 %v1051, 16
        %v1387 = vrot.slane %v1385, 4
        %v1388 = vor.u32 %v1387, %v1383
        %v1389 = vrot.slane %v1388, 4
        %v1391 = vshll.u32 %v1052, 16
        %v1393 = vrot.slane %v1391, 5
        %v1394 = vsel %vm365, %v1389, %v1393
        %v1396 = vshrl.u32 %v1053, 16
        %v1398 = vrot.slane %v1396, 4
        %v1399 = vshll.u32 %v1053, 16
        %v1401 = vrot.slane %v1399, 5
        %v1402 = vor.u32 %v1398, %v1401
        %v1403 = vrot.slane %v1402, 4
        %v1405 = vshll.u32 %v1054, 16
        %v1407 = vrot.slane %v1405, 5
        %v1408 = vsel %vm365, %v1403, %v1407
        %v1409 = vshrl.u32 %v1054, 16
        %v1411 = vrot.slane %v1409, 4
        %v1412 = vor.u32 %v1411, %v1407
        %v1413 = vrot.slane %v1412, 4
        %v1415 = vshll.u32 %v1055, 16
        %v1417 = vrot.slane %v1415, 5
        %v1418 = vsel %vm365, %v1413, %v1417
        %v1420 = vshrl.u32 %v1056, 16
        %v1422 = vrot.slane %v1420, 4
        %v1423 = vshll.u32 %v1056, 16
        %v1425 = vrot.slane %v1423, 5
        %v1426 = vor.u32 %v1422, %v1425
        %v1427 = vrot.slane %v1426, 4
        %v1429 = vshll.u32 %v1057, 16
        %v1431 = vrot.slane %v1429, 5
        %v1432 = vsel %vm365, %v1427, %v1431
        %v1433 = vshrl.u32 %v1057, 16
        %v1435 = vrot.slane %v1433, 4
        %v1436 = vor.u32 %v1435, %v1431
        %v1437 = vrot.slane %v1436, 4
        %v1439 = vshll.u32 %v1058, 16
        %v1441 = vrot.slane %v1439, 5
        %v1442 = vsel %vm365, %v1437, %v1441
        %v1443 = vunpack.c.l.b16 %v1072
        %v1444 = vunpack.c.l.b16 %v1082
        %v1445 = vunpack.c.l.b16 %v1096
        %v1446 = vunpack.c.l.b16 %v1106
        %v1447 = vunpack.c.l.b16 %v1120
        %v1448 = vunpack.c.l.b16 %v1130
        %v1449 = vunpack.c.l.b16 %v1144
        %v1450 = vunpack.c.l.b16 %v1154
        %v1451 = vunpack.c.l.b16 %v1168
        %v1452 = vunpack.c.l.b16 %v1178
        %v1453 = vunpack.c.l.b16 %v1192
        %v1454 = vunpack.c.l.b16 %v1202
        %v1455 = vunpack.c.l.b16 %v1216
        %v1456 = vunpack.c.l.b16 %v1226
        %v1457 = vunpack.c.l.b16 %v1240
        %v1458 = vunpack.c.l.b16 %v1250
        %v1459 = vunpack.c.l.b16 %v1264
        %v1460 = vunpack.c.l.b16 %v1274
        %v1461 = vunpack.c.l.b16 %v1288
        %v1462 = vunpack.c.l.b16 %v1298
        %v1463 = vunpack.c.l.b16 %v1312
        %v1464 = vunpack.c.l.b16 %v1322
        %v1465 = vunpack.c.l.b16 %v1336
        %v1466 = vunpack.c.l.b16 %v1346
        %v1467 = vunpack.c.l.b16 %v1360
        %v1468 = vunpack.c.l.b16 %v1370
        %v1469 = vunpack.c.l.b16 %v1384
        %v1470 = vunpack.c.l.b16 %v1394
        %v1471 = vunpack.c.l.b16 %v1408
        %v1472 = vunpack.c.l.b16 %v1418
        %v1473 = vunpack.c.l.b16 %v1432
        %v1474 = vunpack.c.l.b16 %v1442
        %v1475 = vpack.c.b16 %v1444, %v1443
        %v1476 = vpack.c.b16 %v1446, %v1445
        %v1477 = vpack.c.b16 %v1448, %v1447
        %v1478 = vpack.c.b16 %v1450, %v1449
        %v1479 = vpack.c.b16 %v1452, %v1451
        %v1480 = vpack.c.b16 %v1454, %v1453
        %v1481 = vpack.c.b16 %v1456, %v1455
        %v1482 = vpack.c.b16 %v1458, %v1457
        %v1483 = vpack.c.b16 %v1460, %v1459
        %v1484 = vpack.c.b16 %v1462, %v1461
        %v1485 = vpack.c.b16 %v1464, %v1463
        %v1486 = vpack.c.b16 %v1466, %v1465
        %v1487 = vpack.c.b16 %v1468, %v1467
        %v1488 = vpack.c.b16 %v1470, %v1469
        %v1489 = vpack.c.b16 %v1472, %v1471
        %v1490 = vpack.c.b16 %v1474, %v1473
        %1491 = vrot.lane.b32.xlu0 %v1475, 8
        %v1492 = vpop.permute.xlu0 %1491
        %1493 = vrot.lane.b32.xlu0 %v1476, 8
        %v1494 = vpop.permute.xlu0 %1493
        %1495 = vrot.lane.b32.xlu0 %v1477, 8
        %v1496 = vpop.permute.xlu0 %1495
        %1497 = vrot.lane.b32.xlu0 %v1478, 8
        %v1498 = vpop.permute.xlu0 %1497
        %1499 = vrot.lane.b32.xlu0 %v1479, 8
        %v1500 = vpop.permute.xlu0 %1499
        %1501 = vrot.lane.b32.xlu0 %v1480, 8
        %v1502 = vpop.permute.xlu0 %1501
        %1503 = vrot.lane.b32.xlu0 %v1481, 8
        %v1504 = vpop.permute.xlu0 %1503
        %1505 = vrot.lane.b32.xlu0 %v1482, 8
        %v1506 = vpop.permute.xlu0 %1505
        %1507 = vrot.lane.b32.xlu0 %v1483, 8
        %v1508 = vpop.permute.xlu0 %1507
        %1509 = vrot.lane.b32.xlu0 %v1484, 8
        %v1510 = vpop.permute.xlu0 %1509
        %1511 = vrot.lane.b32.xlu0 %v1485, 8
        %v1512 = vpop.permute.xlu0 %1511
        %1513 = vrot.lane.b32.xlu0 %v1486, 8
        %v1514 = vpop.permute.xlu0 %1513
        %1515 = vrot.lane.b32.xlu0 %v1487, 8
        %v1516 = vpop.permute.xlu0 %1515
        %1517 = vrot.lane.b32.xlu0 %v1488, 8
        %v1518 = vpop.permute.xlu0 %1517
        %1519 = vrot.lane.b32.xlu0 %v1489, 8
        %v1520 = vpop.permute.xlu0 %1519
        %1521 = vrot.lane.b32.xlu0 %v1490, 8
        %v1522 = vpop.permute.xlu0 %1521
        %vm1539 = vcmask 97344
        %1540 = vst.msk [vmem:[#allocation2] sm:$0xff] %vm1539, %v1492
        %1541 = vst.msk [vmem:[#allocation2 + $0x8] sm:$0xff] %vm1539, %v1494
        %1542 = vst.msk [vmem:[#allocation2 + $0x10] sm:$0xff] %vm1539, %v1496
        %1543 = vst.msk [vmem:[#allocation2 + $0x18] sm:$0xff] %vm1539, %v1498
        %1544 = vst.msk [vmem:[#allocation2 + $0x20] sm:$0xff] %vm1539, %v1500
        %1545 = vst.msk [vmem:[#allocation2 + $0x28] sm:$0xff] %vm1539, %v1502
        %1546 = vst.msk [vmem:[#allocation2 + $0x30] sm:$0xff] %vm1539, %v1504
        %1547 = vst.msk [vmem:[#allocation2 + $0x38] sm:$0xff] %vm1539, %v1506
        %1548 = vst.msk [vmem:[#allocation2 + $0x40] sm:$0xff] %vm1539, %v1508
        %1549 = vst.msk [vmem:[#allocation2 + $0x48] sm:$0xff] %vm1539, %v1510
        %1550 = vst.msk [vmem:[#allocation2 + $0x50] sm:$0xff] %vm1539, %v1512
        %1551 = vst.msk [vmem:[#allocation2 + $0x58] sm:$0xff] %vm1539, %v1514
        %1552 = vst.msk [vmem:[#allocation2 + $0x60] sm:$0xff] %vm1539, %v1516
        %1553 = vst.msk [vmem:[#allocation2 + $0x68] sm:$0xff] %vm1539, %v1518
        %1554 = vst.msk [vmem:[#allocation2 + $0x70] sm:$0xff] %vm1539, %v1520
        %1555 = vst.msk [vmem:[#allocation2 + $0x78] sm:$0xff] %vm1539, %v1522
        %v1556 = vld [vmem:[%s833] sm:$0xe]
        %v1557 = vld [vmem:[%s833 + $0x4] sm:$0xf]
        %v1558 = vld [vmem:[%s833 + $0x8] sm:$0x1]
        %v1559 = vld [vmem:[%s833 + $0xc] sm:$0xe]
        %v1560 = vld [vmem:[%s833 + $0x10] sm:$0xf]
        %v1561 = vld [vmem:[%s833 + $0x14] sm:$0x1]
        %v1562 = vld [vmem:[%s833 + $0x18] sm:$0xe]
        %v1563 = vld [vmem:[%s833 + $0x1c] sm:$0xf]
        %v1564 = vld [vmem:[%s833 + $0x20] sm:$0x1]
        %v1565 = vld [vmem:[%s833 + $0x24] sm:$0xe]
        %v1566 = vld [vmem:[%s833 + $0x28] sm:$0xf]
        %v1567 = vld [vmem:[%s833 + $0x2c] sm:$0x1]
        %v1568 = vld [vmem:[%s833 + $0x30] sm:$0xe]
        %v1569 = vld [vmem:[%s833 + $0x34] sm:$0xf]
        %v1570 = vld [vmem:[%s833 + $0x38] sm:$0x1]
        %v1571 = vld [vmem:[%s833 + $0x3c] sm:$0xe]
        %v1572 = vld [vmem:[%s833 + $0x40] sm:$0xf]
        %v1573 = vld [vmem:[%s833 + $0x44] sm:$0x1]
        %v1574 = vld [vmem:[%s833 + $0x48] sm:$0xe]
        %v1575 = vld [vmem:[%s833 + $0x4c] sm:$0xf]
        %v1576 = vld [vmem:[%s833 + $0x50] sm:$0x1]
        %v1577 = vld [vmem:[%s833 + $0x54] sm:$0xe]
        %v1578 = vld [vmem:[%s833 + $0x58] sm:$0xf]
        %v1579 = vld [vmem:[%s833 + $0x5c] sm:$0x1]
        %v1580 = vld [vmem:[%s833 + $0x60] sm:$0xe]
        %v1581 = vld [vmem:[%s833 + $0x64] sm:$0xf]
        %v1582 = vld [vmem:[%s833 + $0x68] sm:$0x1]
        %v1583 = vld [vmem:[%s833 + $0x6c] sm:$0xe]
        %v1584 = vld [vmem:[%s833 + $0x70] sm:$0xf]
        %v1585 = vld [vmem:[%s833 + $0x74] sm:$0x1]
        %v1586 = vld [vmem:[%s833 + $0x78] sm:$0xe]
        %v1587 = vld [vmem:[%s833 + $0x7c] sm:$0xf]
        %v1588 = vld [vmem:[%s833 + $0x80] sm:$0x1]
        %v1589 = vld [vmem:[%s833 + $0x84] sm:$0xe]
        %v1590 = vld [vmem:[%s833 + $0x88] sm:$0xf]
        %v1591 = vld [vmem:[%s833 + $0x8c] sm:$0x1]
        %v1592 = vld [vmem:[%s833 + $0x90] sm:$0xe]
        %v1593 = vld [vmem:[%s833 + $0x94] sm:$0xf]
        %v1594 = vld [vmem:[%s833 + $0x98] sm:$0x1]
        %v1595 = vld [vmem:[%s833 + $0x9c] sm:$0xe]
        %v1596 = vld [vmem:[%s833 + $0xa0] sm:$0xf]
        %v1597 = vld [vmem:[%s833 + $0xa4] sm:$0x1]
        %v1598 = vld [vmem:[%s833 + $0xa8] sm:$0xe]
        %v1599 = vld [vmem:[%s833 + $0xac] sm:$0xf]
        %v1600 = vld [vmem:[%s833 + $0xb0] sm:$0x1]
        %v1601 = vld [vmem:[%s833 + $0xb4] sm:$0xe]
        %v1602 = vld [vmem:[%s833 + $0xb8] sm:$0xf]
        %v1603 = vld [vmem:[%s833 + $0xbc] sm:$0x1]
        %vm1652 = vcmask 1042432
        %vm1653 = vcmask 1046532
        %vm1654 = vmor %vm1652, %vm1653
        %v1655 = vrot.slane %v1556, 5
        %v1656 = vrot.slane %v1655, 4
        %v1657 = vrot.slane %v1557, 5
        %v1658 = vsel %vm1654, %v1656, %v1657
        %v1659 = vrot.slane %v1657, 4
        %v1660 = vrot.slane %v1558, 5
        %v1661 = vsel %vm1654, %v1659, %v1660
        %v1662 = vrot.slane %v1559, 5
        %v1663 = vrot.slane %v1662, 4
        %v1664 = vrot.slane %v1560, 5
        %v1665 = vsel %vm1654, %v1663, %v1664
        %v1666 = vrot.slane %v1664, 4
        %v1667 = vrot.slane %v1561, 5
        %v1668 = vsel %vm1654, %v1666, %v1667
        %v1669 = vrot.slane %v1562, 5
        %v1670 = vrot.slane %v1669, 4
        %v1671 = vrot.slane %v1563, 5
        %v1672 = vsel %vm1654, %v1670, %v1671
        %v1673 = vrot.slane %v1671, 4
        %v1674 = vrot.slane %v1564, 5
        %v1675 = vsel %vm1654, %v1673, %v1674
        %v1676 = vrot.slane %v1565, 5
        %v1677 = vrot.slane %v1676, 4
        %v1678 = vrot.slane %v1566, 5
        %v1679 = vsel %vm1654, %v1677, %v1678
        %v1680 = vrot.slane %v1678, 4
        %v1681 = vrot.slane %v1567, 5
        %v1682 = vsel %vm1654, %v1680, %v1681
        %v1683 = vrot.slane %v1568, 5
        %v1684 = vrot.slane %v1683, 4
        %v1685 = vrot.slane %v1569, 5
        %v1686 = vsel %vm1654, %v1684, %v1685
        %v1687 = vrot.slane %v1685, 4
        %v1688 = vrot.slane %v1570, 5
        %v1689 = vsel %vm1654, %v1687, %v1688
        %v1690 = vrot.slane %v1571, 5
        %v1691 = vrot.slane %v1690, 4
        %v1692 = vrot.slane %v1572, 5
        %v1693 = vsel %vm1654, %v1691, %v1692
        %v1694 = vrot.slane %v1692, 4
        %v1695 = vrot.slane %v1573, 5
        %v1696 = vsel %vm1654, %v1694, %v1695
        %v1697 = vrot.slane %v1574, 5
        %v1698 = vrot.slane %v1697, 4
        %v1699 = vrot.slane %v1575, 5
        %v1700 = vsel %vm1654, %v1698, %v1699
        %v1701 = vrot.slane %v1699, 4
        %v1702 = vrot.slane %v1576, 5
        %v1703 = vsel %vm1654, %v1701, %v1702
        %v1704 = vrot.slane %v1577, 5
        %v1705 = vrot.slane %v1704, 4
        %v1706 = vrot.slane %v1578, 5
        %v1707 = vsel %vm1654, %v1705, %v1706
        %v1708 = vrot.slane %v1706, 4
        %v1709 = vrot.slane %v1579, 5
        %v1710 = vsel %vm1654, %v1708, %v1709
        %v1711 = vrot.slane %v1580, 5
        %v1712 = vrot.slane %v1711, 4
        %v1713 = vrot.slane %v1581, 5
        %v1714 = vsel %vm1654, %v1712, %v1713
        %v1715 = vrot.slane %v1713, 4
        %v1716 = vrot.slane %v1582, 5
        %v1717 = vsel %vm1654, %v1715, %v1716
        %v1718 = vrot.slane %v1583, 5
        %v1719 = vrot.slane %v1718, 4
        %v1720 = vrot.slane %v1584, 5
        %v1721 = vsel %vm1654, %v1719, %v1720
        %v1722 = vrot.slane %v1720, 4
        %v1723 = vrot.slane %v1585, 5
        %v1724 = vsel %vm1654, %v1722, %v1723
        %v1725 = vrot.slane %v1586, 5
        %v1726 = vrot.slane %v1725, 4
        %v1727 = vrot.slane %v1587, 5
        %v1728 = vsel %vm1654, %v1726, %v1727
        %v1729 = vrot.slane %v1727, 4
        %v1730 = vrot.slane %v1588, 5
        %v1731 = vsel %vm1654, %v1729, %v1730
        %v1732 = vrot.slane %v1589, 5
        %v1733 = vrot.slane %v1732, 4
        %v1734 = vrot.slane %v1590, 5
        %v1735 = vsel %vm1654, %v1733, %v1734
        %v1736 = vrot.slane %v1734, 4
        %v1737 = vrot.slane %v1591, 5
        %v1738 = vsel %vm1654, %v1736, %v1737
        %v1739 = vrot.slane %v1592, 5
        %v1740 = vrot.slane %v1739, 4
        %v1741 = vrot.slane %v1593, 5
        %v1742 = vsel %vm1654, %v1740, %v1741
        %v1743 = vrot.slane %v1741, 4
        %v1744 = vrot.slane %v1594, 5
        %v1745 = vsel %vm1654, %v1743, %v1744
        %v1746 = vrot.slane %v1595, 5
        %v1747 = vrot.slane %v1746, 4
        %v1748 = vrot.slane %v1596, 5
        %v1749 = vsel %vm1654, %v1747, %v1748
        %v1750 = vrot.slane %v1748, 4
        %v1751 = vrot.slane %v1597, 5
        %v1752 = vsel %vm1654, %v1750, %v1751
        %v1753 = vrot.slane %v1598, 5
        %v1754 = vrot.slane %v1753, 4
        %v1755 = vrot.slane %v1599, 5
        %v1756 = vsel %vm1654, %v1754, %v1755
        %v1757 = vrot.slane %v1755, 4
        %v1758 = vrot.slane %v1600, 5
        %v1759 = vsel %vm1654, %v1757, %v1758
        %v1760 = vrot.slane %v1601, 5
        %v1761 = vrot.slane %v1760, 4
        %v1762 = vrot.slane %v1602, 5
        %v1763 = vsel %vm1654, %v1761, %v1762
        %v1764 = vrot.slane %v1762, 4
        %v1765 = vrot.slane %v1603, 5
        %v1766 = vsel %vm1654, %v1764, %v1765
        %v1767 = vunpack.c.l.b16 %v1658
        %v1768 = vunpack.c.l.b16 %v1661
        %v1769 = vunpack.c.l.b16 %v1665
        %v1770 = vunpack.c.l.b16 %v1668
        %v1771 = vunpack.c.l.b16 %v1672
        %v1772 = vunpack.c.l.b16 %v1675
        %v1773 = vunpack.c.l.b16 %v1679
        %v1774 = vunpack.c.l.b16 %v1682
        %v1775 = vunpack.c.l.b16 %v1686
        %v1776 = vunpack.c.l.b16 %v1689
        %v1777 = vunpack.c.l.b16 %v1693
        %v1778 = vunpack.c.l.b16 %v1696
        %v1779 = vunpack.c.l.b16 %v1700
        %v1780 = vunpack.c.l.b16 %v1703
        %v1781 = vunpack.c.l.b16 %v1707
        %v1782 = vunpack.c.l.b16 %v1710
        %v1783 = vunpack.c.l.b16 %v1714
        %v1784 = vunpack.c.l.b16 %v1717
        %v1785 = vunpack.c.l.b16 %v1721
        %v1786 = vunpack.c.l.b16 %v1724
        %v1787 = vunpack.c.l.b16 %v1728
        %v1788 = vunpack.c.l.b16 %v1731
        %v1789 = vunpack.c.l.b16 %v1735
        %v1790 = vunpack.c.l.b16 %v1738
        %v1791 = vunpack.c.l.b16 %v1742
        %v1792 = vunpack.c.l.b16 %v1745
        %v1793 = vunpack.c.l.b16 %v1749
        %v1794 = vunpack.c.l.b16 %v1752
        %v1795 = vunpack.c.l.b16 %v1756
        %v1796 = vunpack.c.l.b16 %v1759
        %v1797 = vunpack.c.l.b16 %v1763
        %v1798 = vunpack.c.l.b16 %v1766
        %v1799 = vpack.c.b16 %v1768, %v1767
        %v1800 = vpack.c.b16 %v1770, %v1769
        %v1801 = vpack.c.b16 %v1772, %v1771
        %v1802 = vpack.c.b16 %v1774, %v1773
        %v1803 = vpack.c.b16 %v1776, %v1775
        %v1804 = vpack.c.b16 %v1778, %v1777
        %v1805 = vpack.c.b16 %v1780, %v1779
        %v1806 = vpack.c.b16 %v1782, %v1781
        %v1807 = vpack.c.b16 %v1784, %v1783
        %v1808 = vpack.c.b16 %v1786, %v1785
        %v1809 = vpack.c.b16 %v1788, %v1787
        %v1810 = vpack.c.b16 %v1790, %v1789
        %v1811 = vpack.c.b16 %v1792, %v1791
        %v1812 = vpack.c.b16 %v1794, %v1793
        %v1813 = vpack.c.b16 %v1796, %v1795
        %v1814 = vpack.c.b16 %v1798, %v1797
        %1815 = vrot.lane.b32.xlu0 %v1799, 12
        %v1816 = vpop.permute.xlu0 %1815
        %1817 = vrot.lane.b32.xlu0 %v1800, 12
        %v1818 = vpop.permute.xlu0 %1817
        %1819 = vrot.lane.b32.xlu0 %v1801, 12
        %v1820 = vpop.permute.xlu0 %1819
        %1821 = vrot.lane.b32.xlu0 %v1802, 12
        %v1822 = vpop.permute.xlu0 %1821
        %1823 = vrot.lane.b32.xlu0 %v1803, 12
        %v1824 = vpop.permute.xlu0 %1823
        %1825 = vrot.lane.b32.xlu0 %v1804, 12
        %v1826 = vpop.permute.xlu0 %1825
        %1827 = vrot.lane.b32.xlu0 %v1805, 12
        %v1828 = vpop.permute.xlu0 %1827
        %1829 = vrot.lane.b32.xlu0 %v1806, 12
        %v1830 = vpop.permute.xlu0 %1829
        %1831 = vrot.lane.b32.xlu0 %v1807, 12
        %v1832 = vpop.permute.xlu0 %1831
        %1833 = vrot.lane.b32.xlu0 %v1808, 12
        %v1834 = vpop.permute.xlu0 %1833
        %1835 = vrot.lane.b32.xlu0 %v1809, 12
        %v1836 = vpop.permute.xlu0 %1835
        %1837 = vrot.lane.b32.xlu0 %v1810, 12
        %v1838 = vpop.permute.xlu0 %1837
        %1839 = vrot.lane.b32.xlu0 %v1811, 12
        %v1840 = vpop.permute.xlu0 %1839
        %1841 = vrot.lane.b32.xlu0 %v1812, 12
        %v1842 = vpop.permute.xlu0 %1841
        %1843 = vrot.lane.b32.xlu0 %v1813, 12
        %v1844 = vpop.permute.xlu0 %1843
        %1845 = vrot.lane.b32.xlu0 %v1814, 12
        %v1846 = vpop.permute.xlu0 %1845
        %vm1863 = vcmask 130144
        %1864 = vst.msk [vmem:[#allocation2] sm:$0xff] %vm1863, %v1816
        %1865 = vst.msk [vmem:[#allocation2 + $0x8] sm:$0xff] %vm1863, %v1818
        %1866 = vst.msk [vmem:[#allocation2 + $0x10] sm:$0xff] %vm1863, %v1820
        %1867 = vst.msk [vmem:[#allocation2 + $0x18] sm:$0xff] %vm1863, %v1822
        %1868 = vst.msk [vmem:[#allocation2 + $0x20] sm:$0xff] %vm1863, %v1824
        %1869 = vst.msk [vmem:[#allocation2 + $0x28] sm:$0xff] %vm1863, %v1826
        %1870 = vst.msk [vmem:[#allocation2 + $0x30] sm:$0xff] %vm1863, %v1828
        %1871 = vst.msk [vmem:[#allocation2 + $0x38] sm:$0xff] %vm1863, %v1830
        %1872 = vst.msk [vmem:[#allocation2 + $0x40] sm:$0xff] %vm1863, %v1832
        %1873 = vst.msk [vmem:[#allocation2 + $0x48] sm:$0xff] %vm1863, %v1834
        %1874 = vst.msk [vmem:[#allocation2 + $0x50] sm:$0xff] %vm1863, %v1836
        %1875 = vst.msk [vmem:[#allocation2 + $0x58] sm:$0xff] %vm1863, %v1838
        %1876 = vst.msk [vmem:[#allocation2 + $0x60] sm:$0xff] %vm1863, %v1840
        %1877 = vst.msk [vmem:[#allocation2 + $0x68] sm:$0xff] %vm1863, %v1842
        %1878 = vst.msk [vmem:[#allocation2 + $0x70] sm:$0xff] %vm1863, %v1844
        %1879 = vst.msk [vmem:[#allocation2 + $0x78] sm:$0xff] %vm1863, %v1846
        %v1880 = vld [vmem:[%s314] sm:$0xf]
        %v1881 = vld [vmem:[%s314 + $0x4] sm:$0xf]
        %v1882 = vld [vmem:[%s314 + $0xc] sm:$0xf]
        %v1883 = vld [vmem:[%s314 + $0x10] sm:$0xf]
        %v1884 = vld [vmem:[%s314 + $0x18] sm:$0xf]
        %v1885 = vld [vmem:[%s314 + $0x1c] sm:$0xf]
        %v1886 = vld [vmem:[%s314 + $0x24] sm:$0xf]
        %v1887 = vld [vmem:[%s314 + $0x28] sm:$0xf]
        %v1888 = vld [vmem:[%s314 + $0x30] sm:$0xf]
        %v1889 = vld [vmem:[%s314 + $0x34] sm:$0xf]
        %v1890 = vld [vmem:[%s314 + $0x3c] sm:$0xf]
        %v1891 = vld [vmem:[%s314 + $0x40] sm:$0xf]
        %v1892 = vld [vmem:[%s314 + $0x48] sm:$0xf]
        %v1893 = vld [vmem:[%s314 + $0x4c] sm:$0xf]
        %v1894 = vld [vmem:[%s314 + $0x54] sm:$0xf]
        %v1895 = vld [vmem:[%s314 + $0x58] sm:$0xf]
        %v1896 = vld [vmem:[%s314 + $0x60] sm:$0xf]
        %v1897 = vld [vmem:[%s314 + $0x64] sm:$0xf]
        %v1898 = vld [vmem:[%s314 + $0x6c] sm:$0xf]
        %v1899 = vld [vmem:[%s314 + $0x70] sm:$0xf]
        %v1900 = vld [vmem:[%s314 + $0x78] sm:$0xf]
        %v1901 = vld [vmem:[%s314 + $0x7c] sm:$0xf]
        %v1902 = vld [vmem:[%s314 + $0x84] sm:$0xf]
        %v1903 = vld [vmem:[%s314 + $0x88] sm:$0xf]
        %v1904 = vld [vmem:[%s314 + $0x90] sm:$0xf]
        %v1905 = vld [vmem:[%s314 + $0x94] sm:$0xf]
        %v1906 = vld [vmem:[%s314 + $0x9c] sm:$0xf]
        %v1907 = vld [vmem:[%s314 + $0xa0] sm:$0xf]
        %v1908 = vld [vmem:[%s314 + $0xa8] sm:$0xf]
        %v1909 = vld [vmem:[%s314 + $0xac] sm:$0xf]
        %v1910 = vld [vmem:[%s314 + $0xb4] sm:$0xf]
        %v1911 = vld [vmem:[%s314 + $0xb8] sm:$0xf]
        %v1944 = vunpack.c.l.b16 %v1880
        %v1945 = vunpack.c.l.b16 %v1881
        %v1946 = vunpack.c.l.b16 %v1882
        %v1947 = vunpack.c.l.b16 %v1883
        %v1948 = vunpack.c.l.b16 %v1884
        %v1949 = vunpack.c.l.b16 %v1885
        %v1950 = vunpack.c.l.b16 %v1886
        %v1951 = vunpack.c.l.b16 %v1887
        %v1952 = vunpack.c.l.b16 %v1888
        %v1953 = vunpack.c.l.b16 %v1889
        %v1954 = vunpack.c.l.b16 %v1890
        %v1955 = vunpack.c.l.b16 %v1891
        %v1956 = vunpack.c.l.b16 %v1892
        %v1957 = vunpack.c.l.b16 %v1893
        %v1958 = vunpack.c.l.b16 %v1894
        %v1959 = vunpack.c.l.b16 %v1895
        %v1960 = vunpack.c.l.b16 %v1896
        %v1961 = vunpack.c.l.b16 %v1897
        %v1962 = vunpack.c.l.b16 %v1898
        %v1963 = vunpack.c.l.b16 %v1899
        %v1964 = vunpack.c.l.b16 %v1900
        %v1965 = vunpack.c.l.b16 %v1901
        %v1966 = vunpack.c.l.b16 %v1902
        %v1967 = vunpack.c.l.b16 %v1903
        %v1968 = vunpack.c.l.b16 %v1904
        %v1969 = vunpack.c.l.b16 %v1905
        %v1970 = vunpack.c.l.b16 %v1906
        %v1971 = vunpack.c.l.b16 %v1907
        %v1972 = vunpack.c.l.b16 %v1908
        %v1973 = vunpack.c.l.b16 %v1909
        %v1974 = vunpack.c.l.b16 %v1910
        %v1975 = vunpack.c.l.b16 %v1911
        %v1976 = vpack.c.b16 %v1945, %v1944
        %v1977 = vpack.c.b16 %v1947, %v1946
        %v1978 = vpack.c.b16 %v1949, %v1948
        %v1979 = vpack.c.b16 %v1951, %v1950
        %v1980 = vpack.c.b16 %v1953, %v1952
        %v1981 = vpack.c.b16 %v1955, %v1954
        %v1982 = vpack.c.b16 %v1957, %v1956
        %v1983 = vpack.c.b16 %v1959, %v1958
        %v1984 = vpack.c.b16 %v1961, %v1960
        %v1985 = vpack.c.b16 %v1963, %v1962
        %v1986 = vpack.c.b16 %v1965, %v1964
        %v1987 = vpack.c.b16 %v1967, %v1966
        %v1988 = vpack.c.b16 %v1969, %v1968
        %v1989 = vpack.c.b16 %v1971, %v1970
        %v1990 = vpack.c.b16 %v1973, %v1972
        %v1991 = vpack.c.b16 %v1975, %v1974
        %1992 = vrot.lane.b32.xlu0 %v1976, 16
        %v1993 = vpop.permute.xlu0 %1992
        %1994 = vrot.lane.b32.xlu0 %v1977, 16
        %v1995 = vpop.permute.xlu0 %1994
        %1996 = vrot.lane.b32.xlu0 %v1978, 16
        %v1997 = vpop.permute.xlu0 %1996
        %1998 = vrot.lane.b32.xlu0 %v1979, 16
        %v1999 = vpop.permute.xlu0 %1998
        %2000 = vrot.lane.b32.xlu0 %v1980, 16
        %v2001 = vpop.permute.xlu0 %2000
        %2002 = vrot.lane.b32.xlu0 %v1981, 16
        %v2003 = vpop.permute.xlu0 %2002
        %2004 = vrot.lane.b32.xlu0 %v1982, 16
        %v2005 = vpop.permute.xlu0 %2004
        %2006 = vrot.lane.b32.xlu0 %v1983, 16
        %v2007 = vpop.permute.xlu0 %2006
        %2008 = vrot.lane.b32.xlu0 %v1984, 16
        %v2009 = vpop.permute.xlu0 %2008
        %2010 = vrot.lane.b32.xlu0 %v1985, 16
        %v2011 = vpop.permute.xlu0 %2010
        %2012 = vrot.lane.b32.xlu0 %v1986, 16
        %v2013 = vpop.permute.xlu0 %2012
        %2014 = vrot.lane.b32.xlu0 %v1987, 16
        %v2015 = vpop.permute.xlu0 %2014
        %2016 = vrot.lane.b32.xlu0 %v1988, 16
        %v2017 = vpop.permute.xlu0 %2016
        %2018 = vrot.lane.b32.xlu0 %v1989, 16
        %v2019 = vpop.permute.xlu0 %2018
        %2020 = vrot.lane.b32.xlu0 %v1990, 16
        %v2021 = vpop.permute.xlu0 %2020
        %2022 = vrot.lane.b32.xlu0 %v1991, 16
        %v2023 = vpop.permute.xlu0 %2022
        %vm2040 = vcmask 162944
        %2041 = vst.msk [vmem:[#allocation2] sm:$0xff] %vm2040, %v1993
        %2042 = vst.msk [vmem:[#allocation2 + $0x8] sm:$0xff] %vm2040, %v1995
        %2043 = vst.msk [vmem:[#allocation2 + $0x10] sm:$0xff] %vm2040, %v1997
        %2044 = vst.msk [vmem:[#allocation2 + $0x18] sm:$0xff] %vm2040, %v1999
        %2045 = vst.msk [vmem:[#allocation2 + $0x20] sm:$0xff] %vm2040, %v2001
        %2046 = vst.msk [vmem:[#allocation2 + $0x28] sm:$0xff] %vm2040, %v2003
        %2047 = vst.msk [vmem:[#allocation2 + $0x30] sm:$0xff] %vm2040, %v2005
        %2048 = vst.msk [vmem:[#allocation2 + $0x38] sm:$0xff] %vm2040, %v2007
        %2049 = vst.msk [vmem:[#allocation2 + $0x40] sm:$0xff] %vm2040, %v2009
        %2050 = vst.msk [vmem:[#allocation2 + $0x48] sm:$0xff] %vm2040, %v2011
        %2051 = vst.msk [vmem:[#allocation2 + $0x50] sm:$0xff] %vm2040, %v2013
        %2052 = vst.msk [vmem:[#allocation2 + $0x58] sm:$0xff] %vm2040, %v2015
        %2053 = vst.msk [vmem:[#allocation2 + $0x60] sm:$0xff] %vm2040, %v2017
        %2054 = vst.msk [vmem:[#allocation2 + $0x68] sm:$0xff] %vm2040, %v2019
        %2055 = vst.msk [vmem:[#allocation2 + $0x70] sm:$0xff] %vm2040, %v2021
        %2056 = vst.msk [vmem:[#allocation2 + $0x78] sm:$0xff] %vm2040, %v2023
        %v2057 = vld [vmem:[%s314] sm:$0xe]
        %v2058 = vld [vmem:[%s314 + $0x4] sm:$0xf]
        %v2059 = vld [vmem:[%s314 + $0x8] sm:$0x1]
        %v2060 = vld [vmem:[%s314 + $0xc] sm:$0xe]
        %v2061 = vld [vmem:[%s314 + $0x10] sm:$0xf]
        %v2062 = vld [vmem:[%s314 + $0x14] sm:$0x1]
        %v2063 = vld [vmem:[%s314 + $0x18] sm:$0xe]
        %v2064 = vld [vmem:[%s314 + $0x1c] sm:$0xf]
        %v2065 = vld [vmem:[%s314 + $0x20] sm:$0x1]
        %v2066 = vld [vmem:[%s314 + $0x24] sm:$0xe]
        %v2067 = vld [vmem:[%s314 + $0x28] sm:$0xf]
        %v2068 = vld [vmem:[%s314 + $0x2c] sm:$0x1]
        %v2069 = vld [vmem:[%s314 + $0x30] sm:$0xe]
        %v2070 = vld [vmem:[%s314 + $0x34] sm:$0xf]
        %v2071 = vld [vmem:[%s314 + $0x38] sm:$0x1]
        %v2072 = vld [vmem:[%s314 + $0x3c] sm:$0xe]
        %v2073 = vld [vmem:[%s314 + $0x40] sm:$0xf]
        %v2074 = vld [vmem:[%s314 + $0x44] sm:$0x1]
        %v2075 = vld [vmem:[%s314 + $0x48] sm:$0xe]
        %v2076 = vld [vmem:[%s314 + $0x4c] sm:$0xf]
        %v2077 = vld [vmem:[%s314 + $0x50] sm:$0x1]
        %v2078 = vld [vmem:[%s314 + $0x54] sm:$0xe]
        %v2079 = vld [vmem:[%s314 + $0x58] sm:$0xf]
        %v2080 = vld [vmem:[%s314 + $0x5c] sm:$0x1]
        %v2081 = vld [vmem:[%s314 + $0x60] sm:$0xe]
        %v2082 = vld [vmem:[%s314 + $0x64] sm:$0xf]
        %v2083 = vld [vmem:[%s314 + $0x68] sm:$0x1]
        %v2084 = vld [vmem:[%s314 + $0x6c] sm:$0xe]
        %v2085 = vld [vmem:[%s314 + $0x70] sm:$0xf]
        %v2086 = vld [vmem:[%s314 + $0x74] sm:$0x1]
        %v2087 = vld [vmem:[%s314 + $0x78] sm:$0xe]
        %v2088 = vld [vmem:[%s314 + $0x7c] sm:$0xf]
        %v2089 = vld [vmem:[%s314 + $0x80] sm:$0x1]
        %v2090 = vld [vmem:[%s314 + $0x84] sm:$0xe]
        %v2091 = vld [vmem:[%s314 + $0x88] sm:$0xf]
        %v2092 = vld [vmem:[%s314 + $0x8c] sm:$0x1]
        %v2093 = vld [vmem:[%s314 + $0x90] sm:$0xe]
        %v2094 = vld [vmem:[%s314 + $0x94] sm:$0xf]
        %v2095 = vld [vmem:[%s314 + $0x98] sm:$0x1]
        %v2096 = vld [vmem:[%s314 + $0x9c] sm:$0xe]
        %v2097 = vld [vmem:[%s314 + $0xa0] sm:$0xf]
        %v2098 = vld [vmem:[%s314 + $0xa4] sm:$0x1]
        %v2099 = vld [vmem:[%s314 + $0xa8] sm:$0xe]
        %v2100 = vld [vmem:[%s314 + $0xac] sm:$0xf]
        %v2101 = vld [vmem:[%s314 + $0xb0] sm:$0x1]
        %v2102 = vld [vmem:[%s314 + $0xb4] sm:$0xe]
        %v2103 = vld [vmem:[%s314 + $0xb8] sm:$0xf]
        %v2104 = vld [vmem:[%s314 + $0xbc] sm:$0x1]
        %v2153 = vrot.slane %v2057, 5
        %v2154 = vrot.slane %v2153, 4
        %v2155 = vrot.slane %v2058, 5
        %v2156 = vsel %vm1654, %v2154, %v2155
        %v2157 = vrot.slane %v2155, 4
        %v2158 = vrot.slane %v2059, 5
        %v2159 = vsel %vm1654, %v2157, %v2158
        %v2160 = vrot.slane %v2060, 5
        %v2161 = vrot.slane %v2160, 4
        %v2162 = vrot.slane %v2061, 5
        %v2163 = vsel %vm1654, %v2161, %v2162
        %v2164 = vrot.slane %v2162, 4
        %v2165 = vrot.slane %v2062, 5
        %v2166 = vsel %vm1654, %v2164, %v2165
        %v2167 = vrot.slane %v2063, 5
        %v2168 = vrot.slane %v2167, 4
        %v2169 = vrot.slane %v2064, 5
        %v2170 = vsel %vm1654, %v2168, %v2169
        %v2171 = vrot.slane %v2169, 4
        %v2172 = vrot.slane %v2065, 5
        %v2173 = vsel %vm1654, %v2171, %v2172
        %v2174 = vrot.slane %v2066, 5
        %v2175 = vrot.slane %v2174, 4
        %v2176 = vrot.slane %v2067, 5
        %v2177 = vsel %vm1654, %v2175, %v2176
        %v2178 = vrot.slane %v2176, 4
        %v2179 = vrot.slane %v2068, 5
        %v2180 = vsel %vm1654, %v2178, %v2179
        %v2181 = vrot.slane %v2069, 5
        %v2182 = vrot.slane %v2181, 4
        %v2183 = vrot.slane %v2070, 5
        %v2184 = vsel %vm1654, %v2182, %v2183
        %v2185 = vrot.slane %v2183, 4
        %v2186 = vrot.slane %v2071, 5
        %v2187 = vsel %vm1654, %v2185, %v2186
        %v2188 = vrot.slane %v2072, 5
        %v2189 = vrot.slane %v2188, 4
        %v2190 = vrot.slane %v2073, 5
        %v2191 = vsel %vm1654, %v2189, %v2190
        %v2192 = vrot.slane %v2190, 4
        %v2193 = vrot.slane %v2074, 5
        %v2194 = vsel %vm1654, %v2192, %v2193
        %v2195 = vrot.slane %v2075, 5
        %v2196 = vrot.slane %v2195, 4
        %v2197 = vrot.slane %v2076, 5
        %v2198 = vsel %vm1654, %v2196, %v2197
        %v2199 = vrot.slane %v2197, 4
        %v2200 = vrot.slane %v2077, 5
        %v2201 = vsel %vm1654, %v2199, %v2200
        %v2202 = vrot.slane %v2078, 5
        %v2203 = vrot.slane %v2202, 4
        %v2204 = vrot.slane %v2079, 5
        %v2205 = vsel %vm1654, %v2203, %v2204
        %v2206 = vrot.slane %v2204, 4
        %v2207 = vrot.slane %v2080, 5
        %v2208 = vsel %vm1654, %v2206, %v2207
        %v2209 = vrot.slane %v2081, 5
        %v2210 = vrot.slane %v2209, 4
        %v2211 = vrot.slane %v2082, 5
        %v2212 = vsel %vm1654, %v2210, %v2211
        %v2213 = vrot.slane %v2211, 4
        %v2214 = vrot.slane %v2083, 5
        %v2215 = vsel %vm1654, %v2213, %v2214
        %v2216 = vrot.slane %v2084, 5
        %v2217 = vrot.slane %v2216, 4
        %v2218 = vrot.slane %v2085, 5
        %v2219 = vsel %vm1654, %v2217, %v2218
        %v2220 = vrot.slane %v2218, 4
        %v2221 = vrot.slane %v2086, 5
        %v2222 = vsel %vm1654, %v2220, %v2221
        %v2223 = vrot.slane %v2087, 5
        %v2224 = vrot.slane %v2223, 4
        %v2225 = vrot.slane %v2088, 5
        %v2226 = vsel %vm1654, %v2224, %v2225
        %v2227 = vrot.slane %v2225, 4
        %v2228 = vrot.slane %v2089, 5
        %v2229 = vsel %vm1654, %v2227, %v2228
        %v2230 = vrot.slane %v2090, 5
        %v2231 = vrot.slane %v2230, 4
        %v2232 = vrot.slane %v2091, 5
        %v2233 = vsel %vm1654, %v2231, %v2232
        %v2234 = vrot.slane %v2232, 4
        %v2235 = vrot.slane %v2092, 5
        %v2236 = vsel %vm1654, %v2234, %v2235
        %v2237 = vrot.slane %v2093, 5
        %v2238 = vrot.slane %v2237, 4
        %v2239 = vrot.slane %v2094, 5
        %v2240 = vsel %vm1654, %v2238, %v2239
        %v2241 = vrot.slane %v2239, 4
        %v2242 = vrot.slane %v2095, 5
        %v2243 = vsel %vm1654, %v2241, %v2242
        %v2244 = vrot.slane %v2096, 5
        %v2245 = vrot.slane %v2244, 4
        %v2246 = vrot.slane %v2097, 5
        %v2247 = vsel %vm1654, %v2245, %v2246
        %v2248 = vrot.slane %v2246, 4
        %v2249 = vrot.slane %v2098, 5
        %v2250 = vsel %vm1654, %v2248, %v2249
        %v2251 = vrot.slane %v2099, 5
        %v2252 = vrot.slane %v2251, 4
        %v2253 = vrot.slane %v2100, 5
        %v2254 = vsel %vm1654, %v2252, %v2253
        %v2255 = vrot.slane %v2253, 4
        %v2256 = vrot.slane %v2101, 5
        %v2257 = vsel %vm1654, %v2255, %v2256
        %v2258 = vrot.slane %v2102, 5
        %v2259 = vrot.slane %v2258, 4
        %v2260 = vrot.slane %v2103, 5
        %v2261 = vsel %vm1654, %v2259, %v2260
        %v2262 = vrot.slane %v2260, 4
        %v2263 = vrot.slane %v2104, 5
        %v2264 = vsel %vm1654, %v2262, %v2263
        %v2265 = vunpack.c.l.b16 %v2156
        %v2266 = vunpack.c.l.b16 %v2159
        %v2267 = vunpack.c.l.b16 %v2163
        %v2268 = vunpack.c.l.b16 %v2166
        %v2269 = vunpack.c.l.b16 %v2170
        %v2270 = vunpack.c.l.b16 %v2173
        %v2271 = vunpack.c.l.b16 %v2177
        %v2272 = vunpack.c.l.b16 %v2180
        %v2273 = vunpack.c.l.b16 %v2184
        %v2274 = vunpack.c.l.b16 %v2187
        %v2275 = vunpack.c.l.b16 %v2191
        %v2276 = vunpack.c.l.b16 %v2194
        %v2277 = vunpack.c.l.b16 %v2198
        %v2278 = vunpack.c.l.b16 %v2201
        %v2279 = vunpack.c.l.b16 %v2205
        %v2280 = vunpack.c.l.b16 %v2208
        %v2281 = vunpack.c.l.b16 %v2212
        %v2282 = vunpack.c.l.b16 %v2215
        %v2283 = vunpack.c.l.b16 %v2219
        %v2284 = vunpack.c.l.b16 %v2222
        %v2285 = vunpack.c.l.b16 %v2226
        %v2286 = vunpack.c.l.b16 %v2229
        %v2287 = vunpack.c.l.b16 %v2233
        %v2288 = vunpack.c.l.b16 %v2236
        %v2289 = vunpack.c.l.b16 %v2240
        %v2290 = vunpack.c.l.b16 %v2243
        %v2291 = vunpack.c.l.b16 %v2247
        %v2292 = vunpack.c.l.b16 %v2250
        %v2293 = vunpack.c.l.b16 %v2254
        %v2294 = vunpack.c.l.b16 %v2257
        %v2295 = vunpack.c.l.b16 %v2261
        %v2296 = vunpack.c.l.b16 %v2264
        %v2297 = vpack.c.b16 %v2266, %v2265
        %v2298 = vpack.c.b16 %v2268, %v2267
        %v2299 = vpack.c.b16 %v2270, %v2269
        %v2300 = vpack.c.b16 %v2272, %v2271
        %v2301 = vpack.c.b16 %v2274, %v2273
        %v2302 = vpack.c.b16 %v2276, %v2275
        %v2303 = vpack.c.b16 %v2278, %v2277
        %v2304 = vpack.c.b16 %v2280, %v2279
        %v2305 = vpack.c.b16 %v2282, %v2281
        %v2306 = vpack.c.b16 %v2284, %v2283
        %v2307 = vpack.c.b16 %v2286, %v2285
        %v2308 = vpack.c.b16 %v2288, %v2287
        %v2309 = vpack.c.b16 %v2290, %v2289
        %v2310 = vpack.c.b16 %v2292, %v2291
        %v2311 = vpack.c.b16 %v2294, %v2293
        %v2312 = vpack.c.b16 %v2296, %v2295
        %2313 = vrot.lane.b32.xlu0 %v2297, 20
        %v2314 = vpop.permute.xlu0 %2313
        %2315 = vrot.lane.b32.xlu0 %v2298, 20
        %v2316 = vpop.permute.xlu0 %2315
        %2317 = vrot.lane.b32.xlu0 %v2299, 20
        %v2318 = vpop.permute.xlu0 %2317
        %2319 = vrot.lane.b32.xlu0 %v2300, 20
        %v2320 = vpop.permute.xlu0 %2319
        %2321 = vrot.lane.b32.xlu0 %v2301, 20
        %v2322 = vpop.permute.xlu0 %2321
        %2323 = vrot.lane.b32.xlu0 %v2302, 20
        %v2324 = vpop.permute.xlu0 %2323
        %2325 = vrot.lane.b32.xlu0 %v2303, 20
        %v2326 = vpop.permute.xlu0 %2325
        %2327 = vrot.lane.b32.xlu0 %v2304, 20
        %v2328 = vpop.permute.xlu0 %2327
        %2329 = vrot.lane.b32.xlu0 %v2305, 20
        %v2330 = vpop.permute.xlu0 %2329
        %2331 = vrot.lane.b32.xlu0 %v2306, 20
        %v2332 = vpop.permute.xlu0 %2331
        %2333 = vrot.lane.b32.xlu0 %v2307, 20
        %v2334 = vpop.permute.xlu0 %2333
        %2335 = vrot.lane.b32.xlu0 %v2308, 20
        %v2336 = vpop.permute.xlu0 %2335
        %2337 = vrot.lane.b32.xlu0 %v2309, 20
        %v2338 = vpop.permute.xlu0 %2337
        %2339 = vrot.lane.b32.xlu0 %v2310, 20
        %v2340 = vpop.permute.xlu0 %2339
        %2341 = vrot.lane.b32.xlu0 %v2311, 20
        %v2342 = vpop.permute.xlu0 %2341
        %2343 = vrot.lane.b32.xlu0 %v2312, 20
        %v2344 = vpop.permute.xlu0 %2343
        %vm2361 = vcmask 195744
        %2362 = vst.msk [vmem:[#allocation2] sm:$0xff] %vm2361, %v2314
        %2363 = vst.msk [vmem:[#allocation2 + $0x8] sm:$0xff] %vm2361, %v2316
        %2364 = vst.msk [vmem:[#allocation2 + $0x10] sm:$0xff] %vm2361, %v2318
        %2365 = vst.msk [vmem:[#allocation2 + $0x18] sm:$0xff] %vm2361, %v2320
        %2366 = vst.msk [vmem:[#allocation2 + $0x20] sm:$0xff] %vm2361, %v2322
        %2367 = vst.msk [vmem:[#allocation2 + $0x28] sm:$0xff] %vm2361, %v2324
        %2368 = vst.msk [vmem:[#allocation2 + $0x30] sm:$0xff] %vm2361, %v2326
        %2369 = vst.msk [vmem:[#allocation2 + $0x38] sm:$0xff] %vm2361, %v2328
        %2370 = vst.msk [vmem:[#allocation2 + $0x40] sm:$0xff] %vm2361, %v2330
        %2371 = vst.msk [vmem:[#allocation2 + $0x48] sm:$0xff] %vm2361, %v2332
        %2372 = vst.msk [vmem:[#allocation2 + $0x50] sm:$0xff] %vm2361, %v2334
        %2373 = vst.msk [vmem:[#allocation2 + $0x58] sm:$0xff] %vm2361, %v2336
        %2374 = vst.msk [vmem:[#allocation2 + $0x60] sm:$0xff] %vm2361, %v2338
        %2375 = vst.msk [vmem:[#allocation2 + $0x68] sm:$0xff] %vm2361, %v2340
        %2376 = vst.msk [vmem:[#allocation2 + $0x70] sm:$0xff] %vm2361, %v2342
        %2377 = vst.msk [vmem:[#allocation2 + $0x78] sm:$0xff] %vm2361, %v2344
        %s2378 = sadd.s32 %s310, 2
        %s2379 = smul.u32 %s2378, 3
        %s2380 = smul.addr %s2379, 4
        %s2381 = scalar_lea.vmem %s290, %s2380
        %v2382 = vld [vmem:[%s2381] sm:$0xf]
        %v2383 = vld [vmem:[%s2381 + $0x4] sm:$0xf]
        %v2384 = vld [vmem:[%s2381 + $0xc] sm:$0xf]
        %v2385 = vld [vmem:[%s2381 + $0x10] sm:$0xf]
        %v2386 = vld [vmem:[%s2381 + $0x18] sm:$0xf]
        %v2387 = vld [vmem:[%s2381 + $0x1c] sm:$0xf]
        %v2388 = vld [vmem:[%s2381 + $0x24] sm:$0xf]
        %v2389 = vld [vmem:[%s2381 + $0x28] sm:$0xf]
        %v2390 = vld [vmem:[%s2381 + $0x30] sm:$0xf]
        %v2391 = vld [vmem:[%s2381 + $0x34] sm:$0xf]
        %v2392 = vld [vmem:[%s2381 + $0x3c] sm:$0xf]
        %v2393 = vld [vmem:[%s2381 + $0x40] sm:$0xf]
        %v2394 = vld [vmem:[%s2381 + $0x48] sm:$0xf]
        %v2395 = vld [vmem:[%s2381 + $0x4c] sm:$0xf]
        %v2396 = vld [vmem:[%s2381 + $0x54] sm:$0xf]
        %v2397 = vld [vmem:[%s2381 + $0x58] sm:$0xf]
        %v2398 = vld [vmem:[%s2381 + $0x60] sm:$0xf]
        %v2399 = vld [vmem:[%s2381 + $0x64] sm:$0xf]
        %v2400 = vld [vmem:[%s2381 + $0x6c] sm:$0xf]
        %v2401 = vld [vmem:[%s2381 + $0x70] sm:$0xf]
        %v2402 = vld [vmem:[%s2381 + $0x78] sm:$0xf]
        %v2403 = vld [vmem:[%s2381 + $0x7c] sm:$0xf]
        %v2404 = vld [vmem:[%s2381 + $0x84] sm:$0xf]
        %v2405 = vld [vmem:[%s2381 + $0x88] sm:$0xf]
        %v2406 = vld [vmem:[%s2381 + $0x90] sm:$0xf]
        %v2407 = vld [vmem:[%s2381 + $0x94] sm:$0xf]
        %v2408 = vld [vmem:[%s2381 + $0x9c] sm:$0xf]
        %v2409 = vld [vmem:[%s2381 + $0xa0] sm:$0xf]
        %v2410 = vld [vmem:[%s2381 + $0xa8] sm:$0xf]
        %v2411 = vld [vmem:[%s2381 + $0xac] sm:$0xf]
        %v2412 = vld [vmem:[%s2381 + $0xb4] sm:$0xf]
        %v2413 = vld [vmem:[%s2381 + $0xb8] sm:$0xf]
        %v2446 = vunpack.c.l.b16 %v2382
        %v2447 = vunpack.c.l.b16 %v2383
        %v2448 = vunpack.c.l.b16 %v2384
        %v2449 = vunpack.c.l.b16 %v2385
        %v2450 = vunpack.c.l.b16 %v2386
        %v2451 = vunpack.c.l.b16 %v2387
        %v2452 = vunpack.c.l.b16 %v2388
        %v2453 = vunpack.c.l.b16 %v2389
        %v2454 = vunpack.c.l.b16 %v2390
        %v2455 = vunpack.c.l.b16 %v2391
        %v2456 = vunpack.c.l.b16 %v2392
        %v2457 = vunpack.c.l.b16 %v2393
        %v2458 = vunpack.c.l.b16 %v2394
        %v2459 = vunpack.c.l.b16 %v2395
        %v2460 = vunpack.c.l.b16 %v2396
        %v2461 = vunpack.c.l.b16 %v2397
        %v2462 = vunpack.c.l.b16 %v2398
        %v2463 = vunpack.c.l.b16 %v2399
        %v2464 = vunpack.c.l.b16 %v2400
        %v2465 = vunpack.c.l.b16 %v2401
        %v2466 = vunpack.c.l.b16 %v2402
        %v2467 = vunpack.c.l.b16 %v2403
        %v2468 = vunpack.c.l.b16 %v2404
        %v2469 = vunpack.c.l.b16 %v2405
        %v2470 = vunpack.c.l.b16 %v2406
        %v2471 = vunpack.c.l.b16 %v2407
        %v2472 = vunpack.c.l.b16 %v2408
        %v2473 = vunpack.c.l.b16 %v2409
        %v2474 = vunpack.c.l.b16 %v2410
        %v2475 = vunpack.c.l.b16 %v2411
        %v2476 = vunpack.c.l.b16 %v2412
        %v2477 = vunpack.c.l.b16 %v2413
        %v2478 = vpack.c.b16 %v2447, %v2446
        %v2479 = vpack.c.b16 %v2449, %v2448
        %v2480 = vpack.c.b16 %v2451, %v2450
        %v2481 = vpack.c.b16 %v2453, %v2452
        %v2482 = vpack.c.b16 %v2455, %v2454
        %v2483 = vpack.c.b16 %v2457, %v2456
        %v2484 = vpack.c.b16 %v2459, %v2458
        %v2485 = vpack.c.b16 %v2461, %v2460
        %v2486 = vpack.c.b16 %v2463, %v2462
        %v2487 = vpack.c.b16 %v2465, %v2464
        %v2488 = vpack.c.b16 %v2467, %v2466
        %v2489 = vpack.c.b16 %v2469, %v2468
        %v2490 = vpack.c.b16 %v2471, %v2470
        %v2491 = vpack.c.b16 %v2473, %v2472
        %v2492 = vpack.c.b16 %v2475, %v2474
        %v2493 = vpack.c.b16 %v2477, %v2476
        %2494 = vrot.lane.b32.xlu0 %v2478, 24
        %v2495 = vpop.permute.xlu0 %2494
        %2496 = vrot.lane.b32.xlu0 %v2479, 24
        %v2497 = vpop.permute.xlu0 %2496
        %2498 = vrot.lane.b32.xlu0 %v2480, 24
        %v2499 = vpop.permute.xlu0 %2498
        %2500 = vrot.lane.b32.xlu0 %v2481, 24
        %v2501 = vpop.permute.xlu0 %2500
        %2502 = vrot.lane.b32.xlu0 %v2482, 24
        %v2503 = vpop.permute.xlu0 %2502
        %2504 = vrot.lane.b32.xlu0 %v2483, 24
        %v2505 = vpop.permute.xlu0 %2504
        %2506 = vrot.lane.b32.xlu0 %v2484, 24
        %v2507 = vpop.permute.xlu0 %2506
        %2508 = vrot.lane.b32.xlu0 %v2485, 24
        %v2509 = vpop.permute.xlu0 %2508
        %2510 = vrot.lane.b32.xlu0 %v2486, 24
        %v2511 = vpop.permute.xlu0 %2510
        %2512 = vrot.lane.b32.xlu0 %v2487, 24
        %v2513 = vpop.permute.xlu0 %2512
        %2514 = vrot.lane.b32.xlu0 %v2488, 24
        %v2515 = vpop.permute.xlu0 %2514
        %2516 = vrot.lane.b32.xlu0 %v2489, 24
        %v2517 = vpop.permute.xlu0 %2516
        %2518 = vrot.lane.b32.xlu0 %v2490, 24
        %v2519 = vpop.permute.xlu0 %2518
        %2520 = vrot.lane.b32.xlu0 %v2491, 24
        %v2521 = vpop.permute.xlu0 %2520
        %2522 = vrot.lane.b32.xlu0 %v2492, 24
        %v2523 = vpop.permute.xlu0 %2522
        %2524 = vrot.lane.b32.xlu0 %v2493, 24
        %v2525 = vpop.permute.xlu0 %2524
        %vm2542 = vcmask 228544
        %2543 = vst.msk [vmem:[#allocation2] sm:$0xff] %vm2542, %v2495
        %2544 = vst.msk [vmem:[#allocation2 + $0x8] sm:$0xff] %vm2542, %v2497
        %2545 = vst.msk [vmem:[#allocation2 + $0x10] sm:$0xff] %vm2542, %v2499
        %2546 = vst.msk [vmem:[#allocation2 + $0x18] sm:$0xff] %vm2542, %v2501
        %2547 = vst.msk [vmem:[#allocation2 + $0x20] sm:$0xff] %vm2542, %v2503
        %2548 = vst.msk [vmem:[#allocation2 + $0x28] sm:$0xff] %vm2542, %v2505
        %2549 = vst.msk [vmem:[#allocation2 + $0x30] sm:$0xff] %vm2542, %v2507
        %2550 = vst.msk [vmem:[#allocation2 + $0x38] sm:$0xff] %vm2542, %v2509
        %2551 = vst.msk [vmem:[#allocation2 + $0x40] sm:$0xff] %vm2542, %v2511
        %2552 = vst.msk [vmem:[#allocation2 + $0x48] sm:$0xff] %vm2542, %v2513
        %2553 = vst.msk [vmem:[#allocation2 + $0x50] sm:$0xff] %vm2542, %v2515
        %2554 = vst.msk [vmem:[#allocation2 + $0x58] sm:$0xff] %vm2542, %v2517
        %2555 = vst.msk [vmem:[#allocation2 + $0x60] sm:$0xff] %vm2542, %v2519
        %2556 = vst.msk [vmem:[#allocation2 + $0x68] sm:$0xff] %vm2542, %v2521
        %2557 = vst.msk [vmem:[#allocation2 + $0x70] sm:$0xff] %vm2542, %v2523
        %2558 = vst.msk [vmem:[#allocation2 + $0x78] sm:$0xff] %vm2542, %v2525
        %v2559 = vld [vmem:[%s2381] sm:$0xf]
        %v2560 = vld [vmem:[%s2381 + $0x4] sm:$0xf]
        %v2561 = vld [vmem:[%s2381 + $0x8] sm:$0x1]
        %v2562 = vld [vmem:[%s2381 + $0xc] sm:$0xf]
        %v2563 = vld [vmem:[%s2381 + $0x10] sm:$0xf]
        %v2564 = vld [vmem:[%s2381 + $0x14] sm:$0x1]
        %v2565 = vld [vmem:[%s2381 + $0x18] sm:$0xf]
        %v2566 = vld [vmem:[%s2381 + $0x1c] sm:$0xf]
        %v2567 = vld [vmem:[%s2381 + $0x20] sm:$0x1]
        %v2568 = vld [vmem:[%s2381 + $0x24] sm:$0xf]
        %v2569 = vld [vmem:[%s2381 + $0x28] sm:$0xf]
        %v2570 = vld [vmem:[%s2381 + $0x2c] sm:$0x1]
        %v2571 = vld [vmem:[%s2381 + $0x30] sm:$0xf]
        %v2572 = vld [vmem:[%s2381 + $0x34] sm:$0xf]
        %v2573 = vld [vmem:[%s2381 + $0x38] sm:$0x1]
        %v2574 = vld [vmem:[%s2381 + $0x3c] sm:$0xf]
        %v2575 = vld [vmem:[%s2381 + $0x40] sm:$0xf]
        %v2576 = vld [vmem:[%s2381 + $0x44] sm:$0x1]
        %v2577 = vld [vmem:[%s2381 + $0x48] sm:$0xf]
        %v2578 = vld [vmem:[%s2381 + $0x4c] sm:$0xf]
        %v2579 = vld [vmem:[%s2381 + $0x50] sm:$0x1]
        %v2580 = vld [vmem:[%s2381 + $0x54] sm:$0xf]
        %v2581 = vld [vmem:[%s2381 + $0x58] sm:$0xf]
        %v2582 = vld [vmem:[%s2381 + $0x5c] sm:$0x1]
        %v2583 = vld [vmem:[%s2381 + $0x60] sm:$0xf]
        %v2584 = vld [vmem:[%s2381 + $0x64] sm:$0xf]
        %v2585 = vld [vmem:[%s2381 + $0x68] sm:$0x1]
        %v2586 = vld [vmem:[%s2381 + $0x6c] sm:$0xf]
        %v2587 = vld [vmem:[%s2381 + $0x70] sm:$0xf]
        %v2588 = vld [vmem:[%s2381 + $0x74] sm:$0x1]
        %v2589 = vld [vmem:[%s2381 + $0x78] sm:$0xf]
        %v2590 = vld [vmem:[%s2381 + $0x7c] sm:$0xf]
        %v2591 = vld [vmem:[%s2381 + $0x80] sm:$0x1]
        %v2592 = vld [vmem:[%s2381 + $0x84] sm:$0xf]
        %v2593 = vld [vmem:[%s2381 + $0x88] sm:$0xf]
        %v2594 = vld [vmem:[%s2381 + $0x8c] sm:$0x1]
        %v2595 = vld [vmem:[%s2381 + $0x90] sm:$0xf]
        %v2596 = vld [vmem:[%s2381 + $0x94] sm:$0xf]
        %v2597 = vld [vmem:[%s2381 + $0x98] sm:$0x1]
        %v2598 = vld [vmem:[%s2381 + $0x9c] sm:$0xf]
        %v2599 = vld [vmem:[%s2381 + $0xa0] sm:$0xf]
        %v2600 = vld [vmem:[%s2381 + $0xa4] sm:$0x1]
        %v2601 = vld [vmem:[%s2381 + $0xa8] sm:$0xf]
        %v2602 = vld [vmem:[%s2381 + $0xac] sm:$0xf]
        %v2603 = vld [vmem:[%s2381 + $0xb0] sm:$0x1]
        %v2604 = vld [vmem:[%s2381 + $0xb4] sm:$0xf]
        %v2605 = vld [vmem:[%s2381 + $0xb8] sm:$0xf]
        %v2606 = vld [vmem:[%s2381 + $0xbc] sm:$0x1]
        %v2608 = vshrl.u32 %v2559, 16
        %v2610 = vrot.slane %v2608, 4
        %v2611 = vshll.u32 %v2559, 16
        %v2613 = vrot.slane %v2611, 5
        %v2614 = vor.u32 %v2610, %v2613
        %v2615 = vrot.slane %v2614, 4
        %v2617 = vshll.u32 %v2560, 16
        %v2619 = vrot.slane %v2617, 5
        %v2620 = vsel %vm365, %v2615, %v2619
        %v2621 = vshrl.u32 %v2560, 16
        %v2623 = vrot.slane %v2621, 4
        %v2624 = vor.u32 %v2623, %v2619
        %v2625 = vrot.slane %v2624, 4
        %v2627 = vshll.u32 %v2561, 16
        %v2629 = vrot.slane %v2627, 5
        %v2630 = vsel %vm365, %v2625, %v2629
        %v2632 = vshrl.u32 %v2562, 16
        %v2634 = vrot.slane %v2632, 4
        %v2635 = vshll.u32 %v2562, 16
        %v2637 = vrot.slane %v2635, 5
        %v2638 = vor.u32 %v2634, %v2637
        %v2639 = vrot.slane %v2638, 4
        %v2641 = vshll.u32 %v2563, 16
        %v2643 = vrot.slane %v2641, 5
        %v2644 = vsel %vm365, %v2639, %v2643
        %v2645 = vshrl.u32 %v2563, 16
        %v2647 = vrot.slane %v2645, 4
        %v2648 = vor.u32 %v2647, %v2643
        %v2649 = vrot.slane %v2648, 4
        %v2651 = vshll.u32 %v2564, 16
        %v2653 = vrot.slane %v2651, 5
        %v2654 = vsel %vm365, %v2649, %v2653
        %v2656 = vshrl.u32 %v2565, 16
        %v2658 = vrot.slane %v2656, 4
        %v2659 = vshll.u32 %v2565, 16
        %v2661 = vrot.slane %v2659, 5
        %v2662 = vor.u32 %v2658, %v2661
        %v2663 = vrot.slane %v2662, 4
        %v2665 = vshll.u32 %v2566, 16
        %v2667 = vrot.slane %v2665, 5
        %v2668 = vsel %vm365, %v2663, %v2667
        %v2669 = vshrl.u32 %v2566, 16
        %v2671 = vrot.slane %v2669, 4
        %v2672 = vor.u32 %v2671, %v2667
        %v2673 = vrot.slane %v2672, 4
        %v2675 = vshll.u32 %v2567, 16
        %v2677 = vrot.slane %v2675, 5
        %v2678 = vsel %vm365, %v2673, %v2677
        %v2680 = vshrl.u32 %v2568, 16
        %v2682 = vrot.slane %v2680, 4
        %v2683 = vshll.u32 %v2568, 16
        %v2685 = vrot.slane %v2683, 5
        %v2686 = vor.u32 %v2682, %v2685
        %v2687 = vrot.slane %v2686, 4
        %v2689 = vshll.u32 %v2569, 16
        %v2691 = vrot.slane %v2689, 5
        %v2692 = vsel %vm365, %v2687, %v2691
        %v2693 = vshrl.u32 %v2569, 16
        %v2695 = vrot.slane %v2693, 4
        %v2696 = vor.u32 %v2695, %v2691
        %v2697 = vrot.slane %v2696, 4
        %v2699 = vshll.u32 %v2570, 16
        %v2701 = vrot.slane %v2699, 5
        %v2702 = vsel %vm365, %v2697, %v2701
        %v2704 = vshrl.u32 %v2571, 16
        %v2706 = vrot.slane %v2704, 4
        %v2707 = vshll.u32 %v2571, 16
        %v2709 = vrot.slane %v2707, 5
        %v2710 = vor.u32 %v2706, %v2709
        %v2711 = vrot.slane %v2710, 4
        %v2713 = vshll.u32 %v2572, 16
        %v2715 = vrot.slane %v2713, 5
        %v2716 = vsel %vm365, %v2711, %v2715
        %v2717 = vshrl.u32 %v2572, 16
        %v2719 = vrot.slane %v2717, 4
        %v2720 = vor.u32 %v2719, %v2715
        %v2721 = vrot.slane %v2720, 4
        %v2723 = vshll.u32 %v2573, 16
        %v2725 = vrot.slane %v2723, 5
        %v2726 = vsel %vm365, %v2721, %v2725
        %v2728 = vshrl.u32 %v2574, 16
        %v2730 = vrot.slane %v2728, 4
        %v2731 = vshll.u32 %v2574, 16
        %v2733 = vrot.slane %v2731, 5
        %v2734 = vor.u32 %v2730, %v2733
        %v2735 = vrot.slane %v2734, 4
        %v2737 = vshll.u32 %v2575, 16
        %v2739 = vrot.slane %v2737, 5
        %v2740 = vsel %vm365, %v2735, %v2739
        %v2741 = vshrl.u32 %v2575, 16
        %v2743 = vrot.slane %v2741, 4
        %v2744 = vor.u32 %v2743, %v2739
        %v2745 = vrot.slane %v2744, 4
        %v2747 = vshll.u32 %v2576, 16
        %v2749 = vrot.slane %v2747, 5
        %v2750 = vsel %vm365, %v2745, %v2749
        %v2752 = vshrl.u32 %v2577, 16
        %v2754 = vrot.slane %v2752, 4
        %v2755 = vshll.u32 %v2577, 16
        %v2757 = vrot.slane %v2755, 5
        %v2758 = vor.u32 %v2754, %v2757
        %v2759 = vrot.slane %v2758, 4
        %v2761 = vshll.u32 %v2578, 16
        %v2763 = vrot.slane %v2761, 5
        %v2764 = vsel %vm365, %v2759, %v2763
        %v2765 = vshrl.u32 %v2578, 16
        %v2767 = vrot.slane %v2765, 4
        %v2768 = vor.u32 %v2767, %v2763
        %v2769 = vrot.slane %v2768, 4
        %v2771 = vshll.u32 %v2579, 16
        %v2773 = vrot.slane %v2771, 5
        %v2774 = vsel %vm365, %v2769, %v2773
        %v2776 = vshrl.u32 %v2580, 16
        %v2778 = vrot.slane %v2776, 4
        %v2779 = vshll.u32 %v2580, 16
        %v2781 = vrot.slane %v2779, 5
        %v2782 = vor.u32 %v2778, %v2781
        %v2783 = vrot.slane %v2782, 4
        %v2785 = vshll.u32 %v2581, 16
        %v2787 = vrot.slane %v2785, 5
        %v2788 = vsel %vm365, %v2783, %v2787
        %v2789 = vshrl.u32 %v2581, 16
        %v2791 = vrot.slane %v2789, 4
        %v2792 = vor.u32 %v2791, %v2787
        %v2793 = vrot.slane %v2792, 4
        %v2795 = vshll.u32 %v2582, 16
        %v2797 = vrot.slane %v2795, 5
        %v2798 = vsel %vm365, %v2793, %v2797
        %v2800 = vshrl.u32 %v2583, 16
        %v2802 = vrot.slane %v2800, 4
        %v2803 = vshll.u32 %v2583, 16
        %v2805 = vrot.slane %v2803, 5
        %v2806 = vor.u32 %v2802, %v2805
        %v2807 = vrot.slane %v2806, 4
        %v2809 = vshll.u32 %v2584, 16
        %v2811 = vrot.slane %v2809, 5
        %v2812 = vsel %vm365, %v2807, %v2811
        %v2813 = vshrl.u32 %v2584, 16
        %v2815 = vrot.slane %v2813, 4
        %v2816 = vor.u32 %v2815, %v2811
        %v2817 = vrot.slane %v2816, 4
        %v2819 = vshll.u32 %v2585, 16
        %v2821 = vrot.slane %v2819, 5
        %v2822 = vsel %vm365, %v2817, %v2821
        %v2824 = vshrl.u32 %v2586, 16
        %v2826 = vrot.slane %v2824, 4
        %v2827 = vshll.u32 %v2586, 16
        %v2829 = vrot.slane %v2827, 5
        %v2830 = vor.u32 %v2826, %v2829
        %v2831 = vrot.slane %v2830, 4
        %v2833 = vshll.u32 %v2587, 16
        %v2835 = vrot.slane %v2833, 5
        %v2836 = vsel %vm365, %v2831, %v2835
        %v2837 = vshrl.u32 %v2587, 16
        %v2839 = vrot.slane %v2837, 4
        %v2840 = vor.u32 %v2839, %v2835
        %v2841 = vrot.slane %v2840, 4
        %v2843 = vshll.u32 %v2588, 16
        %v2845 = vrot.slane %v2843, 5
        %v2846 = vsel %vm365, %v2841, %v2845
        %v2848 = vshrl.u32 %v2589, 16
        %v2850 = vrot.slane %v2848, 4
        %v2851 = vshll.u32 %v2589, 16
        %v2853 = vrot.slane %v2851, 5
        %v2854 = vor.u32 %v2850, %v2853
        %v2855 = vrot.slane %v2854, 4
        %v2857 = vshll.u32 %v2590, 16
        %v2859 = vrot.slane %v2857, 5
        %v2860 = vsel %vm365, %v2855, %v2859
        %v2861 = vshrl.u32 %v2590, 16
        %v2863 = vrot.slane %v2861, 4
        %v2864 = vor.u32 %v2863, %v2859
        %v2865 = vrot.slane %v2864, 4
        %v2867 = vshll.u32 %v2591, 16
        %v2869 = vrot.slane %v2867, 5
        %v2870 = vsel %vm365, %v2865, %v2869
        %v2872 = vshrl.u32 %v2592, 16
        %v2874 = vrot.slane %v2872, 4
        %v2875 = vshll.u32 %v2592, 16
        %v2877 = vrot.slane %v2875, 5
        %v2878 = vor.u32 %v2874, %v2877
        %v2879 = vrot.slane %v2878, 4
        %v2881 = vshll.u32 %v2593, 16
        %v2883 = vrot.slane %v2881, 5
        %v2884 = vsel %vm365, %v2879, %v2883
        %v2885 = vshrl.u32 %v2593, 16
        %v2887 = vrot.slane %v2885, 4
        %v2888 = vor.u32 %v2887, %v2883
        %v2889 = vrot.slane %v2888, 4
        %v2891 = vshll.u32 %v2594, 16
        %v2893 = vrot.slane %v2891, 5
        %v2894 = vsel %vm365, %v2889, %v2893
        %v2896 = vshrl.u32 %v2595, 16
        %v2898 = vrot.slane %v2896, 4
        %v2899 = vshll.u32 %v2595, 16
        %v2901 = vrot.slane %v2899, 5
        %v2902 = vor.u32 %v2898, %v2901
        %v2903 = vrot.slane %v2902, 4
        %v2905 = vshll.u32 %v2596, 16
        %v2907 = vrot.slane %v2905, 5
        %v2908 = vsel %vm365, %v2903, %v2907
        %v2909 = vshrl.u32 %v2596, 16
        %v2911 = vrot.slane %v2909, 4
        %v2912 = vor.u32 %v2911, %v2907
        %v2913 = vrot.slane %v2912, 4
        %v2915 = vshll.u32 %v2597, 16
        %v2917 = vrot.slane %v2915, 5
        %v2918 = vsel %vm365, %v2913, %v2917
        %v2920 = vshrl.u32 %v2598, 16
        %v2922 = vrot.slane %v2920, 4
        %v2923 = vshll.u32 %v2598, 16
        %v2925 = vrot.slane %v2923, 5
        %v2926 = vor.u32 %v2922, %v2925
        %v2927 = vrot.slane %v2926, 4
        %v2929 = vshll.u32 %v2599, 16
        %v2931 = vrot.slane %v2929, 5
        %v2932 = vsel %vm365, %v2927, %v2931
        %v2933 = vshrl.u32 %v2599, 16
        %v2935 = vrot.slane %v2933, 4
        %v2936 = vor.u32 %v2935, %v2931
        %v2937 = vrot.slane %v2936, 4
        %v2939 = vshll.u32 %v2600, 16
        %v2941 = vrot.slane %v2939, 5
        %v2942 = vsel %vm365, %v2937, %v2941
        %v2944 = vshrl.u32 %v2601, 16
        %v2946 = vrot.slane %v2944, 4
        %v2947 = vshll.u32 %v2601, 16
        %v2949 = vrot.slane %v2947, 5
        %v2950 = vor.u32 %v2946, %v2949
        %v2951 = vrot.slane %v2950, 4
        %v2953 = vshll.u32 %v2602, 16
        %v2955 = vrot.slane %v2953, 5
        %v2956 = vsel %vm365, %v2951, %v2955
        %v2957 = vshrl.u32 %v2602, 16
        %v2959 = vrot.slane %v2957, 4
        %v2960 = vor.u32 %v2959, %v2955
        %v2961 = vrot.slane %v2960, 4
        %v2963 = vshll.u32 %v2603, 16
        %v2965 = vrot.slane %v2963, 5
        %v2966 = vsel %vm365, %v2961, %v2965
        %v2968 = vshrl.u32 %v2604, 16
        %v2970 = vrot.slane %v2968, 4
        %v2971 = vshll.u32 %v2604, 16
        %v2973 = vrot.slane %v2971, 5
        %v2974 = vor.u32 %v2970, %v2973
        %v2975 = vrot.slane %v2974, 4
        %v2977 = vshll.u32 %v2605, 16
        %v2979 = vrot.slane %v2977, 5
        %v2980 = vsel %vm365, %v2975, %v2979
        %v2981 = vshrl.u32 %v2605, 16
        %v2983 = vrot.slane %v2981, 4
        %v2984 = vor.u32 %v2983, %v2979
        %v2985 = vrot.slane %v2984, 4
        %v2987 = vshll.u32 %v2606, 16
        %v2989 = vrot.slane %v2987, 5
        %v2990 = vsel %vm365, %v2985, %v2989
        %v2991 = vunpack.c.l.b16 %v2620
        %v2992 = vunpack.c.l.b16 %v2630
        %v2993 = vunpack.c.l.b16 %v2644
        %v2994 = vunpack.c.l.b16 %v2654
        %v2995 = vunpack.c.l.b16 %v2668
        %v2996 = vunpack.c.l.b16 %v2678
        %v2997 = vunpack.c.l.b16 %v2692
        %v2998 = vunpack.c.l.b16 %v2702
        %v2999 = vunpack.c.l.b16 %v2716
        %v3000 = vunpack.c.l.b16 %v2726
        %v3001 = vunpack.c.l.b16 %v2740
        %v3002 = vunpack.c.l.b16 %v2750
        %v3003 = vunpack.c.l.b16 %v2764
        %v3004 = vunpack.c.l.b16 %v2774
        %v3005 = vunpack.c.l.b16 %v2788
        %v3006 = vunpack.c.l.b16 %v2798
        %v3007 = vunpack.c.l.b16 %v2812
        %v3008 = vunpack.c.l.b16 %v2822
        %v3009 = vunpack.c.l.b16 %v2836
        %v3010 = vunpack.c.l.b16 %v2846
        %v3011 = vunpack.c.l.b16 %v2860
        %v3012 = vunpack.c.l.b16 %v2870
        %v3013 = vunpack.c.l.b16 %v2884
        %v3014 = vunpack.c.l.b16 %v2894
        %v3015 = vunpack.c.l.b16 %v2908
        %v3016 = vunpack.c.l.b16 %v2918
        %v3017 = vunpack.c.l.b16 %v2932
        %v3018 = vunpack.c.l.b16 %v2942
        %v3019 = vunpack.c.l.b16 %v2956
        %v3020 = vunpack.c.l.b16 %v2966
        %v3021 = vunpack.c.l.b16 %v2980
        %v3022 = vunpack.c.l.b16 %v2990
        %v3023 = vpack.c.b16 %v2992, %v2991
        %v3024 = vpack.c.b16 %v2994, %v2993
        %v3025 = vpack.c.b16 %v2996, %v2995
        %v3026 = vpack.c.b16 %v2998, %v2997
        %v3027 = vpack.c.b16 %v3000, %v2999
        %v3028 = vpack.c.b16 %v3002, %v3001
        %v3029 = vpack.c.b16 %v3004, %v3003
        %v3030 = vpack.c.b16 %v3006, %v3005
        %v3031 = vpack.c.b16 %v3008, %v3007
        %v3032 = vpack.c.b16 %v3010, %v3009
        %v3033 = vpack.c.b16 %v3012, %v3011
        %v3034 = vpack.c.b16 %v3014, %v3013
        %v3035 = vpack.c.b16 %v3016, %v3015
        %v3036 = vpack.c.b16 %v3018, %v3017
        %v3037 = vpack.c.b16 %v3020, %v3019
        %v3038 = vpack.c.b16 %v3022, %v3021
        %3039 = vrot.lane.b32.xlu0 %v3023, 28
        %v3040 = vpop.permute.xlu0 %3039
        %3041 = vrot.lane.b32.xlu0 %v3024, 28
        %v3042 = vpop.permute.xlu0 %3041
        %3043 = vrot.lane.b32.xlu0 %v3025, 28
        %v3044 = vpop.permute.xlu0 %3043
        %3045 = vrot.lane.b32.xlu0 %v3026, 28
        %v3046 = vpop.permute.xlu0 %3045
        %3047 = vrot.lane.b32.xlu0 %v3027, 28
        %v3048 = vpop.permute.xlu0 %3047
        %3049 = vrot.lane.b32.xlu0 %v3028, 28
        %v3050 = vpop.permute.xlu0 %3049
        %3051 = vrot.lane.b32.xlu0 %v3029, 28
        %v3052 = vpop.permute.xlu0 %3051
        %3053 = vrot.lane.b32.xlu0 %v3030, 28
        %v3054 = vpop.permute.xlu0 %3053
        %3055 = vrot.lane.b32.xlu0 %v3031, 28
        %v3056 = vpop.permute.xlu0 %3055
        %3057 = vrot.lane.b32.xlu0 %v3032, 28
        %v3058 = vpop.permute.xlu0 %3057
        %3059 = vrot.lane.b32.xlu0 %v3033, 28
        %v3060 = vpop.permute.xlu0 %3059
        %3061 = vrot.lane.b32.xlu0 %v3034, 28
        %v3062 = vpop.permute.xlu0 %3061
        %3063 = vrot.lane.b32.xlu0 %v3035, 28
        %v3064 = vpop.permute.xlu0 %3063
        %3065 = vrot.lane.b32.xlu0 %v3036, 28
        %v3066 = vpop.permute.xlu0 %3065
        %3067 = vrot.lane.b32.xlu0 %v3037, 28
        %v3068 = vpop.permute.xlu0 %3067
        %3069 = vrot.lane.b32.xlu0 %v3038, 28
        %v3070 = vpop.permute.xlu0 %3069
        %vm3087 = vcmask 261344
        %3088 = vst.msk [vmem:[#allocation2] sm:$0xff] %vm3087, %v3040
        %3089 = vst.msk [vmem:[#allocation2 + $0x8] sm:$0xff] %vm3087, %v3042
        %3090 = vst.msk [vmem:[#allocation2 + $0x10] sm:$0xff] %vm3087, %v3044
        %3091 = vst.msk [vmem:[#allocation2 + $0x18] sm:$0xff] %vm3087, %v3046
        %3092 = vst.msk [vmem:[#allocation2 + $0x20] sm:$0xff] %vm3087, %v3048
        %3093 = vst.msk [vmem:[#allocation2 + $0x28] sm:$0xff] %vm3087, %v3050
        %3094 = vst.msk [vmem:[#allocation2 + $0x30] sm:$0xff] %vm3087, %v3052
        %3095 = vst.msk [vmem:[#allocation2 + $0x38] sm:$0xff] %vm3087, %v3054
        %3096 = vst.msk [vmem:[#allocation2 + $0x40] sm:$0xff] %vm3087, %v3056
        %3097 = vst.msk [vmem:[#allocation2 + $0x48] sm:$0xff] %vm3087, %v3058
        %3098 = vst.msk [vmem:[#allocation2 + $0x50] sm:$0xff] %vm3087, %v3060
        %3099 = vst.msk [vmem:[#allocation2 + $0x58] sm:$0xff] %vm3087, %v3062
        %3100 = vst.msk [vmem:[#allocation2 + $0x60] sm:$0xff] %vm3087, %v3064
        %3101 = vst.msk [vmem:[#allocation2 + $0x68] sm:$0xff] %vm3087, %v3066
        %3102 = vst.msk [vmem:[#allocation2 + $0x70] sm:$0xff] %vm3087, %v3068
        %3103 = vst.msk [vmem:[#allocation2 + $0x78] sm:$0xff] %vm3087, %v3070
        %v3104 = vld [vmem:[%s2381] sm:$0xe]
        %v3105 = vld [vmem:[%s2381 + $0x4] sm:$0xf]
        %v3106 = vld [vmem:[%s2381 + $0x8] sm:$0x1]
        %v3107 = vld [vmem:[%s2381 + $0xc] sm:$0xe]
        %v3108 = vld [vmem:[%s2381 + $0x10] sm:$0xf]
        %v3109 = vld [vmem:[%s2381 + $0x14] sm:$0x1]
        %v3110 = vld [vmem:[%s2381 + $0x18] sm:$0xe]
        %v3111 = vld [vmem:[%s2381 + $0x1c] sm:$0xf]
        %v3112 = vld [vmem:[%s2381 + $0x20] sm:$0x1]
        %v3113 = vld [vmem:[%s2381 + $0x24] sm:$0xe]
        %v3114 = vld [vmem:[%s2381 + $0x28] sm:$0xf]
        %v3115 = vld [vmem:[%s2381 + $0x2c] sm:$0x1]
        %v3116 = vld [vmem:[%s2381 + $0x30] sm:$0xe]
        %v3117 = vld [vmem:[%s2381 + $0x34] sm:$0xf]
        %v3118 = vld [vmem:[%s2381 + $0x38] sm:$0x1]
        %v3119 = vld [vmem:[%s2381 + $0x3c] sm:$0xe]
        %v3120 = vld [vmem:[%s2381 + $0x40] sm:$0xf]
        %v3121 = vld [vmem:[%s2381 + $0x44] sm:$0x1]
        %v3122 = vld [vmem:[%s2381 + $0x48] sm:$0xe]
        %v3123 = vld [vmem:[%s2381 + $0x4c] sm:$0xf]
        %v3124 = vld [vmem:[%s2381 + $0x50] sm:$0x1]
        %v3125 = vld [vmem:[%s2381 + $0x54] sm:$0xe]
        %v3126 = vld [vmem:[%s2381 + $0x58] sm:$0xf]
        %v3127 = vld [vmem:[%s2381 + $0x5c] sm:$0x1]
        %v3128 = vld [vmem:[%s2381 + $0x60] sm:$0xe]
        %v3129 = vld [vmem:[%s2381 + $0x64] sm:$0xf]
        %v3130 = vld [vmem:[%s2381 + $0x68] sm:$0x1]
        %v3131 = vld [vmem:[%s2381 + $0x6c] sm:$0xe]
        %v3132 = vld [vmem:[%s2381 + $0x70] sm:$0xf]
        %v3133 = vld [vmem:[%s2381 + $0x74] sm:$0x1]
        %v3134 = vld [vmem:[%s2381 + $0x78] sm:$0xe]
        %v3135 = vld [vmem:[%s2381 + $0x7c] sm:$0xf]
        %v3136 = vld [vmem:[%s2381 + $0x80] sm:$0x1]
        %v3137 = vld [vmem:[%s2381 + $0x84] sm:$0xe]
        %v3138 = vld [vmem:[%s2381 + $0x88] sm:$0xf]
        %v3139 = vld [vmem:[%s2381 + $0x8c] sm:$0x1]
        %v3140 = vld [vmem:[%s2381 + $0x90] sm:$0xe]
        %v3141 = vld [vmem:[%s2381 + $0x94] sm:$0xf]
        %v3142 = vld [vmem:[%s2381 + $0x98] sm:$0x1]
        %v3143 = vld [vmem:[%s2381 + $0x9c] sm:$0xe]
        %v3144 = vld [vmem:[%s2381 + $0xa0] sm:$0xf]
        %v3145 = vld [vmem:[%s2381 + $0xa4] sm:$0x1]
        %v3146 = vld [vmem:[%s2381 + $0xa8] sm:$0xe]
        %v3147 = vld [vmem:[%s2381 + $0xac] sm:$0xf]
        %v3148 = vld [vmem:[%s2381 + $0xb0] sm:$0x1]
        %v3149 = vld [vmem:[%s2381 + $0xb4] sm:$0xe]
        %v3150 = vld [vmem:[%s2381 + $0xb8] sm:$0xf]
        %v3151 = vld [vmem:[%s2381 + $0xbc] sm:$0x1]
        %v3200 = vrot.slane %v3104, 5
        %v3201 = vrot.slane %v3200, 4
        %v3202 = vrot.slane %v3105, 5
        %v3203 = vsel %vm1654, %v3201, %v3202
        %v3204 = vrot.slane %v3202, 4
        %v3205 = vrot.slane %v3106, 5
        %v3206 = vsel %vm1654, %v3204, %v3205
        %v3207 = vrot.slane %v3107, 5
        %v3208 = vrot.slane %v3207, 4
        %v3209 = vrot.slane %v3108, 5
        %v3210 = vsel %vm1654, %v3208, %v3209
        %v3211 = vrot.slane %v3209, 4
        %v3212 = vrot.slane %v3109, 5
        %v3213 = vsel %vm1654, %v3211, %v3212
        %v3214 = vrot.slane %v3110, 5
        %v3215 = vrot.slane %v3214, 4
        %v3216 = vrot.slane %v3111, 5
        %v3217 = vsel %vm1654, %v3215, %v3216
        %v3218 = vrot.slane %v3216, 4
        %v3219 = vrot.slane %v3112, 5
        %v3220 = vsel %vm1654, %v3218, %v3219
        %v3221 = vrot.slane %v3113, 5
        %v3222 = vrot.slane %v3221, 4
        %v3223 = vrot.slane %v3114, 5
        %v3224 = vsel %vm1654, %v3222, %v3223
        %v3225 = vrot.slane %v3223, 4
        %v3226 = vrot.slane %v3115, 5
        %v3227 = vsel %vm1654, %v3225, %v3226
        %v3228 = vrot.slane %v3116, 5
        %v3229 = vrot.slane %v3228, 4
        %v3230 = vrot.slane %v3117, 5
        %v3231 = vsel %vm1654, %v3229, %v3230
        %v3232 = vrot.slane %v3230, 4
        %v3233 = vrot.slane %v3118, 5
        %v3234 = vsel %vm1654, %v3232, %v3233
        %v3235 = vrot.slane %v3119, 5
        %v3236 = vrot.slane %v3235, 4
        %v3237 = vrot.slane %v3120, 5
        %v3238 = vsel %vm1654, %v3236, %v3237
        %v3239 = vrot.slane %v3237, 4
        %v3240 = vrot.slane %v3121, 5
        %v3241 = vsel %vm1654, %v3239, %v3240
        %v3242 = vrot.slane %v3122, 5
        %v3243 = vrot.slane %v3242, 4
        %v3244 = vrot.slane %v3123, 5
        %v3245 = vsel %vm1654, %v3243, %v3244
        %v3246 = vrot.slane %v3244, 4
        %v3247 = vrot.slane %v3124, 5
        %v3248 = vsel %vm1654, %v3246, %v3247
        %v3249 = vrot.slane %v3125, 5
        %v3250 = vrot.slane %v3249, 4
        %v3251 = vrot.slane %v3126, 5
        %v3252 = vsel %vm1654, %v3250, %v3251
        %v3253 = vrot.slane %v3251, 4
        %v3254 = vrot.slane %v3127, 5
        %v3255 = vsel %vm1654, %v3253, %v3254
        %v3256 = vrot.slane %v3128, 5
        %v3257 = vrot.slane %v3256, 4
        %v3258 = vrot.slane %v3129, 5
        %v3259 = vsel %vm1654, %v3257, %v3258
        %v3260 = vrot.slane %v3258, 4
        %v3261 = vrot.slane %v3130, 5
        %v3262 = vsel %vm1654, %v3260, %v3261
        %v3263 = vrot.slane %v3131, 5
        %v3264 = vrot.slane %v3263, 4
        %v3265 = vrot.slane %v3132, 5
        %v3266 = vsel %vm1654, %v3264, %v3265
        %v3267 = vrot.slane %v3265, 4
        %v3268 = vrot.slane %v3133, 5
        %v3269 = vsel %vm1654, %v3267, %v3268
        %v3270 = vrot.slane %v3134, 5
        %v3271 = vrot.slane %v3270, 4
        %v3272 = vrot.slane %v3135, 5
        %v3273 = vsel %vm1654, %v3271, %v3272
        %v3274 = vrot.slane %v3272, 4
        %v3275 = vrot.slane %v3136, 5
        %v3276 = vsel %vm1654, %v3274, %v3275
        %v3277 = vrot.slane %v3137, 5
        %v3278 = vrot.slane %v3277, 4
        %v3279 = vrot.slane %v3138, 5
        %v3280 = vsel %vm1654, %v3278, %v3279
        %v3281 = vrot.slane %v3279, 4
        %v3282 = vrot.slane %v3139, 5
        %v3283 = vsel %vm1654, %v3281, %v3282
        %v3284 = vrot.slane %v3140, 5
        %v3285 = vrot.slane %v3284, 4
        %v3286 = vrot.slane %v3141, 5
        %v3287 = vsel %vm1654, %v3285, %v3286
        %v3288 = vrot.slane %v3286, 4
        %v3289 = vrot.slane %v3142, 5
        %v3290 = vsel %vm1654, %v3288, %v3289
        %v3291 = vrot.slane %v3143, 5
        %v3292 = vrot.slane %v3291, 4
        %v3293 = vrot.slane %v3144, 5
        %v3294 = vsel %vm1654, %v3292, %v3293
        %v3295 = vrot.slane %v3293, 4
        %v3296 = vrot.slane %v3145, 5
        %v3297 = vsel %vm1654, %v3295, %v3296
        %v3298 = vrot.slane %v3146, 5
        %v3299 = vrot.slane %v3298, 4
        %v3300 = vrot.slane %v3147, 5
        %v3301 = vsel %vm1654, %v3299, %v3300
        %v3302 = vrot.slane %v3300, 4
        %v3303 = vrot.slane %v3148, 5
        %v3304 = vsel %vm1654, %v3302, %v3303
        %v3305 = vrot.slane %v3149, 5
        %v3306 = vrot.slane %v3305, 4
        %v3307 = vrot.slane %v3150, 5
        %v3308 = vsel %vm1654, %v3306, %v3307
        %v3309 = vrot.slane %v3307, 4
        %v3310 = vrot.slane %v3151, 5
        %v3311 = vsel %vm1654, %v3309, %v3310
        %v3312 = vunpack.c.l.b16 %v3203
        %v3313 = vunpack.c.l.b16 %v3206
        %v3314 = vunpack.c.l.b16 %v3210
        %v3315 = vunpack.c.l.b16 %v3213
        %v3316 = vunpack.c.l.b16 %v3217
        %v3317 = vunpack.c.l.b16 %v3220
        %v3318 = vunpack.c.l.b16 %v3224
        %v3319 = vunpack.c.l.b16 %v3227
        %v3320 = vunpack.c.l.b16 %v3231
        %v3321 = vunpack.c.l.b16 %v3234
        %v3322 = vunpack.c.l.b16 %v3238
        %v3323 = vunpack.c.l.b16 %v3241
        %v3324 = vunpack.c.l.b16 %v3245
        %v3325 = vunpack.c.l.b16 %v3248
        %v3326 = vunpack.c.l.b16 %v3252
        %v3327 = vunpack.c.l.b16 %v3255
        %v3328 = vunpack.c.l.b16 %v3259
        %v3329 = vunpack.c.l.b16 %v3262
        %v3330 = vunpack.c.l.b16 %v3266
        %v3331 = vunpack.c.l.b16 %v3269
        %v3332 = vunpack.c.l.b16 %v3273
        %v3333 = vunpack.c.l.b16 %v3276
        %v3334 = vunpack.c.l.b16 %v3280
        %v3335 = vunpack.c.l.b16 %v3283
        %v3336 = vunpack.c.l.b16 %v3287
        %v3337 = vunpack.c.l.b16 %v3290
        %v3338 = vunpack.c.l.b16 %v3294
        %v3339 = vunpack.c.l.b16 %v3297
        %v3340 = vunpack.c.l.b16 %v3301
        %v3341 = vunpack.c.l.b16 %v3304
        %v3342 = vunpack.c.l.b16 %v3308
        %v3343 = vunpack.c.l.b16 %v3311
        %v3344 = vpack.c.b16 %v3313, %v3312
        %v3345 = vpack.c.b16 %v3315, %v3314
        %v3346 = vpack.c.b16 %v3317, %v3316
        %v3347 = vpack.c.b16 %v3319, %v3318
        %v3348 = vpack.c.b16 %v3321, %v3320
        %v3349 = vpack.c.b16 %v3323, %v3322
        %v3350 = vpack.c.b16 %v3325, %v3324
        %v3351 = vpack.c.b16 %v3327, %v3326
        %v3352 = vpack.c.b16 %v3329, %v3328
        %v3353 = vpack.c.b16 %v3331, %v3330
        %v3354 = vpack.c.b16 %v3333, %v3332
        %v3355 = vpack.c.b16 %v3335, %v3334
        %v3356 = vpack.c.b16 %v3337, %v3336
        %v3357 = vpack.c.b16 %v3339, %v3338
        %v3358 = vpack.c.b16 %v3341, %v3340
        %v3359 = vpack.c.b16 %v3343, %v3342
        %3360 = vrot.lane.b32.xlu0 %v3344, 32
        %v3361 = vpop.permute.xlu0 %3360
        %3362 = vrot.lane.b32.xlu0 %v3345, 32
        %v3363 = vpop.permute.xlu0 %3362
        %3364 = vrot.lane.b32.xlu0 %v3346, 32
        %v3365 = vpop.permute.xlu0 %3364
        %3366 = vrot.lane.b32.xlu0 %v3347, 32
        %v3367 = vpop.permute.xlu0 %3366
        %3368 = vrot.lane.b32.xlu0 %v3348, 32
        %v3369 = vpop.permute.xlu0 %3368
        %3370 = vrot.lane.b32.xlu0 %v3349, 32
        %v3371 = vpop.permute.xlu0 %3370
        %3372 = vrot.lane.b32.xlu0 %v3350, 32
        %v3373 = vpop.permute.xlu0 %3372
        %3374 = vrot.lane.b32.xlu0 %v3351, 32
        %v3375 = vpop.permute.xlu0 %3374
        %3376 = vrot.lane.b32.xlu0 %v3352, 32
        %v3377 = vpop.permute.xlu0 %3376
        %3378 = vrot.lane.b32.xlu0 %v3353, 32
        %v3379 = vpop.permute.xlu0 %3378
        %3380 = vrot.lane.b32.xlu0 %v3354, 32
        %v3381 = vpop.permute.xlu0 %3380
        %3382 = vrot.lane.b32.xlu0 %v3355, 32
        %v3383 = vpop.permute.xlu0 %3382
        %3384 = vrot.lane.b32.xlu0 %v3356, 32
        %v3385 = vpop.permute.xlu0 %3384
        %3386 = vrot.lane.b32.xlu0 %v3357, 32
        %v3387 = vpop.permute.xlu0 %3386
        %3388 = vrot.lane.b32.xlu0 %v3358, 32
        %v3389 = vpop.permute.xlu0 %3388
        %3390 = vrot.lane.b32.xlu0 %v3359, 32
        %v3391 = vpop.permute.xlu0 %3390
        %vm3408 = vcmask 294144
        %3409 = vst.msk [vmem:[#allocation2] sm:$0xff] %vm3408, %v3361
        %3410 = vst.msk [vmem:[#allocation2 + $0x8] sm:$0xff] %vm3408, %v3363
        %3411 = vst.msk [vmem:[#allocation2 + $0x10] sm:$0xff] %vm3408, %v3365
        %3412 = vst.msk [vmem:[#allocation2 + $0x18] sm:$0xff] %vm3408, %v3367
        %3413 = vst.msk [vmem:[#allocation2 + $0x20] sm:$0xff] %vm3408, %v3369
        %3414 = vst.msk [vmem:[#allocation2 + $0x28] sm:$0xff] %vm3408, %v3371
        %3415 = vst.msk [vmem:[#allocation2 + $0x30] sm:$0xff] %vm3408, %v3373
        %3416 = vst.msk [vmem:[#allocation2 + $0x38] sm:$0xff] %vm3408, %v3375
        %3417 = vst.msk [vmem:[#allocation2 + $0x40] sm:$0xff] %vm3408, %v3377
        %3418 = vst.msk [vmem:[#allocation2 + $0x48] sm:$0xff] %vm3408, %v3379
        %3419 = vst.msk [vmem:[#allocation2 + $0x50] sm:$0xff] %vm3408, %v3381
        %3420 = vst.msk [vmem:[#allocation2 + $0x58] sm:$0xff] %vm3408, %v3383
        %3421 = vst.msk [vmem:[#allocation2 + $0x60] sm:$0xff] %vm3408, %v3385
        %3422 = vst.msk [vmem:[#allocation2 + $0x68] sm:$0xff] %vm3408, %v3387
        %3423 = vst.msk [vmem:[#allocation2 + $0x70] sm:$0xff] %vm3408, %v3389
        %3424 = vst.msk [vmem:[#allocation2 + $0x78] sm:$0xff] %vm3408, %v3391
        %v3425 = vld [vmem:[#allocation2] sm:$0xff]
        %v3426 = vld [vmem:[#allocation2 + $0x8] sm:$0xff]
        %v3427 = vld [vmem:[#allocation2 + $0x10] sm:$0xff]
        %v3428 = vld [vmem:[#allocation2 + $0x18] sm:$0xff]
        %v3429 = vld [vmem:[#allocation2 + $0x20] sm:$0xff]
        %v3430 = vld [vmem:[#allocation2 + $0x28] sm:$0xff]
        %v3431 = vld [vmem:[#allocation2 + $0x30] sm:$0xff]
        %v3432 = vld [vmem:[#allocation2 + $0x38] sm:$0xff]
        %v3433 = vld [vmem:[#allocation2 + $0x40] sm:$0xff]
        %v3434 = vld [vmem:[#allocation2 + $0x48] sm:$0xff]
        %v3435 = vld [vmem:[#allocation2 + $0x50] sm:$0xff]
        %v3436 = vld [vmem:[#allocation2 + $0x58] sm:$0xff]
        %v3437 = vld [vmem:[#allocation2 + $0x60] sm:$0xff]
        %v3438 = vld [vmem:[#allocation2 + $0x68] sm:$0xff]
        %v3439 = vld [vmem:[#allocation2 + $0x70] sm:$0xff]
        %v3440 = vld [vmem:[#allocation2 + $0x78] sm:$0xff]
        %v3441 = vld [vmem:[%s1] sm:$0xf]
        %v3442 = vld [vmem:[%s1 + $0x4] sm:$0xf]
        %v3443 = vld [vmem:[%s1 + $0x8] sm:$0xf]
        %v3444 = vld [vmem:[%s1 + $0xc] sm:$0xf]
        %v3445 = vld [vmem:[%s1 + $0x10] sm:$0xf]
        %v3446 = vld [vmem:[%s1 + $0x14] sm:$0xf]
        %v3447 = vld [vmem:[%s1 + $0x18] sm:$0xf]
        %v3448 = vld [vmem:[%s1 + $0x1c] sm:$0xf]
        %v3449 = vld [vmem:[%s1 + $0x20] sm:$0xf]
        %v3450 = vld [vmem:[%s1 + $0x24] sm:$0xf]
        %v3451 = vld [vmem:[%s1 + $0x28] sm:$0xf]
        %v3452 = vld [vmem:[%s1 + $0x2c] sm:$0xf]
        %v3453 = vld [vmem:[%s1 + $0x30] sm:$0xf]
        %v3454 = vld [vmem:[%s1 + $0x34] sm:$0xf]
        %v3455 = vld [vmem:[%s1 + $0x38] sm:$0xf]
        %v3456 = vld [vmem:[%s1 + $0x3c] sm:$0xf]
        %v3473 = vunpack.c.l.b16 %v3441
        %v3474 = vunpack.c.l.b16 %v3442
        %v3475 = vunpack.c.l.b16 %v3443
        %v3476 = vunpack.c.l.b16 %v3444
        %v3477 = vunpack.c.l.b16 %v3445
        %v3478 = vunpack.c.l.b16 %v3446
        %v3479 = vunpack.c.l.b16 %v3447
        %v3480 = vunpack.c.l.b16 %v3448
        %v3481 = vunpack.c.l.b16 %v3449
        %v3482 = vunpack.c.l.b16 %v3450
        %v3483 = vunpack.c.l.b16 %v3451
        %v3484 = vunpack.c.l.b16 %v3452
        %v3485 = vunpack.c.l.b16 %v3453
        %v3486 = vunpack.c.l.b16 %v3454
        %v3487 = vunpack.c.l.b16 %v3455
        %v3488 = vunpack.c.l.b16 %v3456
        %v3489 = vpack.c.b16 %v3474, %v3473
        %v3490 = vpack.c.b16 %v3476, %v3475
        %v3491 = vpack.c.b16 %v3478, %v3477
        %v3492 = vpack.c.b16 %v3480, %v3479
        %v3493 = vpack.c.b16 %v3482, %v3481
        %v3494 = vpack.c.b16 %v3484, %v3483
        %v3495 = vpack.c.b16 %v3486, %v3485
        %v3496 = vpack.c.b16 %v3488, %v3487
        %3505 = vmatprep.subr.bf16.mxu0 0
        %3506 = vmatpush1.bf16.msra.mxu0 %v3489
        %3507 = vmatprep.subr.bf16.mxu0 0
        %3508 = vmatpush1.bf16.msra.mxu0 %v3490
        %3509 = vmatprep.subr.bf16.mxu0 0
        %3510 = vmatpush1.bf16.msra.mxu0 %v3491
        %3511 = vmatprep.subr.bf16.mxu0 0
        %3512 = vmatpush1.bf16.msra.mxu0 %v3492
        %3513 = vmatprep.subr.bf16.mxu0 0
        %3514 = vmatpush1.bf16.msra.mxu0 %v3493
        %3515 = vmatprep.subr.bf16.mxu0 0
        %3516 = vmatpush1.bf16.msra.mxu0 %v3494
        %3517 = vmatprep.subr.bf16.mxu0 0
        %3518 = vmatpush1.bf16.msra.mxu0 %v3495
        %3519 = vmatprep.subr.bf16.mxu0 0
        %3520 = vmatpush1.bf16.msra.mxu0 %v3496
        %3521 = vmatprep.subr.bf16.mxu0 0
        %3522 = vmatpush1.bf16.msra.mxu0 0
        %3523 = vmatprep.subr.bf16.mxu0 0
        %3524 = vmatpush1.bf16.msra.mxu0 0
        %3525 = vmatprep.subr.bf16.mxu0 0
        %3526 = vmatpush1.bf16.msra.mxu0 0
        %3527 = vmatprep.subr.bf16.mxu0 0
        %3528 = vmatpush1.bf16.msra.mxu0 0
        %3529 = vmatprep.subr.bf16.mxu0 0
        %3530 = vmatpush1.bf16.msra.mxu0 0
        %3531 = vmatprep.subr.bf16.mxu0 0
        %3532 = vmatpush1.bf16.msra.mxu0 0
        %3533 = vmatprep.subr.bf16.mxu0 0
        %3534 = vmatpush1.bf16.msra.mxu0 0
        %3535 = vmatprep.subr.bf16.mxu0 0
        %3536 = vmatpush1.bf16.msra.mxu0 0
        %3537 = vmatprep.mubr.bf16.mxu0 0
        %3538 = vmatmul.mubr.bf16.gmra.mrb[0].mxu0 %v3425
        %v3539 = vpop.f32.mrb[0].mxu0
        %v3540 = vadd.f32 0.0, %v3539
        %v3541 = vpop.f32.mrb[0].mxu0
        %v3542 = vpop.f32.mrb[0].mxu0
        %v3543 = vadd.f32 0.0, %v3542
        %v3544 = vpop.f32.mrb[0].mxu0
        %3545 = vmatprep.mubr.bf16.mxu0 0
        %3546 = vmatmul.mubr.bf16.gmra.mrb[0].mxu0 %v3426
        %v3547 = vpop.f32.mrb[0].mxu0
        %v3548 = vadd.f32 0.0, %v3547
        %v3549 = vpop.f32.mrb[0].mxu0
        %v3550 = vpop.f32.mrb[0].mxu0
        %v3551 = vadd.f32 0.0, %v3550
        %v3552 = vpop.f32.mrb[0].mxu0
        %3553 = vmatprep.mubr.bf16.mxu0 0
        %3554 = vmatmul.mubr.bf16.gmra.mrb[0].mxu0 %v3427
        %v3555 = vpop.f32.mrb[0].mxu0
        %v3556 = vadd.f32 0.0, %v3555
        %v3557 = vpop.f32.mrb[0].mxu0
        %v3558 = vpop.f32.mrb[0].mxu0
        %v3559 = vadd.f32 0.0, %v3558
        %v3560 = vpop.f32.mrb[0].mxu0
        %3561 = vmatprep.mubr.bf16.mxu0 0
        %3562 = vmatmul.mubr.bf16.gmra.mrb[0].mxu0 %v3428
        %v3563 = vpop.f32.mrb[0].mxu0
        %v3564 = vadd.f32 0.0, %v3563
        %v3565 = vpop.f32.mrb[0].mxu0
        %v3566 = vpop.f32.mrb[0].mxu0
        %v3567 = vadd.f32 0.0, %v3566
        %v3568 = vpop.f32.mrb[0].mxu0
        %3569 = vmatprep.mubr.bf16.mxu0 0
        %3570 = vmatmul.mubr.bf16.gmra.mrb[0].mxu0 %v3429
        %v3571 = vpop.f32.mrb[0].mxu0
        %v3572 = vadd.f32 0.0, %v3571
        %v3573 = vpop.f32.mrb[0].mxu0
        %v3574 = vpop.f32.mrb[0].mxu0
        %v3575 = vadd.f32 0.0, %v3574
        %v3576 = vpop.f32.mrb[0].mxu0
        %3577 = vmatprep.mubr.bf16.mxu0 0
        %3578 = vmatmul.mubr.bf16.gmra.mrb[0].mxu0 %v3430
        %v3579 = vpop.f32.mrb[0].mxu0
        %v3580 = vadd.f32 0.0, %v3579
        %v3581 = vpop.f32.mrb[0].mxu0
        %v3582 = vpop.f32.mrb[0].mxu0
        %v3583 = vadd.f32 0.0, %v3582
        %v3584 = vpop.f32.mrb[0].mxu0
        %3585 = vmatprep.mubr.bf16.mxu0 0
        %3586 = vmatmul.mubr.bf16.gmra.mrb[0].mxu0 %v3431
        %v3587 = vpop.f32.mrb[0].mxu0
        %v3588 = vadd.f32 0.0, %v3587
        %v3589 = vpop.f32.mrb[0].mxu0
        %v3590 = vpop.f32.mrb[0].mxu0
        %v3591 = vadd.f32 0.0, %v3590
        %v3592 = vpop.f32.mrb[0].mxu0
        %3593 = vmatprep.mubr.bf16.mxu0 0
        %3594 = vmatmul.mubr.bf16.gmra.mrb[0].mxu0 %v3432
        %v3595 = vpop.f32.mrb[0].mxu0
        %v3596 = vadd.f32 0.0, %v3595
        %v3597 = vpop.f32.mrb[0].mxu0
        %v3598 = vpop.f32.mrb[0].mxu0
        %v3599 = vadd.f32 0.0, %v3598
        %v3600 = vpop.f32.mrb[0].mxu0
        %3601 = vmatprep.mubr.bf16.mxu0 0
        %3602 = vmatmul.mubr.bf16.gmra.mrb[0].mxu0 %v3433
        %v3603 = vpop.f32.mrb[0].mxu0
        %v3604 = vadd.f32 0.0, %v3603
        %v3605 = vpop.f32.mrb[0].mxu0
        %v3606 = vpop.f32.mrb[0].mxu0
        %v3607 = vadd.f32 0.0, %v3606
        %v3608 = vpop.f32.mrb[0].mxu0
        %3609 = vmatprep.mubr.bf16.mxu0 0
        %3610 = vmatmul.mubr.bf16.gmra.mrb[0].mxu0 %v3434
        %v3611 = vpop.f32.mrb[0].mxu0
        %v3612 = vadd.f32 0.0, %v3611
        %v3613 = vpop.f32.mrb[0].mxu0
        %v3614 = vpop.f32.mrb[0].mxu0
        %v3615 = vadd.f32 0.0, %v3614
        %v3616 = vpop.f32.mrb[0].mxu0
        %3617 = vmatprep.mubr.bf16.mxu0 0
        %3618 = vmatmul.mubr.bf16.gmra.mrb[0].mxu0 %v3435
        %v3619 = vpop.f32.mrb[0].mxu0
        %v3620 = vadd.f32 0.0, %v3619
        %v3621 = vpop.f32.mrb[0].mxu0
        %v3622 = vpop.f32.mrb[0].mxu0
        %v3623 = vadd.f32 0.0, %v3622
        %v3624 = vpop.f32.mrb[0].mxu0
        %3625 = vmatprep.mubr.bf16.mxu0 0
        %3626 = vmatmul.mubr.bf16.gmra.mrb[0].mxu0 %v3436
        %v3627 = vpop.f32.mrb[0].mxu0
        %v3628 = vadd.f32 0.0, %v3627
        %v3629 = vpop.f32.mrb[0].mxu0
        %v3630 = vpop.f32.mrb[0].mxu0
        %v3631 = vadd.f32 0.0, %v3630
        %v3632 = vpop.f32.mrb[0].mxu0
        %3633 = vmatprep.mubr.bf16.mxu0 0
        %3634 = vmatmul.mubr.bf16.gmra.mrb[0].mxu0 %v3437
        %v3635 = vpop.f32.mrb[0].mxu0
        %v3636 = vadd.f32 0.0, %v3635
        %v3637 = vpop.f32.mrb[0].mxu0
        %v3638 = vpop.f32.mrb[0].mxu0
        %v3639 = vadd.f32 0.0, %v3638
        %v3640 = vpop.f32.mrb[0].mxu0
        %3641 = vmatprep.mubr.bf16.mxu0 0
        %3642 = vmatmul.mubr.bf16.gmra.mrb[0].mxu0 %v3438
        %v3643 = vpop.f32.mrb[0].mxu0
        %v3644 = vadd.f32 0.0, %v3643
        %v3645 = vpop.f32.mrb[0].mxu0
        %v3646 = vpop.f32.mrb[0].mxu0
        %v3647 = vadd.f32 0.0, %v3646
        %v3648 = vpop.f32.mrb[0].mxu0
        %3649 = vmatprep.mubr.bf16.mxu0 0
        %3650 = vmatmul.mubr.bf16.gmra.mrb[0].mxu0 %v3439
        %v3651 = vpop.f32.mrb[0].mxu0
        %v3652 = vadd.f32 0.0, %v3651
        %v3653 = vpop.f32.mrb[0].mxu0
        %v3654 = vpop.f32.mrb[0].mxu0
        %v3655 = vadd.f32 0.0, %v3654
        %v3656 = vpop.f32.mrb[0].mxu0
        %3657 = vmatprep.mubr.bf16.mxu0 0
        %3658 = vmatmul.mubr.bf16.gmra.mrb[0].mxu0 %v3440
        %v3659 = vpop.f32.mrb[0].mxu0
        %v3660 = vadd.f32 0.0, %v3659
        %v3661 = vpop.f32.mrb[0].mxu0
        %v3662 = vpop.f32.mrb[0].mxu0
        %v3663 = vadd.f32 0.0, %v3662
        %v3664 = vpop.f32.mrb[0].mxu0
        %3665 = vdwg.mxu0
        %v3666 = vld [vmem:[%s2] sm:$0x1]
        %v3668 = vlaneseq
        %v3669 = vshrl.u32 %v3668, 7
        %v3670 = vsub.s32 0, %v3669
        %v3671 = vrot.slane %v3666, %v3670
        %v3673 = vmul.f32 %v3540, %v3671
        %v3674 = vmul.f32 %v3543, %v3671
        %v3675 = vmul.f32 %v3548, %v3671
        %v3676 = vmul.f32 %v3551, %v3671
        %v3677 = vmul.f32 %v3556, %v3671
        %v3678 = vmul.f32 %v3559, %v3671
        %v3679 = vmul.f32 %v3564, %v3671
        %v3680 = vmul.f32 %v3567, %v3671
        %v3681 = vmul.f32 %v3572, %v3671
        %v3682 = vmul.f32 %v3575, %v3671
        %v3683 = vmul.f32 %v3580, %v3671
        %v3684 = vmul.f32 %v3583, %v3671
        %v3685 = vmul.f32 %v3588, %v3671
        %v3686 = vmul.f32 %v3591, %v3671
        %v3687 = vmul.f32 %v3596, %v3671
        %v3688 = vmul.f32 %v3599, %v3671
        %v3689 = vmul.f32 %v3604, %v3671
        %v3690 = vmul.f32 %v3607, %v3671
        %v3691 = vmul.f32 %v3612, %v3671
        %v3692 = vmul.f32 %v3615, %v3671
        %v3693 = vmul.f32 %v3620, %v3671
        %v3694 = vmul.f32 %v3623, %v3671
        %v3695 = vmul.f32 %v3628, %v3671
        %v3696 = vmul.f32 %v3631, %v3671
        %v3697 = vmul.f32 %v3636, %v3671
        %v3698 = vmul.f32 %v3639, %v3671
        %v3699 = vmul.f32 %v3644, %v3671
        %v3700 = vmul.f32 %v3647, %v3671
        %v3701 = vmul.f32 %v3652, %v3671
        %v3702 = vmul.f32 %v3655, %v3671
        %v3703 = vmul.f32 %v3660, %v3671
        %v3704 = vmul.f32 %v3663, %v3671
        %v3705 = vld [vmem:[%s3] sm:$0x1]
        %v3707 = vlaneseq
        %v3708 = vshrl.u32 %v3707, 7
        %v3709 = vsub.s32 0, %v3708
        %v3710 = vrot.slane %v3705, %v3709
        %v3712 = vadd.f32 %v3673, %v3710
        %v3713 = vadd.f32 %v3674, %v3710
        %v3714 = vadd.f32 %v3675, %v3710
        %v3715 = vadd.f32 %v3676, %v3710
        %v3716 = vadd.f32 %v3677, %v3710
        %v3717 = vadd.f32 %v3678, %v3710
        %v3718 = vadd.f32 %v3679, %v3710
        %v3719 = vadd.f32 %v3680, %v3710
        %v3720 = vadd.f32 %v3681, %v3710
        %v3721 = vadd.f32 %v3682, %v3710
        %v3722 = vadd.f32 %v3683, %v3710
        %v3723 = vadd.f32 %v3684, %v3710
        %v3724 = vadd.f32 %v3685, %v3710
        %v3725 = vadd.f32 %v3686, %v3710
        %v3726 = vadd.f32 %v3687, %v3710
        %v3727 = vadd.f32 %v3688, %v3710
        %v3728 = vadd.f32 %v3689, %v3710
        %v3729 = vadd.f32 %v3690, %v3710
        %v3730 = vadd.f32 %v3691, %v3710
        %v3731 = vadd.f32 %v3692, %v3710
        %v3732 = vadd.f32 %v3693, %v3710
        %v3733 = vadd.f32 %v3694, %v3710
        %v3734 = vadd.f32 %v3695, %v3710
        %v3735 = vadd.f32 %v3696, %v3710
        %v3736 = vadd.f32 %v3697, %v3710
        %v3737 = vadd.f32 %v3698, %v3710
        %v3738 = vadd.f32 %v3699, %v3710
        %v3739 = vadd.f32 %v3700, %v3710
        %v3740 = vadd.f32 %v3701, %v3710
        %v3741 = vadd.f32 %v3702, %v3710
        %v3742 = vadd.f32 %v3703, %v3710
        %v3743 = vadd.f32 %v3704, %v3710
        %v3744 = vmax.f32 %v3712, 0.0
        %v3745 = vmax.f32 %v3713, 0.0
        %v3746 = vmax.f32 %v3714, 0.0
        %v3747 = vmax.f32 %v3715, 0.0
        %v3748 = vmax.f32 %v3716, 0.0
        %v3749 = vmax.f32 %v3717, 0.0
        %v3750 = vmax.f32 %v3718, 0.0
        %v3751 = vmax.f32 %v3719, 0.0
        %v3752 = vmax.f32 %v3720, 0.0
        %v3753 = vmax.f32 %v3721, 0.0
        %v3754 = vmax.f32 %v3722, 0.0
        %v3755 = vmax.f32 %v3723, 0.0
        %v3756 = vmax.f32 %v3724, 0.0
        %v3757 = vmax.f32 %v3725, 0.0
        %v3758 = vmax.f32 %v3726, 0.0
        %v3759 = vmax.f32 %v3727, 0.0
        %v3760 = vmax.f32 %v3728, 0.0
        %v3761 = vmax.f32 %v3729, 0.0
        %v3762 = vmax.f32 %v3730, 0.0
        %v3763 = vmax.f32 %v3731, 0.0
        %v3764 = vmax.f32 %v3732, 0.0
        %v3765 = vmax.f32 %v3733, 0.0
        %v3766 = vmax.f32 %v3734, 0.0
        %v3767 = vmax.f32 %v3735, 0.0
        %v3768 = vmax.f32 %v3736, 0.0
        %v3769 = vmax.f32 %v3737, 0.0
        %v3770 = vmax.f32 %v3738, 0.0
        %v3771 = vmax.f32 %v3739, 0.0
        %v3772 = vmax.f32 %v3740, 0.0
        %v3773 = vmax.f32 %v3741, 0.0
        %v3774 = vmax.f32 %v3742, 0.0
        %v3775 = vmax.f32 %v3743, 0.0
        %v3776 = vpack.c.bf16 %v3745, %v3744
        %v3777 = vpack.c.bf16 %v3747, %v3746
        %v3778 = vpack.c.bf16 %v3749, %v3748
        %v3779 = vpack.c.bf16 %v3751, %v3750
        %v3780 = vpack.c.bf16 %v3753, %v3752
        %v3781 = vpack.c.bf16 %v3755, %v3754
        %v3782 = vpack.c.bf16 %v3757, %v3756
        %v3783 = vpack.c.bf16 %v3759, %v3758
        %v3784 = vpack.c.bf16 %v3761, %v3760
        %v3785 = vpack.c.bf16 %v3763, %v3762
        %v3786 = vpack.c.bf16 %v3765, %v3764
        %v3787 = vpack.c.bf16 %v3767, %v3766
        %v3788 = vpack.c.bf16 %v3769, %v3768
        %v3789 = vpack.c.bf16 %v3771, %v3770
        %v3790 = vpack.c.bf16 %v3773, %v3772
        %v3791 = vpack.c.bf16 %v3775, %v3774
        %v3792 = vld [vmem:[%s4] sm:$0xf]
        %v3793 = vld [vmem:[%s4 + $0x4] sm:$0xf]
        %v3794 = vld [vmem:[%s4 + $0x8] sm:$0xf]
        %v3795 = vld [vmem:[%s4 + $0xc] sm:$0xf]
        %v3796 = vld [vmem:[%s4 + $0x10] sm:$0xf]
        %v3797 = vld [vmem:[%s4 + $0x14] sm:$0xf]
        %v3798 = vld [vmem:[%s4 + $0x18] sm:$0xf]
        %v3799 = vld [vmem:[%s4 + $0x1c] sm:$0xf]
        %v3800 = vld [vmem:[%s4 + $0x20] sm:$0xf]
        %v3801 = vld [vmem:[%s4 + $0x24] sm:$0xf]
        %v3802 = vld [vmem:[%s4 + $0x28] sm:$0xf]
        %v3803 = vld [vmem:[%s4 + $0x2c] sm:$0xf]
        %v3804 = vld [vmem:[%s4 + $0x30] sm:$0xf]
        %v3805 = vld [vmem:[%s4 + $0x34] sm:$0xf]
        %v3806 = vld [vmem:[%s4 + $0x38] sm:$0xf]
        %v3807 = vld [vmem:[%s4 + $0x3c] sm:$0xf]
        %v3824 = vunpack.c.l.b16 %v3792
        %v3825 = vunpack.c.l.b16 %v3793
        %v3826 = vunpack.c.l.b16 %v3794
        %v3827 = vunpack.c.l.b16 %v3795
        %v3828 = vunpack.c.l.b16 %v3796
        %v3829 = vunpack.c.l.b16 %v3797
        %v3830 = vunpack.c.l.b16 %v3798
        %v3831 = vunpack.c.l.b16 %v3799
        %v3832 = vunpack.c.l.b16 %v3800
        %v3833 = vunpack.c.l.b16 %v3801
        %v3834 = vunpack.c.l.b16 %v3802
        %v3835 = vunpack.c.l.b16 %v3803
        %v3836 = vunpack.c.l.b16 %v3804
        %v3837 = vunpack.c.l.b16 %v3805
        %v3838 = vunpack.c.l.b16 %v3806
        %v3839 = vunpack.c.l.b16 %v3807
        %v3840 = vpack.c.b16 %v3825, %v3824
        %v3841 = vpack.c.b16 %v3827, %v3826
        %v3842 = vpack.c.b16 %v3829, %v3828
        %v3843 = vpack.c.b16 %v3831, %v3830
        %v3844 = vpack.c.b16 %v3833, %v3832
        %v3845 = vpack.c.b16 %v3835, %v3834
        %v3846 = vpack.c.b16 %v3837, %v3836
        %v3847 = vpack.c.b16 %v3839, %v3838
        %3856 = vmatprep.subr.bf16.mxu0 0
        %3857 = vmatpush1.bf16.msra.mxu0 %v3840
        %3858 = vmatprep.subr.bf16.mxu0 0
        %3859 = vmatpush1.bf16.msra.mxu0 %v3841
        %3860 = vmatprep.subr.bf16.mxu0 0
        %3861 = vmatpush1.bf16.msra.mxu0 %v3842
        %3862 = vmatprep.subr.bf16.mxu0 0
        %3863 = vmatpush1.bf16.msra.mxu0 %v3843
        %3864 = vmatprep.subr.bf16.mxu0 0
        %3865 = vmatpush1.bf16.msra.mxu0 %v3844
        %3866 = vmatprep.subr.bf16.mxu0 0
        %3867 = vmatpush1.bf16.msra.mxu0 %v3845
        %3868 = vmatprep.subr.bf16.mxu0 0
        %3869 = vmatpush1.bf16.msra.mxu0 %v3846
        %3870 = vmatprep.subr.bf16.mxu0 0
        %3871 = vmatpush1.bf16.msra.mxu0 %v3847
        %3872 = vmatprep.subr.bf16.mxu0 0
        %3873 = vmatpush1.bf16.msra.mxu0 0
        %3874 = vmatprep.subr.bf16.mxu0 0
        %3875 = vmatpush1.bf16.msra.mxu0 0
        %3876 = vmatprep.subr.bf16.mxu0 0
        %3877 = vmatpush1.bf16.msra.mxu0 0
        %3878 = vmatprep.subr.bf16.mxu0 0
        %3879 = vmatpush1.bf16.msra.mxu0 0
        %3880 = vmatprep.subr.bf16.mxu0 0
        %3881 = vmatpush1.bf16.msra.mxu0 0
        %3882 = vmatprep.subr.bf16.mxu0 0
        %3883 = vmatpush1.bf16.msra.mxu0 0
        %3884 = vmatprep.subr.bf16.mxu0 0
        %3885 = vmatpush1.bf16.msra.mxu0 0
        %3886 = vmatprep.subr.bf16.mxu0 0
        %3887 = vmatpush1.bf16.msra.mxu0 0
        %3888 = vmatprep.mubr.bf16.mxu0 0
        %3889 = vmatmul.mubr.bf16.gmra.mrb[0].mxu0 %v3776
        %v3890 = vpop.f32.mrb[0].mxu0
        %v3891 = vadd.f32 0.0, %v3890
        %v3892 = vpop.f32.mrb[0].mxu0
        %v3893 = vpop.f32.mrb[0].mxu0
        %v3894 = vadd.f32 0.0, %v3893
        %v3895 = vpop.f32.mrb[0].mxu0
        %3896 = vmatprep.mubr.bf16.mxu0 0
        %3897 = vmatmul.mubr.bf16.gmra.mrb[0].mxu0 %v3777
        %v3898 = vpop.f32.mrb[0].mxu0
        %v3899 = vadd.f32 0.0, %v3898
        %v3900 = vpop.f32.mrb[0].mxu0
        %v3901 = vpop.f32.mrb[0].mxu0
        %v3902 = vadd.f32 0.0, %v3901
        %v3903 = vpop.f32.mrb[0].mxu0
        %3904 = vmatprep.mubr.bf16.mxu0 0
        %3905 = vmatmul.mubr.bf16.gmra.mrb[0].mxu0 %v3778
        %v3906 = vpop.f32.mrb[0].mxu0
        %v3907 = vadd.f32 0.0, %v3906
        %v3908 = vpop.f32.mrb[0].mxu0
        %v3909 = vpop.f32.mrb[0].mxu0
        %v3910 = vadd.f32 0.0, %v3909
        %v3911 = vpop.f32.mrb[0].mxu0
        %3912 = vmatprep.mubr.bf16.mxu0 0
        %3913 = vmatmul.mubr.bf16.gmra.mrb[0].mxu0 %v3779
        %v3914 = vpop.f32.mrb[0].mxu0
        %v3915 = vadd.f32 0.0, %v3914
        %v3916 = vpop.f32.mrb[0].mxu0
        %v3917 = vpop.f32.mrb[0].mxu0
        %v3918 = vadd.f32 0.0, %v3917
        %v3919 = vpop.f32.mrb[0].mxu0
        %3920 = vmatprep.mubr.bf16.mxu0 0
        %3921 = vmatmul.mubr.bf16.gmra.mrb[0].mxu0 %v3780
        %v3922 = vpop.f32.mrb[0].mxu0
        %v3923 = vadd.f32 0.0, %v3922
        %v3924 = vpop.f32.mrb[0].mxu0
        %v3925 = vpop.f32.mrb[0].mxu0
        %v3926 = vadd.f32 0.0, %v3925
        %v3927 = vpop.f32.mrb[0].mxu0
        %3928 = vmatprep.mubr.bf16.mxu0 0
        %3929 = vmatmul.mubr.bf16.gmra.mrb[0].mxu0 %v3781
        %v3930 = vpop.f32.mrb[0].mxu0
        %v3931 = vadd.f32 0.0, %v3930
        %v3932 = vpop.f32.mrb[0].mxu0
        %v3933 = vpop.f32.mrb[0].mxu0
        %v3934 = vadd.f32 0.0, %v3933
        %v3935 = vpop.f32.mrb[0].mxu0
        %3936 = vmatprep.mubr.bf16.mxu0 0
        %3937 = vmatmul.mubr.bf16.gmra.mrb[0].mxu0 %v3782
        %v3938 = vpop.f32.mrb[0].mxu0
        %v3939 = vadd.f32 0.0, %v3938
        %v3940 = vpop.f32.mrb[0].mxu0
        %v3941 = vpop.f32.mrb[0].mxu0
        %v3942 = vadd.f32 0.0, %v3941
        %v3943 = vpop.f32.mrb[0].mxu0
        %3944 = vmatprep.mubr.bf16.mxu0 0
        %3945 = vmatmul.mubr.bf16.gmra.mrb[0].mxu0 %v3783
        %v3946 = vpop.f32.mrb[0].mxu0
        %v3947 = vadd.f32 0.0, %v3946
        %v3948 = vpop.f32.mrb[0].mxu0
        %v3949 = vpop.f32.mrb[0].mxu0
        %v3950 = vadd.f32 0.0, %v3949
        %v3951 = vpop.f32.mrb[0].mxu0
        %3952 = vmatprep.mubr.bf16.mxu0 0
        %3953 = vmatmul.mubr.bf16.gmra.mrb[0].mxu0 %v3784
        %v3954 = vpop.f32.mrb[0].mxu0
        %v3955 = vadd.f32 0.0, %v3954
        %v3956 = vpop.f32.mrb[0].mxu0
        %v3957 = vpop.f32.mrb[0].mxu0
        %v3958 = vadd.f32 0.0, %v3957
        %v3959 = vpop.f32.mrb[0].mxu0
        %3960 = vmatprep.mubr.bf16.mxu0 0
        %3961 = vmatmul.mubr.bf16.gmra.mrb[0].mxu0 %v3785
        %v3962 = vpop.f32.mrb[0].mxu0
        %v3963 = vadd.f32 0.0, %v3962
        %v3964 = vpop.f32.mrb[0].mxu0
        %v3965 = vpop.f32.mrb[0].mxu0
        %v3966 = vadd.f32 0.0, %v3965
        %v3967 = vpop.f32.mrb[0].mxu0
        %3968 = vmatprep.mubr.bf16.mxu0 0
        %3969 = vmatmul.mubr.bf16.gmra.mrb[0].mxu0 %v3786
        %v3970 = vpop.f32.mrb[0].mxu0
        %v3971 = vadd.f32 0.0, %v3970
        %v3972 = vpop.f32.mrb[0].mxu0
        %v3973 = vpop.f32.mrb[0].mxu0
        %v3974 = vadd.f32 0.0, %v3973
        %v3975 = vpop.f32.mrb[0].mxu0
        %3976 = vmatprep.mubr.bf16.mxu0 0
        %3977 = vmatmul.mubr.bf16.gmra.mrb[0].mxu0 %v3787
        %v3978 = vpop.f32.mrb[0].mxu0
        %v3979 = vadd.f32 0.0, %v3978
        %v3980 = vpop.f32.mrb[0].mxu0
        %v3981 = vpop.f32.mrb[0].mxu0
        %v3982 = vadd.f32 0.0, %v3981
        %v3983 = vpop.f32.mrb[0].mxu0
        %3984 = vmatprep.mubr.bf16.mxu0 0
        %3985 = vmatmul.mubr.bf16.gmra.mrb[0].mxu0 %v3788
        %v3986 = vpop.f32.mrb[0].mxu0
        %v3987 = vadd.f32 0.0, %v3986
        %v3988 = vpop.f32.mrb[0].mxu0
        %v3989 = vpop.f32.mrb[0].mxu0
        %v3990 = vadd.f32 0.0, %v3989
        %v3991 = vpop.f32.mrb[0].mxu0
        %3992 = vmatprep.mubr.bf16.mxu0 0
        %3993 = vmatmul.mubr.bf16.gmra.mrb[0].mxu0 %v3789
        %v3994 = vpop.f32.mrb[0].mxu0
        %v3995 = vadd.f32 0.0, %v3994
        %v3996 = vpop.f32.mrb[0].mxu0
        %v3997 = vpop.f32.mrb[0].mxu0
        %v3998 = vadd.f32 0.0, %v3997
        %v3999 = vpop.f32.mrb[0].mxu0
        %4000 = vmatprep.mubr.bf16.mxu0 0
        %4001 = vmatmul.mubr.bf16.gmra.mrb[0].mxu0 %v3790
        %v4002 = vpop.f32.mrb[0].mxu0
        %v4003 = vadd.f32 0.0, %v4002
        %v4004 = vpop.f32.mrb[0].mxu0
        %v4005 = vpop.f32.mrb[0].mxu0
        %v4006 = vadd.f32 0.0, %v4005
        %v4007 = vpop.f32.mrb[0].mxu0
        %4008 = vmatprep.mubr.bf16.mxu0 0
        %4009 = vmatmul.mubr.bf16.gmra.mrb[0].mxu0 %v3791
        %v4010 = vpop.f32.mrb[0].mxu0
        %v4011 = vadd.f32 0.0, %v4010
        %v4012 = vpop.f32.mrb[0].mxu0
        %v4013 = vpop.f32.mrb[0].mxu0
        %v4014 = vadd.f32 0.0, %v4013
        %v4015 = vpop.f32.mrb[0].mxu0
        %4016 = vdwg.mxu0
        %v4017 = vld [vmem:[%s5] sm:$0x1]
        %v4019 = vlaneseq
        %v4020 = vshrl.u32 %v4019, 7
        %v4021 = vsub.s32 0, %v4020
        %v4022 = vrot.slane %v4017, %v4021
        %v4024 = vmul.f32 %v3891, %v4022
        %v4025 = vmul.f32 %v3894, %v4022
        %v4026 = vmul.f32 %v3899, %v4022
        %v4027 = vmul.f32 %v3902, %v4022
        %v4028 = vmul.f32 %v3907, %v4022
        %v4029 = vmul.f32 %v3910, %v4022
        %v4030 = vmul.f32 %v3915, %v4022
        %v4031 = vmul.f32 %v3918, %v4022
        %v4032 = vmul.f32 %v3923, %v4022
        %v4033 = vmul.f32 %v3926, %v4022
        %v4034 = vmul.f32 %v3931, %v4022
        %v4035 = vmul.f32 %v3934, %v4022
        %v4036 = vmul.f32 %v3939, %v4022
        %v4037 = vmul.f32 %v3942, %v4022
        %v4038 = vmul.f32 %v3947, %v4022
        %v4039 = vmul.f32 %v3950, %v4022
        %v4040 = vmul.f32 %v3955, %v4022
        %v4041 = vmul.f32 %v3958, %v4022
        %v4042 = vmul.f32 %v3963, %v4022
        %v4043 = vmul.f32 %v3966, %v4022
        %v4044 = vmul.f32 %v3971, %v4022
        %v4045 = vmul.f32 %v3974, %v4022
        %v4046 = vmul.f32 %v3979, %v4022
        %v4047 = vmul.f32 %v3982, %v4022
        %v4048 = vmul.f32 %v3987, %v4022
        %v4049 = vmul.f32 %v3990, %v4022
        %v4050 = vmul.f32 %v3995, %v4022
        %v4051 = vmul.f32 %v3998, %v4022
        %v4052 = vmul.f32 %v4003, %v4022
        %v4053 = vmul.f32 %v4006, %v4022
        %v4054 = vmul.f32 %v4011, %v4022
        %v4055 = vmul.f32 %v4014, %v4022
        %v4056 = vld [vmem:[%s6] sm:$0x1]
        %v4058 = vlaneseq
        %v4059 = vshrl.u32 %v4058, 7
        %v4060 = vsub.s32 0, %v4059
        %v4061 = vrot.slane %v4056, %v4060
        %v4063 = vadd.f32 %v4024, %v4061
        %v4064 = vadd.f32 %v4025, %v4061
        %v4065 = vadd.f32 %v4026, %v4061
        %v4066 = vadd.f32 %v4027, %v4061
        %v4067 = vadd.f32 %v4028, %v4061
        %v4068 = vadd.f32 %v4029, %v4061
        %v4069 = vadd.f32 %v4030, %v4061
        %v4070 = vadd.f32 %v4031, %v4061
        %v4071 = vadd.f32 %v4032, %v4061
        %v4072 = vadd.f32 %v4033, %v4061
        %v4073 = vadd.f32 %v4034, %v4061
        %v4074 = vadd.f32 %v4035, %v4061
        %v4075 = vadd.f32 %v4036, %v4061
        %v4076 = vadd.f32 %v4037, %v4061
        %v4077 = vadd.f32 %v4038, %v4061
        %v4078 = vadd.f32 %v4039, %v4061
        %v4079 = vadd.f32 %v4040, %v4061
        %v4080 = vadd.f32 %v4041, %v4061
        %v4081 = vadd.f32 %v4042, %v4061
        %v4082 = vadd.f32 %v4043, %v4061
        %v4083 = vadd.f32 %v4044, %v4061
        %v4084 = vadd.f32 %v4045, %v4061
        %v4085 = vadd.f32 %v4046, %v4061
        %v4086 = vadd.f32 %v4047, %v4061
        %v4087 = vadd.f32 %v4048, %v4061
        %v4088 = vadd.f32 %v4049, %v4061
        %v4089 = vadd.f32 %v4050, %v4061
        %v4090 = vadd.f32 %v4051, %v4061
        %v4091 = vadd.f32 %v4052, %v4061
        %v4092 = vadd.f32 %v4053, %v4061
        %v4093 = vadd.f32 %v4054, %v4061
        %v4094 = vadd.f32 %v4055, %v4061
        %v4095 = vunpack.c.l.bf16 %v3425
        %v4096 = vunpack.c.h.bf16 %v3425
        %v4097 = vunpack.c.l.bf16 %v3426
        %v4098 = vunpack.c.h.bf16 %v3426
        %v4099 = vunpack.c.l.bf16 %v3427
        %v4100 = vunpack.c.h.bf16 %v3427
        %v4101 = vunpack.c.l.bf16 %v3428
        %v4102 = vunpack.c.h.bf16 %v3428
        %v4103 = vunpack.c.l.bf16 %v3429
        %v4104 = vunpack.c.h.bf16 %v3429
        %v4105 = vunpack.c.l.bf16 %v3430
        %v4106 = vunpack.c.h.bf16 %v3430
        %v4107 = vunpack.c.l.bf16 %v3431
        %v4108 = vunpack.c.h.bf16 %v3431
        %v4109 = vunpack.c.l.bf16 %v3432
        %v4110 = vunpack.c.h.bf16 %v3432
        %v4111 = vunpack.c.l.bf16 %v3433
        %v4112 = vunpack.c.h.bf16 %v3433
        %v4113 = vunpack.c.l.bf16 %v3434
        %v4114 = vunpack.c.h.bf16 %v3434
        %v4115 = vunpack.c.l.bf16 %v3435
        %v4116 = vunpack.c.h.bf16 %v3435
        %v4117 = vunpack.c.l.bf16 %v3436
        %v4118 = vunpack.c.h.bf16 %v3436
        %v4119 = vunpack.c.l.bf16 %v3437
        %v4120 = vunpack.c.h.bf16 %v3437
        %v4121 = vunpack.c.l.bf16 %v3438
        %v4122 = vunpack.c.h.bf16 %v3438
        %v4123 = vunpack.c.l.bf16 %v3439
        %v4124 = vunpack.c.h.bf16 %v3439
        %v4125 = vunpack.c.l.bf16 %v3440
        %v4126 = vunpack.c.h.bf16 %v3440
        %v4127 = vadd.f32 %v4063, %v4095
        %v4128 = vadd.f32 %v4064, %v4096
        %v4129 = vadd.f32 %v4065, %v4097
        %v4130 = vadd.f32 %v4066, %v4098
        %v4131 = vadd.f32 %v4067, %v4099
        %v4132 = vadd.f32 %v4068, %v4100
        %v4133 = vadd.f32 %v4069, %v4101
        %v4134 = vadd.f32 %v4070, %v4102
        %v4135 = vadd.f32 %v4071, %v4103
        %v4136 = vadd.f32 %v4072, %v4104
        %v4137 = vadd.f32 %v4073, %v4105
        %v4138 = vadd.f32 %v4074, %v4106
        %v4139 = vadd.f32 %v4075, %v4107
        %v4140 = vadd.f32 %v4076, %v4108
        %v4141 = vadd.f32 %v4077, %v4109
        %v4142 = vadd.f32 %v4078, %v4110
        %v4143 = vadd.f32 %v4079, %v4111
        %v4144 = vadd.f32 %v4080, %v4112
        %v4145 = vadd.f32 %v4081, %v4113
        %v4146 = vadd.f32 %v4082, %v4114
        %v4147 = vadd.f32 %v4083, %v4115
        %v4148 = vadd.f32 %v4084, %v4116
        %v4149 = vadd.f32 %v4085, %v4117
        %v4150 = vadd.f32 %v4086, %v4118
        %v4151 = vadd.f32 %v4087, %v4119
        %v4152 = vadd.f32 %v4088, %v4120
        %v4153 = vadd.f32 %v4089, %v4121
        %v4154 = vadd.f32 %v4090, %v4122
        %v4155 = vadd.f32 %v4091, %v4123
        %v4156 = vadd.f32 %v4092, %v4124
        %v4157 = vadd.f32 %v4093, %v4125
        %v4158 = vadd.f32 %v4094, %v4126
        %v4159 = vpack.c.bf16 %v4128, %v4127
        %v4160 = vpack.c.bf16 %v4130, %v4129
        %v4161 = vpack.c.bf16 %v4132, %v4131
        %v4162 = vpack.c.bf16 %v4134, %v4133
        %v4163 = vpack.c.bf16 %v4136, %v4135
        %v4164 = vpack.c.bf16 %v4138, %v4137
        %v4165 = vpack.c.bf16 %v4140, %v4139
        %v4166 = vpack.c.bf16 %v4142, %v4141
        %v4167 = vpack.c.bf16 %v4144, %v4143
        %v4168 = vpack.c.bf16 %v4146, %v4145
        %v4169 = vpack.c.bf16 %v4148, %v4147
        %v4170 = vpack.c.bf16 %v4150, %v4149
        %v4171 = vpack.c.bf16 %v4152, %v4151
        %v4172 = vpack.c.bf16 %v4154, %v4153
        %v4173 = vpack.c.bf16 %v4156, %v4155
        %v4174 = vpack.c.bf16 %v4158, %v4157
        %v4191 = vunpack.c.l.b16 %v4159
        %v4192 = vunpack.c.h.b16 %v4159
        %v4193 = vunpack.c.l.b16 %v4160
        %v4194 = vunpack.c.h.b16 %v4160
        %v4195 = vunpack.c.l.b16 %v4161
        %v4196 = vunpack.c.h.b16 %v4161
        %v4197 = vunpack.c.l.b16 %v4162
        %v4198 = vunpack.c.h.b16 %v4162
        %v4199 = vunpack.c.l.b16 %v4163
        %v4200 = vunpack.c.h.b16 %v4163
        %v4201 = vunpack.c.l.b16 %v4164
        %v4202 = vunpack.c.h.b16 %v4164
        %v4203 = vunpack.c.l.b16 %v4165
        %v4204 = vunpack.c.h.b16 %v4165
        %v4205 = vunpack.c.l.b16 %v4166
        %v4206 = vunpack.c.h.b16 %v4166
        %v4207 = vunpack.c.l.b16 %v4167
        %v4208 = vunpack.c.h.b16 %v4167
        %v4209 = vunpack.c.l.b16 %v4168
        %v4210 = vunpack.c.h.b16 %v4168
        %v4211 = vunpack.c.l.b16 %v4169
        %v4212 = vunpack.c.h.b16 %v4169
        %v4213 = vunpack.c.l.b16 %v4170
        %v4214 = vunpack.c.h.b16 %v4170
        %v4215 = vunpack.c.l.b16 %v4171
        %v4216 = vunpack.c.h.b16 %v4171
        %v4217 = vunpack.c.l.b16 %v4172
        %v4218 = vunpack.c.h.b16 %v4172
        %v4219 = vunpack.c.l.b16 %v4173
        %v4220 = vunpack.c.h.b16 %v4173
        %v4221 = vunpack.c.l.b16 %v4174
        %v4222 = vunpack.c.h.b16 %v4174
        %v4223 = vpack.c.b16 %v4191, %v4191
        %v4224 = vpack.c.b16 %v4192, %v4192
        %v4225 = vpack.c.b16 %v4193, %v4193
        %v4226 = vpack.c.b16 %v4194, %v4194
        %v4227 = vpack.c.b16 %v4195, %v4195
        %v4228 = vpack.c.b16 %v4196, %v4196
        %v4229 = vpack.c.b16 %v4197, %v4197
        %v4230 = vpack.c.b16 %v4198, %v4198
        %v4231 = vpack.c.b16 %v4199, %v4199
        %v4232 = vpack.c.b16 %v4200, %v4200
        %v4233 = vpack.c.b16 %v4201, %v4201
        %v4234 = vpack.c.b16 %v4202, %v4202
        %v4235 = vpack.c.b16 %v4203, %v4203
        %v4236 = vpack.c.b16 %v4204, %v4204
        %v4237 = vpack.c.b16 %v4205, %v4205
        %v4238 = vpack.c.b16 %v4206, %v4206
        %v4239 = vpack.c.b16 %v4207, %v4207
        %v4240 = vpack.c.b16 %v4208, %v4208
        %v4241 = vpack.c.b16 %v4209, %v4209
        %v4242 = vpack.c.b16 %v4210, %v4210
        %v4243 = vpack.c.b16 %v4211, %v4211
        %v4244 = vpack.c.b16 %v4212, %v4212
        %v4245 = vpack.c.b16 %v4213, %v4213
        %v4246 = vpack.c.b16 %v4214, %v4214
        %v4247 = vpack.c.b16 %v4215, %v4215
        %v4248 = vpack.c.b16 %v4216, %v4216
        %v4249 = vpack.c.b16 %v4217, %v4217
        %v4250 = vpack.c.b16 %v4218, %v4218
        %v4251 = vpack.c.b16 %v4219, %v4219
        %v4252 = vpack.c.b16 %v4220, %v4220
        %v4253 = vpack.c.b16 %v4221, %v4221
        %v4254 = vpack.c.b16 %v4222, %v4222
        %4287 = vst [vmem:[%s285] sm:$0xf] %v4223
        %4288 = vst [vmem:[%s285 + $0x4] sm:$0xf] %v4224
        %4289 = vst [vmem:[%s285 + $0x8] sm:$0xf] %v4225
        %4290 = vst [vmem:[%s285 + $0xc] sm:$0xf] %v4226
        %4291 = vst [vmem:[%s285 + $0x10] sm:$0xf] %v4227
        %4292 = vst [vmem:[%s285 + $0x14] sm:$0xf] %v4228
        %4293 = vst [vmem:[%s285 + $0x18] sm:$0xf] %v4229
        %4294 = vst [vmem:[%s285 + $0x1c] sm:$0xf] %v4230
        %4295 = vst [vmem:[%s285 + $0x20] sm:$0xf] %v4231
        %4296 = vst [vmem:[%s285 + $0x24] sm:$0xf] %v4232
        %4297 = vst [vmem:[%s285 + $0x28] sm:$0xf] %v4233
        %4298 = vst [vmem:[%s285 + $0x2c] sm:$0xf] %v4234
        %4299 = vst [vmem:[%s285 + $0x30] sm:$0xf] %v4235
        %4300 = vst [vmem:[%s285 + $0x34] sm:$0xf] %v4236
        %4301 = vst [vmem:[%s285 + $0x38] sm:$0xf] %v4237
        %4302 = vst [vmem:[%s285 + $0x3c] sm:$0xf] %v4238
        %4303 = vst [vmem:[%s285 + $0x40] sm:$0xf] %v4239
        %4304 = vst [vmem:[%s285 + $0x44] sm:$0xf] %v4240
        %4305 = vst [vmem:[%s285 + $0x48] sm:$0xf] %v4241
        %4306 = vst [vmem:[%s285 + $0x4c] sm:$0xf] %v4242
        %4307 = vst [vmem:[%s285 + $0x50] sm:$0xf] %v4243
        %4308 = vst [vmem:[%s285 + $0x54] sm:$0xf] %v4244
        %4309 = vst [vmem:[%s285 + $0x58] sm:$0xf] %v4245
        %4310 = vst [vmem:[%s285 + $0x5c] sm:$0xf] %v4246
        %4311 = vst [vmem:[%s285 + $0x60] sm:$0xf] %v4247
        %4312 = vst [vmem:[%s285 + $0x64] sm:$0xf] %v4248
        %4313 = vst [vmem:[%s285 + $0x68] sm:$0xf] %v4249
        %4314 = vst [vmem:[%s285 + $0x6c] sm:$0xf] %v4250
        %4315 = vst [vmem:[%s285 + $0x70] sm:$0xf] %v4251
        %4316 = vst [vmem:[%s285 + $0x74] sm:$0xf] %v4252
        %4317 = vst [vmem:[%s285 + $0x78] sm:$0xf] %v4253
        %4318 = vst [vmem:[%s285 + $0x7c] sm:$0xf] %v4254
        %s4319 = sand.u32 %s195, 1
        %s4320 = scalar_lea.sflag [#allocation4], %s4319
        %s4321 = sand.u32 %s195, 1
        %s4322 = smul.addr %s4321, 128
        %s4323 = scalar_lea.vmem [#allocation3], %s4322
        // Predicated region
        $region49: #{tpu_custom_call.1} parent=47 // pred_check
          %p4324 = pneg %p205
        $region50: #{tpu_custom_call.1} parent=47 // pred_check_branch
          %4326 = sbr.rel (%p4324) target = $region52
        $region51: #{tpu_custom_call.1} parent=47 // pred_region
          %s4327 = smul.u32 32, %s26
          %s4329 = ssub.s32 2048, 2048
          %4330 = vsyncadd %s4320, %s4329
          %s4331 = smul.addr %s25, 32
          %s4332 = sadd.s32 %s4327, %s4331
          %s4333 = smul.addr %s4332, 64
          %s4334 = scalar_lea.hbm %s7, %s4333
          %s4335 = sshll.u32 %s4323, 4
          %s4336 = int_to_ptr.vmem [resolvable:$true] %s4335
          %4341 = dma.vmem_to_hbm [thread:$0]  %s4336, 2048, %s4334, %s4320, 64, 64, 4
        $region52: #{tpu_custom_call.1} parent=47 // pred_fallthru
          _
      $region48: #{tpu_custom_call.1} parent=5 // pred_fallthru
        _
      %p4342 = scmp.le.s32.totalorder 2, %s16
      // Predicated region
      $region53: #{tpu_custom_call.1} parent=5 // pred_check
        %p4343 = pneg %p4342
      $region54: #{tpu_custom_call.1} parent=5 // pred_check_branch
        %4345 = sbr.rel (%p4343) target = $region56
      $region55: #{tpu_custom_call.1} parent=5 // pred_region
        %s4346 = ssub.s32 %s16, 2
        // Predicated region
        $region57: #{tpu_custom_call.1} parent=55 // pred_check
          %p4347 = pneg %p211
        $region58: #{tpu_custom_call.1} parent=55 // pred_check_branch
          %4349 = sbr.rel (%p4347) target = $region60
        $region59: #{tpu_custom_call.1} parent=55 // pred_region
          %s4350 = sand.u32 %s196, 1
          %s4351 = scalar_lea.sflag [#allocation4], %s4350
          %s4352 = sand.u32 %s196, 1
          %s4353 = smul.addr %s4352, 128
          %s4354 = scalar_lea.vmem [#allocation3], %s4353
          %4355 = dma.done %s4351, 2048
        $region60: #{tpu_custom_call.1} parent=55 // pred_fallthru
          _
      $region56: #{tpu_custom_call.1} parent=5 // pred_fallthru
        _
    $region6: #{tpu_custom_call.1} parent=1 // loop_footer
      %s20 = sadd.s32 1, %s16
    $region7: #{tpu_custom_call.1} parent=1 // loop_footer_branch
      %15 = sbr.rel target = $region3
    $region8: #{tpu_custom_call.1} parent=1 // loop_exit
      _
    %4356 = vsyncpa [#allocation4], 1
    %s4357 = scalar_lea.sflag [#allocation4], 1
    %4358 = vsyncpa %s4357, 1

</llo_original>
